<compile_context>
chip_gen: v6e
topology: v6e:2x2x1
jax: 0.10.0
libtpu: 0.0.40
codegen_flags: <defaults>
</compile_context>

<pallas_src>
import jax
import jax.numpy as jnp
from jax.experimental import pallas as pl
from jax.experimental.pallas import tpu as pltpu

EPS = 1e-12          # matches torch.nn.functional.normalize default eps
EPS_SQ = EPS * EPS   # x * rsqrt(max(||x||^2, eps^2)) == x / max(||x||, eps)


def _attention_kernel(v_ref, a_ref,
                      wa1_ref, ba1_ref, wa2_ref, ba2_ref,
                      wv1_ref, bv1_ref, wv2_ref, bv2_ref,
                      av_ref, atten_ref, vout_ref):
    B = v_ref.shape[0]
    C = v_ref.shape[1]

    # ---- visual branch: L2-normalize every spatial token over channels -----
    # Kept in the backbone's native (B, C, HW) layout; channel reductions run
    # on the sublane axis, so no transpose is needed anywhere.
    u = v_ref[...]                                              # (B, C, HW) f32
    v_n2 = jnp.sum(u * u, axis=1, keepdims=True)                # (B, 1, HW)
    un = u * jax.lax.rsqrt(jnp.maximum(v_n2, EPS_SQ))           # F.normalize over C

    # ---- audio branch: AdaptiveMaxPool2d((1,1)) == max over spatial (done
    # in-kernel; layout-invariant), then a batched 2-layer MLP --------------
    a_fea = jnp.max(a_ref[...], axis=2)                         # (B, C) f32
    a = jnp.dot(a_fea.astype(jnp.bfloat16), wa1_ref[...],
                preferred_element_type=jnp.float32) + ba1_ref[...]
    a = jnp.maximum(a, 0.0)                                     # ReLU
    a = jnp.dot(a.astype(jnp.bfloat16), wa2_ref[...],
                preferred_element_type=jnp.float32) + ba2_ref[...]
    a = jnp.maximum(a, 0.0)                                     # (B, C)
    a_n2 = jnp.sum(a * a, axis=1, keepdims=True)                # (B, 1)
    a_n = a * jax.lax.rsqrt(jnp.maximum(a_n2, EPS_SQ))          # (B, C), F.normalize
    a3 = a_n.reshape(B, 1, C)                                   # lane dim (C) preserved

    # ---- attention: s[b,h] = <un[b,:,h], a_n[b,:]> via a batched MXU matmul,
    # ONE numerically-stable softmax over HW (exact divide), reused everywhere.
    s3 = jnp.einsum('bxc,bch->bxh', a3, un,
                    preferred_element_type=jnp.float32)         # (B, 1, HW) f32
    m = jnp.max(s3, axis=2, keepdims=True)                      # (B, 1, 1)
    e = jnp.exp(s3 - m)                                         # (B, 1, HW)
    p3 = e / jnp.sum(e, axis=2, keepdims=True)                  # softmax, exact divide
    atten_ref[...] = p3                                         # (B, 1, HW) store

    # weighted sum z[b,c] = sum_h p[b,h] * un[b,c,h]  (same probabilities)
    z = jnp.sum(un * p3, axis=2)                                # (B, C)

    # ---- visual MLP on the attended vectors (batched over B) --------------
    vv = jnp.dot(z.astype(jnp.bfloat16), wv1_ref[...],
                 preferred_element_type=jnp.float32) + bv1_ref[...]
    vv = jnp.maximum(vv, 0.0)
    vv = jnp.dot(vv.astype(jnp.bfloat16), wv2_ref[...],
                 preferred_element_type=jnp.float32) + bv2_ref[...]
    vv = jnp.maximum(vv, 0.0)                                   # (B, C)

    # ---- av[b] = || vv[b] - a_fea[b] ||_2  (torch.norm(v - a_fea, dim=1)) --
    diff = vv - a_fea
    av_ref[...] = jnp.sqrt(jnp.sum(diff * diff, axis=1, keepdims=True))  # (B, 1)
    vout_ref[...] = vv                                          # (B, C)


def init_params(key, C=512):
    """PyTorch-Linear-style init (uniform +-1/sqrt(fan_in)).

    Weights are returned pre-transposed as (in, out) and ALREADY in bf16 (the
    kernel streams them as-is; converting here, once, avoids a per-call
    f32->bf16 convert fusion and its HBM round-trip).  Biases stay f32 (1, C).
    """
    ks = jax.random.split(key, 8)
    bound = 1.0 / float(jnp.sqrt(jnp.float32(C)))

    def lin(kw, kb):
        w = jax.random.uniform(kw, (C, C), jnp.float32, -bound, bound)  # (in, out)
        b = jax.random.uniform(kb, (1, C), jnp.float32, -bound, bound)
        return w.astype(jnp.bfloat16), b

    wa1, ba1 = lin(ks[0], ks[1])
    wa2, ba2 = lin(ks[2], ks[3])
    wv1, bv1 = lin(ks[4], ks[5])
    wv2, bv2 = lin(ks[6], ks[7])
    return dict(wa1=wa1, ba1=ba1, wa2=wa2, ba2=ba2,
                wv1=wv1, bv1=bv1, wv2=wv2, bv2=bv2)
    # NOTE: self.fc_av and self.pooling_a are unused in the PyTorch forward.


@jax.jit
def attention_net_forward(v_input, a_input, params):
    # TODO(synk): visual_net / audio_net are externally-supplied CNN backbones in
    # the PyTorch module; they are modeled here as identity feature extractors,
    # so the inputs are the 512-channel NCHW feature maps.
    B, C, H, W = v_input.shape
    Ba, Ca, Ha, Wa = a_input.shape
    HW, Sa = H * W, Ha * Wa

    # Contiguous (free) reshapes only — no wrapper transposes / convert ops.
    v_fea = v_input.reshape(B, C, HW)
    a_sp = a_input.reshape(Ba, Ca, Sa)

    vmem = pl.BlockSpec(memory_space=pltpu.MemorySpace.VMEM)  # whole array in VMEM

    # Advisory cost estimate for XLA's scheduler (latency-bound micro-kernel).
    flops = 2 * B * (4 * C * C + 2 * C * HW)
    transcendentals = B * (2 * HW + 4)
    bytes_accessed = (4 * C * C * 2           # bf16 weights (dominant)
                      + 4 * C * 4             # f32 biases
                      + B * C * HW * 4 + B * C * Sa * 4   # activations in
                      + (B * C + B * HW + B) * 4)         # outputs

    av, atten, vout = pl.pallas_call(
        _attention_kernel,
        out_shape=(jax.ShapeDtypeStruct((B, 1), jnp.float32),     # av
                   jax.ShapeDtypeStruct((B, 1, HW), jnp.float32), # av_atten
                   jax.ShapeDtypeStruct((B, C), jnp.float32)),    # v
        in_specs=[vmem] * 10,
        out_specs=(vmem, vmem, vmem),
        # Single grid step, everything resident in VMEM (~2.2 MiB with bf16
        # weights); nothing to pipeline at this size and no multi-TC split
        # (the kernel is weight-DMA-bound, splitting would duplicate the DMA).
        # Larger B is nearly free up to the MXU row count (128 v5e / 256 v6e+).
        compiler_params=pltpu.CompilerParams(vmem_limit_bytes=16 * 1024 * 1024),
        cost_estimate=pl.CostEstimate(flops=flops,
                                      transcendentals=transcendentals,
                                      bytes_accessed=bytes_accessed),
    )(v_fea, a_sp,
      params['wa1'], params['ba1'], params['wa2'], params['ba2'],
      params['wv1'], params['bv1'], params['wv2'], params['bv2'])

    # (B, 1, HW) -> (B, HW, 1) is a contiguous (free) reshape; matches PyTorch.
    return av, atten.reshape(B, HW, 1), vout


if __name__ == "__main__":
    key = jax.random.PRNGKey(0)
    k_v, k_a, k_p = jax.random.split(key, 3)

    # Small shapes consistent with the module: C must be 512 (fc layers),
    # spatial kept tiny.
    B, C, H, W = 2, 512, 4, 4
    Ha, Wa = 4, 4

    v_input = jax.random.normal(k_v, (B, C, H, W), jnp.float32)
    a_input = jax.random.normal(k_a, (B, C, Ha, Wa), jnp.float32)
    params = init_params(k_p, C)

    av, av_atten, v_out = attention_net_forward(v_input, a_input, params)
    jax.block_until_ready((av, av_atten, v_out))

    assert av.shape == (B, 1)
    assert av_atten.shape == (B, H * W, 1)
    assert v_out.shape == (B, C)
    assert bool(jnp.all(jnp.isfinite(av_atten)))
    # softmax sanity: attention weights sum to 1 over the HW axis
    assert bool(jnp.allclose(jnp.sum(av_atten, axis=1), 1.0, atol=1e-5))
    print("KERNEL_OK")
</pallas_src>

<mosaic_0001>
module attributes {stable_mosaic.version = 11 : i64} {
  func.func @_attention_kernel(%arg0: memref<2x512x16xf32, #tpu.memory_space<vmem>>, %arg1: memref<2x512x16xf32, #tpu.memory_space<vmem>>, %arg2: memref<512x512xbf16, #tpu.memory_space<vmem>>, %arg3: memref<1x512xf32, #tpu.memory_space<vmem>>, %arg4: memref<512x512xbf16, #tpu.memory_space<vmem>>, %arg5: memref<1x512xf32, #tpu.memory_space<vmem>>, %arg6: memref<512x512xbf16, #tpu.memory_space<vmem>>, %arg7: memref<1x512xf32, #tpu.memory_space<vmem>>, %arg8: memref<512x512xbf16, #tpu.memory_space<vmem>>, %arg9: memref<1x512xf32, #tpu.memory_space<vmem>>, %arg10: memref<2x1xf32, #tpu.memory_space<vmem>>, %arg11: memref<2x1x16xf32, #tpu.memory_space<vmem>>, %arg12: memref<2x512xf32, #tpu.memory_space<vmem>>) attributes {dimension_semantics = [], scalar_prefetch = 0 : i64, scratch_operands = 0 : i64, tpu.core_type = #tpu.core_type<tc>} {
    %c0 = arith.constant 0 : index
    %c0_0 = arith.constant 0 : index
    %c0_1 = arith.constant 0 : index
    %0 = vector.load %arg0[%c0, %c0_0, %c0_1] : memref<2x512x16xf32, #tpu.memory_space<vmem>>, vector<2x512x16xf32>
    %1 = arith.mulf %0, %0 : vector<2x512x16xf32>
    %cst = arith.constant dense<0.000000e+00> : vector<2x16xf32>
    %2 = vector.multi_reduction <add>, %1, %cst [1] : vector<2x512x16xf32> to vector<2x16xf32>
    %3 = vector.shape_cast %2 : vector<2x16xf32> to vector<2x1x16xf32>
    %cst_2 = arith.constant 1.000000e-24 : f32
    %4 = vector.broadcast %cst_2 : f32 to vector<2x1x16xf32>
    %5 = arith.maximumf %3, %4 : vector<2x1x16xf32>
    %6 = math.rsqrt %5 : vector<2x1x16xf32>
    %7 = vector.broadcast %6 : vector<2x1x16xf32> to vector<2x512x16xf32>
    %8 = arith.mulf %0, %7 : vector<2x512x16xf32>
    %c0_3 = arith.constant 0 : index
    %c0_4 = arith.constant 0 : index
    %c0_5 = arith.constant 0 : index
    %9 = vector.load %arg1[%c0_3, %c0_4, %c0_5] : memref<2x512x16xf32, #tpu.memory_space<vmem>>, vector<2x512x16xf32>
    %cst_6 = arith.constant dense<0xFF800000> : vector<2x512xf32>
    %10 = vector.multi_reduction <maximumf>, %9, %cst_6 [2] : vector<2x512x16xf32> to vector<2x512xf32>
    %11 = arith.truncf %10 : vector<2x512xf32> to vector<2x512xbf16>
    %c0_7 = arith.constant 0 : index
    %c0_8 = arith.constant 0 : index
    %12 = vector.load %arg2[%c0_7, %c0_8] : memref<512x512xbf16, #tpu.memory_space<vmem>>, vector<512x512xbf16>
    %cst_9 = arith.constant dense<0.000000e+00> : vector<2x512xf32>
    %13 = tpu.matmul %11, %12, %cst_9 {dimension_numbers = #tpu.dot_dimension_numbers<[1], [0], [0], [1], [0, 0, 1, 1], [], []>} : vector<2x512xbf16>, vector<512x512xbf16>, vector<2x512xf32> -> vector<2x512xf32>
    %c0_10 = arith.constant 0 : index
    %c0_11 = arith.constant 0 : index
    %14 = vector.load %arg3[%c0_10, %c0_11] : memref<1x512xf32, #tpu.memory_space<vmem>>, vector<1x512xf32>
    %15 = vector.broadcast %14 : vector<1x512xf32> to vector<2x512xf32>
    %16 = arith.addf %13, %15 : vector<2x512xf32>
    %cst_12 = arith.constant 0.000000e+00 : f32
    %17 = vector.broadcast %cst_12 : f32 to vector<2x512xf32>
    %18 = arith.maximumf %16, %17 : vector<2x512xf32>
    %19 = arith.truncf %18 : vector<2x512xf32> to vector<2x512xbf16>
    %c0_13 = arith.constant 0 : index
    %c0_14 = arith.constant 0 : index
    %20 = vector.load %arg4[%c0_13, %c0_14] : memref<512x512xbf16, #tpu.memory_space<vmem>>, vector<512x512xbf16>
    %cst_15 = arith.constant dense<0.000000e+00> : vector<2x512xf32>
    %21 = tpu.matmul %19, %20, %cst_15 {dimension_numbers = #tpu.dot_dimension_numbers<[1], [0], [0], [1], [0, 0, 1, 1], [], []>} : vector<2x512xbf16>, vector<512x512xbf16>, vector<2x512xf32> -> vector<2x512xf32>
    %c0_16 = arith.constant 0 : index
    %c0_17 = arith.constant 0 : index
    %22 = vector.load %arg5[%c0_16, %c0_17] : memref<1x512xf32, #tpu.memory_space<vmem>>, vector<1x512xf32>
    %23 = vector.broadcast %22 : vector<1x512xf32> to vector<2x512xf32>
    %24 = arith.addf %21, %23 : vector<2x512xf32>
    %cst_18 = arith.constant 0.000000e+00 : f32
    %25 = vector.broadcast %cst_18 : f32 to vector<2x512xf32>
    %26 = arith.maximumf %24, %25 : vector<2x512xf32>
    %27 = arith.mulf %26, %26 : vector<2x512xf32>
    %cst_19 = arith.constant dense<0.000000e+00> : vector<2xf32>
    %28 = vector.multi_reduction <add>, %27, %cst_19 [1] : vector<2x512xf32> to vector<2xf32>
    %29 = vector.shape_cast %28 : vector<2xf32> to vector<2x1xf32>
    %cst_20 = arith.constant 1.000000e-24 : f32
    %30 = vector.broadcast %cst_20 : f32 to vector<2x1xf32>
    %31 = arith.maximumf %29, %30 : vector<2x1xf32>
    %32 = math.rsqrt %31 : vector<2x1xf32>
    %33 = vector.broadcast %32 : vector<2x1xf32> to vector<2x512xf32>
    %34 = arith.mulf %26, %33 : vector<2x512xf32>
    %35 = vector.shape_cast %34 : vector<2x512xf32> to vector<2x1x512xf32>
    "tpu.trace_start"() <{level = 10 : i32, message = "bxc,bch->bxh"}> : () -> ()
    %cst_21 = arith.constant dense<0.000000e+00> : vector<2x1x16xf32>
    %36 = tpu.matmul %35, %8, %cst_21 {dimension_numbers = #tpu.dot_dimension_numbers<[2], [1], [1], [2], [0, 0, 0, 1, 1, 2], [0], [0]>} : vector<2x1x512xf32>, vector<2x512x16xf32>, vector<2x1x16xf32> -> vector<2x1x16xf32>
    "tpu.trace_stop"() : () -> ()
    %cst_22 = arith.constant dense<0xFF800000> : vector<2x1xf32>
    %37 = vector.multi_reduction <maximumf>, %36, %cst_22 [2] : vector<2x1x16xf32> to vector<2x1xf32>
    %38 = vector.shape_cast %37 : vector<2x1xf32> to vector<2x1x1xf32>
    %39 = vector.broadcast %38 : vector<2x1x1xf32> to vector<2x1x16xf32>
    %40 = arith.subf %36, %39 : vector<2x1x16xf32>
    %41 = math.exp %40 : vector<2x1x16xf32>
    %cst_23 = arith.constant dense<0.000000e+00> : vector<2x1xf32>
    %42 = vector.multi_reduction <add>, %41, %cst_23 [2] : vector<2x1x16xf32> to vector<2x1xf32>
    %43 = vector.shape_cast %42 : vector<2x1xf32> to vector<2x1x1xf32>
    %44 = vector.broadcast %43 : vector<2x1x1xf32> to vector<2x1x16xf32>
    %45 = arith.divf %41, %44 : vector<2x1x16xf32>
    %c0_24 = arith.constant 0 : index
    %c0_25 = arith.constant 0 : index
    %c0_26 = arith.constant 0 : index
    %46 = vector.load %arg11[%c0_24, %c0_25, %c0_26] : memref<2x1x16xf32, #tpu.memory_space<vmem>>, vector<2x1x16xf32>
    tpu.vector_store %arg11[%c0_24, %c0_25, %c0_26], %45 {strides = array<i32>} : memref<2x1x16xf32, #tpu.memory_space<vmem>>, vector<2x1x16xf32>,
    %47 = vector.broadcast %45 : vector<2x1x16xf32> to vector<2x512x16xf32>
    %48 = arith.mulf %8, %47 : vector<2x512x16xf32>
    %cst_27 = arith.constant dense<0.000000e+00> : vector<2x512xf32>
    %49 = vector.multi_reduction <add>, %48, %cst_27 [2] : vector<2x512x16xf32> to vector<2x512xf32>
    %50 = arith.truncf %49 : vector<2x512xf32> to vector<2x512xbf16>
    %c0_28 = arith.constant 0 : index
    %c0_29 = arith.constant 0 : index
    %51 = vector.load %arg6[%c0_28, %c0_29] : memref<512x512xbf16, #tpu.memory_space<vmem>>, vector<512x512xbf16>
    %cst_30 = arith.constant dense<0.000000e+00> : vector<2x512xf32>
    %52 = tpu.matmul %50, %51, %cst_30 {dimension_numbers = #tpu.dot_dimension_numbers<[1], [0], [0], [1], [0, 0, 1, 1], [], []>} : vector<2x512xbf16>, vector<512x512xbf16>, vector<2x512xf32> -> vector<2x512xf32>
    %c0_31 = arith.constant 0 : index
    %c0_32 = arith.constant 0 : index
    %53 = vector.load %arg7[%c0_31, %c0_32] : memref<1x512xf32, #tpu.memory_space<vmem>>, vector<1x512xf32>
    %54 = vector.broadcast %53 : vector<1x512xf32> to vector<2x512xf32>
    %55 = arith.addf %52, %54 : vector<2x512xf32>
    %cst_33 = arith.constant 0.000000e+00 : f32
    %56 = vector.broadcast %cst_33 : f32 to vector<2x512xf32>
    %57 = arith.maximumf %55, %56 : vector<2x512xf32>
    %58 = arith.truncf %57 : vector<2x512xf32> to vector<2x512xbf16>
    %c0_34 = arith.constant 0 : index
    %c0_35 = arith.constant 0 : index
    %59 = vector.load %arg8[%c0_34, %c0_35] : memref<512x512xbf16, #tpu.memory_space<vmem>>, vector<512x512xbf16>
    %cst_36 = arith.constant dense<0.000000e+00> : vector<2x512xf32>
    %60 = tpu.matmul %58, %59, %cst_36 {dimension_numbers = #tpu.dot_dimension_numbers<[1], [0], [0], [1], [0, 0, 1, 1], [], []>} : vector<2x512xbf16>, vector<512x512xbf16>, vector<2x512xf32> -> vector<2x512xf32>
    %c0_37 = arith.constant 0 : index
    %c0_38 = arith.constant 0 : index
    %61 = vector.load %arg9[%c0_37, %c0_38] : memref<1x512xf32, #tpu.memory_space<vmem>>, vector<1x512xf32>
    %62 = vector.broadcast %61 : vector<1x512xf32> to vector<2x512xf32>
    %63 = arith.addf %60, %62 : vector<2x512xf32>
    %cst_39 = arith.constant 0.000000e+00 : f32
    %64 = vector.broadcast %cst_39 : f32 to vector<2x512xf32>
    %65 = arith.maximumf %63, %64 : vector<2x512xf32>
    %66 = arith.subf %65, %10 : vector<2x512xf32>
    %67 = arith.mulf %66, %66 : vector<2x512xf32>
    %cst_40 = arith.constant dense<0.000000e+00> : vector<2xf32>
    %68 = vector.multi_reduction <add>, %67, %cst_40 [1] : vector<2x512xf32> to vector<2xf32>
    %69 = vector.shape_cast %68 : vector<2xf32> to vector<2x1xf32>
    %70 = math.sqrt %69 : vector<2x1xf32>
    %c0_41 = arith.constant 0 : index
    %c0_42 = arith.constant 0 : index
    %71 = vector.load %arg10[%c0_41, %c0_42] : memref<2x1xf32, #tpu.memory_space<vmem>>, vector<2x1xf32>
    tpu.vector_store %arg10[%c0_41, %c0_42], %70 {strides = array<i32>} : memref<2x1xf32, #tpu.memory_space<vmem>>, vector<2x1xf32>,
    %c0_43 = arith.constant 0 : index
    %c0_44 = arith.constant 0 : index
    %72 = vector.load %arg12[%c0_43, %c0_44] : memref<2x512xf32, #tpu.memory_space<vmem>>, vector<2x512xf32>
    tpu.vector_store %arg12[%c0_43, %c0_44], %65 {strides = array<i32>} : memref<2x512xf32, #tpu.memory_space<vmem>>, vector<2x512xf32>,
    return
  }
}

</mosaic_0001>

<llo_original>
// kernel: attention_net_forward.1
$region0: #{attention_net_forward.1}
  #allocation0 [shape = 'u32[]', space=smem, size = 0x4, offset = 0x4, fixed_abs, tag = 'smem constant byte address 0x4 - core index']
  #allocation1 [shape = 'u32[144,128]{1,0:T(1,128)}', space=vmem, size = 0x12000, scoped, tag = 'internal scratch']
  %s0 = inlined_call_operand.vmem [shape: f32[2,512,16], index: 0, kind: input, shape index: {}]
  %s1 = inlined_call_operand.vmem [shape: f32[2,512,16], index: 1, kind: input, shape index: {}]
  %s2 = inlined_call_operand.vmem [shape: bf16[512,512], index: 2, kind: input, shape index: {}]
  %s3 = inlined_call_operand.vmem [shape: f32[1,512], index: 3, kind: input, shape index: {}]
  %s4 = inlined_call_operand.vmem [shape: bf16[512,512], index: 4, kind: input, shape index: {}]
  %s5 = inlined_call_operand.vmem [shape: f32[1,512], index: 5, kind: input, shape index: {}]
  %s6 = inlined_call_operand.hbm [shape: bf16[512,512], index: 6, kind: input, shape index: {}]
  %s7 = inlined_call_operand.vmem [shape: f32[1,512], index: 7, kind: input, shape index: {}]
  %s8 = inlined_call_operand.hbm [shape: bf16[512,512], index: 8, kind: input, shape index: {}]
  %s9 = inlined_call_operand.vmem [shape: f32[1,512], index: 9, kind: input, shape index: {}]
  %s10 = inlined_call_operand.vmem [shape: f32[2,1], index: 10, kind: output, shape index: {0}]
  %s11 = inlined_call_operand.hbm [shape: f32[2,1,16], index: 11, kind: output, shape index: {1}]
  %s12 = inlined_call_operand.hbm [shape: f32[2,512], index: 12, kind: output, shape index: {2}]
  %13 = xla_tuple %s10, %s11, %s12
  %s14 = sld [smem:[#allocation0]]
  $region74: #{attention_net_forward.1} parent=0
    _
  %s16 = ssub.s32 1, %s14
  %s17 = scalar_select 0, %s16, %s14
  $region1: #{attention_net_forward.1} parent=0
    #allocation2 [shape = 'u8[524288]{0}', space=vmem, size = 0x80000, scoped, tag = 'input window, operand 6, single buffered']
    #allocation3 [shape = 's32[1]{0}', space=sflag, size = 0x4, scoped, tag = 'scoped memory for attention_net_forward.1']
    #allocation4 [shape = 's32[1]{0}', space=sflag, size = 0x4, scoped, tag = 'scoped memory for attention_net_forward.1']
    #allocation5 [shape = 'u8[524288]{0}', space=vmem, size = 0x80000, scoped, tag = 'input window, operand 8, single buffered']
    #allocation6 [shape = 's32[1]{0}', space=sflag, size = 0x4, scoped, tag = 'scoped memory for attention_net_forward.1']
    #allocation7 [shape = 'u8[1024]{0}', space=vmem, size = 0x400, scoped, tag = 'output window, operand 1, single buffered']
    #allocation8 [shape = 'u8[4096]{0}', space=vmem, size = 0x1000, scoped, tag = 'output window, operand 2, single buffered']
    #allocation9 [shape = 's32[1]{0}', space=sflag, size = 0x4, scoped, tag = 'scoped memory for attention_net_forward.1']
    %18 = vsyncpa [#allocation3], 0
    %19 = vsyncpa [#allocation6], 0
    %20 = vsyncpa [#allocation4], 0
    %21 = vsyncpa [#allocation9], 0
    // Predicated region
    $region2: #{attention_net_forward.1} parent=1 // pred_check
      _
    $region3: #{attention_net_forward.1} parent=1 // pred_check_branch
      %23 = sbr.rel (0) target = $region5
    $region4: #{attention_net_forward.1} parent=1 // pred_region
      _
    $region5: #{attention_net_forward.1} parent=1 // pred_fallthru
      _
    // Predicated region
    $region6: #{attention_net_forward.1} parent=1 // pred_check
      _
    $region7: #{attention_net_forward.1} parent=1 // pred_check_branch
      %25 = sbr.rel (0) target = $region9
    $region8: #{attention_net_forward.1} parent=1 // pred_region
      _
    $region9: #{attention_net_forward.1} parent=1 // pred_fallthru
      _
    // Predicated region
    $region10: #{attention_net_forward.1} parent=1 // pred_check
      _
    $region11: #{attention_net_forward.1} parent=1 // pred_check_branch
      %27 = sbr.rel (0) target = $region13
    $region12: #{attention_net_forward.1} parent=1 // pred_region
      _
    $region13: #{attention_net_forward.1} parent=1 // pred_fallthru
      _
    // Predicated region
    $region14: #{attention_net_forward.1} parent=1 // pred_check
      _
    $region15: #{attention_net_forward.1} parent=1 // pred_check_branch
      %29 = sbr.rel (0) target = $region17
    $region16: #{attention_net_forward.1} parent=1 // pred_region
      _
    $region17: #{attention_net_forward.1} parent=1 // pred_fallthru
      _
    // Predicated region
    $region18: #{attention_net_forward.1} parent=1 // pred_check
      _
    $region19: #{attention_net_forward.1} parent=1 // pred_check_branch
      %31 = sbr.rel (0) target = $region21
    $region20: #{attention_net_forward.1} parent=1 // pred_region
      _
    $region21: #{attention_net_forward.1} parent=1 // pred_fallthru
      _
    // Predicated region
    $region22: #{attention_net_forward.1} parent=1 // pred_check
      _
    $region23: #{attention_net_forward.1} parent=1 // pred_check_branch
      %33 = sbr.rel (0) target = $region25
    $region24: #{attention_net_forward.1} parent=1 // pred_region
      _
    $region25: #{attention_net_forward.1} parent=1 // pred_fallthru
      _
    // Predicated region
    $region26: #{attention_net_forward.1} parent=1 // pred_check
      _
    $region27: #{attention_net_forward.1} parent=1 // pred_check_branch
      %35 = sbr.rel (0) target = $region29
    $region28: #{attention_net_forward.1} parent=1 // pred_region
      %s37 = ssub.s32 16384, 16384
      %38 = vsyncadd [#allocation3], %s37
      %s39 = sshll.u32 [#allocation2], 4
      %s40 = int_to_ptr.vmem [resolvable:$true] %s39
      %45 = dma.hbm_to_vmem [thread:$0]  %s6, 16384, %s40, [#allocation3], 256, 256, 16
    $region29: #{attention_net_forward.1} parent=1 // pred_fallthru
      _
    // Predicated region
    $region30: #{attention_net_forward.1} parent=1 // pred_check
      _
    $region31: #{attention_net_forward.1} parent=1 // pred_check_branch
      %47 = sbr.rel (0) target = $region33
    $region32: #{attention_net_forward.1} parent=1 // pred_region
      _
    $region33: #{attention_net_forward.1} parent=1 // pred_fallthru
      _
    // Predicated region
    $region34: #{attention_net_forward.1} parent=1 // pred_check
      _
    $region35: #{attention_net_forward.1} parent=1 // pred_check_branch
      %49 = sbr.rel (0) target = $region37
    $region36: #{attention_net_forward.1} parent=1 // pred_region
      %s51 = ssub.s32 16384, 16384
      %52 = vsyncadd [#allocation6], %s51
      %s53 = sshll.u32 [#allocation5], 4
      %s54 = int_to_ptr.vmem [resolvable:$true] %s53
      %59 = dma.hbm_to_vmem [thread:$0]  %s8, 16384, %s54, [#allocation6], 256, 256, 16
    $region37: #{attention_net_forward.1} parent=1 // pred_fallthru
      _
    // Predicated region
    $region38: #{attention_net_forward.1} parent=1 // pred_check
      _
    $region39: #{attention_net_forward.1} parent=1 // pred_check_branch
      %61 = sbr.rel (0) target = $region41
    $region40: #{attention_net_forward.1} parent=1 // pred_region
      _
    $region41: #{attention_net_forward.1} parent=1 // pred_fallthru
      _
    // Predicated region
    $region42: #{attention_net_forward.1} parent=1 // pred_check
      _
    $region43: #{attention_net_forward.1} parent=1 // pred_check_branch
      %63 = sbr.rel (0) target = $region45
    $region44: #{attention_net_forward.1} parent=1 // pred_region
      %64 = dma.done [#allocation3], 16384
    $region45: #{attention_net_forward.1} parent=1 // pred_fallthru
      _
    // Predicated region
    $region46: #{attention_net_forward.1} parent=1 // pred_check
      _
    $region47: #{attention_net_forward.1} parent=1 // pred_check_branch
      %66 = sbr.rel (0) target = $region49
    $region48: #{attention_net_forward.1} parent=1 // pred_region
      %67 = dma.done [#allocation6], 16384
    $region49: #{attention_net_forward.1} parent=1 // pred_fallthru
      _
    %v68 = vld [vmem:[%s0] sm:$0xff]
    %v69 = vld [vmem:[%s0 + $0x8] sm:$0xff]
    %v70 = vld [vmem:[%s0 + $0x10] sm:$0xff]
    %v71 = vld [vmem:[%s0 + $0x18] sm:$0xff]
    %v72 = vld [vmem:[%s0 + $0x20] sm:$0xff]
    %v73 = vld [vmem:[%s0 + $0x28] sm:$0xff]
    %v74 = vld [vmem:[%s0 + $0x30] sm:$0xff]
    %v75 = vld [vmem:[%s0 + $0x38] sm:$0xff]
    %v76 = vld [vmem:[%s0 + $0x40] sm:$0xff]
    %v77 = vld [vmem:[%s0 + $0x48] sm:$0xff]
    %v78 = vld [vmem:[%s0 + $0x50] sm:$0xff]
    %v79 = vld [vmem:[%s0 + $0x58] sm:$0xff]
    %v80 = vld [vmem:[%s0 + $0x60] sm:$0xff]
    %v81 = vld [vmem:[%s0 + $0x68] sm:$0xff]
    %v82 = vld [vmem:[%s0 + $0x70] sm:$0xff]
    %v83 = vld [vmem:[%s0 + $0x78] sm:$0xff]
    %v84 = vld [vmem:[%s0 + $0x80] sm:$0xff]
    %v85 = vld [vmem:[%s0 + $0x88] sm:$0xff]
    %v86 = vld [vmem:[%s0 + $0x90] sm:$0xff]
    %v87 = vld [vmem:[%s0 + $0x98] sm:$0xff]
    %v88 = vld [vmem:[%s0 + $0xa0] sm:$0xff]
    %v89 = vld [vmem:[%s0 + $0xa8] sm:$0xff]
    %v90 = vld [vmem:[%s0 + $0xb0] sm:$0xff]
    %v91 = vld [vmem:[%s0 + $0xb8] sm:$0xff]
    %v92 = vld [vmem:[%s0 + $0xc0] sm:$0xff]
    %v93 = vld [vmem:[%s0 + $0xc8] sm:$0xff]
    %v94 = vld [vmem:[%s0 + $0xd0] sm:$0xff]
    %v95 = vld [vmem:[%s0 + $0xd8] sm:$0xff]
    %v96 = vld [vmem:[%s0 + $0xe0] sm:$0xff]
    %v97 = vld [vmem:[%s0 + $0xe8] sm:$0xff]
    %v98 = vld [vmem:[%s0 + $0xf0] sm:$0xff]
    %v99 = vld [vmem:[%s0 + $0xf8] sm:$0xff]
    %v100 = vld [vmem:[%s0 + $0x100] sm:$0xff]
    %v101 = vld [vmem:[%s0 + $0x108] sm:$0xff]
    %v102 = vld [vmem:[%s0 + $0x110] sm:$0xff]
    %v103 = vld [vmem:[%s0 + $0x118] sm:$0xff]
    %v104 = vld [vmem:[%s0 + $0x120] sm:$0xff]
    %v105 = vld [vmem:[%s0 + $0x128] sm:$0xff]
    %v106 = vld [vmem:[%s0 + $0x130] sm:$0xff]
    %v107 = vld [vmem:[%s0 + $0x138] sm:$0xff]
    %v108 = vld [vmem:[%s0 + $0x140] sm:$0xff]
    %v109 = vld [vmem:[%s0 + $0x148] sm:$0xff]
    %v110 = vld [vmem:[%s0 + $0x150] sm:$0xff]
    %v111 = vld [vmem:[%s0 + $0x158] sm:$0xff]
    %v112 = vld [vmem:[%s0 + $0x160] sm:$0xff]
    %v113 = vld [vmem:[%s0 + $0x168] sm:$0xff]
    %v114 = vld [vmem:[%s0 + $0x170] sm:$0xff]
    %v115 = vld [vmem:[%s0 + $0x178] sm:$0xff]
    %v116 = vld [vmem:[%s0 + $0x180] sm:$0xff]
    %v117 = vld [vmem:[%s0 + $0x188] sm:$0xff]
    %v118 = vld [vmem:[%s0 + $0x190] sm:$0xff]
    %v119 = vld [vmem:[%s0 + $0x198] sm:$0xff]
    %v120 = vld [vmem:[%s0 + $0x1a0] sm:$0xff]
    %v121 = vld [vmem:[%s0 + $0x1a8] sm:$0xff]
    %v122 = vld [vmem:[%s0 + $0x1b0] sm:$0xff]
    %v123 = vld [vmem:[%s0 + $0x1b8] sm:$0xff]
    %v124 = vld [vmem:[%s0 + $0x1c0] sm:$0xff]
    %v125 = vld [vmem:[%s0 + $0x1c8] sm:$0xff]
    %v126 = vld [vmem:[%s0 + $0x1d0] sm:$0xff]
    %v127 = vld [vmem:[%s0 + $0x1d8] sm:$0xff]
    %v128 = vld [vmem:[%s0 + $0x1e0] sm:$0xff]
    %v129 = vld [vmem:[%s0 + $0x1e8] sm:$0xff]
    %v130 = vld [vmem:[%s0 + $0x1f0] sm:$0xff]
    %v131 = vld [vmem:[%s0 + $0x1f8] sm:$0xff]
    %v132 = vld [vmem:[%s0 + $0x200] sm:$0xff]
    %v133 = vld [vmem:[%s0 + $0x208] sm:$0xff]
    %v134 = vld [vmem:[%s0 + $0x210] sm:$0xff]
    %v135 = vld [vmem:[%s0 + $0x218] sm:$0xff]
    %v136 = vld [vmem:[%s0 + $0x220] sm:$0xff]
    %v137 = vld [vmem:[%s0 + $0x228] sm:$0xff]
    %v138 = vld [vmem:[%s0 + $0x230] sm:$0xff]
    %v139 = vld [vmem:[%s0 + $0x238] sm:$0xff]
    %v140 = vld [vmem:[%s0 + $0x240] sm:$0xff]
    %v141 = vld [vmem:[%s0 + $0x248] sm:$0xff]
    %v142 = vld [vmem:[%s0 + $0x250] sm:$0xff]
    %v143 = vld [vmem:[%s0 + $0x258] sm:$0xff]
    %v144 = vld [vmem:[%s0 + $0x260] sm:$0xff]
    %v145 = vld [vmem:[%s0 + $0x268] sm:$0xff]
    %v146 = vld [vmem:[%s0 + $0x270] sm:$0xff]
    %v147 = vld [vmem:[%s0 + $0x278] sm:$0xff]
    %v148 = vld [vmem:[%s0 + $0x280] sm:$0xff]
    %v149 = vld [vmem:[%s0 + $0x288] sm:$0xff]
    %v150 = vld [vmem:[%s0 + $0x290] sm:$0xff]
    %v151 = vld [vmem:[%s0 + $0x298] sm:$0xff]
    %v152 = vld [vmem:[%s0 + $0x2a0] sm:$0xff]
    %v153 = vld [vmem:[%s0 + $0x2a8] sm:$0xff]
    %v154 = vld [vmem:[%s0 + $0x2b0] sm:$0xff]
    %v155 = vld [vmem:[%s0 + $0x2b8] sm:$0xff]
    %v156 = vld [vmem:[%s0 + $0x2c0] sm:$0xff]
    %v157 = vld [vmem:[%s0 + $0x2c8] sm:$0xff]
    %v158 = vld [vmem:[%s0 + $0x2d0] sm:$0xff]
    %v159 = vld [vmem:[%s0 + $0x2d8] sm:$0xff]
    %v160 = vld [vmem:[%s0 + $0x2e0] sm:$0xff]
    %v161 = vld [vmem:[%s0 + $0x2e8] sm:$0xff]
    %v162 = vld [vmem:[%s0 + $0x2f0] sm:$0xff]
    %v163 = vld [vmem:[%s0 + $0x2f8] sm:$0xff]
    %v164 = vld [vmem:[%s0 + $0x300] sm:$0xff]
    %v165 = vld [vmem:[%s0 + $0x308] sm:$0xff]
    %v166 = vld [vmem:[%s0 + $0x310] sm:$0xff]
    %v167 = vld [vmem:[%s0 + $0x318] sm:$0xff]
    %v168 = vld [vmem:[%s0 + $0x320] sm:$0xff]
    %v169 = vld [vmem:[%s0 + $0x328] sm:$0xff]
    %v170 = vld [vmem:[%s0 + $0x330] sm:$0xff]
    %v171 = vld [vmem:[%s0 + $0x338] sm:$0xff]
    %v172 = vld [vmem:[%s0 + $0x340] sm:$0xff]
    %v173 = vld [vmem:[%s0 + $0x348] sm:$0xff]
    %v174 = vld [vmem:[%s0 + $0x350] sm:$0xff]
    %v175 = vld [vmem:[%s0 + $0x358] sm:$0xff]
    %v176 = vld [vmem:[%s0 + $0x360] sm:$0xff]
    %v177 = vld [vmem:[%s0 + $0x368] sm:$0xff]
    %v178 = vld [vmem:[%s0 + $0x370] sm:$0xff]
    %v179 = vld [vmem:[%s0 + $0x378] sm:$0xff]
    %v180 = vld [vmem:[%s0 + $0x380] sm:$0xff]
    %v181 = vld [vmem:[%s0 + $0x388] sm:$0xff]
    %v182 = vld [vmem:[%s0 + $0x390] sm:$0xff]
    %v183 = vld [vmem:[%s0 + $0x398] sm:$0xff]
    %v184 = vld [vmem:[%s0 + $0x3a0] sm:$0xff]
    %v185 = vld [vmem:[%s0 + $0x3a8] sm:$0xff]
    %v186 = vld [vmem:[%s0 + $0x3b0] sm:$0xff]
    %v187 = vld [vmem:[%s0 + $0x3b8] sm:$0xff]
    %v188 = vld [vmem:[%s0 + $0x3c0] sm:$0xff]
    %v189 = vld [vmem:[%s0 + $0x3c8] sm:$0xff]
    %v190 = vld [vmem:[%s0 + $0x3d0] sm:$0xff]
    %v191 = vld [vmem:[%s0 + $0x3d8] sm:$0xff]
    %v192 = vld [vmem:[%s0 + $0x3e0] sm:$0xff]
    %v193 = vld [vmem:[%s0 + $0x3e8] sm:$0xff]
    %v194 = vld [vmem:[%s0 + $0x3f0] sm:$0xff]
    %v195 = vld [vmem:[%s0 + $0x3f8] sm:$0xff]
    %v196 = vmul.f32 %v68, %v68
    %v197 = vmul.f32 %v69, %v69
    %v198 = vmul.f32 %v70, %v70
    %v199 = vmul.f32 %v71, %v71
    %v200 = vmul.f32 %v72, %v72
    %v201 = vmul.f32 %v73, %v73
    %v202 = vmul.f32 %v74, %v74
    %v203 = vmul.f32 %v75, %v75
    %v204 = vmul.f32 %v76, %v76
    %v205 = vmul.f32 %v77, %v77
    %v206 = vmul.f32 %v78, %v78
    %v207 = vmul.f32 %v79, %v79
    %v208 = vmul.f32 %v80, %v80
    %v209 = vmul.f32 %v81, %v81
    %v210 = vmul.f32 %v82, %v82
    %v211 = vmul.f32 %v83, %v83
    %v212 = vmul.f32 %v84, %v84
    %v213 = vmul.f32 %v85, %v85
    %v214 = vmul.f32 %v86, %v86
    %v215 = vmul.f32 %v87, %v87
    %v216 = vmul.f32 %v88, %v88
    %v217 = vmul.f32 %v89, %v89
    %v218 = vmul.f32 %v90, %v90
    %v219 = vmul.f32 %v91, %v91
    %v220 = vmul.f32 %v92, %v92
    %v221 = vmul.f32 %v93, %v93
    %v222 = vmul.f32 %v94, %v94
    %v223 = vmul.f32 %v95, %v95
    %v224 = vmul.f32 %v96, %v96
    %v225 = vmul.f32 %v97, %v97
    %v226 = vmul.f32 %v98, %v98
    %v227 = vmul.f32 %v99, %v99
    %v228 = vmul.f32 %v100, %v100
    %v229 = vmul.f32 %v101, %v101
    %v230 = vmul.f32 %v102, %v102
    %v231 = vmul.f32 %v103, %v103
    %v232 = vmul.f32 %v104, %v104
    %v233 = vmul.f32 %v105, %v105
    %v234 = vmul.f32 %v106, %v106
    %v235 = vmul.f32 %v107, %v107
    %v236 = vmul.f32 %v108, %v108
    %v237 = vmul.f32 %v109, %v109
    %v238 = vmul.f32 %v110, %v110
    %v239 = vmul.f32 %v111, %v111
    %v240 = vmul.f32 %v112, %v112
    %v241 = vmul.f32 %v113, %v113
    %v242 = vmul.f32 %v114, %v114
    %v243 = vmul.f32 %v115, %v115
    %v244 = vmul.f32 %v116, %v116
    %v245 = vmul.f32 %v117, %v117
    %v246 = vmul.f32 %v118, %v118
    %v247 = vmul.f32 %v119, %v119
    %v248 = vmul.f32 %v120, %v120
    %v249 = vmul.f32 %v121, %v121
    %v250 = vmul.f32 %v122, %v122
    %v251 = vmul.f32 %v123, %v123
    %v252 = vmul.f32 %v124, %v124
    %v253 = vmul.f32 %v125, %v125
    %v254 = vmul.f32 %v126, %v126
    %v255 = vmul.f32 %v127, %v127
    %v256 = vmul.f32 %v128, %v128
    %v257 = vmul.f32 %v129, %v129
    %v258 = vmul.f32 %v130, %v130
    %v259 = vmul.f32 %v131, %v131
    %v260 = vmul.f32 %v132, %v132
    %v261 = vmul.f32 %v133, %v133
    %v262 = vmul.f32 %v134, %v134
    %v263 = vmul.f32 %v135, %v135
    %v264 = vmul.f32 %v136, %v136
    %v265 = vmul.f32 %v137, %v137
    %v266 = vmul.f32 %v138, %v138
    %v267 = vmul.f32 %v139, %v139
    %v268 = vmul.f32 %v140, %v140
    %v269 = vmul.f32 %v141, %v141
    %v270 = vmul.f32 %v142, %v142
    %v271 = vmul.f32 %v143, %v143
    %v272 = vmul.f32 %v144, %v144
    %v273 = vmul.f32 %v145, %v145
    %v274 = vmul.f32 %v146, %v146
    %v275 = vmul.f32 %v147, %v147
    %v276 = vmul.f32 %v148, %v148
    %v277 = vmul.f32 %v149, %v149
    %v278 = vmul.f32 %v150, %v150
    %v279 = vmul.f32 %v151, %v151
    %v280 = vmul.f32 %v152, %v152
    %v281 = vmul.f32 %v153, %v153
    %v282 = vmul.f32 %v154, %v154
    %v283 = vmul.f32 %v155, %v155
    %v284 = vmul.f32 %v156, %v156
    %v285 = vmul.f32 %v157, %v157
    %v286 = vmul.f32 %v158, %v158
    %v287 = vmul.f32 %v159, %v159
    %v288 = vmul.f32 %v160, %v160
    %v289 = vmul.f32 %v161, %v161
    %v290 = vmul.f32 %v162, %v162
    %v291 = vmul.f32 %v163, %v163
    %v292 = vmul.f32 %v164, %v164
    %v293 = vmul.f32 %v165, %v165
    %v294 = vmul.f32 %v166, %v166
    %v295 = vmul.f32 %v167, %v167
    %v296 = vmul.f32 %v168, %v168
    %v297 = vmul.f32 %v169, %v169
    %v298 = vmul.f32 %v170, %v170
    %v299 = vmul.f32 %v171, %v171
    %v300 = vmul.f32 %v172, %v172
    %v301 = vmul.f32 %v173, %v173
    %v302 = vmul.f32 %v174, %v174
    %v303 = vmul.f32 %v175, %v175
    %v304 = vmul.f32 %v176, %v176
    %v305 = vmul.f32 %v177, %v177
    %v306 = vmul.f32 %v178, %v178
    %v307 = vmul.f32 %v179, %v179
    %v308 = vmul.f32 %v180, %v180
    %v309 = vmul.f32 %v181, %v181
    %v310 = vmul.f32 %v182, %v182
    %v311 = vmul.f32 %v183, %v183
    %v312 = vmul.f32 %v184, %v184
    %v313 = vmul.f32 %v185, %v185
    %v314 = vmul.f32 %v186, %v186
    %v315 = vmul.f32 %v187, %v187
    %v316 = vmul.f32 %v188, %v188
    %v317 = vmul.f32 %v189, %v189
    %v318 = vmul.f32 %v190, %v190
    %v319 = vmul.f32 %v191, %v191
    %v320 = vmul.f32 %v192, %v192
    %v321 = vmul.f32 %v193, %v193
    %v322 = vmul.f32 %v194, %v194
    %v323 = vmul.f32 %v195, %v195
    %vm324 = vcmask 130048
    %v325 = vsel %vm324, %v196, 0.0
    %v326 = vsel %vm324, %v197, 0.0
    %v327 = vadd.f32 %v325, %v326
    %v328 = vsel %vm324, %v198, 0.0
    %v329 = vadd.f32 %v327, %v328
    %v330 = vsel %vm324, %v199, 0.0
    %v331 = vadd.f32 %v329, %v330
    %v332 = vsel %vm324, %v200, 0.0
    %v333 = vadd.f32 %v331, %v332
    %v334 = vsel %vm324, %v201, 0.0
    %v335 = vadd.f32 %v333, %v334
    %v336 = vsel %vm324, %v202, 0.0
    %v337 = vadd.f32 %v335, %v336
    %v338 = vsel %vm324, %v203, 0.0
    %v339 = vadd.f32 %v337, %v338
    %v340 = vsel %vm324, %v204, 0.0
    %v341 = vadd.f32 %v339, %v340
    %v342 = vsel %vm324, %v205, 0.0
    %v343 = vadd.f32 %v341, %v342
    %v344 = vsel %vm324, %v206, 0.0
    %v345 = vadd.f32 %v343, %v344
    %v346 = vsel %vm324, %v207, 0.0
    %v347 = vadd.f32 %v345, %v346
    %v348 = vsel %vm324, %v208, 0.0
    %v349 = vadd.f32 %v347, %v348
    %v350 = vsel %vm324, %v209, 0.0
    %v351 = vadd.f32 %v349, %v350
    %v352 = vsel %vm324, %v210, 0.0
    %v353 = vadd.f32 %v351, %v352
    %v354 = vsel %vm324, %v211, 0.0
    %v355 = vadd.f32 %v353, %v354
    %v356 = vsel %vm324, %v212, 0.0
    %v357 = vadd.f32 %v355, %v356
    %v358 = vsel %vm324, %v213, 0.0
    %v359 = vadd.f32 %v357, %v358
    %v360 = vsel %vm324, %v214, 0.0
    %v361 = vadd.f32 %v359, %v360
    %v362 = vsel %vm324, %v215, 0.0
    %v363 = vadd.f32 %v361, %v362
    %v364 = vsel %vm324, %v216, 0.0
    %v365 = vadd.f32 %v363, %v364
    %v366 = vsel %vm324, %v217, 0.0
    %v367 = vadd.f32 %v365, %v366
    %v368 = vsel %vm324, %v218, 0.0
    %v369 = vadd.f32 %v367, %v368
    %v370 = vsel %vm324, %v219, 0.0
    %v371 = vadd.f32 %v369, %v370
    %v372 = vsel %vm324, %v220, 0.0
    %v373 = vadd.f32 %v371, %v372
    %v374 = vsel %vm324, %v221, 0.0
    %v375 = vadd.f32 %v373, %v374
    %v376 = vsel %vm324, %v222, 0.0
    %v377 = vadd.f32 %v375, %v376
    %v378 = vsel %vm324, %v223, 0.0
    %v379 = vadd.f32 %v377, %v378
    %v380 = vsel %vm324, %v224, 0.0
    %v381 = vadd.f32 %v379, %v380
    %v382 = vsel %vm324, %v225, 0.0
    %v383 = vadd.f32 %v381, %v382
    %v384 = vsel %vm324, %v226, 0.0
    %v385 = vadd.f32 %v383, %v384
    %v386 = vsel %vm324, %v227, 0.0
    %v387 = vadd.f32 %v385, %v386
    %v388 = vsel %vm324, %v228, 0.0
    %v389 = vadd.f32 %v387, %v388
    %v390 = vsel %vm324, %v229, 0.0
    %v391 = vadd.f32 %v389, %v390
    %v392 = vsel %vm324, %v230, 0.0
    %v393 = vadd.f32 %v391, %v392
    %v394 = vsel %vm324, %v231, 0.0
    %v395 = vadd.f32 %v393, %v394
    %v396 = vsel %vm324, %v232, 0.0
    %v397 = vadd.f32 %v395, %v396
    %v398 = vsel %vm324, %v233, 0.0
    %v399 = vadd.f32 %v397, %v398
    %v400 = vsel %vm324, %v234, 0.0
    %v401 = vadd.f32 %v399, %v400
    %v402 = vsel %vm324, %v235, 0.0
    %v403 = vadd.f32 %v401, %v402
    %v404 = vsel %vm324, %v236, 0.0
    %v405 = vadd.f32 %v403, %v404
    %v406 = vsel %vm324, %v237, 0.0
    %v407 = vadd.f32 %v405, %v406
    %v408 = vsel %vm324, %v238, 0.0
    %v409 = vadd.f32 %v407, %v408
    %v410 = vsel %vm324, %v239, 0.0
    %v411 = vadd.f32 %v409, %v410
    %v412 = vsel %vm324, %v240, 0.0
    %v413 = vadd.f32 %v411, %v412
    %v414 = vsel %vm324, %v241, 0.0
    %v415 = vadd.f32 %v413, %v414
    %v416 = vsel %vm324, %v242, 0.0
    %v417 = vadd.f32 %v415, %v416
    %v418 = vsel %vm324, %v243, 0.0
    %v419 = vadd.f32 %v417, %v418
    %v420 = vsel %vm324, %v244, 0.0
    %v421 = vadd.f32 %v419, %v420
    %v422 = vsel %vm324, %v245, 0.0
    %v423 = vadd.f32 %v421, %v422
    %v424 = vsel %vm324, %v246, 0.0
    %v425 = vadd.f32 %v423, %v424
    %v426 = vsel %vm324, %v247, 0.0
    %v427 = vadd.f32 %v425, %v426
    %v428 = vsel %vm324, %v248, 0.0
    %v429 = vadd.f32 %v427, %v428
    %v430 = vsel %vm324, %v249, 0.0
    %v431 = vadd.f32 %v429, %v430
    %v432 = vsel %vm324, %v250, 0.0
    %v433 = vadd.f32 %v431, %v432
    %v434 = vsel %vm324, %v251, 0.0
    %v435 = vadd.f32 %v433, %v434
    %v436 = vsel %vm324, %v252, 0.0
    %v437 = vadd.f32 %v435, %v436
    %v438 = vsel %vm324, %v253, 0.0
    %v439 = vadd.f32 %v437, %v438
    %v440 = vsel %vm324, %v254, 0.0
    %v441 = vadd.f32 %v439, %v440
    %v442 = vsel %vm324, %v255, 0.0
    %v443 = vadd.f32 %v441, %v442
    %v444 = vsel %vm324, %v256, 0.0
    %v445 = vadd.f32 %v443, %v444
    %v446 = vsel %vm324, %v257, 0.0
    %v447 = vadd.f32 %v445, %v446
    %v448 = vsel %vm324, %v258, 0.0
    %v449 = vadd.f32 %v447, %v448
    %v450 = vsel %vm324, %v259, 0.0
    %v451 = vadd.f32 %v449, %v450
    %v452 = vrot.slane %v451, 4
    %v453 = vadd.f32 %v451, %v452
    %v454 = vrot.slane %v453, 2
    %v455 = vadd.f32 %v453, %v454
    %v456 = vrot.slane %v455, 1
    %v457 = vadd.f32 %v455, %v456
    %v458 = vsel %vm324, %v260, 0.0
    %v459 = vsel %vm324, %v261, 0.0
    %v460 = vadd.f32 %v458, %v459
    %v461 = vsel %vm324, %v262, 0.0
    %v462 = vadd.f32 %v460, %v461
    %v463 = vsel %vm324, %v263, 0.0
    %v464 = vadd.f32 %v462, %v463
    %v465 = vsel %vm324, %v264, 0.0
    %v466 = vadd.f32 %v464, %v465
    %v467 = vsel %vm324, %v265, 0.0
    %v468 = vadd.f32 %v466, %v467
    %v469 = vsel %vm324, %v266, 0.0
    %v470 = vadd.f32 %v468, %v469
    %v471 = vsel %vm324, %v267, 0.0
    %v472 = vadd.f32 %v470, %v471
    %v473 = vsel %vm324, %v268, 0.0
    %v474 = vadd.f32 %v472, %v473
    %v475 = vsel %vm324, %v269, 0.0
    %v476 = vadd.f32 %v474, %v475
    %v477 = vsel %vm324, %v270, 0.0
    %v478 = vadd.f32 %v476, %v477
    %v479 = vsel %vm324, %v271, 0.0
    %v480 = vadd.f32 %v478, %v479
    %v481 = vsel %vm324, %v272, 0.0
    %v482 = vadd.f32 %v480, %v481
    %v483 = vsel %vm324, %v273, 0.0
    %v484 = vadd.f32 %v482, %v483
    %v485 = vsel %vm324, %v274, 0.0
    %v486 = vadd.f32 %v484, %v485
    %v487 = vsel %vm324, %v275, 0.0
    %v488 = vadd.f32 %v486, %v487
    %v489 = vsel %vm324, %v276, 0.0
    %v490 = vadd.f32 %v488, %v489
    %v491 = vsel %vm324, %v277, 0.0
    %v492 = vadd.f32 %v490, %v491
    %v493 = vsel %vm324, %v278, 0.0
    %v494 = vadd.f32 %v492, %v493
    %v495 = vsel %vm324, %v279, 0.0
    %v496 = vadd.f32 %v494, %v495
    %v497 = vsel %vm324, %v280, 0.0
    %v498 = vadd.f32 %v496, %v497
    %v499 = vsel %vm324, %v281, 0.0
    %v500 = vadd.f32 %v498, %v499
    %v501 = vsel %vm324, %v282, 0.0
    %v502 = vadd.f32 %v500, %v501
    %v503 = vsel %vm324, %v283, 0.0
    %v504 = vadd.f32 %v502, %v503
    %v505 = vsel %vm324, %v284, 0.0
    %v506 = vadd.f32 %v504, %v505
    %v507 = vsel %vm324, %v285, 0.0
    %v508 = vadd.f32 %v506, %v507
    %v509 = vsel %vm324, %v286, 0.0
    %v510 = vadd.f32 %v508, %v509
    %v511 = vsel %vm324, %v287, 0.0
    %v512 = vadd.f32 %v510, %v511
    %v513 = vsel %vm324, %v288, 0.0
    %v514 = vadd.f32 %v512, %v513
    %v515 = vsel %vm324, %v289, 0.0
    %v516 = vadd.f32 %v514, %v515
    %v517 = vsel %vm324, %v290, 0.0
    %v518 = vadd.f32 %v516, %v517
    %v519 = vsel %vm324, %v291, 0.0
    %v520 = vadd.f32 %v518, %v519
    %v521 = vsel %vm324, %v292, 0.0
    %v522 = vadd.f32 %v520, %v521
    %v523 = vsel %vm324, %v293, 0.0
    %v524 = vadd.f32 %v522, %v523
    %v525 = vsel %vm324, %v294, 0.0
    %v526 = vadd.f32 %v524, %v525
    %v527 = vsel %vm324, %v295, 0.0
    %v528 = vadd.f32 %v526, %v527
    %v529 = vsel %vm324, %v296, 0.0
    %v530 = vadd.f32 %v528, %v529
    %v531 = vsel %vm324, %v297, 0.0
    %v532 = vadd.f32 %v530, %v531
    %v533 = vsel %vm324, %v298, 0.0
    %v534 = vadd.f32 %v532, %v533
    %v535 = vsel %vm324, %v299, 0.0
    %v536 = vadd.f32 %v534, %v535
    %v537 = vsel %vm324, %v300, 0.0
    %v538 = vadd.f32 %v536, %v537
    %v539 = vsel %vm324, %v301, 0.0
    %v540 = vadd.f32 %v538, %v539
    %v541 = vsel %vm324, %v302, 0.0
    %v542 = vadd.f32 %v540, %v541
    %v543 = vsel %vm324, %v303, 0.0
    %v544 = vadd.f32 %v542, %v543
    %v545 = vsel %vm324, %v304, 0.0
    %v546 = vadd.f32 %v544, %v545
    %v547 = vsel %vm324, %v305, 0.0
    %v548 = vadd.f32 %v546, %v547
    %v549 = vsel %vm324, %v306, 0.0
    %v550 = vadd.f32 %v548, %v549
    %v551 = vsel %vm324, %v307, 0.0
    %v552 = vadd.f32 %v550, %v551
    %v553 = vsel %vm324, %v308, 0.0
    %v554 = vadd.f32 %v552, %v553
    %v555 = vsel %vm324, %v309, 0.0
    %v556 = vadd.f32 %v554, %v555
    %v557 = vsel %vm324, %v310, 0.0
    %v558 = vadd.f32 %v556, %v557
    %v559 = vsel %vm324, %v311, 0.0
    %v560 = vadd.f32 %v558, %v559
    %v561 = vsel %vm324, %v312, 0.0
    %v562 = vadd.f32 %v560, %v561
    %v563 = vsel %vm324, %v313, 0.0
    %v564 = vadd.f32 %v562, %v563
    %v565 = vsel %vm324, %v314, 0.0
    %v566 = vadd.f32 %v564, %v565
    %v567 = vsel %vm324, %v315, 0.0
    %v568 = vadd.f32 %v566, %v567
    %v569 = vsel %vm324, %v316, 0.0
    %v570 = vadd.f32 %v568, %v569
    %v571 = vsel %vm324, %v317, 0.0
    %v572 = vadd.f32 %v570, %v571
    %v573 = vsel %vm324, %v318, 0.0
    %v574 = vadd.f32 %v572, %v573
    %v575 = vsel %vm324, %v319, 0.0
    %v576 = vadd.f32 %v574, %v575
    %v577 = vsel %vm324, %v320, 0.0
    %v578 = vadd.f32 %v576, %v577
    %v579 = vsel %vm324, %v321, 0.0
    %v580 = vadd.f32 %v578, %v579
    %v581 = vsel %vm324, %v322, 0.0
    %v582 = vadd.f32 %v580, %v581
    %v583 = vsel %vm324, %v323, 0.0
    %v584 = vadd.f32 %v582, %v583
    %v585 = vrot.slane %v584, 4
    %v586 = vadd.f32 %v584, %v585
    %v587 = vrot.slane %v586, 2
    %v588 = vadd.f32 %v586, %v587
    %v589 = vrot.slane %v588, 1
    %v590 = vadd.f32 %v588, %v589
    %v591 = vmax.f32 %v457, 1e-24
    %v592 = vmax.f32 %v590, 1e-24
    %v593 = vrsqrt.pop %v591
    %v594 = vrsqrt.pop %v592
    %v595 = vmul.f32 %v68, %v593
    %v596 = vmul.f32 %v69, %v593
    %v597 = vmul.f32 %v70, %v593
    %v598 = vmul.f32 %v71, %v593
    %v599 = vmul.f32 %v72, %v593
    %v600 = vmul.f32 %v73, %v593
    %v601 = vmul.f32 %v74, %v593
    %v602 = vmul.f32 %v75, %v593
    %v603 = vmul.f32 %v76, %v593
    %v604 = vmul.f32 %v77, %v593
    %v605 = vmul.f32 %v78, %v593
    %v606 = vmul.f32 %v79, %v593
    %v607 = vmul.f32 %v80, %v593
    %v608 = vmul.f32 %v81, %v593
    %v609 = vmul.f32 %v82, %v593
    %v610 = vmul.f32 %v83, %v593
    %v611 = vmul.f32 %v84, %v593
    %v612 = vmul.f32 %v85, %v593
    %v613 = vmul.f32 %v86, %v593
    %v614 = vmul.f32 %v87, %v593
    %v615 = vmul.f32 %v88, %v593
    %v616 = vmul.f32 %v89, %v593
    %v617 = vmul.f32 %v90, %v593
    %v618 = vmul.f32 %v91, %v593
    %v619 = vmul.f32 %v92, %v593
    %v620 = vmul.f32 %v93, %v593
    %v621 = vmul.f32 %v94, %v593
    %v622 = vmul.f32 %v95, %v593
    %v623 = vmul.f32 %v96, %v593
    %v624 = vmul.f32 %v97, %v593
    %v625 = vmul.f32 %v98, %v593
    %v626 = vmul.f32 %v99, %v593
    %v627 = vmul.f32 %v100, %v593
    %v628 = vmul.f32 %v101, %v593
    %v629 = vmul.f32 %v102, %v593
    %v630 = vmul.f32 %v103, %v593
    %v631 = vmul.f32 %v104, %v593
    %v632 = vmul.f32 %v105, %v593
    %v633 = vmul.f32 %v106, %v593
    %v634 = vmul.f32 %v107, %v593
    %v635 = vmul.f32 %v108, %v593
    %v636 = vmul.f32 %v109, %v593
    %v637 = vmul.f32 %v110, %v593
    %v638 = vmul.f32 %v111, %v593
    %v639 = vmul.f32 %v112, %v593
    %v640 = vmul.f32 %v113, %v593
    %v641 = vmul.f32 %v114, %v593
    %v642 = vmul.f32 %v115, %v593
    %v643 = vmul.f32 %v116, %v593
    %v644 = vmul.f32 %v117, %v593
    %v645 = vmul.f32 %v118, %v593
    %v646 = vmul.f32 %v119, %v593
    %v647 = vmul.f32 %v120, %v593
    %v648 = vmul.f32 %v121, %v593
    %v649 = vmul.f32 %v122, %v593
    %v650 = vmul.f32 %v123, %v593
    %v651 = vmul.f32 %v124, %v593
    %v652 = vmul.f32 %v125, %v593
    %v653 = vmul.f32 %v126, %v593
    %v654 = vmul.f32 %v127, %v593
    %v655 = vmul.f32 %v128, %v593
    %v656 = vmul.f32 %v129, %v593
    %v657 = vmul.f32 %v130, %v593
    %v658 = vmul.f32 %v131, %v593
    %v659 = vmul.f32 %v132, %v594
    %v660 = vmul.f32 %v133, %v594
    %v661 = vmul.f32 %v134, %v594
    %v662 = vmul.f32 %v135, %v594
    %v663 = vmul.f32 %v136, %v594
    %v664 = vmul.f32 %v137, %v594
    %v665 = vmul.f32 %v138, %v594
    %v666 = vmul.f32 %v139, %v594
    %v667 = vmul.f32 %v140, %v594
    %v668 = vmul.f32 %v141, %v594
    %v669 = vmul.f32 %v142, %v594
    %v670 = vmul.f32 %v143, %v594
    %v671 = vmul.f32 %v144, %v594
    %v672 = vmul.f32 %v145, %v594
    %v673 = vmul.f32 %v146, %v594
    %v674 = vmul.f32 %v147, %v594
    %v675 = vmul.f32 %v148, %v594
    %v676 = vmul.f32 %v149, %v594
    %v677 = vmul.f32 %v150, %v594
    %v678 = vmul.f32 %v151, %v594
    %v679 = vmul.f32 %v152, %v594
    %v680 = vmul.f32 %v153, %v594
    %v681 = vmul.f32 %v154, %v594
    %v682 = vmul.f32 %v155, %v594
    %v683 = vmul.f32 %v156, %v594
    %v684 = vmul.f32 %v157, %v594
    %v685 = vmul.f32 %v158, %v594
    %v686 = vmul.f32 %v159, %v594
    %v687 = vmul.f32 %v160, %v594
    %v688 = vmul.f32 %v161, %v594
    %v689 = vmul.f32 %v162, %v594
    %v690 = vmul.f32 %v163, %v594
    %v691 = vmul.f32 %v164, %v594
    %v692 = vmul.f32 %v165, %v594
    %v693 = vmul.f32 %v166, %v594
    %v694 = vmul.f32 %v167, %v594
    %v695 = vmul.f32 %v168, %v594
    %v696 = vmul.f32 %v169, %v594
    %v697 = vmul.f32 %v170, %v594
    %v698 = vmul.f32 %v171, %v594
    %v699 = vmul.f32 %v172, %v594
    %v700 = vmul.f32 %v173, %v594
    %v701 = vmul.f32 %v174, %v594
    %v702 = vmul.f32 %v175, %v594
    %v703 = vmul.f32 %v176, %v594
    %v704 = vmul.f32 %v177, %v594
    %v705 = vmul.f32 %v178, %v594
    %v706 = vmul.f32 %v179, %v594
    %v707 = vmul.f32 %v180, %v594
    %v708 = vmul.f32 %v181, %v594
    %v709 = vmul.f32 %v182, %v594
    %v710 = vmul.f32 %v183, %v594
    %v711 = vmul.f32 %v184, %v594
    %v712 = vmul.f32 %v185, %v594
    %v713 = vmul.f32 %v186, %v594
    %v714 = vmul.f32 %v187, %v594
    %v715 = vmul.f32 %v188, %v594
    %v716 = vmul.f32 %v189, %v594
    %v717 = vmul.f32 %v190, %v594
    %v718 = vmul.f32 %v191, %v594
    %v719 = vmul.f32 %v192, %v594
    %v720 = vmul.f32 %v193, %v594
    %v721 = vmul.f32 %v194, %v594
    %v722 = vmul.f32 %v195, %v594
    %v723 = vld [vmem:[%s1] sm:$0xff]
    %v724 = vld [vmem:[%s1 + $0x8] sm:$0xff]
    %v725 = vld [vmem:[%s1 + $0x10] sm:$0xff]
    %v726 = vld [vmem:[%s1 + $0x18] sm:$0xff]
    %v727 = vld [vmem:[%s1 + $0x20] sm:$0xff]
    %v728 = vld [vmem:[%s1 + $0x28] sm:$0xff]
    %v729 = vld [vmem:[%s1 + $0x30] sm:$0xff]
    %v730 = vld [vmem:[%s1 + $0x38] sm:$0xff]
    %v731 = vld [vmem:[%s1 + $0x40] sm:$0xff]
    %v732 = vld [vmem:[%s1 + $0x48] sm:$0xff]
    %v733 = vld [vmem:[%s1 + $0x50] sm:$0xff]
    %v734 = vld [vmem:[%s1 + $0x58] sm:$0xff]
    %v735 = vld [vmem:[%s1 + $0x60] sm:$0xff]
    %v736 = vld [vmem:[%s1 + $0x68] sm:$0xff]
    %v737 = vld [vmem:[%s1 + $0x70] sm:$0xff]
    %v738 = vld [vmem:[%s1 + $0x78] sm:$0xff]
    %v739 = vld [vmem:[%s1 + $0x80] sm:$0xff]
    %v740 = vld [vmem:[%s1 + $0x88] sm:$0xff]
    %v741 = vld [vmem:[%s1 + $0x90] sm:$0xff]
    %v742 = vld [vmem:[%s1 + $0x98] sm:$0xff]
    %v743 = vld [vmem:[%s1 + $0xa0] sm:$0xff]
    %v744 = vld [vmem:[%s1 + $0xa8] sm:$0xff]
    %v745 = vld [vmem:[%s1 + $0xb0] sm:$0xff]
    %v746 = vld [vmem:[%s1 + $0xb8] sm:$0xff]
    %v747 = vld [vmem:[%s1 + $0xc0] sm:$0xff]
    %v748 = vld [vmem:[%s1 + $0xc8] sm:$0xff]
    %v749 = vld [vmem:[%s1 + $0xd0] sm:$0xff]
    %v750 = vld [vmem:[%s1 + $0xd8] sm:$0xff]
    %v751 = vld [vmem:[%s1 + $0xe0] sm:$0xff]
    %v752 = vld [vmem:[%s1 + $0xe8] sm:$0xff]
    %v753 = vld [vmem:[%s1 + $0xf0] sm:$0xff]
    %v754 = vld [vmem:[%s1 + $0xf8] sm:$0xff]
    %v755 = vld [vmem:[%s1 + $0x100] sm:$0xff]
    %v756 = vld [vmem:[%s1 + $0x108] sm:$0xff]
    %v757 = vld [vmem:[%s1 + $0x110] sm:$0xff]
    %v758 = vld [vmem:[%s1 + $0x118] sm:$0xff]
    %v759 = vld [vmem:[%s1 + $0x120] sm:$0xff]
    %v760 = vld [vmem:[%s1 + $0x128] sm:$0xff]
    %v761 = vld [vmem:[%s1 + $0x130] sm:$0xff]
    %v762 = vld [vmem:[%s1 + $0x138] sm:$0xff]
    %v763 = vld [vmem:[%s1 + $0x140] sm:$0xff]
    %v764 = vld [vmem:[%s1 + $0x148] sm:$0xff]
    %v765 = vld [vmem:[%s1 + $0x150] sm:$0xff]
    %v766 = vld [vmem:[%s1 + $0x158] sm:$0xff]
    %v767 = vld [vmem:[%s1 + $0x160] sm:$0xff]
    %v768 = vld [vmem:[%s1 + $0x168] sm:$0xff]
    %v769 = vld [vmem:[%s1 + $0x170] sm:$0xff]
    %v770 = vld [vmem:[%s1 + $0x178] sm:$0xff]
    %v771 = vld [vmem:[%s1 + $0x180] sm:$0xff]
    %v772 = vld [vmem:[%s1 + $0x188] sm:$0xff]
    %v773 = vld [vmem:[%s1 + $0x190] sm:$0xff]
    %v774 = vld [vmem:[%s1 + $0x198] sm:$0xff]
    %v775 = vld [vmem:[%s1 + $0x1a0] sm:$0xff]
    %v776 = vld [vmem:[%s1 + $0x1a8] sm:$0xff]
    %v777 = vld [vmem:[%s1 + $0x1b0] sm:$0xff]
    %v778 = vld [vmem:[%s1 + $0x1b8] sm:$0xff]
    %v779 = vld [vmem:[%s1 + $0x1c0] sm:$0xff]
    %v780 = vld [vmem:[%s1 + $0x1c8] sm:$0xff]
    %v781 = vld [vmem:[%s1 + $0x1d0] sm:$0xff]
    %v782 = vld [vmem:[%s1 + $0x1d8] sm:$0xff]
    %v783 = vld [vmem:[%s1 + $0x1e0] sm:$0xff]
    %v784 = vld [vmem:[%s1 + $0x1e8] sm:$0xff]
    %v785 = vld [vmem:[%s1 + $0x1f0] sm:$0xff]
    %v786 = vld [vmem:[%s1 + $0x1f8] sm:$0xff]
    %v787 = vld [vmem:[%s1 + $0x200] sm:$0xff]
    %v788 = vld [vmem:[%s1 + $0x208] sm:$0xff]
    %v789 = vld [vmem:[%s1 + $0x210] sm:$0xff]
    %v790 = vld [vmem:[%s1 + $0x218] sm:$0xff]
    %v791 = vld [vmem:[%s1 + $0x220] sm:$0xff]
    %v792 = vld [vmem:[%s1 + $0x228] sm:$0xff]
    %v793 = vld [vmem:[%s1 + $0x230] sm:$0xff]
    %v794 = vld [vmem:[%s1 + $0x238] sm:$0xff]
    %v795 = vld [vmem:[%s1 + $0x240] sm:$0xff]
    %v796 = vld [vmem:[%s1 + $0x248] sm:$0xff]
    %v797 = vld [vmem:[%s1 + $0x250] sm:$0xff]
    %v798 = vld [vmem:[%s1 + $0x258] sm:$0xff]
    %v799 = vld [vmem:[%s1 + $0x260] sm:$0xff]
    %v800 = vld [vmem:[%s1 + $0x268] sm:$0xff]
    %v801 = vld [vmem:[%s1 + $0x270] sm:$0xff]
    %v802 = vld [vmem:[%s1 + $0x278] sm:$0xff]
    %v803 = vld [vmem:[%s1 + $0x280] sm:$0xff]
    %v804 = vld [vmem:[%s1 + $0x288] sm:$0xff]
    %v805 = vld [vmem:[%s1 + $0x290] sm:$0xff]
    %v806 = vld [vmem:[%s1 + $0x298] sm:$0xff]
    %v807 = vld [vmem:[%s1 + $0x2a0] sm:$0xff]
    %v808 = vld [vmem:[%s1 + $0x2a8] sm:$0xff]
    %v809 = vld [vmem:[%s1 + $0x2b0] sm:$0xff]
    %v810 = vld [vmem:[%s1 + $0x2b8] sm:$0xff]
    %v811 = vld [vmem:[%s1 + $0x2c0] sm:$0xff]
    %v812 = vld [vmem:[%s1 + $0x2c8] sm:$0xff]
    %v813 = vld [vmem:[%s1 + $0x2d0] sm:$0xff]
    %v814 = vld [vmem:[%s1 + $0x2d8] sm:$0xff]
    %v815 = vld [vmem:[%s1 + $0x2e0] sm:$0xff]
    %v816 = vld [vmem:[%s1 + $0x2e8] sm:$0xff]
    %v817 = vld [vmem:[%s1 + $0x2f0] sm:$0xff]
    %v818 = vld [vmem:[%s1 + $0x2f8] sm:$0xff]
    %v819 = vld [vmem:[%s1 + $0x300] sm:$0xff]
    %v820 = vld [vmem:[%s1 + $0x308] sm:$0xff]
    %v821 = vld [vmem:[%s1 + $0x310] sm:$0xff]
    %v822 = vld [vmem:[%s1 + $0x318] sm:$0xff]
    %v823 = vld [vmem:[%s1 + $0x320] sm:$0xff]
    %v824 = vld [vmem:[%s1 + $0x328] sm:$0xff]
    %v825 = vld [vmem:[%s1 + $0x330] sm:$0xff]
    %v826 = vld [vmem:[%s1 + $0x338] sm:$0xff]
    %v827 = vld [vmem:[%s1 + $0x340] sm:$0xff]
    %v828 = vld [vmem:[%s1 + $0x348] sm:$0xff]
    %v829 = vld [vmem:[%s1 + $0x350] sm:$0xff]
    %v830 = vld [vmem:[%s1 + $0x358] sm:$0xff]
    %v831 = vld [vmem:[%s1 + $0x360] sm:$0xff]
    %v832 = vld [vmem:[%s1 + $0x368] sm:$0xff]
    %v833 = vld [vmem:[%s1 + $0x370] sm:$0xff]
    %v834 = vld [vmem:[%s1 + $0x378] sm:$0xff]
    %v835 = vld [vmem:[%s1 + $0x380] sm:$0xff]
    %v836 = vld [vmem:[%s1 + $0x388] sm:$0xff]
    %v837 = vld [vmem:[%s1 + $0x390] sm:$0xff]
    %v838 = vld [vmem:[%s1 + $0x398] sm:$0xff]
    %v839 = vld [vmem:[%s1 + $0x3a0] sm:$0xff]
    %v840 = vld [vmem:[%s1 + $0x3a8] sm:$0xff]
    %v841 = vld [vmem:[%s1 + $0x3b0] sm:$0xff]
    %v842 = vld [vmem:[%s1 + $0x3b8] sm:$0xff]
    %v843 = vld [vmem:[%s1 + $0x3c0] sm:$0xff]
    %v844 = vld [vmem:[%s1 + $0x3c8] sm:$0xff]
    %v845 = vld [vmem:[%s1 + $0x3d0] sm:$0xff]
    %v846 = vld [vmem:[%s1 + $0x3d8] sm:$0xff]
    %v847 = vld [vmem:[%s1 + $0x3e0] sm:$0xff]
    %v848 = vld [vmem:[%s1 + $0x3e8] sm:$0xff]
    %v849 = vld [vmem:[%s1 + $0x3f0] sm:$0xff]
    %v850 = vld [vmem:[%s1 + $0x3f8] sm:$0xff]
    %v851 = vsel %vm324, %v723, -inf
    %852 = vmax.xlane.f32.xlu0 %v851
    %v853 = vpop.xlane.xlu0 %852
    %v854 = vsel %vm324, %v724, -inf
    %855 = vmax.xlane.f32.xlu0 %v854
    %v856 = vpop.xlane.xlu0 %855
    %v857 = vsel %vm324, %v725, -inf
    %858 = vmax.xlane.f32.xlu0 %v857
    %v859 = vpop.xlane.xlu0 %858
    %v860 = vsel %vm324, %v726, -inf
    %861 = vmax.xlane.f32.xlu0 %v860
    %v862 = vpop.xlane.xlu0 %861
    %v863 = vsel %vm324, %v727, -inf
    %864 = vmax.xlane.f32.xlu0 %v863
    %v865 = vpop.xlane.xlu0 %864
    %v866 = vsel %vm324, %v728, -inf
    %867 = vmax.xlane.f32.xlu0 %v866
    %v868 = vpop.xlane.xlu0 %867
    %v869 = vsel %vm324, %v729, -inf
    %870 = vmax.xlane.f32.xlu0 %v869
    %v871 = vpop.xlane.xlu0 %870
    %v872 = vsel %vm324, %v730, -inf
    %873 = vmax.xlane.f32.xlu0 %v872
    %v874 = vpop.xlane.xlu0 %873
    %v875 = vsel %vm324, %v731, -inf
    %876 = vmax.xlane.f32.xlu0 %v875
    %v877 = vpop.xlane.xlu0 %876
    %v878 = vsel %vm324, %v732, -inf
    %879 = vmax.xlane.f32.xlu0 %v878
    %v880 = vpop.xlane.xlu0 %879
    %v881 = vsel %vm324, %v733, -inf
    %882 = vmax.xlane.f32.xlu0 %v881
    %v883 = vpop.xlane.xlu0 %882
    %v884 = vsel %vm324, %v734, -inf
    %885 = vmax.xlane.f32.xlu0 %v884
    %v886 = vpop.xlane.xlu0 %885
    %v887 = vsel %vm324, %v735, -inf
    %888 = vmax.xlane.f32.xlu0 %v887
    %v889 = vpop.xlane.xlu0 %888
    %v890 = vsel %vm324, %v736, -inf
    %891 = vmax.xlane.f32.xlu0 %v890
    %v892 = vpop.xlane.xlu0 %891
    %v893 = vsel %vm324, %v737, -inf
    %894 = vmax.xlane.f32.xlu0 %v893
    %v895 = vpop.xlane.xlu0 %894
    %v896 = vsel %vm324, %v738, -inf
    %897 = vmax.xlane.f32.xlu0 %v896
    %v898 = vpop.xlane.xlu0 %897
    %v899 = vsel %vm324, %v739, -inf
    %900 = vmax.xlane.f32.xlu0 %v899
    %v901 = vpop.xlane.xlu0 %900
    %v902 = vsel %vm324, %v740, -inf
    %903 = vmax.xlane.f32.xlu0 %v902
    %v904 = vpop.xlane.xlu0 %903
    %v905 = vsel %vm324, %v741, -inf
    %906 = vmax.xlane.f32.xlu0 %v905
    %v907 = vpop.xlane.xlu0 %906
    %v908 = vsel %vm324, %v742, -inf
    %909 = vmax.xlane.f32.xlu0 %v908
    %v910 = vpop.xlane.xlu0 %909
    %v911 = vsel %vm324, %v743, -inf
    %912 = vmax.xlane.f32.xlu0 %v911
    %v913 = vpop.xlane.xlu0 %912
    %v914 = vsel %vm324, %v744, -inf
    %915 = vmax.xlane.f32.xlu0 %v914
    %v916 = vpop.xlane.xlu0 %915
    %v917 = vsel %vm324, %v745, -inf
    %918 = vmax.xlane.f32.xlu0 %v917
    %v919 = vpop.xlane.xlu0 %918
    %v920 = vsel %vm324, %v746, -inf
    %921 = vmax.xlane.f32.xlu0 %v920
    %v922 = vpop.xlane.xlu0 %921
    %v923 = vsel %vm324, %v747, -inf
    %924 = vmax.xlane.f32.xlu0 %v923
    %v925 = vpop.xlane.xlu0 %924
    %v926 = vsel %vm324, %v748, -inf
    %927 = vmax.xlane.f32.xlu0 %v926
    %v928 = vpop.xlane.xlu0 %927
    %v929 = vsel %vm324, %v749, -inf
    %930 = vmax.xlane.f32.xlu0 %v929
    %v931 = vpop.xlane.xlu0 %930
    %v932 = vsel %vm324, %v750, -inf
    %933 = vmax.xlane.f32.xlu0 %v932
    %v934 = vpop.xlane.xlu0 %933
    %v935 = vsel %vm324, %v751, -inf
    %936 = vmax.xlane.f32.xlu0 %v935
    %v937 = vpop.xlane.xlu0 %936
    %v938 = vsel %vm324, %v752, -inf
    %939 = vmax.xlane.f32.xlu0 %v938
    %v940 = vpop.xlane.xlu0 %939
    %v941 = vsel %vm324, %v753, -inf
    %942 = vmax.xlane.f32.xlu0 %v941
    %v943 = vpop.xlane.xlu0 %942
    %v944 = vsel %vm324, %v754, -inf
    %945 = vmax.xlane.f32.xlu0 %v944
    %v946 = vpop.xlane.xlu0 %945
    %v947 = vsel %vm324, %v755, -inf
    %948 = vmax.xlane.f32.xlu0 %v947
    %v949 = vpop.xlane.xlu0 %948
    %v950 = vsel %vm324, %v756, -inf
    %951 = vmax.xlane.f32.xlu0 %v950
    %v952 = vpop.xlane.xlu0 %951
    %v953 = vsel %vm324, %v757, -inf
    %954 = vmax.xlane.f32.xlu0 %v953
    %v955 = vpop.xlane.xlu0 %954
    %v956 = vsel %vm324, %v758, -inf
    %957 = vmax.xlane.f32.xlu0 %v956
    %v958 = vpop.xlane.xlu0 %957
    %v959 = vsel %vm324, %v759, -inf
    %960 = vmax.xlane.f32.xlu0 %v959
    %v961 = vpop.xlane.xlu0 %960
    %v962 = vsel %vm324, %v760, -inf
    %963 = vmax.xlane.f32.xlu0 %v962
    %v964 = vpop.xlane.xlu0 %963
    %v965 = vsel %vm324, %v761, -inf
    %966 = vmax.xlane.f32.xlu0 %v965
    %v967 = vpop.xlane.xlu0 %966
    %v968 = vsel %vm324, %v762, -inf
    %969 = vmax.xlane.f32.xlu0 %v968
    %v970 = vpop.xlane.xlu0 %969
    %v971 = vsel %vm324, %v763, -inf
    %972 = vmax.xlane.f32.xlu0 %v971
    %v973 = vpop.xlane.xlu0 %972
    %v974 = vsel %vm324, %v764, -inf
    %975 = vmax.xlane.f32.xlu0 %v974
    %v976 = vpop.xlane.xlu0 %975
    %v977 = vsel %vm324, %v765, -inf
    %978 = vmax.xlane.f32.xlu0 %v977
    %v979 = vpop.xlane.xlu0 %978
    %v980 = vsel %vm324, %v766, -inf
    %981 = vmax.xlane.f32.xlu0 %v980
    %v982 = vpop.xlane.xlu0 %981
    %v983 = vsel %vm324, %v767, -inf
    %984 = vmax.xlane.f32.xlu0 %v983
    %v985 = vpop.xlane.xlu0 %984
    %v986 = vsel %vm324, %v768, -inf
    %987 = vmax.xlane.f32.xlu0 %v986
    %v988 = vpop.xlane.xlu0 %987
    %v989 = vsel %vm324, %v769, -inf
    %990 = vmax.xlane.f32.xlu0 %v989
    %v991 = vpop.xlane.xlu0 %990
    %v992 = vsel %vm324, %v770, -inf
    %993 = vmax.xlane.f32.xlu0 %v992
    %v994 = vpop.xlane.xlu0 %993
    %v995 = vsel %vm324, %v771, -inf
    %996 = vmax.xlane.f32.xlu0 %v995
    %v997 = vpop.xlane.xlu0 %996
    %v998 = vsel %vm324, %v772, -inf
    %999 = vmax.xlane.f32.xlu0 %v998
    %v1000 = vpop.xlane.xlu0 %999
    %v1001 = vsel %vm324, %v773, -inf
    %1002 = vmax.xlane.f32.xlu0 %v1001
    %v1003 = vpop.xlane.xlu0 %1002
    %v1004 = vsel %vm324, %v774, -inf
    %1005 = vmax.xlane.f32.xlu0 %v1004
    %v1006 = vpop.xlane.xlu0 %1005
    %v1007 = vsel %vm324, %v775, -inf
    %1008 = vmax.xlane.f32.xlu0 %v1007
    %v1009 = vpop.xlane.xlu0 %1008
    %v1010 = vsel %vm324, %v776, -inf
    %1011 = vmax.xlane.f32.xlu0 %v1010
    %v1012 = vpop.xlane.xlu0 %1011
    %v1013 = vsel %vm324, %v777, -inf
    %1014 = vmax.xlane.f32.xlu0 %v1013
    %v1015 = vpop.xlane.xlu0 %1014
    %v1016 = vsel %vm324, %v778, -inf
    %1017 = vmax.xlane.f32.xlu0 %v1016
    %v1018 = vpop.xlane.xlu0 %1017
    %v1019 = vsel %vm324, %v779, -inf
    %1020 = vmax.xlane.f32.xlu0 %v1019
    %v1021 = vpop.xlane.xlu0 %1020
    %v1022 = vsel %vm324, %v780, -inf
    %1023 = vmax.xlane.f32.xlu0 %v1022
    %v1024 = vpop.xlane.xlu0 %1023
    %v1025 = vsel %vm324, %v781, -inf
    %1026 = vmax.xlane.f32.xlu0 %v1025
    %v1027 = vpop.xlane.xlu0 %1026
    %v1028 = vsel %vm324, %v782, -inf
    %1029 = vmax.xlane.f32.xlu0 %v1028
    %v1030 = vpop.xlane.xlu0 %1029
    %v1031 = vsel %vm324, %v783, -inf
    %1032 = vmax.xlane.f32.xlu0 %v1031
    %v1033 = vpop.xlane.xlu0 %1032
    %v1034 = vsel %vm324, %v784, -inf
    %1035 = vmax.xlane.f32.xlu0 %v1034
    %v1036 = vpop.xlane.xlu0 %1035
    %v1037 = vsel %vm324, %v785, -inf
    %1038 = vmax.xlane.f32.xlu0 %v1037
    %v1039 = vpop.xlane.xlu0 %1038
    %v1040 = vsel %vm324, %v786, -inf
    %1041 = vmax.xlane.f32.xlu0 %v1040
    %v1042 = vpop.xlane.xlu0 %1041
    %v1043 = vsel %vm324, %v787, -inf
    %1044 = vmax.xlane.f32.xlu0 %v1043
    %v1045 = vpop.xlane.xlu0 %1044
    %v1046 = vsel %vm324, %v788, -inf
    %1047 = vmax.xlane.f32.xlu0 %v1046
    %v1048 = vpop.xlane.xlu0 %1047
    %v1049 = vsel %vm324, %v789, -inf
    %1050 = vmax.xlane.f32.xlu0 %v1049
    %v1051 = vpop.xlane.xlu0 %1050
    %v1052 = vsel %vm324, %v790, -inf
    %1053 = vmax.xlane.f32.xlu0 %v1052
    %v1054 = vpop.xlane.xlu0 %1053
    %v1055 = vsel %vm324, %v791, -inf
    %1056 = vmax.xlane.f32.xlu0 %v1055
    %v1057 = vpop.xlane.xlu0 %1056
    %v1058 = vsel %vm324, %v792, -inf
    %1059 = vmax.xlane.f32.xlu0 %v1058
    %v1060 = vpop.xlane.xlu0 %1059
    %v1061 = vsel %vm324, %v793, -inf
    %1062 = vmax.xlane.f32.xlu0 %v1061
    %v1063 = vpop.xlane.xlu0 %1062
    %v1064 = vsel %vm324, %v794, -inf
    %1065 = vmax.xlane.f32.xlu0 %v1064
    %v1066 = vpop.xlane.xlu0 %1065
    %v1067 = vsel %vm324, %v795, -inf
    %1068 = vmax.xlane.f32.xlu0 %v1067
    %v1069 = vpop.xlane.xlu0 %1068
    %v1070 = vsel %vm324, %v796, -inf
    %1071 = vmax.xlane.f32.xlu0 %v1070
    %v1072 = vpop.xlane.xlu0 %1071
    %v1073 = vsel %vm324, %v797, -inf
    %1074 = vmax.xlane.f32.xlu0 %v1073
    %v1075 = vpop.xlane.xlu0 %1074
    %v1076 = vsel %vm324, %v798, -inf
    %1077 = vmax.xlane.f32.xlu0 %v1076
    %v1078 = vpop.xlane.xlu0 %1077
    %v1079 = vsel %vm324, %v799, -inf
    %1080 = vmax.xlane.f32.xlu0 %v1079
    %v1081 = vpop.xlane.xlu0 %1080
    %v1082 = vsel %vm324, %v800, -inf
    %1083 = vmax.xlane.f32.xlu0 %v1082
    %v1084 = vpop.xlane.xlu0 %1083
    %v1085 = vsel %vm324, %v801, -inf
    %1086 = vmax.xlane.f32.xlu0 %v1085
    %v1087 = vpop.xlane.xlu0 %1086
    %v1088 = vsel %vm324, %v802, -inf
    %1089 = vmax.xlane.f32.xlu0 %v1088
    %v1090 = vpop.xlane.xlu0 %1089
    %v1091 = vsel %vm324, %v803, -inf
    %1092 = vmax.xlane.f32.xlu0 %v1091
    %v1093 = vpop.xlane.xlu0 %1092
    %v1094 = vsel %vm324, %v804, -inf
    %1095 = vmax.xlane.f32.xlu0 %v1094
    %v1096 = vpop.xlane.xlu0 %1095
    %v1097 = vsel %vm324, %v805, -inf
    %1098 = vmax.xlane.f32.xlu0 %v1097
    %v1099 = vpop.xlane.xlu0 %1098
    %v1100 = vsel %vm324, %v806, -inf
    %1101 = vmax.xlane.f32.xlu0 %v1100
    %v1102 = vpop.xlane.xlu0 %1101
    %v1103 = vsel %vm324, %v807, -inf
    %1104 = vmax.xlane.f32.xlu0 %v1103
    %v1105 = vpop.xlane.xlu0 %1104
    %v1106 = vsel %vm324, %v808, -inf
    %1107 = vmax.xlane.f32.xlu0 %v1106
    %v1108 = vpop.xlane.xlu0 %1107
    %v1109 = vsel %vm324, %v809, -inf
    %1110 = vmax.xlane.f32.xlu0 %v1109
    %v1111 = vpop.xlane.xlu0 %1110
    %v1112 = vsel %vm324, %v810, -inf
    %1113 = vmax.xlane.f32.xlu0 %v1112
    %v1114 = vpop.xlane.xlu0 %1113
    %v1115 = vsel %vm324, %v811, -inf
    %1116 = vmax.xlane.f32.xlu0 %v1115
    %v1117 = vpop.xlane.xlu0 %1116
    %v1118 = vsel %vm324, %v812, -inf
    %1119 = vmax.xlane.f32.xlu0 %v1118
    %v1120 = vpop.xlane.xlu0 %1119
    %v1121 = vsel %vm324, %v813, -inf
    %1122 = vmax.xlane.f32.xlu0 %v1121
    %v1123 = vpop.xlane.xlu0 %1122
    %v1124 = vsel %vm324, %v814, -inf
    %1125 = vmax.xlane.f32.xlu0 %v1124
    %v1126 = vpop.xlane.xlu0 %1125
    %v1127 = vsel %vm324, %v815, -inf
    %1128 = vmax.xlane.f32.xlu0 %v1127
    %v1129 = vpop.xlane.xlu0 %1128
    %v1130 = vsel %vm324, %v816, -inf
    %1131 = vmax.xlane.f32.xlu0 %v1130
    %v1132 = vpop.xlane.xlu0 %1131
    %v1133 = vsel %vm324, %v817, -inf
    %1134 = vmax.xlane.f32.xlu0 %v1133
    %v1135 = vpop.xlane.xlu0 %1134
    %v1136 = vsel %vm324, %v818, -inf
    %1137 = vmax.xlane.f32.xlu0 %v1136
    %v1138 = vpop.xlane.xlu0 %1137
    %v1139 = vsel %vm324, %v819, -inf
    %1140 = vmax.xlane.f32.xlu0 %v1139
    %v1141 = vpop.xlane.xlu0 %1140
    %v1142 = vsel %vm324, %v820, -inf
    %1143 = vmax.xlane.f32.xlu0 %v1142
    %v1144 = vpop.xlane.xlu0 %1143
    %v1145 = vsel %vm324, %v821, -inf
    %1146 = vmax.xlane.f32.xlu0 %v1145
    %v1147 = vpop.xlane.xlu0 %1146
    %v1148 = vsel %vm324, %v822, -inf
    %1149 = vmax.xlane.f32.xlu0 %v1148
    %v1150 = vpop.xlane.xlu0 %1149
    %v1151 = vsel %vm324, %v823, -inf
    %1152 = vmax.xlane.f32.xlu0 %v1151
    %v1153 = vpop.xlane.xlu0 %1152
    %v1154 = vsel %vm324, %v824, -inf
    %1155 = vmax.xlane.f32.xlu0 %v1154
    %v1156 = vpop.xlane.xlu0 %1155
    %v1157 = vsel %vm324, %v825, -inf
    %1158 = vmax.xlane.f32.xlu0 %v1157
    %v1159 = vpop.xlane.xlu0 %1158
    %v1160 = vsel %vm324, %v826, -inf
    %1161 = vmax.xlane.f32.xlu0 %v1160
    %v1162 = vpop.xlane.xlu0 %1161
    %v1163 = vsel %vm324, %v827, -inf
    %1164 = vmax.xlane.f32.xlu0 %v1163
    %v1165 = vpop.xlane.xlu0 %1164
    %v1166 = vsel %vm324, %v828, -inf
    %1167 = vmax.xlane.f32.xlu0 %v1166
    %v1168 = vpop.xlane.xlu0 %1167
    %v1169 = vsel %vm324, %v829, -inf
    %1170 = vmax.xlane.f32.xlu0 %v1169
    %v1171 = vpop.xlane.xlu0 %1170
    %v1172 = vsel %vm324, %v830, -inf
    %1173 = vmax.xlane.f32.xlu0 %v1172
    %v1174 = vpop.xlane.xlu0 %1173
    %v1175 = vsel %vm324, %v831, -inf
    %1176 = vmax.xlane.f32.xlu0 %v1175
    %v1177 = vpop.xlane.xlu0 %1176
    %v1178 = vsel %vm324, %v832, -inf
    %1179 = vmax.xlane.f32.xlu0 %v1178
    %v1180 = vpop.xlane.xlu0 %1179
    %v1181 = vsel %vm324, %v833, -inf
    %1182 = vmax.xlane.f32.xlu0 %v1181
    %v1183 = vpop.xlane.xlu0 %1182
    %v1184 = vsel %vm324, %v834, -inf
    %1185 = vmax.xlane.f32.xlu0 %v1184
    %v1186 = vpop.xlane.xlu0 %1185
    %v1187 = vsel %vm324, %v835, -inf
    %1188 = vmax.xlane.f32.xlu0 %v1187
    %v1189 = vpop.xlane.xlu0 %1188
    %v1190 = vsel %vm324, %v836, -inf
    %1191 = vmax.xlane.f32.xlu0 %v1190
    %v1192 = vpop.xlane.xlu0 %1191
    %v1193 = vsel %vm324, %v837, -inf
    %1194 = vmax.xlane.f32.xlu0 %v1193
    %v1195 = vpop.xlane.xlu0 %1194
    %v1196 = vsel %vm324, %v838, -inf
    %1197 = vmax.xlane.f32.xlu0 %v1196
    %v1198 = vpop.xlane.xlu0 %1197
    %v1199 = vsel %vm324, %v839, -inf
    %1200 = vmax.xlane.f32.xlu0 %v1199
    %v1201 = vpop.xlane.xlu0 %1200
    %v1202 = vsel %vm324, %v840, -inf
    %1203 = vmax.xlane.f32.xlu0 %v1202
    %v1204 = vpop.xlane.xlu0 %1203
    %v1205 = vsel %vm324, %v841, -inf
    %1206 = vmax.xlane.f32.xlu0 %v1205
    %v1207 = vpop.xlane.xlu0 %1206
    %v1208 = vsel %vm324, %v842, -inf
    %1209 = vmax.xlane.f32.xlu0 %v1208
    %v1210 = vpop.xlane.xlu0 %1209
    %v1211 = vsel %vm324, %v843, -inf
    %1212 = vmax.xlane.f32.xlu0 %v1211
    %v1213 = vpop.xlane.xlu0 %1212
    %v1214 = vsel %vm324, %v844, -inf
    %1215 = vmax.xlane.f32.xlu0 %v1214
    %v1216 = vpop.xlane.xlu0 %1215
    %v1217 = vsel %vm324, %v845, -inf
    %1218 = vmax.xlane.f32.xlu0 %v1217
    %v1219 = vpop.xlane.xlu0 %1218
    %v1220 = vsel %vm324, %v846, -inf
    %1221 = vmax.xlane.f32.xlu0 %v1220
    %v1222 = vpop.xlane.xlu0 %1221
    %v1223 = vsel %vm324, %v847, -inf
    %1224 = vmax.xlane.f32.xlu0 %v1223
    %v1225 = vpop.xlane.xlu0 %1224
    %v1226 = vsel %vm324, %v848, -inf
    %1227 = vmax.xlane.f32.xlu0 %v1226
    %v1228 = vpop.xlane.xlu0 %1227
    %v1229 = vsel %vm324, %v849, -inf
    %1230 = vmax.xlane.f32.xlu0 %v1229
    %v1231 = vpop.xlane.xlu0 %1230
    %v1232 = vsel %vm324, %v850, -inf
    %1233 = vmax.xlane.f32.xlu0 %v1232
    %v1234 = vpop.xlane.xlu0 %1233
    %v1235 = vpack.c.bf16 %v856, %v853
    %v1236 = vpack.c.bf16 %v862, %v859
    %v1237 = vpack.c.bf16 %v868, %v865
    %v1238 = vpack.c.bf16 %v874, %v871
    %v1239 = vpack.c.bf16 %v880, %v877
    %v1240 = vpack.c.bf16 %v886, %v883
    %v1241 = vpack.c.bf16 %v892, %v889
    %v1242 = vpack.c.bf16 %v898, %v895
    %v1243 = vpack.c.bf16 %v904, %v901
    %v1244 = vpack.c.bf16 %v910, %v907
    %v1245 = vpack.c.bf16 %v916, %v913
    %v1246 = vpack.c.bf16 %v922, %v919
    %v1247 = vpack.c.bf16 %v928, %v925
    %v1248 = vpack.c.bf16 %v934, %v931
    %v1249 = vpack.c.bf16 %v940, %v937
    %v1250 = vpack.c.bf16 %v946, %v943
    %v1251 = vpack.c.bf16 %v952, %v949
    %v1252 = vpack.c.bf16 %v958, %v955
    %v1253 = vpack.c.bf16 %v964, %v961
    %v1254 = vpack.c.bf16 %v970, %v967
    %v1255 = vpack.c.bf16 %v976, %v973
    %v1256 = vpack.c.bf16 %v982, %v979
    %v1257 = vpack.c.bf16 %v988, %v985
    %v1258 = vpack.c.bf16 %v994, %v991
    %v1259 = vpack.c.bf16 %v1000, %v997
    %v1260 = vpack.c.bf16 %v1006, %v1003
    %v1261 = vpack.c.bf16 %v1012, %v1009
    %v1262 = vpack.c.bf16 %v1018, %v1015
    %v1263 = vpack.c.bf16 %v1024, %v1021
    %v1264 = vpack.c.bf16 %v1030, %v1027
    %v1265 = vpack.c.bf16 %v1036, %v1033
    %v1266 = vpack.c.bf16 %v1042, %v1039
    %v1267 = vpack.c.bf16 %v1048, %v1045
    %v1268 = vpack.c.bf16 %v1054, %v1051
    %v1269 = vpack.c.bf16 %v1060, %v1057
    %v1270 = vpack.c.bf16 %v1066, %v1063
    %v1271 = vpack.c.bf16 %v1072, %v1069
    %v1272 = vpack.c.bf16 %v1078, %v1075
    %v1273 = vpack.c.bf16 %v1084, %v1081
    %v1274 = vpack.c.bf16 %v1090, %v1087
    %v1275 = vpack.c.bf16 %v1096, %v1093
    %v1276 = vpack.c.bf16 %v1102, %v1099
    %v1277 = vpack.c.bf16 %v1108, %v1105
    %v1278 = vpack.c.bf16 %v1114, %v1111
    %v1279 = vpack.c.bf16 %v1120, %v1117
    %v1280 = vpack.c.bf16 %v1126, %v1123
    %v1281 = vpack.c.bf16 %v1132, %v1129
    %v1282 = vpack.c.bf16 %v1138, %v1135
    %v1283 = vpack.c.bf16 %v1144, %v1141
    %v1284 = vpack.c.bf16 %v1150, %v1147
    %v1285 = vpack.c.bf16 %v1156, %v1153
    %v1286 = vpack.c.bf16 %v1162, %v1159
    %v1287 = vpack.c.bf16 %v1168, %v1165
    %v1288 = vpack.c.bf16 %v1174, %v1171
    %v1289 = vpack.c.bf16 %v1180, %v1177
    %v1290 = vpack.c.bf16 %v1186, %v1183
    %v1291 = vpack.c.bf16 %v1192, %v1189
    %v1292 = vpack.c.bf16 %v1198, %v1195
    %v1293 = vpack.c.bf16 %v1204, %v1201
    %v1294 = vpack.c.bf16 %v1210, %v1207
    %v1295 = vpack.c.bf16 %v1216, %v1213
    %v1296 = vpack.c.bf16 %v1222, %v1219
    %v1297 = vpack.c.bf16 %v1228, %v1225
    %v1298 = vpack.c.bf16 %v1234, %v1231
    %v1299 = vld [vmem:[%s2] sm:$0xff]
    %v1300 = vld [vmem:[%s2 + $0x8] sm:$0xff]
    %v1301 = vld [vmem:[%s2 + $0x10] sm:$0xff]
    %v1302 = vld [vmem:[%s2 + $0x18] sm:$0xff]
    %v1303 = vld [vmem:[%s2 + $0x20] sm:$0xff]
    %v1304 = vld [vmem:[%s2 + $0x28] sm:$0xff]
    %v1305 = vld [vmem:[%s2 + $0x30] sm:$0xff]
    %v1306 = vld [vmem:[%s2 + $0x38] sm:$0xff]
    %v1307 = vld [vmem:[%s2 + $0x40] sm:$0xff]
    %v1308 = vld [vmem:[%s2 + $0x48] sm:$0xff]
    %v1309 = vld [vmem:[%s2 + $0x50] sm:$0xff]
    %v1310 = vld [vmem:[%s2 + $0x58] sm:$0xff]
    %v1311 = vld [vmem:[%s2 + $0x60] sm:$0xff]
    %v1312 = vld [vmem:[%s2 + $0x68] sm:$0xff]
    %v1313 = vld [vmem:[%s2 + $0x70] sm:$0xff]
    %v1314 = vld [vmem:[%s2 + $0x78] sm:$0xff]
    %v1315 = vld [vmem:[%s2 + $0x80] sm:$0xff]
    %v1316 = vld [vmem:[%s2 + $0x88] sm:$0xff]
    %v1317 = vld [vmem:[%s2 + $0x90] sm:$0xff]
    %v1318 = vld [vmem:[%s2 + $0x98] sm:$0xff]
    %v1319 = vld [vmem:[%s2 + $0xa0] sm:$0xff]
    %v1320 = vld [vmem:[%s2 + $0xa8] sm:$0xff]
    %v1321 = vld [vmem:[%s2 + $0xb0] sm:$0xff]
    %v1322 = vld [vmem:[%s2 + $0xb8] sm:$0xff]
    %v1323 = vld [vmem:[%s2 + $0xc0] sm:$0xff]
    %v1324 = vld [vmem:[%s2 + $0xc8] sm:$0xff]
    %v1325 = vld [vmem:[%s2 + $0xd0] sm:$0xff]
    %v1326 = vld [vmem:[%s2 + $0xd8] sm:$0xff]
    %v1327 = vld [vmem:[%s2 + $0xe0] sm:$0xff]
    %v1328 = vld [vmem:[%s2 + $0xe8] sm:$0xff]
    %v1329 = vld [vmem:[%s2 + $0xf0] sm:$0xff]
    %v1330 = vld [vmem:[%s2 + $0xf8] sm:$0xff]
    %v1331 = vld [vmem:[%s2 + $0x100] sm:$0xff]
    %v1332 = vld [vmem:[%s2 + $0x108] sm:$0xff]
    %v1333 = vld [vmem:[%s2 + $0x110] sm:$0xff]
    %v1334 = vld [vmem:[%s2 + $0x118] sm:$0xff]
    %v1335 = vld [vmem:[%s2 + $0x120] sm:$0xff]
    %v1336 = vld [vmem:[%s2 + $0x128] sm:$0xff]
    %v1337 = vld [vmem:[%s2 + $0x130] sm:$0xff]
    %v1338 = vld [vmem:[%s2 + $0x138] sm:$0xff]
    %v1339 = vld [vmem:[%s2 + $0x140] sm:$0xff]
    %v1340 = vld [vmem:[%s2 + $0x148] sm:$0xff]
    %v1341 = vld [vmem:[%s2 + $0x150] sm:$0xff]
    %v1342 = vld [vmem:[%s2 + $0x158] sm:$0xff]
    %v1343 = vld [vmem:[%s2 + $0x160] sm:$0xff]
    %v1344 = vld [vmem:[%s2 + $0x168] sm:$0xff]
    %v1345 = vld [vmem:[%s2 + $0x170] sm:$0xff]
    %v1346 = vld [vmem:[%s2 + $0x178] sm:$0xff]
    %v1347 = vld [vmem:[%s2 + $0x180] sm:$0xff]
    %v1348 = vld [vmem:[%s2 + $0x188] sm:$0xff]
    %v1349 = vld [vmem:[%s2 + $0x190] sm:$0xff]
    %v1350 = vld [vmem:[%s2 + $0x198] sm:$0xff]
    %v1351 = vld [vmem:[%s2 + $0x1a0] sm:$0xff]
    %v1352 = vld [vmem:[%s2 + $0x1a8] sm:$0xff]
    %v1353 = vld [vmem:[%s2 + $0x1b0] sm:$0xff]
    %v1354 = vld [vmem:[%s2 + $0x1b8] sm:$0xff]
    %v1355 = vld [vmem:[%s2 + $0x1c0] sm:$0xff]
    %v1356 = vld [vmem:[%s2 + $0x1c8] sm:$0xff]
    %v1357 = vld [vmem:[%s2 + $0x1d0] sm:$0xff]
    %v1358 = vld [vmem:[%s2 + $0x1d8] sm:$0xff]
    %v1359 = vld [vmem:[%s2 + $0x1e0] sm:$0xff]
    %v1360 = vld [vmem:[%s2 + $0x1e8] sm:$0xff]
    %v1361 = vld [vmem:[%s2 + $0x1f0] sm:$0xff]
    %v1362 = vld [vmem:[%s2 + $0x1f8] sm:$0xff]
    %v1363 = vld [vmem:[%s2 + $0x200] sm:$0xff]
    %v1364 = vld [vmem:[%s2 + $0x208] sm:$0xff]
    %v1365 = vld [vmem:[%s2 + $0x210] sm:$0xff]
    %v1366 = vld [vmem:[%s2 + $0x218] sm:$0xff]
    %v1367 = vld [vmem:[%s2 + $0x220] sm:$0xff]
    %v1368 = vld [vmem:[%s2 + $0x228] sm:$0xff]
    %v1369 = vld [vmem:[%s2 + $0x230] sm:$0xff]
    %v1370 = vld [vmem:[%s2 + $0x238] sm:$0xff]
    %v1371 = vld [vmem:[%s2 + $0x240] sm:$0xff]
    %v1372 = vld [vmem:[%s2 + $0x248] sm:$0xff]
    %v1373 = vld [vmem:[%s2 + $0x250] sm:$0xff]
    %v1374 = vld [vmem:[%s2 + $0x258] sm:$0xff]
    %v1375 = vld [vmem:[%s2 + $0x260] sm:$0xff]
    %v1376 = vld [vmem:[%s2 + $0x268] sm:$0xff]
    %v1377 = vld [vmem:[%s2 + $0x270] sm:$0xff]
    %v1378 = vld [vmem:[%s2 + $0x278] sm:$0xff]
    %v1379 = vld [vmem:[%s2 + $0x280] sm:$0xff]
    %v1380 = vld [vmem:[%s2 + $0x288] sm:$0xff]
    %v1381 = vld [vmem:[%s2 + $0x290] sm:$0xff]
    %v1382 = vld [vmem:[%s2 + $0x298] sm:$0xff]
    %v1383 = vld [vmem:[%s2 + $0x2a0] sm:$0xff]
    %v1384 = vld [vmem:[%s2 + $0x2a8] sm:$0xff]
    %v1385 = vld [vmem:[%s2 + $0x2b0] sm:$0xff]
    %v1386 = vld [vmem:[%s2 + $0x2b8] sm:$0xff]
    %v1387 = vld [vmem:[%s2 + $0x2c0] sm:$0xff]
    %v1388 = vld [vmem:[%s2 + $0x2c8] sm:$0xff]
    %v1389 = vld [vmem:[%s2 + $0x2d0] sm:$0xff]
    %v1390 = vld [vmem:[%s2 + $0x2d8] sm:$0xff]
    %v1391 = vld [vmem:[%s2 + $0x2e0] sm:$0xff]
    %v1392 = vld [vmem:[%s2 + $0x2e8] sm:$0xff]
    %v1393 = vld [vmem:[%s2 + $0x2f0] sm:$0xff]
    %v1394 = vld [vmem:[%s2 + $0x2f8] sm:$0xff]
    %v1395 = vld [vmem:[%s2 + $0x300] sm:$0xff]
    %v1396 = vld [vmem:[%s2 + $0x308] sm:$0xff]
    %v1397 = vld [vmem:[%s2 + $0x310] sm:$0xff]
    %v1398 = vld [vmem:[%s2 + $0x318] sm:$0xff]
    %v1399 = vld [vmem:[%s2 + $0x320] sm:$0xff]
    %v1400 = vld [vmem:[%s2 + $0x328] sm:$0xff]
    %v1401 = vld [vmem:[%s2 + $0x330] sm:$0xff]
    %v1402 = vld [vmem:[%s2 + $0x338] sm:$0xff]
    %v1403 = vld [vmem:[%s2 + $0x340] sm:$0xff]
    %v1404 = vld [vmem:[%s2 + $0x348] sm:$0xff]
    %v1405 = vld [vmem:[%s2 + $0x350] sm:$0xff]
    %v1406 = vld [vmem:[%s2 + $0x358] sm:$0xff]
    %v1407 = vld [vmem:[%s2 + $0x360] sm:$0xff]
    %v1408 = vld [vmem:[%s2 + $0x368] sm:$0xff]
    %v1409 = vld [vmem:[%s2 + $0x370] sm:$0xff]
    %v1410 = vld [vmem:[%s2 + $0x378] sm:$0xff]
    %v1411 = vld [vmem:[%s2 + $0x380] sm:$0xff]
    %v1412 = vld [vmem:[%s2 + $0x388] sm:$0xff]
    %v1413 = vld [vmem:[%s2 + $0x390] sm:$0xff]
    %v1414 = vld [vmem:[%s2 + $0x398] sm:$0xff]
    %v1415 = vld [vmem:[%s2 + $0x3a0] sm:$0xff]
    %v1416 = vld [vmem:[%s2 + $0x3a8] sm:$0xff]
    %v1417 = vld [vmem:[%s2 + $0x3b0] sm:$0xff]
    %v1418 = vld [vmem:[%s2 + $0x3b8] sm:$0xff]
    %v1419 = vld [vmem:[%s2 + $0x3c0] sm:$0xff]
    %v1420 = vld [vmem:[%s2 + $0x3c8] sm:$0xff]
    %v1421 = vld [vmem:[%s2 + $0x3d0] sm:$0xff]
    %v1422 = vld [vmem:[%s2 + $0x3d8] sm:$0xff]
    %v1423 = vld [vmem:[%s2 + $0x3e0] sm:$0xff]
    %v1424 = vld [vmem:[%s2 + $0x3e8] sm:$0xff]
    %v1425 = vld [vmem:[%s2 + $0x3f0] sm:$0xff]
    %v1426 = vld [vmem:[%s2 + $0x3f8] sm:$0xff]
    %v1427 = vld [vmem:[%s3] sm:$0xf]
    %v1429 = vlaneseq
    %v1430 = vshrl.u32 %v1429, 7
    %v1431 = vsub.s32 0, %v1430
    %v1432 = vrot.slane %v1427, %v1431
    %v1433 = vlaneseq
    %v1434 = vshrl.u32 %v1433, 7
    %v1435 = vsub.s32 1, %v1434
    %v1436 = vrot.slane %v1427, %v1435
    %v1437 = vlaneseq
    %v1438 = vshrl.u32 %v1437, 7
    %v1439 = vsub.s32 2, %v1438
    %v1440 = vrot.slane %v1427, %v1439
    %v1441 = vlaneseq
    %v1442 = vshrl.u32 %v1441, 7
    %v1443 = vsub.s32 3, %v1442
    %v1444 = vrot.slane %v1427, %v1443
    %v1513 = vunpack.c.l.b16 %v1235
    %v1514 = vunpack.c.h.b16 %v1235
    %v1515 = vunpack.c.l.b16 %v1236
    %v1516 = vunpack.c.h.b16 %v1236
    %v1517 = vunpack.c.l.b16 %v1237
    %v1518 = vunpack.c.h.b16 %v1237
    %v1519 = vunpack.c.l.b16 %v1238
    %v1520 = vunpack.c.h.b16 %v1238
    %v1521 = vunpack.c.l.b16 %v1239
    %v1522 = vunpack.c.h.b16 %v1239
    %v1523 = vunpack.c.l.b16 %v1240
    %v1524 = vunpack.c.h.b16 %v1240
    %v1525 = vunpack.c.l.b16 %v1241
    %v1526 = vunpack.c.h.b16 %v1241
    %v1527 = vunpack.c.l.b16 %v1242
    %v1528 = vunpack.c.h.b16 %v1242
    %v1529 = vunpack.c.l.b16 %v1243
    %v1530 = vunpack.c.h.b16 %v1243
    %v1531 = vunpack.c.l.b16 %v1244
    %v1532 = vunpack.c.h.b16 %v1244
    %v1533 = vunpack.c.l.b16 %v1245
    %v1534 = vunpack.c.h.b16 %v1245
    %v1535 = vunpack.c.l.b16 %v1246
    %v1536 = vunpack.c.h.b16 %v1246
    %v1537 = vunpack.c.l.b16 %v1247
    %v1538 = vunpack.c.h.b16 %v1247
    %v1539 = vunpack.c.l.b16 %v1248
    %v1540 = vunpack.c.h.b16 %v1248
    %v1541 = vunpack.c.l.b16 %v1249
    %v1542 = vunpack.c.h.b16 %v1249
    %v1543 = vunpack.c.l.b16 %v1250
    %v1544 = vunpack.c.h.b16 %v1250
    %v1545 = vunpack.c.l.b16 %v1251
    %v1546 = vunpack.c.h.b16 %v1251
    %v1547 = vunpack.c.l.b16 %v1252
    %v1548 = vunpack.c.h.b16 %v1252
    %v1549 = vunpack.c.l.b16 %v1253
    %v1550 = vunpack.c.h.b16 %v1253
    %v1551 = vunpack.c.l.b16 %v1254
    %v1552 = vunpack.c.h.b16 %v1254
    %v1553 = vunpack.c.l.b16 %v1255
    %v1554 = vunpack.c.h.b16 %v1255
    %v1555 = vunpack.c.l.b16 %v1256
    %v1556 = vunpack.c.h.b16 %v1256
    %v1557 = vunpack.c.l.b16 %v1257
    %v1558 = vunpack.c.h.b16 %v1257
    %v1559 = vunpack.c.l.b16 %v1258
    %v1560 = vunpack.c.h.b16 %v1258
    %v1561 = vunpack.c.l.b16 %v1259
    %v1562 = vunpack.c.h.b16 %v1259
    %v1563 = vunpack.c.l.b16 %v1260
    %v1564 = vunpack.c.h.b16 %v1260
    %v1565 = vunpack.c.l.b16 %v1261
    %v1566 = vunpack.c.h.b16 %v1261
    %v1567 = vunpack.c.l.b16 %v1262
    %v1568 = vunpack.c.h.b16 %v1262
    %v1569 = vunpack.c.l.b16 %v1263
    %v1570 = vunpack.c.h.b16 %v1263
    %v1571 = vunpack.c.l.b16 %v1264
    %v1572 = vunpack.c.h.b16 %v1264
    %v1573 = vunpack.c.l.b16 %v1265
    %v1574 = vunpack.c.h.b16 %v1265
    %v1575 = vunpack.c.l.b16 %v1266
    %v1576 = vunpack.c.h.b16 %v1266
    %v1577 = vunpack.c.l.b16 %v1267
    %v1578 = vunpack.c.h.b16 %v1267
    %v1579 = vunpack.c.l.b16 %v1268
    %v1580 = vunpack.c.h.b16 %v1268
    %v1581 = vunpack.c.l.b16 %v1269
    %v1582 = vunpack.c.h.b16 %v1269
    %v1583 = vunpack.c.l.b16 %v1270
    %v1584 = vunpack.c.h.b16 %v1270
    %v1585 = vunpack.c.l.b16 %v1271
    %v1586 = vunpack.c.h.b16 %v1271
    %v1587 = vunpack.c.l.b16 %v1272
    %v1588 = vunpack.c.h.b16 %v1272
    %v1589 = vunpack.c.l.b16 %v1273
    %v1590 = vunpack.c.h.b16 %v1273
    %v1591 = vunpack.c.l.b16 %v1274
    %v1592 = vunpack.c.h.b16 %v1274
    %v1593 = vunpack.c.l.b16 %v1275
    %v1594 = vunpack.c.h.b16 %v1275
    %v1595 = vunpack.c.l.b16 %v1276
    %v1596 = vunpack.c.h.b16 %v1276
    %v1597 = vunpack.c.l.b16 %v1277
    %v1598 = vunpack.c.h.b16 %v1277
    %v1599 = vunpack.c.l.b16 %v1278
    %v1600 = vunpack.c.h.b16 %v1278
    %v1601 = vunpack.c.l.b16 %v1279
    %v1602 = vunpack.c.h.b16 %v1279
    %v1603 = vunpack.c.l.b16 %v1280
    %v1604 = vunpack.c.h.b16 %v1280
    %v1605 = vunpack.c.l.b16 %v1281
    %v1606 = vunpack.c.h.b16 %v1281
    %v1607 = vunpack.c.l.b16 %v1282
    %v1608 = vunpack.c.h.b16 %v1282
    %v1609 = vunpack.c.l.b16 %v1283
    %v1610 = vunpack.c.h.b16 %v1283
    %v1611 = vunpack.c.l.b16 %v1284
    %v1612 = vunpack.c.h.b16 %v1284
    %v1613 = vunpack.c.l.b16 %v1285
    %v1614 = vunpack.c.h.b16 %v1285
    %v1615 = vunpack.c.l.b16 %v1286
    %v1616 = vunpack.c.h.b16 %v1286
    %v1617 = vunpack.c.l.b16 %v1287
    %v1618 = vunpack.c.h.b16 %v1287
    %v1619 = vunpack.c.l.b16 %v1288
    %v1620 = vunpack.c.h.b16 %v1288
    %v1621 = vunpack.c.l.b16 %v1289
    %v1622 = vunpack.c.h.b16 %v1289
    %v1623 = vunpack.c.l.b16 %v1290
    %v1624 = vunpack.c.h.b16 %v1290
    %v1625 = vunpack.c.l.b16 %v1291
    %v1626 = vunpack.c.h.b16 %v1291
    %v1627 = vunpack.c.l.b16 %v1292
    %v1628 = vunpack.c.h.b16 %v1292
    %v1629 = vunpack.c.l.b16 %v1293
    %v1630 = vunpack.c.h.b16 %v1293
    %v1631 = vunpack.c.l.b16 %v1294
    %v1632 = vunpack.c.h.b16 %v1294
    %v1633 = vunpack.c.l.b16 %v1295
    %v1634 = vunpack.c.h.b16 %v1295
    %v1635 = vunpack.c.l.b16 %v1296
    %v1636 = vunpack.c.h.b16 %v1296
    %v1637 = vunpack.c.l.b16 %v1297
    %v1638 = vunpack.c.h.b16 %v1297
    %v1639 = vunpack.c.l.b16 %v1298
    %v1640 = vunpack.c.h.b16 %v1298
    %v1641 = vlaneseq
    %v1642 = vand.u32 %v1641, 127
    %v1643 = vlaneseq
    %v1644 = vshrl.u32 %v1643, 7
    %v1645 = vsub.s32 %v1642, %v1644
    %v1646 = vrot.slane %v1513, %v1645
    %v1647 = vadd.s32 %v1642, 4294967288
    %v1648 = vlaneseq
    %v1649 = vshrl.u32 %v1648, 7
    %v1650 = vsub.s32 %v1647, %v1649
    %v1651 = vrot.slane %v1514, %v1650
    %vm1652 = vcmask 130112
    %v1653 = vsel %vm1652, %v1651, %v1646
    %v1654 = vadd.s32 %v1642, 4294967280
    %v1655 = vlaneseq
    %v1656 = vshrl.u32 %v1655, 7
    %v1657 = vsub.s32 %v1654, %v1656
    %v1658 = vrot.slane %v1515, %v1657
    %vm1659 = vcmask 195712
    %v1660 = vsel %vm1659, %v1658, %v1653
    %v1661 = vadd.s32 %v1642, 4294967272
    %v1662 = vlaneseq
    %v1663 = vshrl.u32 %v1662, 7
    %v1664 = vsub.s32 %v1661, %v1663
    %v1665 = vrot.slane %v1516, %v1664
    %vm1666 = vcmask 261312
    %v1667 = vsel %vm1666, %v1665, %v1660
    %v1668 = vadd.s32 %v1642, 4294967264
    %v1669 = vlaneseq
    %v1670 = vshrl.u32 %v1669, 7
    %v1671 = vsub.s32 %v1668, %v1670
    %v1672 = vrot.slane %v1517, %v1671
    %vm1673 = vcmask 326912
    %v1674 = vsel %vm1673, %v1672, %v1667
    %v1675 = vadd.s32 %v1642, 4294967256
    %v1676 = vlaneseq
    %v1677 = vshrl.u32 %v1676, 7
    %v1678 = vsub.s32 %v1675, %v1677
    %v1679 = vrot.slane %v1518, %v1678
    %vm1680 = vcmask 392512
    %v1681 = vsel %vm1680, %v1679, %v1674
    %v1682 = vadd.s32 %v1642, 4294967248
    %v1683 = vlaneseq
    %v1684 = vshrl.u32 %v1683, 7
    %v1685 = vsub.s32 %v1682, %v1684
    %v1686 = vrot.slane %v1519, %v1685
    %vm1687 = vcmask 458112
    %v1688 = vsel %vm1687, %v1686, %v1681
    %v1689 = vadd.s32 %v1642, 4294967240
    %v1690 = vlaneseq
    %v1691 = vshrl.u32 %v1690, 7
    %v1692 = vsub.s32 %v1689, %v1691
    %v1693 = vrot.slane %v1520, %v1692
    %vm1694 = vcmask 523712
    %v1695 = vsel %vm1694, %v1693, %v1688
    %v1696 = vadd.s32 %v1642, 4294967232
    %v1697 = vlaneseq
    %v1698 = vshrl.u32 %v1697, 7
    %v1699 = vsub.s32 %v1696, %v1698
    %v1700 = vrot.slane %v1521, %v1699
    %vm1701 = vcmask 589312
    %v1702 = vsel %vm1701, %v1700, %v1695
    %v1703 = vadd.s32 %v1642, 4294967224
    %v1704 = vlaneseq
    %v1705 = vshrl.u32 %v1704, 7
    %v1706 = vsub.s32 %v1703, %v1705
    %v1707 = vrot.slane %v1522, %v1706
    %vm1708 = vcmask 654912
    %v1709 = vsel %vm1708, %v1707, %v1702
    %v1710 = vadd.s32 %v1642, 4294967216
    %v1711 = vlaneseq
    %v1712 = vshrl.u32 %v1711, 7
    %v1713 = vsub.s32 %v1710, %v1712
    %v1714 = vrot.slane %v1523, %v1713
    %vm1715 = vcmask 720512
    %v1716 = vsel %vm1715, %v1714, %v1709
    %v1717 = vadd.s32 %v1642, 4294967208
    %v1718 = vlaneseq
    %v1719 = vshrl.u32 %v1718, 7
    %v1720 = vsub.s32 %v1717, %v1719
    %v1721 = vrot.slane %v1524, %v1720
    %vm1722 = vcmask 786112
    %v1723 = vsel %vm1722, %v1721, %v1716
    %v1724 = vadd.s32 %v1642, 4294967200
    %v1725 = vlaneseq
    %v1726 = vshrl.u32 %v1725, 7
    %v1727 = vsub.s32 %v1724, %v1726
    %v1728 = vrot.slane %v1525, %v1727
    %vm1729 = vcmask 851712
    %v1730 = vsel %vm1729, %v1728, %v1723
    %v1731 = vadd.s32 %v1642, 4294967192
    %v1732 = vlaneseq
    %v1733 = vshrl.u32 %v1732, 7
    %v1734 = vsub.s32 %v1731, %v1733
    %v1735 = vrot.slane %v1526, %v1734
    %vm1736 = vcmask 917312
    %v1737 = vsel %vm1736, %v1735, %v1730
    %v1738 = vadd.s32 %v1642, 4294967184
    %v1739 = vlaneseq
    %v1740 = vshrl.u32 %v1739, 7
    %v1741 = vsub.s32 %v1738, %v1740
    %v1742 = vrot.slane %v1527, %v1741
    %vm1743 = vcmask 982912
    %v1744 = vsel %vm1743, %v1742, %v1737
    %v1745 = vadd.s32 %v1642, 4294967176
    %v1746 = vlaneseq
    %v1747 = vshrl.u32 %v1746, 7
    %v1748 = vsub.s32 %v1745, %v1747
    %v1749 = vrot.slane %v1528, %v1748
    %vm1750 = vcmask 1048512
    %v1751 = vsel %vm1750, %v1749, %v1744
    %v1752 = vlaneseq
    %v1753 = vshrl.u32 %v1752, 7
    %v1754 = vsub.s32 %v1642, %v1753
    %v1755 = vrot.slane %v1529, %v1754
    %v1756 = vlaneseq
    %v1757 = vshrl.u32 %v1756, 7
    %v1758 = vsub.s32 %v1647, %v1757
    %v1759 = vrot.slane %v1530, %v1758
    %v1760 = vsel %vm1652, %v1759, %v1755
    %v1761 = vlaneseq
    %v1762 = vshrl.u32 %v1761, 7
    %v1763 = vsub.s32 %v1654, %v1762
    %v1764 = vrot.slane %v1531, %v1763
    %v1765 = vsel %vm1659, %v1764, %v1760
    %v1766 = vlaneseq
    %v1767 = vshrl.u32 %v1766, 7
    %v1768 = vsub.s32 %v1661, %v1767
    %v1769 = vrot.slane %v1532, %v1768
    %v1770 = vsel %vm1666, %v1769, %v1765
    %v1771 = vlaneseq
    %v1772 = vshrl.u32 %v1771, 7
    %v1773 = vsub.s32 %v1668, %v1772
    %v1774 = vrot.slane %v1533, %v1773
    %v1775 = vsel %vm1673, %v1774, %v1770
    %v1776 = vlaneseq
    %v1777 = vshrl.u32 %v1776, 7
    %v1778 = vsub.s32 %v1675, %v1777
    %v1779 = vrot.slane %v1534, %v1778
    %v1780 = vsel %vm1680, %v1779, %v1775
    %v1781 = vlaneseq
    %v1782 = vshrl.u32 %v1781, 7
    %v1783 = vsub.s32 %v1682, %v1782
    %v1784 = vrot.slane %v1535, %v1783
    %v1785 = vsel %vm1687, %v1784, %v1780
    %v1786 = vlaneseq
    %v1787 = vshrl.u32 %v1786, 7
    %v1788 = vsub.s32 %v1689, %v1787
    %v1789 = vrot.slane %v1536, %v1788
    %v1790 = vsel %vm1694, %v1789, %v1785
    %v1791 = vlaneseq
    %v1792 = vshrl.u32 %v1791, 7
    %v1793 = vsub.s32 %v1696, %v1792
    %v1794 = vrot.slane %v1537, %v1793
    %v1795 = vsel %vm1701, %v1794, %v1790
    %v1796 = vlaneseq
    %v1797 = vshrl.u32 %v1796, 7
    %v1798 = vsub.s32 %v1703, %v1797
    %v1799 = vrot.slane %v1538, %v1798
    %v1800 = vsel %vm1708, %v1799, %v1795
    %v1801 = vlaneseq
    %v1802 = vshrl.u32 %v1801, 7
    %v1803 = vsub.s32 %v1710, %v1802
    %v1804 = vrot.slane %v1539, %v1803
    %v1805 = vsel %vm1715, %v1804, %v1800
    %v1806 = vlaneseq
    %v1807 = vshrl.u32 %v1806, 7
    %v1808 = vsub.s32 %v1717, %v1807
    %v1809 = vrot.slane %v1540, %v1808
    %v1810 = vsel %vm1722, %v1809, %v1805
    %v1811 = vlaneseq
    %v1812 = vshrl.u32 %v1811, 7
    %v1813 = vsub.s32 %v1724, %v1812
    %v1814 = vrot.slane %v1541, %v1813
    %v1815 = vsel %vm1729, %v1814, %v1810
    %v1816 = vlaneseq
    %v1817 = vshrl.u32 %v1816, 7
    %v1818 = vsub.s32 %v1731, %v1817
    %v1819 = vrot.slane %v1542, %v1818
    %v1820 = vsel %vm1736, %v1819, %v1815
    %v1821 = vlaneseq
    %v1822 = vshrl.u32 %v1821, 7
    %v1823 = vsub.s32 %v1738, %v1822
    %v1824 = vrot.slane %v1543, %v1823
    %v1825 = vsel %vm1743, %v1824, %v1820
    %v1826 = vlaneseq
    %v1827 = vshrl.u32 %v1826, 7
    %v1828 = vsub.s32 %v1745, %v1827
    %v1829 = vrot.slane %v1544, %v1828
    %v1830 = vsel %vm1750, %v1829, %v1825
    %v1831 = vlaneseq
    %v1832 = vshrl.u32 %v1831, 7
    %v1833 = vsub.s32 %v1642, %v1832
    %v1834 = vrot.slane %v1545, %v1833
    %v1835 = vlaneseq
    %v1836 = vshrl.u32 %v1835, 7
    %v1837 = vsub.s32 %v1647, %v1836
    %v1838 = vrot.slane %v1546, %v1837
    %v1839 = vsel %vm1652, %v1838, %v1834
    %v1840 = vlaneseq
    %v1841 = vshrl.u32 %v1840, 7
    %v1842 = vsub.s32 %v1654, %v1841
    %v1843 = vrot.slane %v1547, %v1842
    %v1844 = vsel %vm1659, %v1843, %v1839
    %v1845 = vlaneseq
    %v1846 = vshrl.u32 %v1845, 7
    %v1847 = vsub.s32 %v1661, %v1846
    %v1848 = vrot.slane %v1548, %v1847
    %v1849 = vsel %vm1666, %v1848, %v1844
    %v1850 = vlaneseq
    %v1851 = vshrl.u32 %v1850, 7
    %v1852 = vsub.s32 %v1668, %v1851
    %v1853 = vrot.slane %v1549, %v1852
    %v1854 = vsel %vm1673, %v1853, %v1849
    %v1855 = vlaneseq
    %v1856 = vshrl.u32 %v1855, 7
    %v1857 = vsub.s32 %v1675, %v1856
    %v1858 = vrot.slane %v1550, %v1857
    %v1859 = vsel %vm1680, %v1858, %v1854
    %v1860 = vlaneseq
    %v1861 = vshrl.u32 %v1860, 7
    %v1862 = vsub.s32 %v1682, %v1861
    %v1863 = vrot.slane %v1551, %v1862
    %v1864 = vsel %vm1687, %v1863, %v1859
    %v1865 = vlaneseq
    %v1866 = vshrl.u32 %v1865, 7
    %v1867 = vsub.s32 %v1689, %v1866
    %v1868 = vrot.slane %v1552, %v1867
    %v1869 = vsel %vm1694, %v1868, %v1864
    %v1870 = vlaneseq
    %v1871 = vshrl.u32 %v1870, 7
    %v1872 = vsub.s32 %v1696, %v1871
    %v1873 = vrot.slane %v1553, %v1872
    %v1874 = vsel %vm1701, %v1873, %v1869
    %v1875 = vlaneseq
    %v1876 = vshrl.u32 %v1875, 7
    %v1877 = vsub.s32 %v1703, %v1876
    %v1878 = vrot.slane %v1554, %v1877
    %v1879 = vsel %vm1708, %v1878, %v1874
    %v1880 = vlaneseq
    %v1881 = vshrl.u32 %v1880, 7
    %v1882 = vsub.s32 %v1710, %v1881
    %v1883 = vrot.slane %v1555, %v1882
    %v1884 = vsel %vm1715, %v1883, %v1879
    %v1885 = vlaneseq
    %v1886 = vshrl.u32 %v1885, 7
    %v1887 = vsub.s32 %v1717, %v1886
    %v1888 = vrot.slane %v1556, %v1887
    %v1889 = vsel %vm1722, %v1888, %v1884
    %v1890 = vlaneseq
    %v1891 = vshrl.u32 %v1890, 7
    %v1892 = vsub.s32 %v1724, %v1891
    %v1893 = vrot.slane %v1557, %v1892
    %v1894 = vsel %vm1729, %v1893, %v1889
    %v1895 = vlaneseq
    %v1896 = vshrl.u32 %v1895, 7
    %v1897 = vsub.s32 %v1731, %v1896
    %v1898 = vrot.slane %v1558, %v1897
    %v1899 = vsel %vm1736, %v1898, %v1894
    %v1900 = vlaneseq
    %v1901 = vshrl.u32 %v1900, 7
    %v1902 = vsub.s32 %v1738, %v1901
    %v1903 = vrot.slane %v1559, %v1902
    %v1904 = vsel %vm1743, %v1903, %v1899
    %v1905 = vlaneseq
    %v1906 = vshrl.u32 %v1905, 7
    %v1907 = vsub.s32 %v1745, %v1906
    %v1908 = vrot.slane %v1560, %v1907
    %v1909 = vsel %vm1750, %v1908, %v1904
    %v1910 = vlaneseq
    %v1911 = vshrl.u32 %v1910, 7
    %v1912 = vsub.s32 %v1642, %v1911
    %v1913 = vrot.slane %v1561, %v1912
    %v1914 = vlaneseq
    %v1915 = vshrl.u32 %v1914, 7
    %v1916 = vsub.s32 %v1647, %v1915
    %v1917 = vrot.slane %v1562, %v1916
    %v1918 = vsel %vm1652, %v1917, %v1913
    %v1919 = vlaneseq
    %v1920 = vshrl.u32 %v1919, 7
    %v1921 = vsub.s32 %v1654, %v1920
    %v1922 = vrot.slane %v1563, %v1921
    %v1923 = vsel %vm1659, %v1922, %v1918
    %v1924 = vlaneseq
    %v1925 = vshrl.u32 %v1924, 7
    %v1926 = vsub.s32 %v1661, %v1925
    %v1927 = vrot.slane %v1564, %v1926
    %v1928 = vsel %vm1666, %v1927, %v1923
    %v1929 = vlaneseq
    %v1930 = vshrl.u32 %v1929, 7
    %v1931 = vsub.s32 %v1668, %v1930
    %v1932 = vrot.slane %v1565, %v1931
    %v1933 = vsel %vm1673, %v1932, %v1928
    %v1934 = vlaneseq
    %v1935 = vshrl.u32 %v1934, 7
    %v1936 = vsub.s32 %v1675, %v1935
    %v1937 = vrot.slane %v1566, %v1936
    %v1938 = vsel %vm1680, %v1937, %v1933
    %v1939 = vlaneseq
    %v1940 = vshrl.u32 %v1939, 7
    %v1941 = vsub.s32 %v1682, %v1940
    %v1942 = vrot.slane %v1567, %v1941
    %v1943 = vsel %vm1687, %v1942, %v1938
    %v1944 = vlaneseq
    %v1945 = vshrl.u32 %v1944, 7
    %v1946 = vsub.s32 %v1689, %v1945
    %v1947 = vrot.slane %v1568, %v1946
    %v1948 = vsel %vm1694, %v1947, %v1943
    %v1949 = vlaneseq
    %v1950 = vshrl.u32 %v1949, 7
    %v1951 = vsub.s32 %v1696, %v1950
    %v1952 = vrot.slane %v1569, %v1951
    %v1953 = vsel %vm1701, %v1952, %v1948
    %v1954 = vlaneseq
    %v1955 = vshrl.u32 %v1954, 7
    %v1956 = vsub.s32 %v1703, %v1955
    %v1957 = vrot.slane %v1570, %v1956
    %v1958 = vsel %vm1708, %v1957, %v1953
    %v1959 = vlaneseq
    %v1960 = vshrl.u32 %v1959, 7
    %v1961 = vsub.s32 %v1710, %v1960
    %v1962 = vrot.slane %v1571, %v1961
    %v1963 = vsel %vm1715, %v1962, %v1958
    %v1964 = vlaneseq
    %v1965 = vshrl.u32 %v1964, 7
    %v1966 = vsub.s32 %v1717, %v1965
    %v1967 = vrot.slane %v1572, %v1966
    %v1968 = vsel %vm1722, %v1967, %v1963
    %v1969 = vlaneseq
    %v1970 = vshrl.u32 %v1969, 7
    %v1971 = vsub.s32 %v1724, %v1970
    %v1972 = vrot.slane %v1573, %v1971
    %v1973 = vsel %vm1729, %v1972, %v1968
    %v1974 = vlaneseq
    %v1975 = vshrl.u32 %v1974, 7
    %v1976 = vsub.s32 %v1731, %v1975
    %v1977 = vrot.slane %v1574, %v1976
    %v1978 = vsel %vm1736, %v1977, %v1973
    %v1979 = vlaneseq
    %v1980 = vshrl.u32 %v1979, 7
    %v1981 = vsub.s32 %v1738, %v1980
    %v1982 = vrot.slane %v1575, %v1981
    %v1983 = vsel %vm1743, %v1982, %v1978
    %v1984 = vlaneseq
    %v1985 = vshrl.u32 %v1984, 7
    %v1986 = vsub.s32 %v1745, %v1985
    %v1987 = vrot.slane %v1576, %v1986
    %v1988 = vsel %vm1750, %v1987, %v1983
    %v1989 = vlaneseq
    %v1990 = vshrl.u32 %v1989, 7
    %v1991 = vsub.s32 %v1642, %v1990
    %v1992 = vrot.slane %v1577, %v1991
    %v1993 = vlaneseq
    %v1994 = vshrl.u32 %v1993, 7
    %v1995 = vsub.s32 %v1647, %v1994
    %v1996 = vrot.slane %v1578, %v1995
    %v1997 = vsel %vm1652, %v1996, %v1992
    %v1998 = vlaneseq
    %v1999 = vshrl.u32 %v1998, 7
    %v2000 = vsub.s32 %v1654, %v1999
    %v2001 = vrot.slane %v1579, %v2000
    %v2002 = vsel %vm1659, %v2001, %v1997
    %v2003 = vlaneseq
    %v2004 = vshrl.u32 %v2003, 7
    %v2005 = vsub.s32 %v1661, %v2004
    %v2006 = vrot.slane %v1580, %v2005
    %v2007 = vsel %vm1666, %v2006, %v2002
    %v2008 = vlaneseq
    %v2009 = vshrl.u32 %v2008, 7
    %v2010 = vsub.s32 %v1668, %v2009
    %v2011 = vrot.slane %v1581, %v2010
    %v2012 = vsel %vm1673, %v2011, %v2007
    %v2013 = vlaneseq
    %v2014 = vshrl.u32 %v2013, 7
    %v2015 = vsub.s32 %v1675, %v2014
    %v2016 = vrot.slane %v1582, %v2015
    %v2017 = vsel %vm1680, %v2016, %v2012
    %v2018 = vlaneseq
    %v2019 = vshrl.u32 %v2018, 7
    %v2020 = vsub.s32 %v1682, %v2019
    %v2021 = vrot.slane %v1583, %v2020
    %v2022 = vsel %vm1687, %v2021, %v2017
    %v2023 = vlaneseq
    %v2024 = vshrl.u32 %v2023, 7
    %v2025 = vsub.s32 %v1689, %v2024
    %v2026 = vrot.slane %v1584, %v2025
    %v2027 = vsel %vm1694, %v2026, %v2022
    %v2028 = vlaneseq
    %v2029 = vshrl.u32 %v2028, 7
    %v2030 = vsub.s32 %v1696, %v2029
    %v2031 = vrot.slane %v1585, %v2030
    %v2032 = vsel %vm1701, %v2031, %v2027
    %v2033 = vlaneseq
    %v2034 = vshrl.u32 %v2033, 7
    %v2035 = vsub.s32 %v1703, %v2034
    %v2036 = vrot.slane %v1586, %v2035
    %v2037 = vsel %vm1708, %v2036, %v2032
    %v2038 = vlaneseq
    %v2039 = vshrl.u32 %v2038, 7
    %v2040 = vsub.s32 %v1710, %v2039
    %v2041 = vrot.slane %v1587, %v2040
    %v2042 = vsel %vm1715, %v2041, %v2037
    %v2043 = vlaneseq
    %v2044 = vshrl.u32 %v2043, 7
    %v2045 = vsub.s32 %v1717, %v2044
    %v2046 = vrot.slane %v1588, %v2045
    %v2047 = vsel %vm1722, %v2046, %v2042
    %v2048 = vlaneseq
    %v2049 = vshrl.u32 %v2048, 7
    %v2050 = vsub.s32 %v1724, %v2049
    %v2051 = vrot.slane %v1589, %v2050
    %v2052 = vsel %vm1729, %v2051, %v2047
    %v2053 = vlaneseq
    %v2054 = vshrl.u32 %v2053, 7
    %v2055 = vsub.s32 %v1731, %v2054
    %v2056 = vrot.slane %v1590, %v2055
    %v2057 = vsel %vm1736, %v2056, %v2052
    %v2058 = vlaneseq
    %v2059 = vshrl.u32 %v2058, 7
    %v2060 = vsub.s32 %v1738, %v2059
    %v2061 = vrot.slane %v1591, %v2060
    %v2062 = vsel %vm1743, %v2061, %v2057
    %v2063 = vlaneseq
    %v2064 = vshrl.u32 %v2063, 7
    %v2065 = vsub.s32 %v1745, %v2064
    %v2066 = vrot.slane %v1592, %v2065
    %v2067 = vsel %vm1750, %v2066, %v2062
    %v2068 = vlaneseq
    %v2069 = vshrl.u32 %v2068, 7
    %v2070 = vsub.s32 %v1642, %v2069
    %v2071 = vrot.slane %v1593, %v2070
    %v2072 = vlaneseq
    %v2073 = vshrl.u32 %v2072, 7
    %v2074 = vsub.s32 %v1647, %v2073
    %v2075 = vrot.slane %v1594, %v2074
    %v2076 = vsel %vm1652, %v2075, %v2071
    %v2077 = vlaneseq
    %v2078 = vshrl.u32 %v2077, 7
    %v2079 = vsub.s32 %v1654, %v2078
    %v2080 = vrot.slane %v1595, %v2079
    %v2081 = vsel %vm1659, %v2080, %v2076
    %v2082 = vlaneseq
    %v2083 = vshrl.u32 %v2082, 7
    %v2084 = vsub.s32 %v1661, %v2083
    %v2085 = vrot.slane %v1596, %v2084
    %v2086 = vsel %vm1666, %v2085, %v2081
    %v2087 = vlaneseq
    %v2088 = vshrl.u32 %v2087, 7
    %v2089 = vsub.s32 %v1668, %v2088
    %v2090 = vrot.slane %v1597, %v2089
    %v2091 = vsel %vm1673, %v2090, %v2086
    %v2092 = vlaneseq
    %v2093 = vshrl.u32 %v2092, 7
    %v2094 = vsub.s32 %v1675, %v2093
    %v2095 = vrot.slane %v1598, %v2094
    %v2096 = vsel %vm1680, %v2095, %v2091
    %v2097 = vlaneseq
    %v2098 = vshrl.u32 %v2097, 7
    %v2099 = vsub.s32 %v1682, %v2098
    %v2100 = vrot.slane %v1599, %v2099
    %v2101 = vsel %vm1687, %v2100, %v2096
    %v2102 = vlaneseq
    %v2103 = vshrl.u32 %v2102, 7
    %v2104 = vsub.s32 %v1689, %v2103
    %v2105 = vrot.slane %v1600, %v2104
    %v2106 = vsel %vm1694, %v2105, %v2101
    %v2107 = vlaneseq
    %v2108 = vshrl.u32 %v2107, 7
    %v2109 = vsub.s32 %v1696, %v2108
    %v2110 = vrot.slane %v1601, %v2109
    %v2111 = vsel %vm1701, %v2110, %v2106
    %v2112 = vlaneseq
    %v2113 = vshrl.u32 %v2112, 7
    %v2114 = vsub.s32 %v1703, %v2113
    %v2115 = vrot.slane %v1602, %v2114
    %v2116 = vsel %vm1708, %v2115, %v2111
    %v2117 = vlaneseq
    %v2118 = vshrl.u32 %v2117, 7
    %v2119 = vsub.s32 %v1710, %v2118
    %v2120 = vrot.slane %v1603, %v2119
    %v2121 = vsel %vm1715, %v2120, %v2116
    %v2122 = vlaneseq
    %v2123 = vshrl.u32 %v2122, 7
    %v2124 = vsub.s32 %v1717, %v2123
    %v2125 = vrot.slane %v1604, %v2124
    %v2126 = vsel %vm1722, %v2125, %v2121
    %v2127 = vlaneseq
    %v2128 = vshrl.u32 %v2127, 7
    %v2129 = vsub.s32 %v1724, %v2128
    %v2130 = vrot.slane %v1605, %v2129
    %v2131 = vsel %vm1729, %v2130, %v2126
    %v2132 = vlaneseq
    %v2133 = vshrl.u32 %v2132, 7
    %v2134 = vsub.s32 %v1731, %v2133
    %v2135 = vrot.slane %v1606, %v2134
    %v2136 = vsel %vm1736, %v2135, %v2131
    %v2137 = vlaneseq
    %v2138 = vshrl.u32 %v2137, 7
    %v2139 = vsub.s32 %v1738, %v2138
    %v2140 = vrot.slane %v1607, %v2139
    %v2141 = vsel %vm1743, %v2140, %v2136
    %v2142 = vlaneseq
    %v2143 = vshrl.u32 %v2142, 7
    %v2144 = vsub.s32 %v1745, %v2143
    %v2145 = vrot.slane %v1608, %v2144
    %v2146 = vsel %vm1750, %v2145, %v2141
    %v2147 = vlaneseq
    %v2148 = vshrl.u32 %v2147, 7
    %v2149 = vsub.s32 %v1642, %v2148
    %v2150 = vrot.slane %v1609, %v2149
    %v2151 = vlaneseq
    %v2152 = vshrl.u32 %v2151, 7
    %v2153 = vsub.s32 %v1647, %v2152
    %v2154 = vrot.slane %v1610, %v2153
    %v2155 = vsel %vm1652, %v2154, %v2150
    %v2156 = vlaneseq
    %v2157 = vshrl.u32 %v2156, 7
    %v2158 = vsub.s32 %v1654, %v2157
    %v2159 = vrot.slane %v1611, %v2158
    %v2160 = vsel %vm1659, %v2159, %v2155
    %v2161 = vlaneseq
    %v2162 = vshrl.u32 %v2161, 7
    %v2163 = vsub.s32 %v1661, %v2162
    %v2164 = vrot.slane %v1612, %v2163
    %v2165 = vsel %vm1666, %v2164, %v2160
    %v2166 = vlaneseq
    %v2167 = vshrl.u32 %v2166, 7
    %v2168 = vsub.s32 %v1668, %v2167
    %v2169 = vrot.slane %v1613, %v2168
    %v2170 = vsel %vm1673, %v2169, %v2165
    %v2171 = vlaneseq
    %v2172 = vshrl.u32 %v2171, 7
    %v2173 = vsub.s32 %v1675, %v2172
    %v2174 = vrot.slane %v1614, %v2173
    %v2175 = vsel %vm1680, %v2174, %v2170
    %v2176 = vlaneseq
    %v2177 = vshrl.u32 %v2176, 7
    %v2178 = vsub.s32 %v1682, %v2177
    %v2179 = vrot.slane %v1615, %v2178
    %v2180 = vsel %vm1687, %v2179, %v2175
    %v2181 = vlaneseq
    %v2182 = vshrl.u32 %v2181, 7
    %v2183 = vsub.s32 %v1689, %v2182
    %v2184 = vrot.slane %v1616, %v2183
    %v2185 = vsel %vm1694, %v2184, %v2180
    %v2186 = vlaneseq
    %v2187 = vshrl.u32 %v2186, 7
    %v2188 = vsub.s32 %v1696, %v2187
    %v2189 = vrot.slane %v1617, %v2188
    %v2190 = vsel %vm1701, %v2189, %v2185
    %v2191 = vlaneseq
    %v2192 = vshrl.u32 %v2191, 7
    %v2193 = vsub.s32 %v1703, %v2192
    %v2194 = vrot.slane %v1618, %v2193
    %v2195 = vsel %vm1708, %v2194, %v2190
    %v2196 = vlaneseq
    %v2197 = vshrl.u32 %v2196, 7
    %v2198 = vsub.s32 %v1710, %v2197
    %v2199 = vrot.slane %v1619, %v2198
    %v2200 = vsel %vm1715, %v2199, %v2195
    %v2201 = vlaneseq
    %v2202 = vshrl.u32 %v2201, 7
    %v2203 = vsub.s32 %v1717, %v2202
    %v2204 = vrot.slane %v1620, %v2203
    %v2205 = vsel %vm1722, %v2204, %v2200
    %v2206 = vlaneseq
    %v2207 = vshrl.u32 %v2206, 7
    %v2208 = vsub.s32 %v1724, %v2207
    %v2209 = vrot.slane %v1621, %v2208
    %v2210 = vsel %vm1729, %v2209, %v2205
    %v2211 = vlaneseq
    %v2212 = vshrl.u32 %v2211, 7
    %v2213 = vsub.s32 %v1731, %v2212
    %v2214 = vrot.slane %v1622, %v2213
    %v2215 = vsel %vm1736, %v2214, %v2210
    %v2216 = vlaneseq
    %v2217 = vshrl.u32 %v2216, 7
    %v2218 = vsub.s32 %v1738, %v2217
    %v2219 = vrot.slane %v1623, %v2218
    %v2220 = vsel %vm1743, %v2219, %v2215
    %v2221 = vlaneseq
    %v2222 = vshrl.u32 %v2221, 7
    %v2223 = vsub.s32 %v1745, %v2222
    %v2224 = vrot.slane %v1624, %v2223
    %v2225 = vsel %vm1750, %v2224, %v2220
    %v2226 = vlaneseq
    %v2227 = vshrl.u32 %v2226, 7
    %v2228 = vsub.s32 %v1642, %v2227
    %v2229 = vrot.slane %v1625, %v2228
    %v2230 = vlaneseq
    %v2231 = vshrl.u32 %v2230, 7
    %v2232 = vsub.s32 %v1647, %v2231
    %v2233 = vrot.slane %v1626, %v2232
    %v2234 = vsel %vm1652, %v2233, %v2229
    %v2235 = vlaneseq
    %v2236 = vshrl.u32 %v2235, 7
    %v2237 = vsub.s32 %v1654, %v2236
    %v2238 = vrot.slane %v1627, %v2237
    %v2239 = vsel %vm1659, %v2238, %v2234
    %v2240 = vlaneseq
    %v2241 = vshrl.u32 %v2240, 7
    %v2242 = vsub.s32 %v1661, %v2241
    %v2243 = vrot.slane %v1628, %v2242
    %v2244 = vsel %vm1666, %v2243, %v2239
    %v2245 = vlaneseq
    %v2246 = vshrl.u32 %v2245, 7
    %v2247 = vsub.s32 %v1668, %v2246
    %v2248 = vrot.slane %v1629, %v2247
    %v2249 = vsel %vm1673, %v2248, %v2244
    %v2250 = vlaneseq
    %v2251 = vshrl.u32 %v2250, 7
    %v2252 = vsub.s32 %v1675, %v2251
    %v2253 = vrot.slane %v1630, %v2252
    %v2254 = vsel %vm1680, %v2253, %v2249
    %v2255 = vlaneseq
    %v2256 = vshrl.u32 %v2255, 7
    %v2257 = vsub.s32 %v1682, %v2256
    %v2258 = vrot.slane %v1631, %v2257
    %v2259 = vsel %vm1687, %v2258, %v2254
    %v2260 = vlaneseq
    %v2261 = vshrl.u32 %v2260, 7
    %v2262 = vsub.s32 %v1689, %v2261
    %v2263 = vrot.slane %v1632, %v2262
    %v2264 = vsel %vm1694, %v2263, %v2259
    %v2265 = vlaneseq
    %v2266 = vshrl.u32 %v2265, 7
    %v2267 = vsub.s32 %v1696, %v2266
    %v2268 = vrot.slane %v1633, %v2267
    %v2269 = vsel %vm1701, %v2268, %v2264
    %v2270 = vlaneseq
    %v2271 = vshrl.u32 %v2270, 7
    %v2272 = vsub.s32 %v1703, %v2271
    %v2273 = vrot.slane %v1634, %v2272
    %v2274 = vsel %vm1708, %v2273, %v2269
    %v2275 = vlaneseq
    %v2276 = vshrl.u32 %v2275, 7
    %v2277 = vsub.s32 %v1710, %v2276
    %v2278 = vrot.slane %v1635, %v2277
    %v2279 = vsel %vm1715, %v2278, %v2274
    %v2280 = vlaneseq
    %v2281 = vshrl.u32 %v2280, 7
    %v2282 = vsub.s32 %v1717, %v2281
    %v2283 = vrot.slane %v1636, %v2282
    %v2284 = vsel %vm1722, %v2283, %v2279
    %v2285 = vlaneseq
    %v2286 = vshrl.u32 %v2285, 7
    %v2287 = vsub.s32 %v1724, %v2286
    %v2288 = vrot.slane %v1637, %v2287
    %v2289 = vsel %vm1729, %v2288, %v2284
    %v2290 = vlaneseq
    %v2291 = vshrl.u32 %v2290, 7
    %v2292 = vsub.s32 %v1731, %v2291
    %v2293 = vrot.slane %v1638, %v2292
    %v2294 = vsel %vm1736, %v2293, %v2289
    %v2295 = vlaneseq
    %v2296 = vshrl.u32 %v2295, 7
    %v2297 = vsub.s32 %v1738, %v2296
    %v2298 = vrot.slane %v1639, %v2297
    %v2299 = vsel %vm1743, %v2298, %v2294
    %v2300 = vlaneseq
    %v2301 = vshrl.u32 %v2300, 7
    %v2302 = vsub.s32 %v1745, %v2301
    %v2303 = vrot.slane %v1640, %v2302
    %v2304 = vsel %vm1750, %v2303, %v2299
    %vm2305 = vcmask 1041409
    %v2306 = vsel %vm2305, %v2067, %v1751
    %v2307 = vsel %vm2305, %v2146, %v1830
    %v2308 = vsel %vm2305, %v2225, %v1909
    %v2309 = vsel %vm2305, %v2304, %v1988
    %v2310 = vpack.c.b16 %v2306, %v2306
    %v2311 = vpack.c.b16 %v2307, %v2307
    %v2312 = vpack.c.b16 %v2308, %v2308
    %v2313 = vpack.c.b16 %v2309, %v2309
    %v2446 = vunpack.c.l.b16 %v1299
    %v2447 = vunpack.c.h.b16 %v1299
    %v2448 = vunpack.c.l.b16 %v1300
    %v2449 = vunpack.c.h.b16 %v1300
    %v2450 = vunpack.c.l.b16 %v1301
    %v2451 = vunpack.c.h.b16 %v1301
    %v2452 = vunpack.c.l.b16 %v1302
    %v2453 = vunpack.c.h.b16 %v1302
    %v2454 = vunpack.c.l.b16 %v1303
    %v2455 = vunpack.c.h.b16 %v1303
    %v2456 = vunpack.c.l.b16 %v1304
    %v2457 = vunpack.c.h.b16 %v1304
    %v2458 = vunpack.c.l.b16 %v1305
    %v2459 = vunpack.c.h.b16 %v1305
    %v2460 = vunpack.c.l.b16 %v1306
    %v2461 = vunpack.c.h.b16 %v1306
    %v2462 = vunpack.c.l.b16 %v1307
    %v2463 = vunpack.c.h.b16 %v1307
    %v2464 = vunpack.c.l.b16 %v1308
    %v2465 = vunpack.c.h.b16 %v1308
    %v2466 = vunpack.c.l.b16 %v1309
    %v2467 = vunpack.c.h.b16 %v1309
    %v2468 = vunpack.c.l.b16 %v1310
    %v2469 = vunpack.c.h.b16 %v1310
    %v2470 = vunpack.c.l.b16 %v1311
    %v2471 = vunpack.c.h.b16 %v1311
    %v2472 = vunpack.c.l.b16 %v1312
    %v2473 = vunpack.c.h.b16 %v1312
    %v2474 = vunpack.c.l.b16 %v1313
    %v2475 = vunpack.c.h.b16 %v1313
    %v2476 = vunpack.c.l.b16 %v1314
    %v2477 = vunpack.c.h.b16 %v1314
    %v2478 = vunpack.c.l.b16 %v1315
    %v2479 = vunpack.c.h.b16 %v1315
    %v2480 = vunpack.c.l.b16 %v1316
    %v2481 = vunpack.c.h.b16 %v1316
    %v2482 = vunpack.c.l.b16 %v1317
    %v2483 = vunpack.c.h.b16 %v1317
    %v2484 = vunpack.c.l.b16 %v1318
    %v2485 = vunpack.c.h.b16 %v1318
    %v2486 = vunpack.c.l.b16 %v1319
    %v2487 = vunpack.c.h.b16 %v1319
    %v2488 = vunpack.c.l.b16 %v1320
    %v2489 = vunpack.c.h.b16 %v1320
    %v2490 = vunpack.c.l.b16 %v1321
    %v2491 = vunpack.c.h.b16 %v1321
    %v2492 = vunpack.c.l.b16 %v1322
    %v2493 = vunpack.c.h.b16 %v1322
    %v2494 = vunpack.c.l.b16 %v1323
    %v2495 = vunpack.c.h.b16 %v1323
    %v2496 = vunpack.c.l.b16 %v1324
    %v2497 = vunpack.c.h.b16 %v1324
    %v2498 = vunpack.c.l.b16 %v1325
    %v2499 = vunpack.c.h.b16 %v1325
    %v2500 = vunpack.c.l.b16 %v1326
    %v2501 = vunpack.c.h.b16 %v1326
    %v2502 = vunpack.c.l.b16 %v1327
    %v2503 = vunpack.c.h.b16 %v1327
    %v2504 = vunpack.c.l.b16 %v1328
    %v2505 = vunpack.c.h.b16 %v1328
    %v2506 = vunpack.c.l.b16 %v1329
    %v2507 = vunpack.c.h.b16 %v1329
    %v2508 = vunpack.c.l.b16 %v1330
    %v2509 = vunpack.c.h.b16 %v1330
    %v2510 = vunpack.c.l.b16 %v1331
    %v2511 = vunpack.c.h.b16 %v1331
    %v2512 = vunpack.c.l.b16 %v1332
    %v2513 = vunpack.c.h.b16 %v1332
    %v2514 = vunpack.c.l.b16 %v1333
    %v2515 = vunpack.c.h.b16 %v1333
    %v2516 = vunpack.c.l.b16 %v1334
    %v2517 = vunpack.c.h.b16 %v1334
    %v2518 = vunpack.c.l.b16 %v1335
    %v2519 = vunpack.c.h.b16 %v1335
    %v2520 = vunpack.c.l.b16 %v1336
    %v2521 = vunpack.c.h.b16 %v1336
    %v2522 = vunpack.c.l.b16 %v1337
    %v2523 = vunpack.c.h.b16 %v1337
    %v2524 = vunpack.c.l.b16 %v1338
    %v2525 = vunpack.c.h.b16 %v1338
    %v2526 = vunpack.c.l.b16 %v1339
    %v2527 = vunpack.c.h.b16 %v1339
    %v2528 = vunpack.c.l.b16 %v1340
    %v2529 = vunpack.c.h.b16 %v1340
    %v2530 = vunpack.c.l.b16 %v1341
    %v2531 = vunpack.c.h.b16 %v1341
    %v2532 = vunpack.c.l.b16 %v1342
    %v2533 = vunpack.c.h.b16 %v1342
    %v2534 = vunpack.c.l.b16 %v1343
    %v2535 = vunpack.c.h.b16 %v1343
    %v2536 = vunpack.c.l.b16 %v1344
    %v2537 = vunpack.c.h.b16 %v1344
    %v2538 = vunpack.c.l.b16 %v1345
    %v2539 = vunpack.c.h.b16 %v1345
    %v2540 = vunpack.c.l.b16 %v1346
    %v2541 = vunpack.c.h.b16 %v1346
    %v2542 = vunpack.c.l.b16 %v1347
    %v2543 = vunpack.c.h.b16 %v1347
    %v2544 = vunpack.c.l.b16 %v1348
    %v2545 = vunpack.c.h.b16 %v1348
    %v2546 = vunpack.c.l.b16 %v1349
    %v2547 = vunpack.c.h.b16 %v1349
    %v2548 = vunpack.c.l.b16 %v1350
    %v2549 = vunpack.c.h.b16 %v1350
    %v2550 = vunpack.c.l.b16 %v1351
    %v2551 = vunpack.c.h.b16 %v1351
    %v2552 = vunpack.c.l.b16 %v1352
    %v2553 = vunpack.c.h.b16 %v1352
    %v2554 = vunpack.c.l.b16 %v1353
    %v2555 = vunpack.c.h.b16 %v1353
    %v2556 = vunpack.c.l.b16 %v1354
    %v2557 = vunpack.c.h.b16 %v1354
    %v2558 = vunpack.c.l.b16 %v1355
    %v2559 = vunpack.c.h.b16 %v1355
    %v2560 = vunpack.c.l.b16 %v1356
    %v2561 = vunpack.c.h.b16 %v1356
    %v2562 = vunpack.c.l.b16 %v1357
    %v2563 = vunpack.c.h.b16 %v1357
    %v2564 = vunpack.c.l.b16 %v1358
    %v2565 = vunpack.c.h.b16 %v1358
    %v2566 = vunpack.c.l.b16 %v1359
    %v2567 = vunpack.c.h.b16 %v1359
    %v2568 = vunpack.c.l.b16 %v1360
    %v2569 = vunpack.c.h.b16 %v1360
    %v2570 = vunpack.c.l.b16 %v1361
    %v2571 = vunpack.c.h.b16 %v1361
    %v2572 = vunpack.c.l.b16 %v1362
    %v2573 = vunpack.c.h.b16 %v1362
    %v2574 = vunpack.c.l.b16 %v1363
    %v2575 = vunpack.c.h.b16 %v1363
    %v2576 = vunpack.c.l.b16 %v1364
    %v2577 = vunpack.c.h.b16 %v1364
    %v2578 = vunpack.c.l.b16 %v1365
    %v2579 = vunpack.c.h.b16 %v1365
    %v2580 = vunpack.c.l.b16 %v1366
    %v2581 = vunpack.c.h.b16 %v1366
    %v2582 = vunpack.c.l.b16 %v1367
    %v2583 = vunpack.c.h.b16 %v1367
    %v2584 = vunpack.c.l.b16 %v1368
    %v2585 = vunpack.c.h.b16 %v1368
    %v2586 = vunpack.c.l.b16 %v1369
    %v2587 = vunpack.c.h.b16 %v1369
    %v2588 = vunpack.c.l.b16 %v1370
    %v2589 = vunpack.c.h.b16 %v1370
    %v2590 = vunpack.c.l.b16 %v1371
    %v2591 = vunpack.c.h.b16 %v1371
    %v2592 = vunpack.c.l.b16 %v1372
    %v2593 = vunpack.c.h.b16 %v1372
    %v2594 = vunpack.c.l.b16 %v1373
    %v2595 = vunpack.c.h.b16 %v1373
    %v2596 = vunpack.c.l.b16 %v1374
    %v2597 = vunpack.c.h.b16 %v1374
    %v2598 = vunpack.c.l.b16 %v1375
    %v2599 = vunpack.c.h.b16 %v1375
    %v2600 = vunpack.c.l.b16 %v1376
    %v2601 = vunpack.c.h.b16 %v1376
    %v2602 = vunpack.c.l.b16 %v1377
    %v2603 = vunpack.c.h.b16 %v1377
    %v2604 = vunpack.c.l.b16 %v1378
    %v2605 = vunpack.c.h.b16 %v1378
    %v2606 = vunpack.c.l.b16 %v1379
    %v2607 = vunpack.c.h.b16 %v1379
    %v2608 = vunpack.c.l.b16 %v1380
    %v2609 = vunpack.c.h.b16 %v1380
    %v2610 = vunpack.c.l.b16 %v1381
    %v2611 = vunpack.c.h.b16 %v1381
    %v2612 = vunpack.c.l.b16 %v1382
    %v2613 = vunpack.c.h.b16 %v1382
    %v2614 = vunpack.c.l.b16 %v1383
    %v2615 = vunpack.c.h.b16 %v1383
    %v2616 = vunpack.c.l.b16 %v1384
    %v2617 = vunpack.c.h.b16 %v1384
    %v2618 = vunpack.c.l.b16 %v1385
    %v2619 = vunpack.c.h.b16 %v1385
    %v2620 = vunpack.c.l.b16 %v1386
    %v2621 = vunpack.c.h.b16 %v1386
    %v2622 = vunpack.c.l.b16 %v1387
    %v2623 = vunpack.c.h.b16 %v1387
    %v2624 = vunpack.c.l.b16 %v1388
    %v2625 = vunpack.c.h.b16 %v1388
    %v2626 = vunpack.c.l.b16 %v1389
    %v2627 = vunpack.c.h.b16 %v1389
    %v2628 = vunpack.c.l.b16 %v1390
    %v2629 = vunpack.c.h.b16 %v1390
    %v2630 = vunpack.c.l.b16 %v1391
    %v2631 = vunpack.c.h.b16 %v1391
    %v2632 = vunpack.c.l.b16 %v1392
    %v2633 = vunpack.c.h.b16 %v1392
    %v2634 = vunpack.c.l.b16 %v1393
    %v2635 = vunpack.c.h.b16 %v1393
    %v2636 = vunpack.c.l.b16 %v1394
    %v2637 = vunpack.c.h.b16 %v1394
    %v2638 = vunpack.c.l.b16 %v1395
    %v2639 = vunpack.c.h.b16 %v1395
    %v2640 = vunpack.c.l.b16 %v1396
    %v2641 = vunpack.c.h.b16 %v1396
    %v2642 = vunpack.c.l.b16 %v1397
    %v2643 = vunpack.c.h.b16 %v1397
    %v2644 = vunpack.c.l.b16 %v1398
    %v2645 = vunpack.c.h.b16 %v1398
    %v2646 = vunpack.c.l.b16 %v1399
    %v2647 = vunpack.c.h.b16 %v1399
    %v2648 = vunpack.c.l.b16 %v1400
    %v2649 = vunpack.c.h.b16 %v1400
    %v2650 = vunpack.c.l.b16 %v1401
    %v2651 = vunpack.c.h.b16 %v1401
    %v2652 = vunpack.c.l.b16 %v1402
    %v2653 = vunpack.c.h.b16 %v1402
    %v2654 = vunpack.c.l.b16 %v1403
    %v2655 = vunpack.c.h.b16 %v1403
    %v2656 = vunpack.c.l.b16 %v1404
    %v2657 = vunpack.c.h.b16 %v1404
    %v2658 = vunpack.c.l.b16 %v1405
    %v2659 = vunpack.c.h.b16 %v1405
    %v2660 = vunpack.c.l.b16 %v1406
    %v2661 = vunpack.c.h.b16 %v1406
    %v2662 = vunpack.c.l.b16 %v1407
    %v2663 = vunpack.c.h.b16 %v1407
    %v2664 = vunpack.c.l.b16 %v1408
    %v2665 = vunpack.c.h.b16 %v1408
    %v2666 = vunpack.c.l.b16 %v1409
    %v2667 = vunpack.c.h.b16 %v1409
    %v2668 = vunpack.c.l.b16 %v1410
    %v2669 = vunpack.c.h.b16 %v1410
    %v2670 = vunpack.c.l.b16 %v1411
    %v2671 = vunpack.c.h.b16 %v1411
    %v2672 = vunpack.c.l.b16 %v1412
    %v2673 = vunpack.c.h.b16 %v1412
    %v2674 = vunpack.c.l.b16 %v1413
    %v2675 = vunpack.c.h.b16 %v1413
    %v2676 = vunpack.c.l.b16 %v1414
    %v2677 = vunpack.c.h.b16 %v1414
    %v2678 = vunpack.c.l.b16 %v1415
    %v2679 = vunpack.c.h.b16 %v1415
    %v2680 = vunpack.c.l.b16 %v1416
    %v2681 = vunpack.c.h.b16 %v1416
    %v2682 = vunpack.c.l.b16 %v1417
    %v2683 = vunpack.c.h.b16 %v1417
    %v2684 = vunpack.c.l.b16 %v1418
    %v2685 = vunpack.c.h.b16 %v1418
    %v2686 = vunpack.c.l.b16 %v1419
    %v2687 = vunpack.c.h.b16 %v1419
    %v2688 = vunpack.c.l.b16 %v1420
    %v2689 = vunpack.c.h.b16 %v1420
    %v2690 = vunpack.c.l.b16 %v1421
    %v2691 = vunpack.c.h.b16 %v1421
    %v2692 = vunpack.c.l.b16 %v1422
    %v2693 = vunpack.c.h.b16 %v1422
    %v2694 = vunpack.c.l.b16 %v1423
    %v2695 = vunpack.c.h.b16 %v1423
    %v2696 = vunpack.c.l.b16 %v1424
    %v2697 = vunpack.c.h.b16 %v1424
    %v2698 = vunpack.c.l.b16 %v1425
    %v2699 = vunpack.c.h.b16 %v1425
    %v2700 = vunpack.c.l.b16 %v1426
    %v2701 = vunpack.c.h.b16 %v1426
    %v2702 = vpack.c.b16 %v2450, %v2446
    %v2703 = vpack.c.b16 %v2451, %v2447
    %v2704 = vpack.c.b16 %v2452, %v2448
    %v2705 = vpack.c.b16 %v2453, %v2449
    %v2706 = vpack.c.b16 %v2458, %v2454
    %v2707 = vpack.c.b16 %v2459, %v2455
    %v2708 = vpack.c.b16 %v2460, %v2456
    %v2709 = vpack.c.b16 %v2461, %v2457
    %v2710 = vpack.c.b16 %v2466, %v2462
    %v2711 = vpack.c.b16 %v2467, %v2463
    %v2712 = vpack.c.b16 %v2468, %v2464
    %v2713 = vpack.c.b16 %v2469, %v2465
    %v2714 = vpack.c.b16 %v2474, %v2470
    %v2715 = vpack.c.b16 %v2475, %v2471
    %v2716 = vpack.c.b16 %v2476, %v2472
    %v2717 = vpack.c.b16 %v2477, %v2473
    %v2718 = vpack.c.b16 %v2482, %v2478
    %v2719 = vpack.c.b16 %v2483, %v2479
    %v2720 = vpack.c.b16 %v2484, %v2480
    %v2721 = vpack.c.b16 %v2485, %v2481
    %v2722 = vpack.c.b16 %v2490, %v2486
    %v2723 = vpack.c.b16 %v2491, %v2487
    %v2724 = vpack.c.b16 %v2492, %v2488
    %v2725 = vpack.c.b16 %v2493, %v2489
    %v2726 = vpack.c.b16 %v2498, %v2494
    %v2727 = vpack.c.b16 %v2499, %v2495
    %v2728 = vpack.c.b16 %v2500, %v2496
    %v2729 = vpack.c.b16 %v2501, %v2497
    %v2730 = vpack.c.b16 %v2506, %v2502
    %v2731 = vpack.c.b16 %v2507, %v2503
    %v2732 = vpack.c.b16 %v2508, %v2504
    %v2733 = vpack.c.b16 %v2509, %v2505
    %v2734 = vpack.c.b16 %v2514, %v2510
    %v2735 = vpack.c.b16 %v2515, %v2511
    %v2736 = vpack.c.b16 %v2516, %v2512
    %v2737 = vpack.c.b16 %v2517, %v2513
    %v2738 = vpack.c.b16 %v2522, %v2518
    %v2739 = vpack.c.b16 %v2523, %v2519
    %v2740 = vpack.c.b16 %v2524, %v2520
    %v2741 = vpack.c.b16 %v2525, %v2521
    %v2742 = vpack.c.b16 %v2530, %v2526
    %v2743 = vpack.c.b16 %v2531, %v2527
    %v2744 = vpack.c.b16 %v2532, %v2528
    %v2745 = vpack.c.b16 %v2533, %v2529
    %v2746 = vpack.c.b16 %v2538, %v2534
    %v2747 = vpack.c.b16 %v2539, %v2535
    %v2748 = vpack.c.b16 %v2540, %v2536
    %v2749 = vpack.c.b16 %v2541, %v2537
    %v2750 = vpack.c.b16 %v2546, %v2542
    %v2751 = vpack.c.b16 %v2547, %v2543
    %v2752 = vpack.c.b16 %v2548, %v2544
    %v2753 = vpack.c.b16 %v2549, %v2545
    %v2754 = vpack.c.b16 %v2554, %v2550
    %v2755 = vpack.c.b16 %v2555, %v2551
    %v2756 = vpack.c.b16 %v2556, %v2552
    %v2757 = vpack.c.b16 %v2557, %v2553
    %v2758 = vpack.c.b16 %v2562, %v2558
    %v2759 = vpack.c.b16 %v2563, %v2559
    %v2760 = vpack.c.b16 %v2564, %v2560
    %v2761 = vpack.c.b16 %v2565, %v2561
    %v2762 = vpack.c.b16 %v2570, %v2566
    %v2763 = vpack.c.b16 %v2571, %v2567
    %v2764 = vpack.c.b16 %v2572, %v2568
    %v2765 = vpack.c.b16 %v2573, %v2569
    %v2766 = vpack.c.b16 %v2578, %v2574
    %v2767 = vpack.c.b16 %v2579, %v2575
    %v2768 = vpack.c.b16 %v2580, %v2576
    %v2769 = vpack.c.b16 %v2581, %v2577
    %v2770 = vpack.c.b16 %v2586, %v2582
    %v2771 = vpack.c.b16 %v2587, %v2583
    %v2772 = vpack.c.b16 %v2588, %v2584
    %v2773 = vpack.c.b16 %v2589, %v2585
    %v2774 = vpack.c.b16 %v2594, %v2590
    %v2775 = vpack.c.b16 %v2595, %v2591
    %v2776 = vpack.c.b16 %v2596, %v2592
    %v2777 = vpack.c.b16 %v2597, %v2593
    %v2778 = vpack.c.b16 %v2602, %v2598
    %v2779 = vpack.c.b16 %v2603, %v2599
    %v2780 = vpack.c.b16 %v2604, %v2600
    %v2781 = vpack.c.b16 %v2605, %v2601
    %v2782 = vpack.c.b16 %v2610, %v2606
    %v2783 = vpack.c.b16 %v2611, %v2607
    %v2784 = vpack.c.b16 %v2612, %v2608
    %v2785 = vpack.c.b16 %v2613, %v2609
    %v2786 = vpack.c.b16 %v2618, %v2614
    %v2787 = vpack.c.b16 %v2619, %v2615
    %v2788 = vpack.c.b16 %v2620, %v2616
    %v2789 = vpack.c.b16 %v2621, %v2617
    %v2790 = vpack.c.b16 %v2626, %v2622
    %v2791 = vpack.c.b16 %v2627, %v2623
    %v2792 = vpack.c.b16 %v2628, %v2624
    %v2793 = vpack.c.b16 %v2629, %v2625
    %v2794 = vpack.c.b16 %v2634, %v2630
    %v2795 = vpack.c.b16 %v2635, %v2631
    %v2796 = vpack.c.b16 %v2636, %v2632
    %v2797 = vpack.c.b16 %v2637, %v2633
    %v2798 = vpack.c.b16 %v2642, %v2638
    %v2799 = vpack.c.b16 %v2643, %v2639
    %v2800 = vpack.c.b16 %v2644, %v2640
    %v2801 = vpack.c.b16 %v2645, %v2641
    %v2802 = vpack.c.b16 %v2650, %v2646
    %v2803 = vpack.c.b16 %v2651, %v2647
    %v2804 = vpack.c.b16 %v2652, %v2648
    %v2805 = vpack.c.b16 %v2653, %v2649
    %v2806 = vpack.c.b16 %v2658, %v2654
    %v2807 = vpack.c.b16 %v2659, %v2655
    %v2808 = vpack.c.b16 %v2660, %v2656
    %v2809 = vpack.c.b16 %v2661, %v2657
    %v2810 = vpack.c.b16 %v2666, %v2662
    %v2811 = vpack.c.b16 %v2667, %v2663
    %v2812 = vpack.c.b16 %v2668, %v2664
    %v2813 = vpack.c.b16 %v2669, %v2665
    %v2814 = vpack.c.b16 %v2674, %v2670
    %v2815 = vpack.c.b16 %v2675, %v2671
    %v2816 = vpack.c.b16 %v2676, %v2672
    %v2817 = vpack.c.b16 %v2677, %v2673
    %v2818 = vpack.c.b16 %v2682, %v2678
    %v2819 = vpack.c.b16 %v2683, %v2679
    %v2820 = vpack.c.b16 %v2684, %v2680
    %v2821 = vpack.c.b16 %v2685, %v2681
    %v2822 = vpack.c.b16 %v2690, %v2686
    %v2823 = vpack.c.b16 %v2691, %v2687
    %v2824 = vpack.c.b16 %v2692, %v2688
    %v2825 = vpack.c.b16 %v2693, %v2689
    %v2826 = vpack.c.b16 %v2698, %v2694
    %v2827 = vpack.c.b16 %v2699, %v2695
    %v2828 = vpack.c.b16 %v2700, %v2696
    %v2829 = vpack.c.b16 %v2701, %v2697
    %2958 = vmatprep.subr.bf16.mxu0 %v2731
    %2959 = vmatpush1.bf16.msra.mxu0 %v2730
    %2960 = vmatprep.subr.bf16.mxu0 %v2727
    %2961 = vmatpush1.bf16.msra.mxu0 %v2726
    %2962 = vmatprep.subr.bf16.mxu0 %v2723
    %2963 = vmatpush1.bf16.msra.mxu0 %v2722
    %2964 = vmatprep.subr.bf16.mxu0 %v2719
    %2965 = vmatpush1.bf16.msra.mxu0 %v2718
    %2966 = vmatprep.subr.bf16.mxu0 %v2715
    %2967 = vmatpush1.bf16.msra.mxu0 %v2714
    %2968 = vmatprep.subr.bf16.mxu0 %v2711
    %2969 = vmatpush1.bf16.msra.mxu0 %v2710
    %2970 = vmatprep.subr.bf16.mxu0 %v2707
    %2971 = vmatpush1.bf16.msra.mxu0 %v2706
    %2972 = vmatprep.subr.bf16.mxu0 %v2703
    %2973 = vmatpush1.bf16.msra.mxu0 %v2702
    %2974 = vmatprep.subr.bf16.mxu0 %v2763
    %2975 = vmatpush2.bf16.msra.mxu0 %v2762
    %2976 = vmatprep.subr.bf16.mxu0 %v2759
    %2977 = vmatpush2.bf16.msra.mxu0 %v2758
    %2978 = vmatprep.subr.bf16.mxu0 %v2755
    %2979 = vmatpush2.bf16.msra.mxu0 %v2754
    %2980 = vmatprep.subr.bf16.mxu0 %v2751
    %2981 = vmatpush2.bf16.msra.mxu0 %v2750
    %2982 = vmatprep.subr.bf16.mxu0 %v2747
    %2983 = vmatpush2.bf16.msra.mxu0 %v2746
    %2984 = vmatprep.subr.bf16.mxu0 %v2743
    %2985 = vmatpush2.bf16.msra.mxu0 %v2742
    %2986 = vmatprep.subr.bf16.mxu0 %v2739
    %2987 = vmatpush2.bf16.msra.mxu0 %v2738
    %2988 = vmatprep.subr.bf16.mxu0 %v2735
    %2989 = vmatpush2.bf16.msra.mxu0 %v2734
    %2990 = vmatprep.mubr.bf16.mxu0 %v2311
    %2991 = vmatmul.mubr.bf16.gmra.mxu0 %v2310
    %v2992 = vpop.f32.mrf.mxu0
    %v2993 = vadd.f32 %v1432, %v2992
    %v2994 = vpop.f32.mrf.mxu0
    %v2995 = vadd.f32 %v1436, %v2994
    %v2996 = vpop.f32.mrf.mxu0
    %v2997 = vpop.f32.mrf.mxu0
    %2998 = vdwg.mxu0
    %2999 = vmatprep.subr.bf16.mxu0 %v2795
    %3000 = vmatpush1.bf16.msra.mxu0 %v2794
    %3001 = vmatprep.subr.bf16.mxu0 %v2791
    %3002 = vmatpush1.bf16.msra.mxu0 %v2790
    %3003 = vmatprep.subr.bf16.mxu0 %v2787
    %3004 = vmatpush1.bf16.msra.mxu0 %v2786
    %3005 = vmatprep.subr.bf16.mxu0 %v2783
    %3006 = vmatpush1.bf16.msra.mxu0 %v2782
    %3007 = vmatprep.subr.bf16.mxu0 %v2779
    %3008 = vmatpush1.bf16.msra.mxu0 %v2778
    %3009 = vmatprep.subr.bf16.mxu0 %v2775
    %3010 = vmatpush1.bf16.msra.mxu0 %v2774
    %3011 = vmatprep.subr.bf16.mxu0 %v2771
    %3012 = vmatpush1.bf16.msra.mxu0 %v2770
    %3013 = vmatprep.subr.bf16.mxu0 %v2767
    %3014 = vmatpush1.bf16.msra.mxu0 %v2766
    %3015 = vmatprep.subr.bf16.mxu0 %v2827
    %3016 = vmatpush2.bf16.msra.mxu0 %v2826
    %3017 = vmatprep.subr.bf16.mxu0 %v2823
    %3018 = vmatpush2.bf16.msra.mxu0 %v2822
    %3019 = vmatprep.subr.bf16.mxu0 %v2819
    %3020 = vmatpush2.bf16.msra.mxu0 %v2818
    %3021 = vmatprep.subr.bf16.mxu0 %v2815
    %3022 = vmatpush2.bf16.msra.mxu0 %v2814
    %3023 = vmatprep.subr.bf16.mxu0 %v2811
    %3024 = vmatpush2.bf16.msra.mxu0 %v2810
    %3025 = vmatprep.subr.bf16.mxu0 %v2807
    %3026 = vmatpush2.bf16.msra.mxu0 %v2806
    %3027 = vmatprep.subr.bf16.mxu0 %v2803
    %3028 = vmatpush2.bf16.msra.mxu0 %v2802
    %3029 = vmatprep.subr.bf16.mxu0 %v2799
    %3030 = vmatpush2.bf16.msra.mxu0 %v2798
    %3031 = vmatprep.mubr.bf16.mxu0 %v2313
    %3032 = vmatmul.mubr.bf16.gmra.mxu0 %v2312
    %v3033 = vpop.f32.mrf.mxu0
    %v3034 = vadd.f32 %v2993, %v3033
    %v3035 = vpop.f32.mrf.mxu0
    %v3036 = vadd.f32 %v2995, %v3035
    %v3037 = vpop.f32.mrf.mxu0
    %v3038 = vpop.f32.mrf.mxu0
    %3039 = vdwg.mxu0
    %3040 = vmatprep.subr.bf16.mxu0 %v2733
    %3041 = vmatpush1.bf16.msra.mxu0 %v2732
    %3042 = vmatprep.subr.bf16.mxu0 %v2729
    %3043 = vmatpush1.bf16.msra.mxu0 %v2728
    %3044 = vmatprep.subr.bf16.mxu0 %v2725
    %3045 = vmatpush1.bf16.msra.mxu0 %v2724
    %3046 = vmatprep.subr.bf16.mxu0 %v2721
    %3047 = vmatpush1.bf16.msra.mxu0 %v2720
    %3048 = vmatprep.subr.bf16.mxu0 %v2717
    %3049 = vmatpush1.bf16.msra.mxu0 %v2716
    %3050 = vmatprep.subr.bf16.mxu0 %v2713
    %3051 = vmatpush1.bf16.msra.mxu0 %v2712
    %3052 = vmatprep.subr.bf16.mxu0 %v2709
    %3053 = vmatpush1.bf16.msra.mxu0 %v2708
    %3054 = vmatprep.subr.bf16.mxu0 %v2705
    %3055 = vmatpush1.bf16.msra.mxu0 %v2704
    %3056 = vmatprep.subr.bf16.mxu0 %v2765
    %3057 = vmatpush2.bf16.msra.mxu0 %v2764
    %3058 = vmatprep.subr.bf16.mxu0 %v2761
    %3059 = vmatpush2.bf16.msra.mxu0 %v2760
    %3060 = vmatprep.subr.bf16.mxu0 %v2757
    %3061 = vmatpush2.bf16.msra.mxu0 %v2756
    %3062 = vmatprep.subr.bf16.mxu0 %v2753
    %3063 = vmatpush2.bf16.msra.mxu0 %v2752
    %3064 = vmatprep.subr.bf16.mxu0 %v2749
    %3065 = vmatpush2.bf16.msra.mxu0 %v2748
    %3066 = vmatprep.subr.bf16.mxu0 %v2745
    %3067 = vmatpush2.bf16.msra.mxu0 %v2744
    %3068 = vmatprep.subr.bf16.mxu0 %v2741
    %3069 = vmatpush2.bf16.msra.mxu0 %v2740
    %3070 = vmatprep.subr.bf16.mxu0 %v2737
    %3071 = vmatpush2.bf16.msra.mxu0 %v2736
    %3072 = vmatprep.mubr.bf16.mxu0 %v2311
    %3073 = vmatmul.mubr.bf16.gmra.mxu0 %v2310
    %v3074 = vpop.f32.mrf.mxu0
    %v3075 = vadd.f32 %v1440, %v3074
    %v3076 = vpop.f32.mrf.mxu0
    %v3077 = vadd.f32 %v1444, %v3076
    %v3078 = vpop.f32.mrf.mxu0
    %v3079 = vpop.f32.mrf.mxu0
    %3080 = vdwg.mxu0
    %3081 = vmatprep.subr.bf16.mxu0 %v2797
    %3082 = vmatpush1.bf16.msra.mxu0 %v2796
    %3083 = vmatprep.subr.bf16.mxu0 %v2793
    %3084 = vmatpush1.bf16.msra.mxu0 %v2792
    %3085 = vmatprep.subr.bf16.mxu0 %v2789
    %3086 = vmatpush1.bf16.msra.mxu0 %v2788
    %3087 = vmatprep.subr.bf16.mxu0 %v2785
    %3088 = vmatpush1.bf16.msra.mxu0 %v2784
    %3089 = vmatprep.subr.bf16.mxu0 %v2781
    %3090 = vmatpush1.bf16.msra.mxu0 %v2780
    %3091 = vmatprep.subr.bf16.mxu0 %v2777
    %3092 = vmatpush1.bf16.msra.mxu0 %v2776
    %3093 = vmatprep.subr.bf16.mxu0 %v2773
    %3094 = vmatpush1.bf16.msra.mxu0 %v2772
    %3095 = vmatprep.subr.bf16.mxu0 %v2769
    %3096 = vmatpush1.bf16.msra.mxu0 %v2768
    %3097 = vmatprep.subr.bf16.mxu0 %v2829
    %3098 = vmatpush2.bf16.msra.mxu0 %v2828
    %3099 = vmatprep.subr.bf16.mxu0 %v2825
    %3100 = vmatpush2.bf16.msra.mxu0 %v2824
    %3101 = vmatprep.subr.bf16.mxu0 %v2821
    %3102 = vmatpush2.bf16.msra.mxu0 %v2820
    %3103 = vmatprep.subr.bf16.mxu0 %v2817
    %3104 = vmatpush2.bf16.msra.mxu0 %v2816
    %3105 = vmatprep.subr.bf16.mxu0 %v2813
    %3106 = vmatpush2.bf16.msra.mxu0 %v2812
    %3107 = vmatprep.subr.bf16.mxu0 %v2809
    %3108 = vmatpush2.bf16.msra.mxu0 %v2808
    %3109 = vmatprep.subr.bf16.mxu0 %v2805
    %3110 = vmatpush2.bf16.msra.mxu0 %v2804
    %3111 = vmatprep.subr.bf16.mxu0 %v2801
    %3112 = vmatpush2.bf16.msra.mxu0 %v2800
    %3113 = vmatprep.mubr.bf16.mxu0 %v2313
    %3114 = vmatmul.mubr.bf16.gmra.mxu0 %v2312
    %v3115 = vpop.f32.mrf.mxu0
    %v3116 = vadd.f32 %v3075, %v3115
    %v3117 = vpop.f32.mrf.mxu0
    %v3118 = vadd.f32 %v3077, %v3117
    %v3119 = vpop.f32.mrf.mxu0
    %v3120 = vpop.f32.mrf.mxu0
    %3121 = vdwg.mxu0
    %v3122 = vmax.f32 %v3034, 0.0
    %v3123 = vmax.f32 %v3036, 0.0
    %v3124 = vmax.f32 %v3116, 0.0
    %v3125 = vmax.f32 %v3118, 0.0
    %v3126 = vpack.c.bf16 %v3122, %v3122
    %v3127 = vpack.c.bf16 %v3123, %v3123
    %v3128 = vpack.c.bf16 %v3124, %v3124
    %v3129 = vpack.c.bf16 %v3125, %v3125
    %v3130 = vld [vmem:[%s4] sm:$0xff]
    %v3131 = vld [vmem:[%s4 + $0x8] sm:$0xff]
    %v3132 = vld [vmem:[%s4 + $0x10] sm:$0xff]
    %v3133 = vld [vmem:[%s4 + $0x18] sm:$0xff]
    %v3134 = vld [vmem:[%s4 + $0x20] sm:$0xff]
    %v3135 = vld [vmem:[%s4 + $0x28] sm:$0xff]
    %v3136 = vld [vmem:[%s4 + $0x30] sm:$0xff]
    %v3137 = vld [vmem:[%s4 + $0x38] sm:$0xff]
    %v3138 = vld [vmem:[%s4 + $0x40] sm:$0xff]
    %v3139 = vld [vmem:[%s4 + $0x48] sm:$0xff]
    %v3140 = vld [vmem:[%s4 + $0x50] sm:$0xff]
    %v3141 = vld [vmem:[%s4 + $0x58] sm:$0xff]
    %v3142 = vld [vmem:[%s4 + $0x60] sm:$0xff]
    %v3143 = vld [vmem:[%s4 + $0x68] sm:$0xff]
    %v3144 = vld [vmem:[%s4 + $0x70] sm:$0xff]
    %v3145 = vld [vmem:[%s4 + $0x78] sm:$0xff]
    %v3146 = vld [vmem:[%s4 + $0x80] sm:$0xff]
    %v3147 = vld [vmem:[%s4 + $0x88] sm:$0xff]
    %v3148 = vld [vmem:[%s4 + $0x90] sm:$0xff]
    %v3149 = vld [vmem:[%s4 + $0x98] sm:$0xff]
    %v3150 = vld [vmem:[%s4 + $0xa0] sm:$0xff]
    %v3151 = vld [vmem:[%s4 + $0xa8] sm:$0xff]
    %v3152 = vld [vmem:[%s4 + $0xb0] sm:$0xff]
    %v3153 = vld [vmem:[%s4 + $0xb8] sm:$0xff]
    %v3154 = vld [vmem:[%s4 + $0xc0] sm:$0xff]
    %v3155 = vld [vmem:[%s4 + $0xc8] sm:$0xff]
    %v3156 = vld [vmem:[%s4 + $0xd0] sm:$0xff]
    %v3157 = vld [vmem:[%s4 + $0xd8] sm:$0xff]
    %v3158 = vld [vmem:[%s4 + $0xe0] sm:$0xff]
    %v3159 = vld [vmem:[%s4 + $0xe8] sm:$0xff]
    %v3160 = vld [vmem:[%s4 + $0xf0] sm:$0xff]
    %v3161 = vld [vmem:[%s4 + $0xf8] sm:$0xff]
    %v3162 = vld [vmem:[%s4 + $0x100] sm:$0xff]
    %v3163 = vld [vmem:[%s4 + $0x108] sm:$0xff]
    %v3164 = vld [vmem:[%s4 + $0x110] sm:$0xff]
    %v3165 = vld [vmem:[%s4 + $0x118] sm:$0xff]
    %v3166 = vld [vmem:[%s4 + $0x120] sm:$0xff]
    %v3167 = vld [vmem:[%s4 + $0x128] sm:$0xff]
    %v3168 = vld [vmem:[%s4 + $0x130] sm:$0xff]
    %v3169 = vld [vmem:[%s4 + $0x138] sm:$0xff]
    %v3170 = vld [vmem:[%s4 + $0x140] sm:$0xff]
    %v3171 = vld [vmem:[%s4 + $0x148] sm:$0xff]
    %v3172 = vld [vmem:[%s4 + $0x150] sm:$0xff]
    %v3173 = vld [vmem:[%s4 + $0x158] sm:$0xff]
    %v3174 = vld [vmem:[%s4 + $0x160] sm:$0xff]
    %v3175 = vld [vmem:[%s4 + $0x168] sm:$0xff]
    %v3176 = vld [vmem:[%s4 + $0x170] sm:$0xff]
    %v3177 = vld [vmem:[%s4 + $0x178] sm:$0xff]
    %v3178 = vld [vmem:[%s4 + $0x180] sm:$0xff]
    %v3179 = vld [vmem:[%s4 + $0x188] sm:$0xff]
    %v3180 = vld [vmem:[%s4 + $0x190] sm:$0xff]
    %v3181 = vld [vmem:[%s4 + $0x198] sm:$0xff]
    %v3182 = vld [vmem:[%s4 + $0x1a0] sm:$0xff]
    %v3183 = vld [vmem:[%s4 + $0x1a8] sm:$0xff]
    %v3184 = vld [vmem:[%s4 + $0x1b0] sm:$0xff]
    %v3185 = vld [vmem:[%s4 + $0x1b8] sm:$0xff]
    %v3186 = vld [vmem:[%s4 + $0x1c0] sm:$0xff]
    %v3187 = vld [vmem:[%s4 + $0x1c8] sm:$0xff]
    %v3188 = vld [vmem:[%s4 + $0x1d0] sm:$0xff]
    %v3189 = vld [vmem:[%s4 + $0x1d8] sm:$0xff]
    %v3190 = vld [vmem:[%s4 + $0x1e0] sm:$0xff]
    %v3191 = vld [vmem:[%s4 + $0x1e8] sm:$0xff]
    %v3192 = vld [vmem:[%s4 + $0x1f0] sm:$0xff]
    %v3193 = vld [vmem:[%s4 + $0x1f8] sm:$0xff]
    %v3194 = vld [vmem:[%s4 + $0x200] sm:$0xff]
    %v3195 = vld [vmem:[%s4 + $0x208] sm:$0xff]
    %v3196 = vld [vmem:[%s4 + $0x210] sm:$0xff]
    %v3197 = vld [vmem:[%s4 + $0x218] sm:$0xff]
    %v3198 = vld [vmem:[%s4 + $0x220] sm:$0xff]
    %v3199 = vld [vmem:[%s4 + $0x228] sm:$0xff]
    %v3200 = vld [vmem:[%s4 + $0x230] sm:$0xff]
    %v3201 = vld [vmem:[%s4 + $0x238] sm:$0xff]
    %v3202 = vld [vmem:[%s4 + $0x240] sm:$0xff]
    %v3203 = vld [vmem:[%s4 + $0x248] sm:$0xff]
    %v3204 = vld [vmem:[%s4 + $0x250] sm:$0xff]
    %v3205 = vld [vmem:[%s4 + $0x258] sm:$0xff]
    %v3206 = vld [vmem:[%s4 + $0x260] sm:$0xff]
    %v3207 = vld [vmem:[%s4 + $0x268] sm:$0xff]
    %v3208 = vld [vmem:[%s4 + $0x270] sm:$0xff]
    %v3209 = vld [vmem:[%s4 + $0x278] sm:$0xff]
    %v3210 = vld [vmem:[%s4 + $0x280] sm:$0xff]
    %v3211 = vld [vmem:[%s4 + $0x288] sm:$0xff]
    %v3212 = vld [vmem:[%s4 + $0x290] sm:$0xff]
    %v3213 = vld [vmem:[%s4 + $0x298] sm:$0xff]
    %v3214 = vld [vmem:[%s4 + $0x2a0] sm:$0xff]
    %v3215 = vld [vmem:[%s4 + $0x2a8] sm:$0xff]
    %v3216 = vld [vmem:[%s4 + $0x2b0] sm:$0xff]
    %v3217 = vld [vmem:[%s4 + $0x2b8] sm:$0xff]
    %v3218 = vld [vmem:[%s4 + $0x2c0] sm:$0xff]
    %v3219 = vld [vmem:[%s4 + $0x2c8] sm:$0xff]
    %v3220 = vld [vmem:[%s4 + $0x2d0] sm:$0xff]
    %v3221 = vld [vmem:[%s4 + $0x2d8] sm:$0xff]
    %v3222 = vld [vmem:[%s4 + $0x2e0] sm:$0xff]
    %v3223 = vld [vmem:[%s4 + $0x2e8] sm:$0xff]
    %v3224 = vld [vmem:[%s4 + $0x2f0] sm:$0xff]
    %v3225 = vld [vmem:[%s4 + $0x2f8] sm:$0xff]
    %v3226 = vld [vmem:[%s4 + $0x300] sm:$0xff]
    %v3227 = vld [vmem:[%s4 + $0x308] sm:$0xff]
    %v3228 = vld [vmem:[%s4 + $0x310] sm:$0xff]
    %v3229 = vld [vmem:[%s4 + $0x318] sm:$0xff]
    %v3230 = vld [vmem:[%s4 + $0x320] sm:$0xff]
    %v3231 = vld [vmem:[%s4 + $0x328] sm:$0xff]
    %v3232 = vld [vmem:[%s4 + $0x330] sm:$0xff]
    %v3233 = vld [vmem:[%s4 + $0x338] sm:$0xff]
    %v3234 = vld [vmem:[%s4 + $0x340] sm:$0xff]
    %v3235 = vld [vmem:[%s4 + $0x348] sm:$0xff]
    %v3236 = vld [vmem:[%s4 + $0x350] sm:$0xff]
    %v3237 = vld [vmem:[%s4 + $0x358] sm:$0xff]
    %v3238 = vld [vmem:[%s4 + $0x360] sm:$0xff]
    %v3239 = vld [vmem:[%s4 + $0x368] sm:$0xff]
    %v3240 = vld [vmem:[%s4 + $0x370] sm:$0xff]
    %v3241 = vld [vmem:[%s4 + $0x378] sm:$0xff]
    %v3242 = vld [vmem:[%s4 + $0x380] sm:$0xff]
    %v3243 = vld [vmem:[%s4 + $0x388] sm:$0xff]
    %v3244 = vld [vmem:[%s4 + $0x390] sm:$0xff]
    %v3245 = vld [vmem:[%s4 + $0x398] sm:$0xff]
    %v3246 = vld [vmem:[%s4 + $0x3a0] sm:$0xff]
    %v3247 = vld [vmem:[%s4 + $0x3a8] sm:$0xff]
    %v3248 = vld [vmem:[%s4 + $0x3b0] sm:$0xff]
    %v3249 = vld [vmem:[%s4 + $0x3b8] sm:$0xff]
    %v3250 = vld [vmem:[%s4 + $0x3c0] sm:$0xff]
    %v3251 = vld [vmem:[%s4 + $0x3c8] sm:$0xff]
    %v3252 = vld [vmem:[%s4 + $0x3d0] sm:$0xff]
    %v3253 = vld [vmem:[%s4 + $0x3d8] sm:$0xff]
    %v3254 = vld [vmem:[%s4 + $0x3e0] sm:$0xff]
    %v3255 = vld [vmem:[%s4 + $0x3e8] sm:$0xff]
    %v3256 = vld [vmem:[%s4 + $0x3f0] sm:$0xff]
    %v3257 = vld [vmem:[%s4 + $0x3f8] sm:$0xff]
    %v3258 = vld [vmem:[%s5] sm:$0xf]
    %v3260 = vlaneseq
    %v3261 = vshrl.u32 %v3260, 7
    %v3262 = vsub.s32 0, %v3261
    %v3263 = vrot.slane %v3258, %v3262
    %v3264 = vlaneseq
    %v3265 = vshrl.u32 %v3264, 7
    %v3266 = vsub.s32 1, %v3265
    %v3267 = vrot.slane %v3258, %v3266
    %v3268 = vlaneseq
    %v3269 = vshrl.u32 %v3268, 7
    %v3270 = vsub.s32 2, %v3269
    %v3271 = vrot.slane %v3258, %v3270
    %v3272 = vlaneseq
    %v3273 = vshrl.u32 %v3272, 7
    %v3274 = vsub.s32 3, %v3273
    %v3275 = vrot.slane %v3258, %v3274
    %v3408 = vunpack.c.l.b16 %v3130
    %v3409 = vunpack.c.h.b16 %v3130
    %v3410 = vunpack.c.l.b16 %v3131
    %v3411 = vunpack.c.h.b16 %v3131
    %v3412 = vunpack.c.l.b16 %v3132
    %v3413 = vunpack.c.h.b16 %v3132
    %v3414 = vunpack.c.l.b16 %v3133
    %v3415 = vunpack.c.h.b16 %v3133
    %v3416 = vunpack.c.l.b16 %v3134
    %v3417 = vunpack.c.h.b16 %v3134
    %v3418 = vunpack.c.l.b16 %v3135
    %v3419 = vunpack.c.h.b16 %v3135
    %v3420 = vunpack.c.l.b16 %v3136
    %v3421 = vunpack.c.h.b16 %v3136
    %v3422 = vunpack.c.l.b16 %v3137
    %v3423 = vunpack.c.h.b16 %v3137
    %v3424 = vunpack.c.l.b16 %v3138
    %v3425 = vunpack.c.h.b16 %v3138
    %v3426 = vunpack.c.l.b16 %v3139
    %v3427 = vunpack.c.h.b16 %v3139
    %v3428 = vunpack.c.l.b16 %v3140
    %v3429 = vunpack.c.h.b16 %v3140
    %v3430 = vunpack.c.l.b16 %v3141
    %v3431 = vunpack.c.h.b16 %v3141
    %v3432 = vunpack.c.l.b16 %v3142
    %v3433 = vunpack.c.h.b16 %v3142
    %v3434 = vunpack.c.l.b16 %v3143
    %v3435 = vunpack.c.h.b16 %v3143
    %v3436 = vunpack.c.l.b16 %v3144
    %v3437 = vunpack.c.h.b16 %v3144
    %v3438 = vunpack.c.l.b16 %v3145
    %v3439 = vunpack.c.h.b16 %v3145
    %v3440 = vunpack.c.l.b16 %v3146
    %v3441 = vunpack.c.h.b16 %v3146
    %v3442 = vunpack.c.l.b16 %v3147
    %v3443 = vunpack.c.h.b16 %v3147
    %v3444 = vunpack.c.l.b16 %v3148
    %v3445 = vunpack.c.h.b16 %v3148
    %v3446 = vunpack.c.l.b16 %v3149
    %v3447 = vunpack.c.h.b16 %v3149
    %v3448 = vunpack.c.l.b16 %v3150
    %v3449 = vunpack.c.h.b16 %v3150
    %v3450 = vunpack.c.l.b16 %v3151
    %v3451 = vunpack.c.h.b16 %v3151
    %v3452 = vunpack.c.l.b16 %v3152
    %v3453 = vunpack.c.h.b16 %v3152
    %v3454 = vunpack.c.l.b16 %v3153
    %v3455 = vunpack.c.h.b16 %v3153
    %v3456 = vunpack.c.l.b16 %v3154
    %v3457 = vunpack.c.h.b16 %v3154
    %v3458 = vunpack.c.l.b16 %v3155
    %v3459 = vunpack.c.h.b16 %v3155
    %v3460 = vunpack.c.l.b16 %v3156
    %v3461 = vunpack.c.h.b16 %v3156
    %v3462 = vunpack.c.l.b16 %v3157
    %v3463 = vunpack.c.h.b16 %v3157
    %v3464 = vunpack.c.l.b16 %v3158
    %v3465 = vunpack.c.h.b16 %v3158
    %v3466 = vunpack.c.l.b16 %v3159
    %v3467 = vunpack.c.h.b16 %v3159
    %v3468 = vunpack.c.l.b16 %v3160
    %v3469 = vunpack.c.h.b16 %v3160
    %v3470 = vunpack.c.l.b16 %v3161
    %v3471 = vunpack.c.h.b16 %v3161
    %v3472 = vunpack.c.l.b16 %v3162
    %v3473 = vunpack.c.h.b16 %v3162
    %v3474 = vunpack.c.l.b16 %v3163
    %v3475 = vunpack.c.h.b16 %v3163
    %v3476 = vunpack.c.l.b16 %v3164
    %v3477 = vunpack.c.h.b16 %v3164
    %v3478 = vunpack.c.l.b16 %v3165
    %v3479 = vunpack.c.h.b16 %v3165
    %v3480 = vunpack.c.l.b16 %v3166
    %v3481 = vunpack.c.h.b16 %v3166
    %v3482 = vunpack.c.l.b16 %v3167
    %v3483 = vunpack.c.h.b16 %v3167
    %v3484 = vunpack.c.l.b16 %v3168
    %v3485 = vunpack.c.h.b16 %v3168
    %v3486 = vunpack.c.l.b16 %v3169
    %v3487 = vunpack.c.h.b16 %v3169
    %v3488 = vunpack.c.l.b16 %v3170
    %v3489 = vunpack.c.h.b16 %v3170
    %v3490 = vunpack.c.l.b16 %v3171
    %v3491 = vunpack.c.h.b16 %v3171
    %v3492 = vunpack.c.l.b16 %v3172
    %v3493 = vunpack.c.h.b16 %v3172
    %v3494 = vunpack.c.l.b16 %v3173
    %v3495 = vunpack.c.h.b16 %v3173
    %v3496 = vunpack.c.l.b16 %v3174
    %v3497 = vunpack.c.h.b16 %v3174
    %v3498 = vunpack.c.l.b16 %v3175
    %v3499 = vunpack.c.h.b16 %v3175
    %v3500 = vunpack.c.l.b16 %v3176
    %v3501 = vunpack.c.h.b16 %v3176
    %v3502 = vunpack.c.l.b16 %v3177
    %v3503 = vunpack.c.h.b16 %v3177
    %v3504 = vunpack.c.l.b16 %v3178
    %v3505 = vunpack.c.h.b16 %v3178
    %v3506 = vunpack.c.l.b16 %v3179
    %v3507 = vunpack.c.h.b16 %v3179
    %v3508 = vunpack.c.l.b16 %v3180
    %v3509 = vunpack.c.h.b16 %v3180
    %v3510 = vunpack.c.l.b16 %v3181
    %v3511 = vunpack.c.h.b16 %v3181
    %v3512 = vunpack.c.l.b16 %v3182
    %v3513 = vunpack.c.h.b16 %v3182
    %v3514 = vunpack.c.l.b16 %v3183
    %v3515 = vunpack.c.h.b16 %v3183
    %v3516 = vunpack.c.l.b16 %v3184
    %v3517 = vunpack.c.h.b16 %v3184
    %v3518 = vunpack.c.l.b16 %v3185
    %v3519 = vunpack.c.h.b16 %v3185
    %v3520 = vunpack.c.l.b16 %v3186
    %v3521 = vunpack.c.h.b16 %v3186
    %v3522 = vunpack.c.l.b16 %v3187
    %v3523 = vunpack.c.h.b16 %v3187
    %v3524 = vunpack.c.l.b16 %v3188
    %v3525 = vunpack.c.h.b16 %v3188
    %v3526 = vunpack.c.l.b16 %v3189
    %v3527 = vunpack.c.h.b16 %v3189
    %v3528 = vunpack.c.l.b16 %v3190
    %v3529 = vunpack.c.h.b16 %v3190
    %v3530 = vunpack.c.l.b16 %v3191
    %v3531 = vunpack.c.h.b16 %v3191
    %v3532 = vunpack.c.l.b16 %v3192
    %v3533 = vunpack.c.h.b16 %v3192
    %v3534 = vunpack.c.l.b16 %v3193
    %v3535 = vunpack.c.h.b16 %v3193
    %v3536 = vunpack.c.l.b16 %v3194
    %v3537 = vunpack.c.h.b16 %v3194
    %v3538 = vunpack.c.l.b16 %v3195
    %v3539 = vunpack.c.h.b16 %v3195
    %v3540 = vunpack.c.l.b16 %v3196
    %v3541 = vunpack.c.h.b16 %v3196
    %v3542 = vunpack.c.l.b16 %v3197
    %v3543 = vunpack.c.h.b16 %v3197
    %v3544 = vunpack.c.l.b16 %v3198
    %v3545 = vunpack.c.h.b16 %v3198
    %v3546 = vunpack.c.l.b16 %v3199
    %v3547 = vunpack.c.h.b16 %v3199
    %v3548 = vunpack.c.l.b16 %v3200
    %v3549 = vunpack.c.h.b16 %v3200
    %v3550 = vunpack.c.l.b16 %v3201
    %v3551 = vunpack.c.h.b16 %v3201
    %v3552 = vunpack.c.l.b16 %v3202
    %v3553 = vunpack.c.h.b16 %v3202
    %v3554 = vunpack.c.l.b16 %v3203
    %v3555 = vunpack.c.h.b16 %v3203
    %v3556 = vunpack.c.l.b16 %v3204
    %v3557 = vunpack.c.h.b16 %v3204
    %v3558 = vunpack.c.l.b16 %v3205
    %v3559 = vunpack.c.h.b16 %v3205
    %v3560 = vunpack.c.l.b16 %v3206
    %v3561 = vunpack.c.h.b16 %v3206
    %v3562 = vunpack.c.l.b16 %v3207
    %v3563 = vunpack.c.h.b16 %v3207
    %v3564 = vunpack.c.l.b16 %v3208
    %v3565 = vunpack.c.h.b16 %v3208
    %v3566 = vunpack.c.l.b16 %v3209
    %v3567 = vunpack.c.h.b16 %v3209
    %v3568 = vunpack.c.l.b16 %v3210
    %v3569 = vunpack.c.h.b16 %v3210
    %v3570 = vunpack.c.l.b16 %v3211
    %v3571 = vunpack.c.h.b16 %v3211
    %v3572 = vunpack.c.l.b16 %v3212
    %v3573 = vunpack.c.h.b16 %v3212
    %v3574 = vunpack.c.l.b16 %v3213
    %v3575 = vunpack.c.h.b16 %v3213
    %v3576 = vunpack.c.l.b16 %v3214
    %v3577 = vunpack.c.h.b16 %v3214
    %v3578 = vunpack.c.l.b16 %v3215
    %v3579 = vunpack.c.h.b16 %v3215
    %v3580 = vunpack.c.l.b16 %v3216
    %v3581 = vunpack.c.h.b16 %v3216
    %v3582 = vunpack.c.l.b16 %v3217
    %v3583 = vunpack.c.h.b16 %v3217
    %v3584 = vunpack.c.l.b16 %v3218
    %v3585 = vunpack.c.h.b16 %v3218
    %v3586 = vunpack.c.l.b16 %v3219
    %v3587 = vunpack.c.h.b16 %v3219
    %v3588 = vunpack.c.l.b16 %v3220
    %v3589 = vunpack.c.h.b16 %v3220
    %v3590 = vunpack.c.l.b16 %v3221
    %v3591 = vunpack.c.h.b16 %v3221
    %v3592 = vunpack.c.l.b16 %v3222
    %v3593 = vunpack.c.h.b16 %v3222
    %v3594 = vunpack.c.l.b16 %v3223
    %v3595 = vunpack.c.h.b16 %v3223
    %v3596 = vunpack.c.l.b16 %v3224
    %v3597 = vunpack.c.h.b16 %v3224
    %v3598 = vunpack.c.l.b16 %v3225
    %v3599 = vunpack.c.h.b16 %v3225
    %v3600 = vunpack.c.l.b16 %v3226
    %v3601 = vunpack.c.h.b16 %v3226
    %v3602 = vunpack.c.l.b16 %v3227
    %v3603 = vunpack.c.h.b16 %v3227
    %v3604 = vunpack.c.l.b16 %v3228
    %v3605 = vunpack.c.h.b16 %v3228
    %v3606 = vunpack.c.l.b16 %v3229
    %v3607 = vunpack.c.h.b16 %v3229
    %v3608 = vunpack.c.l.b16 %v3230
    %v3609 = vunpack.c.h.b16 %v3230
    %v3610 = vunpack.c.l.b16 %v3231
    %v3611 = vunpack.c.h.b16 %v3231
    %v3612 = vunpack.c.l.b16 %v3232
    %v3613 = vunpack.c.h.b16 %v3232
    %v3614 = vunpack.c.l.b16 %v3233
    %v3615 = vunpack.c.h.b16 %v3233
    %v3616 = vunpack.c.l.b16 %v3234
    %v3617 = vunpack.c.h.b16 %v3234
    %v3618 = vunpack.c.l.b16 %v3235
    %v3619 = vunpack.c.h.b16 %v3235
    %v3620 = vunpack.c.l.b16 %v3236
    %v3621 = vunpack.c.h.b16 %v3236
    %v3622 = vunpack.c.l.b16 %v3237
    %v3623 = vunpack.c.h.b16 %v3237
    %v3624 = vunpack.c.l.b16 %v3238
    %v3625 = vunpack.c.h.b16 %v3238
    %v3626 = vunpack.c.l.b16 %v3239
    %v3627 = vunpack.c.h.b16 %v3239
    %v3628 = vunpack.c.l.b16 %v3240
    %v3629 = vunpack.c.h.b16 %v3240
    %v3630 = vunpack.c.l.b16 %v3241
    %v3631 = vunpack.c.h.b16 %v3241
    %v3632 = vunpack.c.l.b16 %v3242
    %v3633 = vunpack.c.h.b16 %v3242
    %v3634 = vunpack.c.l.b16 %v3243
    %v3635 = vunpack.c.h.b16 %v3243
    %v3636 = vunpack.c.l.b16 %v3244
    %v3637 = vunpack.c.h.b16 %v3244
    %v3638 = vunpack.c.l.b16 %v3245
    %v3639 = vunpack.c.h.b16 %v3245
    %v3640 = vunpack.c.l.b16 %v3246
    %v3641 = vunpack.c.h.b16 %v3246
    %v3642 = vunpack.c.l.b16 %v3247
    %v3643 = vunpack.c.h.b16 %v3247
    %v3644 = vunpack.c.l.b16 %v3248
    %v3645 = vunpack.c.h.b16 %v3248
    %v3646 = vunpack.c.l.b16 %v3249
    %v3647 = vunpack.c.h.b16 %v3249
    %v3648 = vunpack.c.l.b16 %v3250
    %v3649 = vunpack.c.h.b16 %v3250
    %v3650 = vunpack.c.l.b16 %v3251
    %v3651 = vunpack.c.h.b16 %v3251
    %v3652 = vunpack.c.l.b16 %v3252
    %v3653 = vunpack.c.h.b16 %v3252
    %v3654 = vunpack.c.l.b16 %v3253
    %v3655 = vunpack.c.h.b16 %v3253
    %v3656 = vunpack.c.l.b16 %v3254
    %v3657 = vunpack.c.h.b16 %v3254
    %v3658 = vunpack.c.l.b16 %v3255
    %v3659 = vunpack.c.h.b16 %v3255
    %v3660 = vunpack.c.l.b16 %v3256
    %v3661 = vunpack.c.h.b16 %v3256
    %v3662 = vunpack.c.l.b16 %v3257
    %v3663 = vunpack.c.h.b16 %v3257
    %v3664 = vpack.c.b16 %v3412, %v3408
    %v3665 = vpack.c.b16 %v3413, %v3409
    %v3666 = vpack.c.b16 %v3414, %v3410
    %v3667 = vpack.c.b16 %v3415, %v3411
    %v3668 = vpack.c.b16 %v3420, %v3416
    %v3669 = vpack.c.b16 %v3421, %v3417
    %v3670 = vpack.c.b16 %v3422, %v3418
    %v3671 = vpack.c.b16 %v3423, %v3419
    %v3672 = vpack.c.b16 %v3428, %v3424
    %v3673 = vpack.c.b16 %v3429, %v3425
    %v3674 = vpack.c.b16 %v3430, %v3426
    %v3675 = vpack.c.b16 %v3431, %v3427
    %v3676 = vpack.c.b16 %v3436, %v3432
    %v3677 = vpack.c.b16 %v3437, %v3433
    %v3678 = vpack.c.b16 %v3438, %v3434
    %v3679 = vpack.c.b16 %v3439, %v3435
    %v3680 = vpack.c.b16 %v3444, %v3440
    %v3681 = vpack.c.b16 %v3445, %v3441
    %v3682 = vpack.c.b16 %v3446, %v3442
    %v3683 = vpack.c.b16 %v3447, %v3443
    %v3684 = vpack.c.b16 %v3452, %v3448
    %v3685 = vpack.c.b16 %v3453, %v3449
    %v3686 = vpack.c.b16 %v3454, %v3450
    %v3687 = vpack.c.b16 %v3455, %v3451
    %v3688 = vpack.c.b16 %v3460, %v3456
    %v3689 = vpack.c.b16 %v3461, %v3457
    %v3690 = vpack.c.b16 %v3462, %v3458
    %v3691 = vpack.c.b16 %v3463, %v3459
    %v3692 = vpack.c.b16 %v3468, %v3464
    %v3693 = vpack.c.b16 %v3469, %v3465
    %v3694 = vpack.c.b16 %v3470, %v3466
    %v3695 = vpack.c.b16 %v3471, %v3467
    %v3696 = vpack.c.b16 %v3476, %v3472
    %v3697 = vpack.c.b16 %v3477, %v3473
    %v3698 = vpack.c.b16 %v3478, %v3474
    %v3699 = vpack.c.b16 %v3479, %v3475
    %v3700 = vpack.c.b16 %v3484, %v3480
    %v3701 = vpack.c.b16 %v3485, %v3481
    %v3702 = vpack.c.b16 %v3486, %v3482
    %v3703 = vpack.c.b16 %v3487, %v3483
    %v3704 = vpack.c.b16 %v3492, %v3488
    %v3705 = vpack.c.b16 %v3493, %v3489
    %v3706 = vpack.c.b16 %v3494, %v3490
    %v3707 = vpack.c.b16 %v3495, %v3491
    %v3708 = vpack.c.b16 %v3500, %v3496
    %v3709 = vpack.c.b16 %v3501, %v3497
    %v3710 = vpack.c.b16 %v3502, %v3498
    %v3711 = vpack.c.b16 %v3503, %v3499
    %v3712 = vpack.c.b16 %v3508, %v3504
    %v3713 = vpack.c.b16 %v3509, %v3505
    %v3714 = vpack.c.b16 %v3510, %v3506
    %v3715 = vpack.c.b16 %v3511, %v3507
    %v3716 = vpack.c.b16 %v3516, %v3512
    %v3717 = vpack.c.b16 %v3517, %v3513
    %v3718 = vpack.c.b16 %v3518, %v3514
    %v3719 = vpack.c.b16 %v3519, %v3515
    %v3720 = vpack.c.b16 %v3524, %v3520
    %v3721 = vpack.c.b16 %v3525, %v3521
    %v3722 = vpack.c.b16 %v3526, %v3522
    %v3723 = vpack.c.b16 %v3527, %v3523
    %v3724 = vpack.c.b16 %v3532, %v3528
    %v3725 = vpack.c.b16 %v3533, %v3529
    %v3726 = vpack.c.b16 %v3534, %v3530
    %v3727 = vpack.c.b16 %v3535, %v3531
    %v3728 = vpack.c.b16 %v3540, %v3536
    %v3729 = vpack.c.b16 %v3541, %v3537
    %v3730 = vpack.c.b16 %v3542, %v3538
    %v3731 = vpack.c.b16 %v3543, %v3539
    %v3732 = vpack.c.b16 %v3548, %v3544
    %v3733 = vpack.c.b16 %v3549, %v3545
    %v3734 = vpack.c.b16 %v3550, %v3546
    %v3735 = vpack.c.b16 %v3551, %v3547
    %v3736 = vpack.c.b16 %v3556, %v3552
    %v3737 = vpack.c.b16 %v3557, %v3553
    %v3738 = vpack.c.b16 %v3558, %v3554
    %v3739 = vpack.c.b16 %v3559, %v3555
    %v3740 = vpack.c.b16 %v3564, %v3560
    %v3741 = vpack.c.b16 %v3565, %v3561
    %v3742 = vpack.c.b16 %v3566, %v3562
    %v3743 = vpack.c.b16 %v3567, %v3563
    %v3744 = vpack.c.b16 %v3572, %v3568
    %v3745 = vpack.c.b16 %v3573, %v3569
    %v3746 = vpack.c.b16 %v3574, %v3570
    %v3747 = vpack.c.b16 %v3575, %v3571
    %v3748 = vpack.c.b16 %v3580, %v3576
    %v3749 = vpack.c.b16 %v3581, %v3577
    %v3750 = vpack.c.b16 %v3582, %v3578
    %v3751 = vpack.c.b16 %v3583, %v3579
    %v3752 = vpack.c.b16 %v3588, %v3584
    %v3753 = vpack.c.b16 %v3589, %v3585
    %v3754 = vpack.c.b16 %v3590, %v3586
    %v3755 = vpack.c.b16 %v3591, %v3587
    %v3756 = vpack.c.b16 %v3596, %v3592
    %v3757 = vpack.c.b16 %v3597, %v3593
    %v3758 = vpack.c.b16 %v3598, %v3594
    %v3759 = vpack.c.b16 %v3599, %v3595
    %v3760 = vpack.c.b16 %v3604, %v3600
    %v3761 = vpack.c.b16 %v3605, %v3601
    %v3762 = vpack.c.b16 %v3606, %v3602
    %v3763 = vpack.c.b16 %v3607, %v3603
    %v3764 = vpack.c.b16 %v3612, %v3608
    %v3765 = vpack.c.b16 %v3613, %v3609
    %v3766 = vpack.c.b16 %v3614, %v3610
    %v3767 = vpack.c.b16 %v3615, %v3611
    %v3768 = vpack.c.b16 %v3620, %v3616
    %v3769 = vpack.c.b16 %v3621, %v3617
    %v3770 = vpack.c.b16 %v3622, %v3618
    %v3771 = vpack.c.b16 %v3623, %v3619
    %v3772 = vpack.c.b16 %v3628, %v3624
    %v3773 = vpack.c.b16 %v3629, %v3625
    %v3774 = vpack.c.b16 %v3630, %v3626
    %v3775 = vpack.c.b16 %v3631, %v3627
    %v3776 = vpack.c.b16 %v3636, %v3632
    %v3777 = vpack.c.b16 %v3637, %v3633
    %v3778 = vpack.c.b16 %v3638, %v3634
    %v3779 = vpack.c.b16 %v3639, %v3635
    %v3780 = vpack.c.b16 %v3644, %v3640
    %v3781 = vpack.c.b16 %v3645, %v3641
    %v3782 = vpack.c.b16 %v3646, %v3642
    %v3783 = vpack.c.b16 %v3647, %v3643
    %v3784 = vpack.c.b16 %v3652, %v3648
    %v3785 = vpack.c.b16 %v3653, %v3649
    %v3786 = vpack.c.b16 %v3654, %v3650
    %v3787 = vpack.c.b16 %v3655, %v3651
    %v3788 = vpack.c.b16 %v3660, %v3656
    %v3789 = vpack.c.b16 %v3661, %v3657
    %v3790 = vpack.c.b16 %v3662, %v3658
    %v3791 = vpack.c.b16 %v3663, %v3659
    %3920 = vmatprep.subr.bf16.mxu0 %v3693
    %3921 = vmatpush1.bf16.msra.mxu0 %v3692
    %3922 = vmatprep.subr.bf16.mxu0 %v3689
    %3923 = vmatpush1.bf16.msra.mxu0 %v3688
    %3924 = vmatprep.subr.bf16.mxu0 %v3685
    %3925 = vmatpush1.bf16.msra.mxu0 %v3684
    %3926 = vmatprep.subr.bf16.mxu0 %v3681
    %3927 = vmatpush1.bf16.msra.mxu0 %v3680
    %3928 = vmatprep.subr.bf16.mxu0 %v3677
    %3929 = vmatpush1.bf16.msra.mxu0 %v3676
    %3930 = vmatprep.subr.bf16.mxu0 %v3673
    %3931 = vmatpush1.bf16.msra.mxu0 %v3672
    %3932 = vmatprep.subr.bf16.mxu0 %v3669
    %3933 = vmatpush1.bf16.msra.mxu0 %v3668
    %3934 = vmatprep.subr.bf16.mxu0 %v3665
    %3935 = vmatpush1.bf16.msra.mxu0 %v3664
    %3936 = vmatprep.subr.bf16.mxu0 %v3725
    %3937 = vmatpush2.bf16.msra.mxu0 %v3724
    %3938 = vmatprep.subr.bf16.mxu0 %v3721
    %3939 = vmatpush2.bf16.msra.mxu0 %v3720
    %3940 = vmatprep.subr.bf16.mxu0 %v3717
    %3941 = vmatpush2.bf16.msra.mxu0 %v3716
    %3942 = vmatprep.subr.bf16.mxu0 %v3713
    %3943 = vmatpush2.bf16.msra.mxu0 %v3712
    %3944 = vmatprep.subr.bf16.mxu0 %v3709
    %3945 = vmatpush2.bf16.msra.mxu0 %v3708
    %3946 = vmatprep.subr.bf16.mxu0 %v3705
    %3947 = vmatpush2.bf16.msra.mxu0 %v3704
    %3948 = vmatprep.subr.bf16.mxu0 %v3701
    %3949 = vmatpush2.bf16.msra.mxu0 %v3700
    %3950 = vmatprep.subr.bf16.mxu0 %v3697
    %3951 = vmatpush2.bf16.msra.mxu0 %v3696
    %3952 = vmatprep.mubr.bf16.mxu0 %v3127
    %3953 = vmatmul.mubr.bf16.gmra.mxu0 %v3126
    %v3954 = vpop.f32.mrf.mxu0
    %v3955 = vadd.f32 %v3263, %v3954
    %v3956 = vpop.f32.mrf.mxu0
    %v3957 = vadd.f32 %v3267, %v3956
    %v3958 = vpop.f32.mrf.mxu0
    %v3959 = vpop.f32.mrf.mxu0
    %3960 = vdwg.mxu0
    %3961 = vmatprep.subr.bf16.mxu0 %v3757
    %3962 = vmatpush1.bf16.msra.mxu0 %v3756
    %3963 = vmatprep.subr.bf16.mxu0 %v3753
    %3964 = vmatpush1.bf16.msra.mxu0 %v3752
    %3965 = vmatprep.subr.bf16.mxu0 %v3749
    %3966 = vmatpush1.bf16.msra.mxu0 %v3748
    %3967 = vmatprep.subr.bf16.mxu0 %v3745
    %3968 = vmatpush1.bf16.msra.mxu0 %v3744
    %3969 = vmatprep.subr.bf16.mxu0 %v3741
    %3970 = vmatpush1.bf16.msra.mxu0 %v3740
    %3971 = vmatprep.subr.bf16.mxu0 %v3737
    %3972 = vmatpush1.bf16.msra.mxu0 %v3736
    %3973 = vmatprep.subr.bf16.mxu0 %v3733
    %3974 = vmatpush1.bf16.msra.mxu0 %v3732
    %3975 = vmatprep.subr.bf16.mxu0 %v3729
    %3976 = vmatpush1.bf16.msra.mxu0 %v3728
    %3977 = vmatprep.subr.bf16.mxu0 %v3789
    %3978 = vmatpush2.bf16.msra.mxu0 %v3788
    %3979 = vmatprep.subr.bf16.mxu0 %v3785
    %3980 = vmatpush2.bf16.msra.mxu0 %v3784
    %3981 = vmatprep.subr.bf16.mxu0 %v3781
    %3982 = vmatpush2.bf16.msra.mxu0 %v3780
    %3983 = vmatprep.subr.bf16.mxu0 %v3777
    %3984 = vmatpush2.bf16.msra.mxu0 %v3776
    %3985 = vmatprep.subr.bf16.mxu0 %v3773
    %3986 = vmatpush2.bf16.msra.mxu0 %v3772
    %3987 = vmatprep.subr.bf16.mxu0 %v3769
    %3988 = vmatpush2.bf16.msra.mxu0 %v3768
    %3989 = vmatprep.subr.bf16.mxu0 %v3765
    %3990 = vmatpush2.bf16.msra.mxu0 %v3764
    %3991 = vmatprep.subr.bf16.mxu0 %v3761
    %3992 = vmatpush2.bf16.msra.mxu0 %v3760
    %3993 = vmatprep.mubr.bf16.mxu0 %v3129
    %3994 = vmatmul.mubr.bf16.gmra.mxu0 %v3128
    %v3995 = vpop.f32.mrf.mxu0
    %v3996 = vadd.f32 %v3955, %v3995
    %v3997 = vpop.f32.mrf.mxu0
    %v3998 = vadd.f32 %v3957, %v3997
    %v3999 = vpop.f32.mrf.mxu0
    %v4000 = vpop.f32.mrf.mxu0
    %4001 = vdwg.mxu0
    %4002 = vmatprep.subr.bf16.mxu0 %v3695
    %4003 = vmatpush1.bf16.msra.mxu0 %v3694
    %4004 = vmatprep.subr.bf16.mxu0 %v3691
    %4005 = vmatpush1.bf16.msra.mxu0 %v3690
    %4006 = vmatprep.subr.bf16.mxu0 %v3687
    %4007 = vmatpush1.bf16.msra.mxu0 %v3686
    %4008 = vmatprep.subr.bf16.mxu0 %v3683
    %4009 = vmatpush1.bf16.msra.mxu0 %v3682
    %4010 = vmatprep.subr.bf16.mxu0 %v3679
    %4011 = vmatpush1.bf16.msra.mxu0 %v3678
    %4012 = vmatprep.subr.bf16.mxu0 %v3675
    %4013 = vmatpush1.bf16.msra.mxu0 %v3674
    %4014 = vmatprep.subr.bf16.mxu0 %v3671
    %4015 = vmatpush1.bf16.msra.mxu0 %v3670
    %4016 = vmatprep.subr.bf16.mxu0 %v3667
    %4017 = vmatpush1.bf16.msra.mxu0 %v3666
    %4018 = vmatprep.subr.bf16.mxu0 %v3727
    %4019 = vmatpush2.bf16.msra.mxu0 %v3726
    %4020 = vmatprep.subr.bf16.mxu0 %v3723
    %4021 = vmatpush2.bf16.msra.mxu0 %v3722
    %4022 = vmatprep.subr.bf16.mxu0 %v3719
    %4023 = vmatpush2.bf16.msra.mxu0 %v3718
    %4024 = vmatprep.subr.bf16.mxu0 %v3715
    %4025 = vmatpush2.bf16.msra.mxu0 %v3714
    %4026 = vmatprep.subr.bf16.mxu0 %v3711
    %4027 = vmatpush2.bf16.msra.mxu0 %v3710
    %4028 = vmatprep.subr.bf16.mxu0 %v3707
    %4029 = vmatpush2.bf16.msra.mxu0 %v3706
    %4030 = vmatprep.subr.bf16.mxu0 %v3703
    %4031 = vmatpush2.bf16.msra.mxu0 %v3702
    %4032 = vmatprep.subr.bf16.mxu0 %v3699
    %4033 = vmatpush2.bf16.msra.mxu0 %v3698
    %4034 = vmatprep.mubr.bf16.mxu0 %v3127
    %4035 = vmatmul.mubr.bf16.gmra.mxu0 %v3126
    %v4036 = vpop.f32.mrf.mxu0
    %v4037 = vadd.f32 %v3271, %v4036
    %v4038 = vpop.f32.mrf.mxu0
    %v4039 = vadd.f32 %v3275, %v4038
    %v4040 = vpop.f32.mrf.mxu0
    %v4041 = vpop.f32.mrf.mxu0
    %4042 = vdwg.mxu0
    %4043 = vmatprep.subr.bf16.mxu0 %v3759
    %4044 = vmatpush1.bf16.msra.mxu0 %v3758
    %4045 = vmatprep.subr.bf16.mxu0 %v3755
    %4046 = vmatpush1.bf16.msra.mxu0 %v3754
    %4047 = vmatprep.subr.bf16.mxu0 %v3751
    %4048 = vmatpush1.bf16.msra.mxu0 %v3750
    %4049 = vmatprep.subr.bf16.mxu0 %v3747
    %4050 = vmatpush1.bf16.msra.mxu0 %v3746
    %4051 = vmatprep.subr.bf16.mxu0 %v3743
    %4052 = vmatpush1.bf16.msra.mxu0 %v3742
    %4053 = vmatprep.subr.bf16.mxu0 %v3739
    %4054 = vmatpush1.bf16.msra.mxu0 %v3738
    %4055 = vmatprep.subr.bf16.mxu0 %v3735
    %4056 = vmatpush1.bf16.msra.mxu0 %v3734
    %4057 = vmatprep.subr.bf16.mxu0 %v3731
    %4058 = vmatpush1.bf16.msra.mxu0 %v3730
    %4059 = vmatprep.subr.bf16.mxu0 %v3791
    %4060 = vmatpush2.bf16.msra.mxu0 %v3790
    %4061 = vmatprep.subr.bf16.mxu0 %v3787
    %4062 = vmatpush2.bf16.msra.mxu0 %v3786
    %4063 = vmatprep.subr.bf16.mxu0 %v3783
    %4064 = vmatpush2.bf16.msra.mxu0 %v3782
    %4065 = vmatprep.subr.bf16.mxu0 %v3779
    %4066 = vmatpush2.bf16.msra.mxu0 %v3778
    %4067 = vmatprep.subr.bf16.mxu0 %v3775
    %4068 = vmatpush2.bf16.msra.mxu0 %v3774
    %4069 = vmatprep.subr.bf16.mxu0 %v3771
    %4070 = vmatpush2.bf16.msra.mxu0 %v3770
    %4071 = vmatprep.subr.bf16.mxu0 %v3767
    %4072 = vmatpush2.bf16.msra.mxu0 %v3766
    %4073 = vmatprep.subr.bf16.mxu0 %v3763
    %4074 = vmatpush2.bf16.msra.mxu0 %v3762
    %4075 = vmatprep.mubr.bf16.mxu0 %v3129
    %4076 = vmatmul.mubr.bf16.gmra.mxu0 %v3128
    %v4077 = vpop.f32.mrf.mxu0
    %v4078 = vadd.f32 %v4037, %v4077
    %v4079 = vpop.f32.mrf.mxu0
    %v4080 = vadd.f32 %v4039, %v4079
    %v4081 = vpop.f32.mrf.mxu0
    %v4082 = vpop.f32.mrf.mxu0
    %4083 = vdwg.mxu0
    %v4084 = vmax.f32 %v3996, 0.0
    %v4085 = vmax.f32 %v3998, 0.0
    %v4086 = vmax.f32 %v4078, 0.0
    %v4087 = vmax.f32 %v4080, 0.0
    %v4088 = vmul.f32 %v4084, %v4084
    %v4089 = vmul.f32 %v4085, %v4085
    %v4090 = vmul.f32 %v4086, %v4086
    %v4091 = vmul.f32 %v4087, %v4087
    %vm4092 = vcmask 1041408
    %v4093 = vsel %vm4092, %v4088, 0.0
    %v4094 = vsel %vm4092, %v4089, 0.0
    %v4095 = vadd.f32 %v4093, %v4094
    %v4096 = vsel %vm4092, %v4090, 0.0
    %v4097 = vadd.f32 %v4095, %v4096
    %v4098 = vsel %vm4092, %v4091, 0.0
    %v4099 = vadd.f32 %v4097, %v4098
    %4100 = vadd.xlane.f32.xlu0 %v4099
    %v4101 = vpop.xlane.xlu0 %4100
    %v4102 = vmax.f32 %v4101, 1e-24
    %v4103 = vrsqrt.pop %v4102
    %v4104 = vmul.f32 %v4084, %v4103
    %v4105 = vmul.f32 %v4085, %v4103
    %v4106 = vmul.f32 %v4086, %v4103
    %v4107 = vmul.f32 %v4087, %v4103
    %v4112 = vcombine.low %v4104, %v4105
    %v4113 = vcombine.low %v4106, %v4107
    %v4115 = vunpack.c.l.s4 1966171168
    %v4116 = vunpack.c.0.s8 %v4115
    %v4117 = vlaneseq
    %v4118 = vshrl.u32 %v4117, 7
    %v4119 = vsub.s32 %v4116, %v4118
    %v4120 = vrot.slane %v4112, %v4119
    %v4122 = vunpack.c.l.s4 1966171168
    %v4123 = vunpack.c.0.s8 %v4122
    %v4124 = vlaneseq
    %v4125 = vshrl.u32 %v4124, 7
    %v4126 = vsub.s32 %v4123, %v4125
    %v4127 = vrot.slane %v4113, %v4126
    %v4128 = vcombine.low %v4120, %v4127
    %v4129 = vcombine.high %v4120, %v4127
    %v4131 = vunpack.c.l.s4 1966171168
    %v4132 = vunpack.c.0.s8 %v4131
    %v4133 = vlaneseq
    %v4134 = vshrl.u32 %v4133, 7
    %v4135 = vsub.s32 %v4132, %v4134
    %v4136 = vrot.slane %v4128, %v4135
    %v4138 = vunpack.c.l.s4 1966171168
    %v4139 = vunpack.c.0.s8 %v4138
    %v4140 = vlaneseq
    %v4141 = vshrl.u32 %v4140, 7
    %v4142 = vsub.s32 %v4139, %v4141
    %v4143 = vrot.slane %v4129, %v4142
    %v4144 = vlaneseq
    %v4145 = vshrl.u32 %v4144, 7
    %v4146 = vsub.s32 0, %v4145
    %v4147 = vrot.slane %v4136, %v4146
    %v4148 = vlaneseq
    %v4149 = vshrl.u32 %v4148, 7
    %v4150 = vsub.s32 1, %v4149
    %v4151 = vrot.slane %v4136, %v4150
    %v4152 = vlaneseq
    %v4153 = vshrl.u32 %v4152, 7
    %v4154 = vsub.s32 2, %v4153
    %v4155 = vrot.slane %v4136, %v4154
    %v4156 = vlaneseq
    %v4157 = vshrl.u32 %v4156, 7
    %v4158 = vsub.s32 3, %v4157
    %v4159 = vrot.slane %v4136, %v4158
    %4164 = vmatprep.subr.mxu0 0.0
    %4165 = vmatpush1.msra.mxu0 %v610
    %4166 = vmatprep.subr.mxu0 0.0
    %4167 = vmatpush1.msra.mxu0 %v609
    %4168 = vmatprep.subr.mxu0 0.0
    %4169 = vmatpush1.msra.mxu0 %v608
    %4170 = vmatprep.subr.mxu0 0.0
    %4171 = vmatpush1.msra.mxu0 %v607
    %4172 = vmatprep.subr.mxu0 0.0
    %4173 = vmatpush1.msra.mxu0 %v606
    %4174 = vmatprep.subr.mxu0 0.0
    %4175 = vmatpush1.msra.mxu0 %v605
    %4176 = vmatprep.subr.mxu0 0.0
    %4177 = vmatpush1.msra.mxu0 %v604
    %4178 = vmatprep.subr.mxu0 0.0
    %4179 = vmatpush1.msra.mxu0 %v603
    %4180 = vmatprep.subr.mxu0 0.0
    %4181 = vmatpush1.msra.mxu0 %v602
    %4182 = vmatprep.subr.mxu0 0.0
    %4183 = vmatpush1.msra.mxu0 %v601
    %4184 = vmatprep.subr.mxu0 0.0
    %4185 = vmatpush1.msra.mxu0 %v600
    %4186 = vmatprep.subr.mxu0 0.0
    %4187 = vmatpush1.msra.mxu0 %v599
    %4188 = vmatprep.subr.mxu0 0.0
    %4189 = vmatpush1.msra.mxu0 %v598
    %4190 = vmatprep.subr.mxu0 0.0
    %4191 = vmatpush1.msra.mxu0 %v597
    %4192 = vmatprep.subr.mxu0 0.0
    %4193 = vmatpush1.msra.mxu0 %v596
    %4194 = vmatprep.subr.mxu0 0.0
    %4195 = vmatpush1.msra.mxu0 %v595
    %4196 = vmatprep.subr.mxu0 0.0
    %4197 = vmatpush2.msra.mxu0 %v626
    %4198 = vmatprep.subr.mxu0 0.0
    %4199 = vmatpush2.msra.mxu0 %v625
    %4200 = vmatprep.subr.mxu0 0.0
    %4201 = vmatpush2.msra.mxu0 %v624
    %4202 = vmatprep.subr.mxu0 0.0
    %4203 = vmatpush2.msra.mxu0 %v623
    %4204 = vmatprep.subr.mxu0 0.0
    %4205 = vmatpush2.msra.mxu0 %v622
    %4206 = vmatprep.subr.mxu0 0.0
    %4207 = vmatpush2.msra.mxu0 %v621
    %4208 = vmatprep.subr.mxu0 0.0
    %4209 = vmatpush2.msra.mxu0 %v620
    %4210 = vmatprep.subr.mxu0 0.0
    %4211 = vmatpush2.msra.mxu0 %v619
    %4212 = vmatprep.subr.mxu0 0.0
    %4213 = vmatpush2.msra.mxu0 %v618
    %4214 = vmatprep.subr.mxu0 0.0
    %4215 = vmatpush2.msra.mxu0 %v617
    %4216 = vmatprep.subr.mxu0 0.0
    %4217 = vmatpush2.msra.mxu0 %v616
    %4218 = vmatprep.subr.mxu0 0.0
    %4219 = vmatpush2.msra.mxu0 %v615
    %4220 = vmatprep.subr.mxu0 0.0
    %4221 = vmatpush2.msra.mxu0 %v614
    %4222 = vmatprep.subr.mxu0 0.0
    %4223 = vmatpush2.msra.mxu0 %v613
    %4224 = vmatprep.subr.mxu0 0.0
    %4225 = vmatpush2.msra.mxu0 %v612
    %4226 = vmatprep.subr.mxu0 0.0
    %4227 = vmatpush2.msra.mxu0 %v611
    %4228 = vmatprep.mubr.f32.mxu0 %v4151
    %4229 = vmatmul.mubr.f32.gmra.mxu0 %v4147
    %v4230 = vpop.f32.mrf.mxu0
    %v4231 = vadd.f32 0.0, %v4230
    %v4232 = vpop.f32.mrf.mxu0
    %4233 = vdwg.mxu0
    %4234 = vmatprep.subr.mxu0 0.0
    %4235 = vmatpush1.msra.mxu0 %v642
    %4236 = vmatprep.subr.mxu0 0.0
    %4237 = vmatpush1.msra.mxu0 %v641
    %4238 = vmatprep.subr.mxu0 0.0
    %4239 = vmatpush1.msra.mxu0 %v640
    %4240 = vmatprep.subr.mxu0 0.0
    %4241 = vmatpush1.msra.mxu0 %v639
    %4242 = vmatprep.subr.mxu0 0.0
    %4243 = vmatpush1.msra.mxu0 %v638
    %4244 = vmatprep.subr.mxu0 0.0
    %4245 = vmatpush1.msra.mxu0 %v637
    %4246 = vmatprep.subr.mxu0 0.0
    %4247 = vmatpush1.msra.mxu0 %v636
    %4248 = vmatprep.subr.mxu0 0.0
    %4249 = vmatpush1.msra.mxu0 %v635
    %4250 = vmatprep.subr.mxu0 0.0
    %4251 = vmatpush1.msra.mxu0 %v634
    %4252 = vmatprep.subr.mxu0 0.0
    %4253 = vmatpush1.msra.mxu0 %v633
    %4254 = vmatprep.subr.mxu0 0.0
    %4255 = vmatpush1.msra.mxu0 %v632
    %4256 = vmatprep.subr.mxu0 0.0
    %4257 = vmatpush1.msra.mxu0 %v631
    %4258 = vmatprep.subr.mxu0 0.0
    %4259 = vmatpush1.msra.mxu0 %v630
    %4260 = vmatprep.subr.mxu0 0.0
    %4261 = vmatpush1.msra.mxu0 %v629
    %4262 = vmatprep.subr.mxu0 0.0
    %4263 = vmatpush1.msra.mxu0 %v628
    %4264 = vmatprep.subr.mxu0 0.0
    %4265 = vmatpush1.msra.mxu0 %v627
    %4266 = vmatprep.subr.mxu0 0.0
    %4267 = vmatpush2.msra.mxu0 %v658
    %4268 = vmatprep.subr.mxu0 0.0
    %4269 = vmatpush2.msra.mxu0 %v657
    %4270 = vmatprep.subr.mxu0 0.0
    %4271 = vmatpush2.msra.mxu0 %v656
    %4272 = vmatprep.subr.mxu0 0.0
    %4273 = vmatpush2.msra.mxu0 %v655
    %4274 = vmatprep.subr.mxu0 0.0
    %4275 = vmatpush2.msra.mxu0 %v654
    %4276 = vmatprep.subr.mxu0 0.0
    %4277 = vmatpush2.msra.mxu0 %v653
    %4278 = vmatprep.subr.mxu0 0.0
    %4279 = vmatpush2.msra.mxu0 %v652
    %4280 = vmatprep.subr.mxu0 0.0
    %4281 = vmatpush2.msra.mxu0 %v651
    %4282 = vmatprep.subr.mxu0 0.0
    %4283 = vmatpush2.msra.mxu0 %v650
    %4284 = vmatprep.subr.mxu0 0.0
    %4285 = vmatpush2.msra.mxu0 %v649
    %4286 = vmatprep.subr.mxu0 0.0
    %4287 = vmatpush2.msra.mxu0 %v648
    %4288 = vmatprep.subr.mxu0 0.0
    %4289 = vmatpush2.msra.mxu0 %v647
    %4290 = vmatprep.subr.mxu0 0.0
    %4291 = vmatpush2.msra.mxu0 %v646
    %4292 = vmatprep.subr.mxu0 0.0
    %4293 = vmatpush2.msra.mxu0 %v645
    %4294 = vmatprep.subr.mxu0 0.0
    %4295 = vmatpush2.msra.mxu0 %v644
    %4296 = vmatprep.subr.mxu0 0.0
    %4297 = vmatpush2.msra.mxu0 %v643
    %4298 = vmatprep.mubr.f32.mxu0 %v4159
    %4299 = vmatmul.mubr.f32.gmra.mxu0 %v4155
    %v4300 = vpop.f32.mrf.mxu0
    %v4301 = vadd.f32 %v4231, %v4300
    %v4302 = vpop.f32.mrf.mxu0
    %4303 = vdwg.mxu0
    %v4304 = vlaneseq
    %v4305 = vshrl.u32 %v4304, 7
    %v4306 = vsub.s32 0, %v4305
    %v4307 = vrot.slane %v4143, %v4306
    %v4308 = vlaneseq
    %v4309 = vshrl.u32 %v4308, 7
    %v4310 = vsub.s32 1, %v4309
    %v4311 = vrot.slane %v4143, %v4310
    %v4312 = vlaneseq
    %v4313 = vshrl.u32 %v4312, 7
    %v4314 = vsub.s32 2, %v4313
    %v4315 = vrot.slane %v4143, %v4314
    %v4316 = vlaneseq
    %v4317 = vshrl.u32 %v4316, 7
    %v4318 = vsub.s32 3, %v4317
    %v4319 = vrot.slane %v4143, %v4318
    %4324 = vmatprep.subr.mxu0 0.0
    %4325 = vmatpush1.msra.mxu0 %v674
    %4326 = vmatprep.subr.mxu0 0.0
    %4327 = vmatpush1.msra.mxu0 %v673
    %4328 = vmatprep.subr.mxu0 0.0
    %4329 = vmatpush1.msra.mxu0 %v672
    %4330 = vmatprep.subr.mxu0 0.0
    %4331 = vmatpush1.msra.mxu0 %v671
    %4332 = vmatprep.subr.mxu0 0.0
    %4333 = vmatpush1.msra.mxu0 %v670
    %4334 = vmatprep.subr.mxu0 0.0
    %4335 = vmatpush1.msra.mxu0 %v669
    %4336 = vmatprep.subr.mxu0 0.0
    %4337 = vmatpush1.msra.mxu0 %v668
    %4338 = vmatprep.subr.mxu0 0.0
    %4339 = vmatpush1.msra.mxu0 %v667
    %4340 = vmatprep.subr.mxu0 0.0
    %4341 = vmatpush1.msra.mxu0 %v666
    %4342 = vmatprep.subr.mxu0 0.0
    %4343 = vmatpush1.msra.mxu0 %v665
    %4344 = vmatprep.subr.mxu0 0.0
    %4345 = vmatpush1.msra.mxu0 %v664
    %4346 = vmatprep.subr.mxu0 0.0
    %4347 = vmatpush1.msra.mxu0 %v663
    %4348 = vmatprep.subr.mxu0 0.0
    %4349 = vmatpush1.msra.mxu0 %v662
    %4350 = vmatprep.subr.mxu0 0.0
    %4351 = vmatpush1.msra.mxu0 %v661
    %4352 = vmatprep.subr.mxu0 0.0
    %4353 = vmatpush1.msra.mxu0 %v660
    %4354 = vmatprep.subr.mxu0 0.0
    %4355 = vmatpush1.msra.mxu0 %v659
    %4356 = vmatprep.subr.mxu0 0.0
    %4357 = vmatpush2.msra.mxu0 %v690
    %4358 = vmatprep.subr.mxu0 0.0
    %4359 = vmatpush2.msra.mxu0 %v689
    %4360 = vmatprep.subr.mxu0 0.0
    %4361 = vmatpush2.msra.mxu0 %v688
    %4362 = vmatprep.subr.mxu0 0.0
    %4363 = vmatpush2.msra.mxu0 %v687
    %4364 = vmatprep.subr.mxu0 0.0
    %4365 = vmatpush2.msra.mxu0 %v686
    %4366 = vmatprep.subr.mxu0 0.0
    %4367 = vmatpush2.msra.mxu0 %v685
    %4368 = vmatprep.subr.mxu0 0.0
    %4369 = vmatpush2.msra.mxu0 %v684
    %4370 = vmatprep.subr.mxu0 0.0
    %4371 = vmatpush2.msra.mxu0 %v683
    %4372 = vmatprep.subr.mxu0 0.0
    %4373 = vmatpush2.msra.mxu0 %v682
    %4374 = vmatprep.subr.mxu0 0.0
    %4375 = vmatpush2.msra.mxu0 %v681
    %4376 = vmatprep.subr.mxu0 0.0
    %4377 = vmatpush2.msra.mxu0 %v680
    %4378 = vmatprep.subr.mxu0 0.0
    %4379 = vmatpush2.msra.mxu0 %v679
    %4380 = vmatprep.subr.mxu0 0.0
    %4381 = vmatpush2.msra.mxu0 %v678
    %4382 = vmatprep.subr.mxu0 0.0
    %4383 = vmatpush2.msra.mxu0 %v677
    %4384 = vmatprep.subr.mxu0 0.0
    %4385 = vmatpush2.msra.mxu0 %v676
    %4386 = vmatprep.subr.mxu0 0.0
    %4387 = vmatpush2.msra.mxu0 %v675
    %4388 = vmatprep.mubr.f32.mxu0 %v4311
    %4389 = vmatmul.mubr.f32.gmra.mxu0 %v4307
    %v4390 = vpop.f32.mrf.mxu0
    %v4391 = vadd.f32 0.0, %v4390
    %v4392 = vpop.f32.mrf.mxu0
    %4393 = vdwg.mxu0
    %4394 = vmatprep.subr.mxu0 0.0
    %4395 = vmatpush1.msra.mxu0 %v706
    %4396 = vmatprep.subr.mxu0 0.0
    %4397 = vmatpush1.msra.mxu0 %v705
    %4398 = vmatprep.subr.mxu0 0.0
    %4399 = vmatpush1.msra.mxu0 %v704
    %4400 = vmatprep.subr.mxu0 0.0
    %4401 = vmatpush1.msra.mxu0 %v703
    %4402 = vmatprep.subr.mxu0 0.0
    %4403 = vmatpush1.msra.mxu0 %v702
    %4404 = vmatprep.subr.mxu0 0.0
    %4405 = vmatpush1.msra.mxu0 %v701
    %4406 = vmatprep.subr.mxu0 0.0
    %4407 = vmatpush1.msra.mxu0 %v700
    %4408 = vmatprep.subr.mxu0 0.0
    %4409 = vmatpush1.msra.mxu0 %v699
    %4410 = vmatprep.subr.mxu0 0.0
    %4411 = vmatpush1.msra.mxu0 %v698
    %4412 = vmatprep.subr.mxu0 0.0
    %4413 = vmatpush1.msra.mxu0 %v697
    %4414 = vmatprep.subr.mxu0 0.0
    %4415 = vmatpush1.msra.mxu0 %v696
    %4416 = vmatprep.subr.mxu0 0.0
    %4417 = vmatpush1.msra.mxu0 %v695
    %4418 = vmatprep.subr.mxu0 0.0
    %4419 = vmatpush1.msra.mxu0 %v694
    %4420 = vmatprep.subr.mxu0 0.0
    %4421 = vmatpush1.msra.mxu0 %v693
    %4422 = vmatprep.subr.mxu0 0.0
    %4423 = vmatpush1.msra.mxu0 %v692
    %4424 = vmatprep.subr.mxu0 0.0
    %4425 = vmatpush1.msra.mxu0 %v691
    %4426 = vmatprep.subr.mxu0 0.0
    %4427 = vmatpush2.msra.mxu0 %v722
    %4428 = vmatprep.subr.mxu0 0.0
    %4429 = vmatpush2.msra.mxu0 %v721
    %4430 = vmatprep.subr.mxu0 0.0
    %4431 = vmatpush2.msra.mxu0 %v720
    %4432 = vmatprep.subr.mxu0 0.0
    %4433 = vmatpush2.msra.mxu0 %v719
    %4434 = vmatprep.subr.mxu0 0.0
    %4435 = vmatpush2.msra.mxu0 %v718
    %4436 = vmatprep.subr.mxu0 0.0
    %4437 = vmatpush2.msra.mxu0 %v717
    %4438 = vmatprep.subr.mxu0 0.0
    %4439 = vmatpush2.msra.mxu0 %v716
    %4440 = vmatprep.subr.mxu0 0.0
    %4441 = vmatpush2.msra.mxu0 %v715
    %4442 = vmatprep.subr.mxu0 0.0
    %4443 = vmatpush2.msra.mxu0 %v714
    %4444 = vmatprep.subr.mxu0 0.0
    %4445 = vmatpush2.msra.mxu0 %v713
    %4446 = vmatprep.subr.mxu0 0.0
    %4447 = vmatpush2.msra.mxu0 %v712
    %4448 = vmatprep.subr.mxu0 0.0
    %4449 = vmatpush2.msra.mxu0 %v711
    %4450 = vmatprep.subr.mxu0 0.0
    %4451 = vmatpush2.msra.mxu0 %v710
    %4452 = vmatprep.subr.mxu0 0.0
    %4453 = vmatpush2.msra.mxu0 %v709
    %4454 = vmatprep.subr.mxu0 0.0
    %4455 = vmatpush2.msra.mxu0 %v708
    %4456 = vmatprep.subr.mxu0 0.0
    %4457 = vmatpush2.msra.mxu0 %v707
    %4458 = vmatprep.mubr.f32.mxu0 %v4319
    %4459 = vmatmul.mubr.f32.gmra.mxu0 %v4315
    %v4460 = vpop.f32.mrf.mxu0
    %v4461 = vadd.f32 %v4391, %v4460
    %v4462 = vpop.f32.mrf.mxu0
    %4463 = vdwg.mxu0
    %vm4464 = vcmask 122880
    %v4465 = vsel %vm4464, %v4301, -inf
    %4466 = vmax.xlane.f32.xlu0 %v4465
    %v4467 = vpop.xlane.xlu0 %4466
    %v4468 = vsel %vm4464, %v4461, -inf
    %4469 = vmax.xlane.f32.xlu0 %v4468
    %v4470 = vpop.xlane.xlu0 %4469
    %v4471 = vsub.f32 %v4301, %v4467
    %v4472 = vsub.f32 %v4461, %v4470
    %v4473 = vmul.f32 %v4471, 1.442695
    %v4474 = vpow.pop %v4473
    %v4475 = vmul.f32 %v4472, 1.442695
    %v4476 = vpow.pop %v4475
    %v4477 = vsel %vm4464, %v4474, 0.0
    %4478 = vadd.xlane.f32.xlu0 %v4477
    %v4479 = vpop.xlane.xlu0 %4478
    %v4480 = vsel %vm4464, %v4476, 0.0
    %4481 = vadd.xlane.f32.xlu0 %v4480
    %v4482 = vpop.xlane.xlu0 %4481
    %v4483 = vrcp.pop %v4479
    %v4484 = vmul.f32 %v4474, %v4483
    %v4485 = vrcp.pop %v4482
    %v4486 = vmul.f32 %v4476, %v4485
    %4487 = vst.msk [vmem:[#allocation7] sm:$0x1] %vm4464, %v4484
    %4488 = vst.msk [vmem:[#allocation7 + $0x1] sm:$0x1] %vm4464, %v4486
    %v4489 = vlaneseq
    %v4490 = vshrl.u32 %v4489, 7
    %v4491 = vsub.s32 0, %v4490
    %v4492 = vrot.slane %v4484, %v4491
    %v4493 = vlaneseq
    %v4494 = vshrl.u32 %v4493, 7
    %v4495 = vsub.s32 0, %v4494
    %v4496 = vrot.slane %v4486, %v4495
    %v4497 = vmul.f32 %v595, %v4492
    %v4498 = vmul.f32 %v596, %v4492
    %v4499 = vmul.f32 %v597, %v4492
    %v4500 = vmul.f32 %v598, %v4492
    %v4501 = vmul.f32 %v599, %v4492
    %v4502 = vmul.f32 %v600, %v4492
    %v4503 = vmul.f32 %v601, %v4492
    %v4504 = vmul.f32 %v602, %v4492
    %v4505 = vmul.f32 %v603, %v4492
    %v4506 = vmul.f32 %v604, %v4492
    %v4507 = vmul.f32 %v605, %v4492
    %v4508 = vmul.f32 %v606, %v4492
    %v4509 = vmul.f32 %v607, %v4492
    %v4510 = vmul.f32 %v608, %v4492
    %v4511 = vmul.f32 %v609, %v4492
    %v4512 = vmul.f32 %v610, %v4492
    %v4513 = vmul.f32 %v611, %v4492
    %v4514 = vmul.f32 %v612, %v4492
    %v4515 = vmul.f32 %v613, %v4492
    %v4516 = vmul.f32 %v614, %v4492
    %v4517 = vmul.f32 %v615, %v4492
    %v4518 = vmul.f32 %v616, %v4492
    %v4519 = vmul.f32 %v617, %v4492
    %v4520 = vmul.f32 %v618, %v4492
    %v4521 = vmul.f32 %v619, %v4492
    %v4522 = vmul.f32 %v620, %v4492
    %v4523 = vmul.f32 %v621, %v4492
    %v4524 = vmul.f32 %v622, %v4492
    %v4525 = vmul.f32 %v623, %v4492
    %v4526 = vmul.f32 %v624, %v4492
    %v4527 = vmul.f32 %v625, %v4492
    %v4528 = vmul.f32 %v626, %v4492
    %v4529 = vmul.f32 %v627, %v4492
    %v4530 = vmul.f32 %v628, %v4492
    %v4531 = vmul.f32 %v629, %v4492
    %v4532 = vmul.f32 %v630, %v4492
    %v4533 = vmul.f32 %v631, %v4492
    %v4534 = vmul.f32 %v632, %v4492
    %v4535 = vmul.f32 %v633, %v4492
    %v4536 = vmul.f32 %v634, %v4492
    %v4537 = vmul.f32 %v635, %v4492
    %v4538 = vmul.f32 %v636, %v4492
    %v4539 = vmul.f32 %v637, %v4492
    %v4540 = vmul.f32 %v638, %v4492
    %v4541 = vmul.f32 %v639, %v4492
    %v4542 = vmul.f32 %v640, %v4492
    %v4543 = vmul.f32 %v641, %v4492
    %v4544 = vmul.f32 %v642, %v4492
    %v4545 = vmul.f32 %v643, %v4492
    %v4546 = vmul.f32 %v644, %v4492
    %v4547 = vmul.f32 %v645, %v4492
    %v4548 = vmul.f32 %v646, %v4492
    %v4549 = vmul.f32 %v647, %v4492
    %v4550 = vmul.f32 %v648, %v4492
    %v4551 = vmul.f32 %v649, %v4492
    %v4552 = vmul.f32 %v650, %v4492
    %v4553 = vmul.f32 %v651, %v4492
    %v4554 = vmul.f32 %v652, %v4492
    %v4555 = vmul.f32 %v653, %v4492
    %v4556 = vmul.f32 %v654, %v4492
    %v4557 = vmul.f32 %v655, %v4492
    %v4558 = vmul.f32 %v656, %v4492
    %v4559 = vmul.f32 %v657, %v4492
    %v4560 = vmul.f32 %v658, %v4492
    %v4561 = vmul.f32 %v659, %v4496
    %v4562 = vmul.f32 %v660, %v4496
    %v4563 = vmul.f32 %v661, %v4496
    %v4564 = vmul.f32 %v662, %v4496
    %v4565 = vmul.f32 %v663, %v4496
    %v4566 = vmul.f32 %v664, %v4496
    %v4567 = vmul.f32 %v665, %v4496
    %v4568 = vmul.f32 %v666, %v4496
    %v4569 = vmul.f32 %v667, %v4496
    %v4570 = vmul.f32 %v668, %v4496
    %v4571 = vmul.f32 %v669, %v4496
    %v4572 = vmul.f32 %v670, %v4496
    %v4573 = vmul.f32 %v671, %v4496
    %v4574 = vmul.f32 %v672, %v4496
    %v4575 = vmul.f32 %v673, %v4496
    %v4576 = vmul.f32 %v674, %v4496
    %v4577 = vmul.f32 %v675, %v4496
    %v4578 = vmul.f32 %v676, %v4496
    %v4579 = vmul.f32 %v677, %v4496
    %v4580 = vmul.f32 %v678, %v4496
    %v4581 = vmul.f32 %v679, %v4496
    %v4582 = vmul.f32 %v680, %v4496
    %v4583 = vmul.f32 %v681, %v4496
    %v4584 = vmul.f32 %v682, %v4496
    %v4585 = vmul.f32 %v683, %v4496
    %v4586 = vmul.f32 %v684, %v4496
    %v4587 = vmul.f32 %v685, %v4496
    %v4588 = vmul.f32 %v686, %v4496
    %v4589 = vmul.f32 %v687, %v4496
    %v4590 = vmul.f32 %v688, %v4496
    %v4591 = vmul.f32 %v689, %v4496
    %v4592 = vmul.f32 %v690, %v4496
    %v4593 = vmul.f32 %v691, %v4496
    %v4594 = vmul.f32 %v692, %v4496
    %v4595 = vmul.f32 %v693, %v4496
    %v4596 = vmul.f32 %v694, %v4496
    %v4597 = vmul.f32 %v695, %v4496
    %v4598 = vmul.f32 %v696, %v4496
    %v4599 = vmul.f32 %v697, %v4496
    %v4600 = vmul.f32 %v698, %v4496
    %v4601 = vmul.f32 %v699, %v4496
    %v4602 = vmul.f32 %v700, %v4496
    %v4603 = vmul.f32 %v701, %v4496
    %v4604 = vmul.f32 %v702, %v4496
    %v4605 = vmul.f32 %v703, %v4496
    %v4606 = vmul.f32 %v704, %v4496
    %v4607 = vmul.f32 %v705, %v4496
    %v4608 = vmul.f32 %v706, %v4496
    %v4609 = vmul.f32 %v707, %v4496
    %v4610 = vmul.f32 %v708, %v4496
    %v4611 = vmul.f32 %v709, %v4496
    %v4612 = vmul.f32 %v710, %v4496
    %v4613 = vmul.f32 %v711, %v4496
    %v4614 = vmul.f32 %v712, %v4496
    %v4615 = vmul.f32 %v713, %v4496
    %v4616 = vmul.f32 %v714, %v4496
    %v4617 = vmul.f32 %v715, %v4496
    %v4618 = vmul.f32 %v716, %v4496
    %v4619 = vmul.f32 %v717, %v4496
    %v4620 = vmul.f32 %v718, %v4496
    %v4621 = vmul.f32 %v719, %v4496
    %v4622 = vmul.f32 %v720, %v4496
    %v4623 = vmul.f32 %v721, %v4496
    %v4624 = vmul.f32 %v722, %v4496
    %v4625 = vsel %vm324, %v4497, 0.0
    %4626 = vadd.xlane.f32.xlu0 %v4625
    %v4627 = vpop.xlane.xlu0 %4626
    %v4628 = vsel %vm324, %v4498, 0.0
    %4629 = vadd.xlane.f32.xlu0 %v4628
    %v4630 = vpop.xlane.xlu0 %4629
    %v4631 = vsel %vm324, %v4499, 0.0
    %4632 = vadd.xlane.f32.xlu0 %v4631
    %v4633 = vpop.xlane.xlu0 %4632
    %v4634 = vsel %vm324, %v4500, 0.0
    %4635 = vadd.xlane.f32.xlu0 %v4634
    %v4636 = vpop.xlane.xlu0 %4635
    %v4637 = vsel %vm324, %v4501, 0.0
    %4638 = vadd.xlane.f32.xlu0 %v4637
    %v4639 = vpop.xlane.xlu0 %4638
    %v4640 = vsel %vm324, %v4502, 0.0
    %4641 = vadd.xlane.f32.xlu0 %v4640
    %v4642 = vpop.xlane.xlu0 %4641
    %v4643 = vsel %vm324, %v4503, 0.0
    %4644 = vadd.xlane.f32.xlu0 %v4643
    %v4645 = vpop.xlane.xlu0 %4644
    %v4646 = vsel %vm324, %v4504, 0.0
    %4647 = vadd.xlane.f32.xlu0 %v4646
    %v4648 = vpop.xlane.xlu0 %4647
    %v4649 = vsel %vm324, %v4505, 0.0
    %4650 = vadd.xlane.f32.xlu0 %v4649
    %v4651 = vpop.xlane.xlu0 %4650
    %v4652 = vsel %vm324, %v4506, 0.0
    %4653 = vadd.xlane.f32.xlu0 %v4652
    %v4654 = vpop.xlane.xlu0 %4653
    %v4655 = vsel %vm324, %v4507, 0.0
    %4656 = vadd.xlane.f32.xlu0 %v4655
    %v4657 = vpop.xlane.xlu0 %4656
    %v4658 = vsel %vm324, %v4508, 0.0
    %4659 = vadd.xlane.f32.xlu0 %v4658
    %v4660 = vpop.xlane.xlu0 %4659
    %v4661 = vsel %vm324, %v4509, 0.0
    %4662 = vadd.xlane.f32.xlu0 %v4661
    %v4663 = vpop.xlane.xlu0 %4662
    %v4664 = vsel %vm324, %v4510, 0.0
    %4665 = vadd.xlane.f32.xlu0 %v4664
    %v4666 = vpop.xlane.xlu0 %4665
    %v4667 = vsel %vm324, %v4511, 0.0
    %4668 = vadd.xlane.f32.xlu0 %v4667
    %v4669 = vpop.xlane.xlu0 %4668
    %v4670 = vsel %vm324, %v4512, 0.0
    %4671 = vadd.xlane.f32.xlu0 %v4670
    %v4672 = vpop.xlane.xlu0 %4671
    %v4673 = vsel %vm324, %v4513, 0.0
    %4674 = vadd.xlane.f32.xlu0 %v4673
    %v4675 = vpop.xlane.xlu0 %4674
    %v4676 = vsel %vm324, %v4514, 0.0
    %4677 = vadd.xlane.f32.xlu0 %v4676
    %v4678 = vpop.xlane.xlu0 %4677
    %v4679 = vsel %vm324, %v4515, 0.0
    %4680 = vadd.xlane.f32.xlu0 %v4679
    %v4681 = vpop.xlane.xlu0 %4680
    %v4682 = vsel %vm324, %v4516, 0.0
    %4683 = vadd.xlane.f32.xlu0 %v4682
    %v4684 = vpop.xlane.xlu0 %4683
    %v4685 = vsel %vm324, %v4517, 0.0
    %4686 = vadd.xlane.f32.xlu0 %v4685
    %v4687 = vpop.xlane.xlu0 %4686
    %v4688 = vsel %vm324, %v4518, 0.0
    %4689 = vadd.xlane.f32.xlu0 %v4688
    %v4690 = vpop.xlane.xlu0 %4689
    %v4691 = vsel %vm324, %v4519, 0.0
    %4692 = vadd.xlane.f32.xlu0 %v4691
    %v4693 = vpop.xlane.xlu0 %4692
    %v4694 = vsel %vm324, %v4520, 0.0
    %4695 = vadd.xlane.f32.xlu0 %v4694
    %v4696 = vpop.xlane.xlu0 %4695
    %v4697 = vsel %vm324, %v4521, 0.0
    %4698 = vadd.xlane.f32.xlu0 %v4697
    %v4699 = vpop.xlane.xlu0 %4698
    %v4700 = vsel %vm324, %v4522, 0.0
    %4701 = vadd.xlane.f32.xlu0 %v4700
    %v4702 = vpop.xlane.xlu0 %4701
    %v4703 = vsel %vm324, %v4523, 0.0
    %4704 = vadd.xlane.f32.xlu0 %v4703
    %v4705 = vpop.xlane.xlu0 %4704
    %v4706 = vsel %vm324, %v4524, 0.0
    %4707 = vadd.xlane.f32.xlu0 %v4706
    %v4708 = vpop.xlane.xlu0 %4707
    %v4709 = vsel %vm324, %v4525, 0.0
    %4710 = vadd.xlane.f32.xlu0 %v4709
    %v4711 = vpop.xlane.xlu0 %4710
    %v4712 = vsel %vm324, %v4526, 0.0
    %4713 = vadd.xlane.f32.xlu0 %v4712
    %v4714 = vpop.xlane.xlu0 %4713
    %v4715 = vsel %vm324, %v4527, 0.0
    %4716 = vadd.xlane.f32.xlu0 %v4715
    %v4717 = vpop.xlane.xlu0 %4716
    %v4718 = vsel %vm324, %v4528, 0.0
    %4719 = vadd.xlane.f32.xlu0 %v4718
    %v4720 = vpop.xlane.xlu0 %4719
    %v4721 = vsel %vm324, %v4529, 0.0
    %4722 = vadd.xlane.f32.xlu0 %v4721
    %v4723 = vpop.xlane.xlu0 %4722
    %v4724 = vsel %vm324, %v4530, 0.0
    %4725 = vadd.xlane.f32.xlu0 %v4724
    %v4726 = vpop.xlane.xlu0 %4725
    %v4727 = vsel %vm324, %v4531, 0.0
    %4728 = vadd.xlane.f32.xlu0 %v4727
    %v4729 = vpop.xlane.xlu0 %4728
    %v4730 = vsel %vm324, %v4532, 0.0
    %4731 = vadd.xlane.f32.xlu0 %v4730
    %v4732 = vpop.xlane.xlu0 %4731
    %v4733 = vsel %vm324, %v4533, 0.0
    %4734 = vadd.xlane.f32.xlu0 %v4733
    %v4735 = vpop.xlane.xlu0 %4734
    %v4736 = vsel %vm324, %v4534, 0.0
    %4737 = vadd.xlane.f32.xlu0 %v4736
    %v4738 = vpop.xlane.xlu0 %4737
    %v4739 = vsel %vm324, %v4535, 0.0
    %4740 = vadd.xlane.f32.xlu0 %v4739
    %v4741 = vpop.xlane.xlu0 %4740
    %v4742 = vsel %vm324, %v4536, 0.0
    %4743 = vadd.xlane.f32.xlu0 %v4742
    %v4744 = vpop.xlane.xlu0 %4743
    %v4745 = vsel %vm324, %v4537, 0.0
    %4746 = vadd.xlane.f32.xlu0 %v4745
    %v4747 = vpop.xlane.xlu0 %4746
    %v4748 = vsel %vm324, %v4538, 0.0
    %4749 = vadd.xlane.f32.xlu0 %v4748
    %v4750 = vpop.xlane.xlu0 %4749
    %v4751 = vsel %vm324, %v4539, 0.0
    %4752 = vadd.xlane.f32.xlu0 %v4751
    %v4753 = vpop.xlane.xlu0 %4752
    %v4754 = vsel %vm324, %v4540, 0.0
    %4755 = vadd.xlane.f32.xlu0 %v4754
    %v4756 = vpop.xlane.xlu0 %4755
    %v4757 = vsel %vm324, %v4541, 0.0
    %4758 = vadd.xlane.f32.xlu0 %v4757
    %v4759 = vpop.xlane.xlu0 %4758
    %v4760 = vsel %vm324, %v4542, 0.0
    %4761 = vadd.xlane.f32.xlu0 %v4760
    %v4762 = vpop.xlane.xlu0 %4761
    %v4763 = vsel %vm324, %v4543, 0.0
    %4764 = vadd.xlane.f32.xlu0 %v4763
    %v4765 = vpop.xlane.xlu0 %4764
    %v4766 = vsel %vm324, %v4544, 0.0
    %4767 = vadd.xlane.f32.xlu0 %v4766
    %v4768 = vpop.xlane.xlu0 %4767
    %v4769 = vsel %vm324, %v4545, 0.0
    %4770 = vadd.xlane.f32.xlu0 %v4769
    %v4771 = vpop.xlane.xlu0 %4770
    %v4772 = vsel %vm324, %v4546, 0.0
    %4773 = vadd.xlane.f32.xlu0 %v4772
    %v4774 = vpop.xlane.xlu0 %4773
    %v4775 = vsel %vm324, %v4547, 0.0
    %4776 = vadd.xlane.f32.xlu0 %v4775
    %v4777 = vpop.xlane.xlu0 %4776
    %v4778 = vsel %vm324, %v4548, 0.0
    %4779 = vadd.xlane.f32.xlu0 %v4778
    %v4780 = vpop.xlane.xlu0 %4779
    %v4781 = vsel %vm324, %v4549, 0.0
    %4782 = vadd.xlane.f32.xlu0 %v4781
    %v4783 = vpop.xlane.xlu0 %4782
    %v4784 = vsel %vm324, %v4550, 0.0
    %4785 = vadd.xlane.f32.xlu0 %v4784
    %v4786 = vpop.xlane.xlu0 %4785
    %v4787 = vsel %vm324, %v4551, 0.0
    %4788 = vadd.xlane.f32.xlu0 %v4787
    %v4789 = vpop.xlane.xlu0 %4788
    %v4790 = vsel %vm324, %v4552, 0.0
    %4791 = vadd.xlane.f32.xlu0 %v4790
    %v4792 = vpop.xlane.xlu0 %4791
    %v4793 = vsel %vm324, %v4553, 0.0
    %4794 = vadd.xlane.f32.xlu0 %v4793
    %v4795 = vpop.xlane.xlu0 %4794
    %v4796 = vsel %vm324, %v4554, 0.0
    %4797 = vadd.xlane.f32.xlu0 %v4796
    %v4798 = vpop.xlane.xlu0 %4797
    %v4799 = vsel %vm324, %v4555, 0.0
    %4800 = vadd.xlane.f32.xlu0 %v4799
    %v4801 = vpop.xlane.xlu0 %4800
    %v4802 = vsel %vm324, %v4556, 0.0
    %4803 = vadd.xlane.f32.xlu0 %v4802
    %v4804 = vpop.xlane.xlu0 %4803
    %v4805 = vsel %vm324, %v4557, 0.0
    %4806 = vadd.xlane.f32.xlu0 %v4805
    %v4807 = vpop.xlane.xlu0 %4806
    %v4808 = vsel %vm324, %v4558, 0.0
    %4809 = vadd.xlane.f32.xlu0 %v4808
    %v4810 = vpop.xlane.xlu0 %4809
    %v4811 = vsel %vm324, %v4559, 0.0
    %4812 = vadd.xlane.f32.xlu0 %v4811
    %v4813 = vpop.xlane.xlu0 %4812
    %v4814 = vsel %vm324, %v4560, 0.0
    %4815 = vadd.xlane.f32.xlu0 %v4814
    %v4816 = vpop.xlane.xlu0 %4815
    %v4817 = vsel %vm324, %v4561, 0.0
    %4818 = vadd.xlane.f32.xlu0 %v4817
    %v4819 = vpop.xlane.xlu0 %4818
    %v4820 = vsel %vm324, %v4562, 0.0
    %4821 = vadd.xlane.f32.xlu0 %v4820
    %v4822 = vpop.xlane.xlu0 %4821
    %v4823 = vsel %vm324, %v4563, 0.0
    %4824 = vadd.xlane.f32.xlu0 %v4823
    %v4825 = vpop.xlane.xlu0 %4824
    %v4826 = vsel %vm324, %v4564, 0.0
    %4827 = vadd.xlane.f32.xlu0 %v4826
    %v4828 = vpop.xlane.xlu0 %4827
    %v4829 = vsel %vm324, %v4565, 0.0
    %4830 = vadd.xlane.f32.xlu0 %v4829
    %v4831 = vpop.xlane.xlu0 %4830
    %v4832 = vsel %vm324, %v4566, 0.0
    %4833 = vadd.xlane.f32.xlu0 %v4832
    %v4834 = vpop.xlane.xlu0 %4833
    %v4835 = vsel %vm324, %v4567, 0.0
    %4836 = vadd.xlane.f32.xlu0 %v4835
    %v4837 = vpop.xlane.xlu0 %4836
    %v4838 = vsel %vm324, %v4568, 0.0
    %4839 = vadd.xlane.f32.xlu0 %v4838
    %v4840 = vpop.xlane.xlu0 %4839
    %v4841 = vsel %vm324, %v4569, 0.0
    %4842 = vadd.xlane.f32.xlu0 %v4841
    %v4843 = vpop.xlane.xlu0 %4842
    %v4844 = vsel %vm324, %v4570, 0.0
    %4845 = vadd.xlane.f32.xlu0 %v4844
    %v4846 = vpop.xlane.xlu0 %4845
    %v4847 = vsel %vm324, %v4571, 0.0
    %4848 = vadd.xlane.f32.xlu0 %v4847
    %v4849 = vpop.xlane.xlu0 %4848
    %v4850 = vsel %vm324, %v4572, 0.0
    %4851 = vadd.xlane.f32.xlu0 %v4850
    %v4852 = vpop.xlane.xlu0 %4851
    %v4853 = vsel %vm324, %v4573, 0.0
    %4854 = vadd.xlane.f32.xlu0 %v4853
    %v4855 = vpop.xlane.xlu0 %4854
    %v4856 = vsel %vm324, %v4574, 0.0
    %4857 = vadd.xlane.f32.xlu0 %v4856
    %v4858 = vpop.xlane.xlu0 %4857
    %v4859 = vsel %vm324, %v4575, 0.0
    %4860 = vadd.xlane.f32.xlu0 %v4859
    %v4861 = vpop.xlane.xlu0 %4860
    %v4862 = vsel %vm324, %v4576, 0.0
    %4863 = vadd.xlane.f32.xlu0 %v4862
    %v4864 = vpop.xlane.xlu0 %4863
    %v4865 = vsel %vm324, %v4577, 0.0
    %4866 = vadd.xlane.f32.xlu0 %v4865
    %v4867 = vpop.xlane.xlu0 %4866
    %v4868 = vsel %vm324, %v4578, 0.0
    %4869 = vadd.xlane.f32.xlu0 %v4868
    %v4870 = vpop.xlane.xlu0 %4869
    %v4871 = vsel %vm324, %v4579, 0.0
    %4872 = vadd.xlane.f32.xlu0 %v4871
    %v4873 = vpop.xlane.xlu0 %4872
    %v4874 = vsel %vm324, %v4580, 0.0
    %4875 = vadd.xlane.f32.xlu0 %v4874
    %v4876 = vpop.xlane.xlu0 %4875
    %v4877 = vsel %vm324, %v4581, 0.0
    %4878 = vadd.xlane.f32.xlu0 %v4877
    %v4879 = vpop.xlane.xlu0 %4878
    %v4880 = vsel %vm324, %v4582, 0.0
    %4881 = vadd.xlane.f32.xlu0 %v4880
    %v4882 = vpop.xlane.xlu0 %4881
    %v4883 = vsel %vm324, %v4583, 0.0
    %4884 = vadd.xlane.f32.xlu0 %v4883
    %v4885 = vpop.xlane.xlu0 %4884
    %v4886 = vsel %vm324, %v4584, 0.0
    %4887 = vadd.xlane.f32.xlu0 %v4886
    %v4888 = vpop.xlane.xlu0 %4887
    %v4889 = vsel %vm324, %v4585, 0.0
    %4890 = vadd.xlane.f32.xlu0 %v4889
    %v4891 = vpop.xlane.xlu0 %4890
    %v4892 = vsel %vm324, %v4586, 0.0
    %4893 = vadd.xlane.f32.xlu0 %v4892
    %v4894 = vpop.xlane.xlu0 %4893
    %v4895 = vsel %vm324, %v4587, 0.0
    %4896 = vadd.xlane.f32.xlu0 %v4895
    %v4897 = vpop.xlane.xlu0 %4896
    %v4898 = vsel %vm324, %v4588, 0.0
    %4899 = vadd.xlane.f32.xlu0 %v4898
    %v4900 = vpop.xlane.xlu0 %4899
    %v4901 = vsel %vm324, %v4589, 0.0
    %4902 = vadd.xlane.f32.xlu0 %v4901
    %v4903 = vpop.xlane.xlu0 %4902
    %v4904 = vsel %vm324, %v4590, 0.0
    %4905 = vadd.xlane.f32.xlu0 %v4904
    %v4906 = vpop.xlane.xlu0 %4905
    %v4907 = vsel %vm324, %v4591, 0.0
    %4908 = vadd.xlane.f32.xlu0 %v4907
    %v4909 = vpop.xlane.xlu0 %4908
    %v4910 = vsel %vm324, %v4592, 0.0
    %4911 = vadd.xlane.f32.xlu0 %v4910
    %v4912 = vpop.xlane.xlu0 %4911
    %v4913 = vsel %vm324, %v4593, 0.0
    %4914 = vadd.xlane.f32.xlu0 %v4913
    %v4915 = vpop.xlane.xlu0 %4914
    %v4916 = vsel %vm324, %v4594, 0.0
    %4917 = vadd.xlane.f32.xlu0 %v4916
    %v4918 = vpop.xlane.xlu0 %4917
    %v4919 = vsel %vm324, %v4595, 0.0
    %4920 = vadd.xlane.f32.xlu0 %v4919
    %v4921 = vpop.xlane.xlu0 %4920
    %v4922 = vsel %vm324, %v4596, 0.0
    %4923 = vadd.xlane.f32.xlu0 %v4922
    %v4924 = vpop.xlane.xlu0 %4923
    %v4925 = vsel %vm324, %v4597, 0.0
    %4926 = vadd.xlane.f32.xlu0 %v4925
    %v4927 = vpop.xlane.xlu0 %4926
    %v4928 = vsel %vm324, %v4598, 0.0
    %4929 = vadd.xlane.f32.xlu0 %v4928
    %v4930 = vpop.xlane.xlu0 %4929
    %v4931 = vsel %vm324, %v4599, 0.0
    %4932 = vadd.xlane.f32.xlu0 %v4931
    %v4933 = vpop.xlane.xlu0 %4932
    %v4934 = vsel %vm324, %v4600, 0.0
    %4935 = vadd.xlane.f32.xlu0 %v4934
    %v4936 = vpop.xlane.xlu0 %4935
    %v4937 = vsel %vm324, %v4601, 0.0
    %4938 = vadd.xlane.f32.xlu0 %v4937
    %v4939 = vpop.xlane.xlu0 %4938
    %v4940 = vsel %vm324, %v4602, 0.0
    %4941 = vadd.xlane.f32.xlu0 %v4940
    %v4942 = vpop.xlane.xlu0 %4941
    %v4943 = vsel %vm324, %v4603, 0.0
    %4944 = vadd.xlane.f32.xlu0 %v4943
    %v4945 = vpop.xlane.xlu0 %4944
    %v4946 = vsel %vm324, %v4604, 0.0
    %4947 = vadd.xlane.f32.xlu0 %v4946
    %v4948 = vpop.xlane.xlu0 %4947
    %v4949 = vsel %vm324, %v4605, 0.0
    %4950 = vadd.xlane.f32.xlu0 %v4949
    %v4951 = vpop.xlane.xlu0 %4950
    %v4952 = vsel %vm324, %v4606, 0.0
    %4953 = vadd.xlane.f32.xlu0 %v4952
    %v4954 = vpop.xlane.xlu0 %4953
    %v4955 = vsel %vm324, %v4607, 0.0
    %4956 = vadd.xlane.f32.xlu0 %v4955
    %v4957 = vpop.xlane.xlu0 %4956
    %v4958 = vsel %vm324, %v4608, 0.0
    %4959 = vadd.xlane.f32.xlu0 %v4958
    %v4960 = vpop.xlane.xlu0 %4959
    %v4961 = vsel %vm324, %v4609, 0.0
    %4962 = vadd.xlane.f32.xlu0 %v4961
    %v4963 = vpop.xlane.xlu0 %4962
    %v4964 = vsel %vm324, %v4610, 0.0
    %4965 = vadd.xlane.f32.xlu0 %v4964
    %v4966 = vpop.xlane.xlu0 %4965
    %v4967 = vsel %vm324, %v4611, 0.0
    %4968 = vadd.xlane.f32.xlu0 %v4967
    %v4969 = vpop.xlane.xlu0 %4968
    %v4970 = vsel %vm324, %v4612, 0.0
    %4971 = vadd.xlane.f32.xlu0 %v4970
    %v4972 = vpop.xlane.xlu0 %4971
    %v4973 = vsel %vm324, %v4613, 0.0
    %4974 = vadd.xlane.f32.xlu0 %v4973
    %v4975 = vpop.xlane.xlu0 %4974
    %v4976 = vsel %vm324, %v4614, 0.0
    %4977 = vadd.xlane.f32.xlu0 %v4976
    %v4978 = vpop.xlane.xlu0 %4977
    %v4979 = vsel %vm324, %v4615, 0.0
    %4980 = vadd.xlane.f32.xlu0 %v4979
    %v4981 = vpop.xlane.xlu0 %4980
    %v4982 = vsel %vm324, %v4616, 0.0
    %4983 = vadd.xlane.f32.xlu0 %v4982
    %v4984 = vpop.xlane.xlu0 %4983
    %v4985 = vsel %vm324, %v4617, 0.0
    %4986 = vadd.xlane.f32.xlu0 %v4985
    %v4987 = vpop.xlane.xlu0 %4986
    %v4988 = vsel %vm324, %v4618, 0.0
    %4989 = vadd.xlane.f32.xlu0 %v4988
    %v4990 = vpop.xlane.xlu0 %4989
    %v4991 = vsel %vm324, %v4619, 0.0
    %4992 = vadd.xlane.f32.xlu0 %v4991
    %v4993 = vpop.xlane.xlu0 %4992
    %v4994 = vsel %vm324, %v4620, 0.0
    %4995 = vadd.xlane.f32.xlu0 %v4994
    %v4996 = vpop.xlane.xlu0 %4995
    %v4997 = vsel %vm324, %v4621, 0.0
    %4998 = vadd.xlane.f32.xlu0 %v4997
    %v4999 = vpop.xlane.xlu0 %4998
    %v5000 = vsel %vm324, %v4622, 0.0
    %5001 = vadd.xlane.f32.xlu0 %v5000
    %v5002 = vpop.xlane.xlu0 %5001
    %v5003 = vsel %vm324, %v4623, 0.0
    %5004 = vadd.xlane.f32.xlu0 %v5003
    %v5005 = vpop.xlane.xlu0 %5004
    %v5006 = vsel %vm324, %v4624, 0.0
    %5007 = vadd.xlane.f32.xlu0 %v5006
    %v5008 = vpop.xlane.xlu0 %5007
    %v5009 = vpack.c.bf16 %v4630, %v4627
    %v5010 = vpack.c.bf16 %v4636, %v4633
    %v5011 = vpack.c.bf16 %v4642, %v4639
    %v5012 = vpack.c.bf16 %v4648, %v4645
    %v5013 = vpack.c.bf16 %v4654, %v4651
    %v5014 = vpack.c.bf16 %v4660, %v4657
    %v5015 = vpack.c.bf16 %v4666, %v4663
    %v5016 = vpack.c.bf16 %v4672, %v4669
    %v5017 = vpack.c.bf16 %v4678, %v4675
    %v5018 = vpack.c.bf16 %v4684, %v4681
    %v5019 = vpack.c.bf16 %v4690, %v4687
    %v5020 = vpack.c.bf16 %v4696, %v4693
    %v5021 = vpack.c.bf16 %v4702, %v4699
    %v5022 = vpack.c.bf16 %v4708, %v4705
    %v5023 = vpack.c.bf16 %v4714, %v4711
    %v5024 = vpack.c.bf16 %v4720, %v4717
    %v5025 = vpack.c.bf16 %v4726, %v4723
    %v5026 = vpack.c.bf16 %v4732, %v4729
    %v5027 = vpack.c.bf16 %v4738, %v4735
    %v5028 = vpack.c.bf16 %v4744, %v4741
    %v5029 = vpack.c.bf16 %v4750, %v4747
    %v5030 = vpack.c.bf16 %v4756, %v4753
    %v5031 = vpack.c.bf16 %v4762, %v4759
    %v5032 = vpack.c.bf16 %v4768, %v4765
    %v5033 = vpack.c.bf16 %v4774, %v4771
    %v5034 = vpack.c.bf16 %v4780, %v4777
    %v5035 = vpack.c.bf16 %v4786, %v4783
    %v5036 = vpack.c.bf16 %v4792, %v4789
    %v5037 = vpack.c.bf16 %v4798, %v4795
    %v5038 = vpack.c.bf16 %v4804, %v4801
    %v5039 = vpack.c.bf16 %v4810, %v4807
    %v5040 = vpack.c.bf16 %v4816, %v4813
    %v5041 = vpack.c.bf16 %v4822, %v4819
    %v5042 = vpack.c.bf16 %v4828, %v4825
    %v5043 = vpack.c.bf16 %v4834, %v4831
    %v5044 = vpack.c.bf16 %v4840, %v4837
    %v5045 = vpack.c.bf16 %v4846, %v4843
    %v5046 = vpack.c.bf16 %v4852, %v4849
    %v5047 = vpack.c.bf16 %v4858, %v4855
    %v5048 = vpack.c.bf16 %v4864, %v4861
    %v5049 = vpack.c.bf16 %v4870, %v4867
    %v5050 = vpack.c.bf16 %v4876, %v4873
    %v5051 = vpack.c.bf16 %v4882, %v4879
    %v5052 = vpack.c.bf16 %v4888, %v4885
    %v5053 = vpack.c.bf16 %v4894, %v4891
    %v5054 = vpack.c.bf16 %v4900, %v4897
    %v5055 = vpack.c.bf16 %v4906, %v4903
    %v5056 = vpack.c.bf16 %v4912, %v4909
    %v5057 = vpack.c.bf16 %v4918, %v4915
    %v5058 = vpack.c.bf16 %v4924, %v4921
    %v5059 = vpack.c.bf16 %v4930, %v4927
    %v5060 = vpack.c.bf16 %v4936, %v4933
    %v5061 = vpack.c.bf16 %v4942, %v4939
    %v5062 = vpack.c.bf16 %v4948, %v4945
    %v5063 = vpack.c.bf16 %v4954, %v4951
    %v5064 = vpack.c.bf16 %v4960, %v4957
    %v5065 = vpack.c.bf16 %v4966, %v4963
    %v5066 = vpack.c.bf16 %v4972, %v4969
    %v5067 = vpack.c.bf16 %v4978, %v4975
    %v5068 = vpack.c.bf16 %v4984, %v4981
    %v5069 = vpack.c.bf16 %v4990, %v4987
    %v5070 = vpack.c.bf16 %v4996, %v4993
    %v5071 = vpack.c.bf16 %v5002, %v4999
    %v5072 = vpack.c.bf16 %v5008, %v5005
    %v5073 = vld [vmem:[#allocation2] sm:$0xff]
    %v5074 = vld [vmem:[#allocation2 + $0x8] sm:$0xff]
    %v5075 = vld [vmem:[#allocation2 + $0x10] sm:$0xff]
    %v5076 = vld [vmem:[#allocation2 + $0x18] sm:$0xff]
    %v5077 = vld [vmem:[#allocation2 + $0x20] sm:$0xff]
    %v5078 = vld [vmem:[#allocation2 + $0x28] sm:$0xff]
    %v5079 = vld [vmem:[#allocation2 + $0x30] sm:$0xff]
    %v5080 = vld [vmem:[#allocation2 + $0x38] sm:$0xff]
    %v5081 = vld [vmem:[#allocation2 + $0x40] sm:$0xff]
    %v5082 = vld [vmem:[#allocation2 + $0x48] sm:$0xff]
    %v5083 = vld [vmem:[#allocation2 + $0x50] sm:$0xff]
    %v5084 = vld [vmem:[#allocation2 + $0x58] sm:$0xff]
    %v5085 = vld [vmem:[#allocation2 + $0x60] sm:$0xff]
    %v5086 = vld [vmem:[#allocation2 + $0x68] sm:$0xff]
    %v5087 = vld [vmem:[#allocation2 + $0x70] sm:$0xff]
    %v5088 = vld [vmem:[#allocation2 + $0x78] sm:$0xff]
    %v5089 = vld [vmem:[#allocation2 + $0x80] sm:$0xff]
    %v5090 = vld [vmem:[#allocation2 + $0x88] sm:$0xff]
    %v5091 = vld [vmem:[#allocation2 + $0x90] sm:$0xff]
    %v5092 = vld [vmem:[#allocation2 + $0x98] sm:$0xff]
    %v5093 = vld [vmem:[#allocation2 + $0xa0] sm:$0xff]
    %v5094 = vld [vmem:[#allocation2 + $0xa8] sm:$0xff]
    %v5095 = vld [vmem:[#allocation2 + $0xb0] sm:$0xff]
    %v5096 = vld [vmem:[#allocation2 + $0xb8] sm:$0xff]
    %v5097 = vld [vmem:[#allocation2 + $0xc0] sm:$0xff]
    %v5098 = vld [vmem:[#allocation2 + $0xc8] sm:$0xff]
    %v5099 = vld [vmem:[#allocation2 + $0xd0] sm:$0xff]
    %v5100 = vld [vmem:[#allocation2 + $0xd8] sm:$0xff]
    %v5101 = vld [vmem:[#allocation2 + $0xe0] sm:$0xff]
    %v5102 = vld [vmem:[#allocation2 + $0xe8] sm:$0xff]
    %v5103 = vld [vmem:[#allocation2 + $0xf0] sm:$0xff]
    %v5104 = vld [vmem:[#allocation2 + $0xf8] sm:$0xff]
    %v5105 = vld [vmem:[#allocation2 + $0x100] sm:$0xff]
    %v5106 = vld [vmem:[#allocation2 + $0x108] sm:$0xff]
    %v5107 = vld [vmem:[#allocation2 + $0x110] sm:$0xff]
    %v5108 = vld [vmem:[#allocation2 + $0x118] sm:$0xff]
    %v5109 = vld [vmem:[#allocation2 + $0x120] sm:$0xff]
    %v5110 = vld [vmem:[#allocation2 + $0x128] sm:$0xff]
    %v5111 = vld [vmem:[#allocation2 + $0x130] sm:$0xff]
    %v5112 = vld [vmem:[#allocation2 + $0x138] sm:$0xff]
    %v5113 = vld [vmem:[#allocation2 + $0x140] sm:$0xff]
    %v5114 = vld [vmem:[#allocation2 + $0x148] sm:$0xff]
    %v5115 = vld [vmem:[#allocation2 + $0x150] sm:$0xff]
    %v5116 = vld [vmem:[#allocation2 + $0x158] sm:$0xff]
    %v5117 = vld [vmem:[#allocation2 + $0x160] sm:$0xff]
    %v5118 = vld [vmem:[#allocation2 + $0x168] sm:$0xff]
    %v5119 = vld [vmem:[#allocation2 + $0x170] sm:$0xff]
    %v5120 = vld [vmem:[#allocation2 + $0x178] sm:$0xff]
    %v5121 = vld [vmem:[#allocation2 + $0x180] sm:$0xff]
    %v5122 = vld [vmem:[#allocation2 + $0x188] sm:$0xff]
    %v5123 = vld [vmem:[#allocation2 + $0x190] sm:$0xff]
    %v5124 = vld [vmem:[#allocation2 + $0x198] sm:$0xff]
    %v5125 = vld [vmem:[#allocation2 + $0x1a0] sm:$0xff]
    %v5126 = vld [vmem:[#allocation2 + $0x1a8] sm:$0xff]
    %v5127 = vld [vmem:[#allocation2 + $0x1b0] sm:$0xff]
    %v5128 = vld [vmem:[#allocation2 + $0x1b8] sm:$0xff]
    %v5129 = vld [vmem:[#allocation2 + $0x1c0] sm:$0xff]
    %v5130 = vld [vmem:[#allocation2 + $0x1c8] sm:$0xff]
    %v5131 = vld [vmem:[#allocation2 + $0x1d0] sm:$0xff]
    %v5132 = vld [vmem:[#allocation2 + $0x1d8] sm:$0xff]
    %v5133 = vld [vmem:[#allocation2 + $0x1e0] sm:$0xff]
    %v5134 = vld [vmem:[#allocation2 + $0x1e8] sm:$0xff]
    %v5135 = vld [vmem:[#allocation2 + $0x1f0] sm:$0xff]
    %v5136 = vld [vmem:[#allocation2 + $0x1f8] sm:$0xff]
    %v5137 = vld [vmem:[#allocation2 + $0x200] sm:$0xff]
    %v5138 = vld [vmem:[#allocation2 + $0x208] sm:$0xff]
    %v5139 = vld [vmem:[#allocation2 + $0x210] sm:$0xff]
    %v5140 = vld [vmem:[#allocation2 + $0x218] sm:$0xff]
    %v5141 = vld [vmem:[#allocation2 + $0x220] sm:$0xff]
    %v5142 = vld [vmem:[#allocation2 + $0x228] sm:$0xff]
    %v5143 = vld [vmem:[#allocation2 + $0x230] sm:$0xff]
    %v5144 = vld [vmem:[#allocation2 + $0x238] sm:$0xff]
    %v5145 = vld [vmem:[#allocation2 + $0x240] sm:$0xff]
    %v5146 = vld [vmem:[#allocation2 + $0x248] sm:$0xff]
    %v5147 = vld [vmem:[#allocation2 + $0x250] sm:$0xff]
    %v5148 = vld [vmem:[#allocation2 + $0x258] sm:$0xff]
    %v5149 = vld [vmem:[#allocation2 + $0x260] sm:$0xff]
    %v5150 = vld [vmem:[#allocation2 + $0x268] sm:$0xff]
    %v5151 = vld [vmem:[#allocation2 + $0x270] sm:$0xff]
    %v5152 = vld [vmem:[#allocation2 + $0x278] sm:$0xff]
    %v5153 = vld [vmem:[#allocation2 + $0x280] sm:$0xff]
    %v5154 = vld [vmem:[#allocation2 + $0x288] sm:$0xff]
    %v5155 = vld [vmem:[#allocation2 + $0x290] sm:$0xff]
    %v5156 = vld [vmem:[#allocation2 + $0x298] sm:$0xff]
    %v5157 = vld [vmem:[#allocation2 + $0x2a0] sm:$0xff]
    %v5158 = vld [vmem:[#allocation2 + $0x2a8] sm:$0xff]
    %v5159 = vld [vmem:[#allocation2 + $0x2b0] sm:$0xff]
    %v5160 = vld [vmem:[#allocation2 + $0x2b8] sm:$0xff]
    %v5161 = vld [vmem:[#allocation2 + $0x2c0] sm:$0xff]
    %v5162 = vld [vmem:[#allocation2 + $0x2c8] sm:$0xff]
    %v5163 = vld [vmem:[#allocation2 + $0x2d0] sm:$0xff]
    %v5164 = vld [vmem:[#allocation2 + $0x2d8] sm:$0xff]
    %v5165 = vld [vmem:[#allocation2 + $0x2e0] sm:$0xff]
    %v5166 = vld [vmem:[#allocation2 + $0x2e8] sm:$0xff]
    %v5167 = vld [vmem:[#allocation2 + $0x2f0] sm:$0xff]
    %v5168 = vld [vmem:[#allocation2 + $0x2f8] sm:$0xff]
    %v5169 = vld [vmem:[#allocation2 + $0x300] sm:$0xff]
    %v5170 = vld [vmem:[#allocation2 + $0x308] sm:$0xff]
    %v5171 = vld [vmem:[#allocation2 + $0x310] sm:$0xff]
    %v5172 = vld [vmem:[#allocation2 + $0x318] sm:$0xff]
    %v5173 = vld [vmem:[#allocation2 + $0x320] sm:$0xff]
    %v5174 = vld [vmem:[#allocation2 + $0x328] sm:$0xff]
    %v5175 = vld [vmem:[#allocation2 + $0x330] sm:$0xff]
    %v5176 = vld [vmem:[#allocation2 + $0x338] sm:$0xff]
    %v5177 = vld [vmem:[#allocation2 + $0x340] sm:$0xff]
    %v5178 = vld [vmem:[#allocation2 + $0x348] sm:$0xff]
    %v5179 = vld [vmem:[#allocation2 + $0x350] sm:$0xff]
    %v5180 = vld [vmem:[#allocation2 + $0x358] sm:$0xff]
    %v5181 = vld [vmem:[#allocation2 + $0x360] sm:$0xff]
    %v5182 = vld [vmem:[#allocation2 + $0x368] sm:$0xff]
    %v5183 = vld [vmem:[#allocation2 + $0x370] sm:$0xff]
    %v5184 = vld [vmem:[#allocation2 + $0x378] sm:$0xff]
    %v5185 = vld [vmem:[#allocation2 + $0x380] sm:$0xff]
    %v5186 = vld [vmem:[#allocation2 + $0x388] sm:$0xff]
    %v5187 = vld [vmem:[#allocation2 + $0x390] sm:$0xff]
    %v5188 = vld [vmem:[#allocation2 + $0x398] sm:$0xff]
    %v5189 = vld [vmem:[#allocation2 + $0x3a0] sm:$0xff]
    %v5190 = vld [vmem:[#allocation2 + $0x3a8] sm:$0xff]
    %v5191 = vld [vmem:[#allocation2 + $0x3b0] sm:$0xff]
    %v5192 = vld [vmem:[#allocation2 + $0x3b8] sm:$0xff]
    %v5193 = vld [vmem:[#allocation2 + $0x3c0] sm:$0xff]
    %v5194 = vld [vmem:[#allocation2 + $0x3c8] sm:$0xff]
    %v5195 = vld [vmem:[#allocation2 + $0x3d0] sm:$0xff]
    %v5196 = vld [vmem:[#allocation2 + $0x3d8] sm:$0xff]
    %v5197 = vld [vmem:[#allocation2 + $0x3e0] sm:$0xff]
    %v5198 = vld [vmem:[#allocation2 + $0x3e8] sm:$0xff]
    %v5199 = vld [vmem:[#allocation2 + $0x3f0] sm:$0xff]
    %v5200 = vld [vmem:[#allocation2 + $0x3f8] sm:$0xff]
    %v5201 = vld [vmem:[%s7] sm:$0xf]
    %v5203 = vlaneseq
    %v5204 = vshrl.u32 %v5203, 7
    %v5205 = vsub.s32 0, %v5204
    %v5206 = vrot.slane %v5201, %v5205
    %v5207 = vlaneseq
    %v5208 = vshrl.u32 %v5207, 7
    %v5209 = vsub.s32 1, %v5208
    %v5210 = vrot.slane %v5201, %v5209
    %v5211 = vlaneseq
    %v5212 = vshrl.u32 %v5211, 7
    %v5213 = vsub.s32 2, %v5212
    %v5214 = vrot.slane %v5201, %v5213
    %v5215 = vlaneseq
    %v5216 = vshrl.u32 %v5215, 7
    %v5217 = vsub.s32 3, %v5216
    %v5218 = vrot.slane %v5201, %v5217
    %v5287 = vunpack.c.l.b16 %v5009
    %v5288 = vunpack.c.h.b16 %v5009
    %v5289 = vunpack.c.l.b16 %v5010
    %v5290 = vunpack.c.h.b16 %v5010
    %v5291 = vunpack.c.l.b16 %v5011
    %v5292 = vunpack.c.h.b16 %v5011
    %v5293 = vunpack.c.l.b16 %v5012
    %v5294 = vunpack.c.h.b16 %v5012
    %v5295 = vunpack.c.l.b16 %v5013
    %v5296 = vunpack.c.h.b16 %v5013
    %v5297 = vunpack.c.l.b16 %v5014
    %v5298 = vunpack.c.h.b16 %v5014
    %v5299 = vunpack.c.l.b16 %v5015
    %v5300 = vunpack.c.h.b16 %v5015
    %v5301 = vunpack.c.l.b16 %v5016
    %v5302 = vunpack.c.h.b16 %v5016
    %v5303 = vunpack.c.l.b16 %v5017
    %v5304 = vunpack.c.h.b16 %v5017
    %v5305 = vunpack.c.l.b16 %v5018
    %v5306 = vunpack.c.h.b16 %v5018
    %v5307 = vunpack.c.l.b16 %v5019
    %v5308 = vunpack.c.h.b16 %v5019
    %v5309 = vunpack.c.l.b16 %v5020
    %v5310 = vunpack.c.h.b16 %v5020
    %v5311 = vunpack.c.l.b16 %v5021
    %v5312 = vunpack.c.h.b16 %v5021
    %v5313 = vunpack.c.l.b16 %v5022
    %v5314 = vunpack.c.h.b16 %v5022
    %v5315 = vunpack.c.l.b16 %v5023
    %v5316 = vunpack.c.h.b16 %v5023
    %v5317 = vunpack.c.l.b16 %v5024
    %v5318 = vunpack.c.h.b16 %v5024
    %v5319 = vunpack.c.l.b16 %v5025
    %v5320 = vunpack.c.h.b16 %v5025
    %v5321 = vunpack.c.l.b16 %v5026
    %v5322 = vunpack.c.h.b16 %v5026
    %v5323 = vunpack.c.l.b16 %v5027
    %v5324 = vunpack.c.h.b16 %v5027
    %v5325 = vunpack.c.l.b16 %v5028
    %v5326 = vunpack.c.h.b16 %v5028
    %v5327 = vunpack.c.l.b16 %v5029
    %v5328 = vunpack.c.h.b16 %v5029
    %v5329 = vunpack.c.l.b16 %v5030
    %v5330 = vunpack.c.h.b16 %v5030
    %v5331 = vunpack.c.l.b16 %v5031
    %v5332 = vunpack.c.h.b16 %v5031
    %v5333 = vunpack.c.l.b16 %v5032
    %v5334 = vunpack.c.h.b16 %v5032
    %v5335 = vunpack.c.l.b16 %v5033
    %v5336 = vunpack.c.h.b16 %v5033
    %v5337 = vunpack.c.l.b16 %v5034
    %v5338 = vunpack.c.h.b16 %v5034
    %v5339 = vunpack.c.l.b16 %v5035
    %v5340 = vunpack.c.h.b16 %v5035
    %v5341 = vunpack.c.l.b16 %v5036
    %v5342 = vunpack.c.h.b16 %v5036
    %v5343 = vunpack.c.l.b16 %v5037
    %v5344 = vunpack.c.h.b16 %v5037
    %v5345 = vunpack.c.l.b16 %v5038
    %v5346 = vunpack.c.h.b16 %v5038
    %v5347 = vunpack.c.l.b16 %v5039
    %v5348 = vunpack.c.h.b16 %v5039
    %v5349 = vunpack.c.l.b16 %v5040
    %v5350 = vunpack.c.h.b16 %v5040
    %v5351 = vunpack.c.l.b16 %v5041
    %v5352 = vunpack.c.h.b16 %v5041
    %v5353 = vunpack.c.l.b16 %v5042
    %v5354 = vunpack.c.h.b16 %v5042
    %v5355 = vunpack.c.l.b16 %v5043
    %v5356 = vunpack.c.h.b16 %v5043
    %v5357 = vunpack.c.l.b16 %v5044
    %v5358 = vunpack.c.h.b16 %v5044
    %v5359 = vunpack.c.l.b16 %v5045
    %v5360 = vunpack.c.h.b16 %v5045
    %v5361 = vunpack.c.l.b16 %v5046
    %v5362 = vunpack.c.h.b16 %v5046
    %v5363 = vunpack.c.l.b16 %v5047
    %v5364 = vunpack.c.h.b16 %v5047
    %v5365 = vunpack.c.l.b16 %v5048
    %v5366 = vunpack.c.h.b16 %v5048
    %v5367 = vunpack.c.l.b16 %v5049
    %v5368 = vunpack.c.h.b16 %v5049
    %v5369 = vunpack.c.l.b16 %v5050
    %v5370 = vunpack.c.h.b16 %v5050
    %v5371 = vunpack.c.l.b16 %v5051
    %v5372 = vunpack.c.h.b16 %v5051
    %v5373 = vunpack.c.l.b16 %v5052
    %v5374 = vunpack.c.h.b16 %v5052
    %v5375 = vunpack.c.l.b16 %v5053
    %v5376 = vunpack.c.h.b16 %v5053
    %v5377 = vunpack.c.l.b16 %v5054
    %v5378 = vunpack.c.h.b16 %v5054
    %v5379 = vunpack.c.l.b16 %v5055
    %v5380 = vunpack.c.h.b16 %v5055
    %v5381 = vunpack.c.l.b16 %v5056
    %v5382 = vunpack.c.h.b16 %v5056
    %v5383 = vunpack.c.l.b16 %v5057
    %v5384 = vunpack.c.h.b16 %v5057
    %v5385 = vunpack.c.l.b16 %v5058
    %v5386 = vunpack.c.h.b16 %v5058
    %v5387 = vunpack.c.l.b16 %v5059
    %v5388 = vunpack.c.h.b16 %v5059
    %v5389 = vunpack.c.l.b16 %v5060
    %v5390 = vunpack.c.h.b16 %v5060
    %v5391 = vunpack.c.l.b16 %v5061
    %v5392 = vunpack.c.h.b16 %v5061
    %v5393 = vunpack.c.l.b16 %v5062
    %v5394 = vunpack.c.h.b16 %v5062
    %v5395 = vunpack.c.l.b16 %v5063
    %v5396 = vunpack.c.h.b16 %v5063
    %v5397 = vunpack.c.l.b16 %v5064
    %v5398 = vunpack.c.h.b16 %v5064
    %v5399 = vunpack.c.l.b16 %v5065
    %v5400 = vunpack.c.h.b16 %v5065
    %v5401 = vunpack.c.l.b16 %v5066
    %v5402 = vunpack.c.h.b16 %v5066
    %v5403 = vunpack.c.l.b16 %v5067
    %v5404 = vunpack.c.h.b16 %v5067
    %v5405 = vunpack.c.l.b16 %v5068
    %v5406 = vunpack.c.h.b16 %v5068
    %v5407 = vunpack.c.l.b16 %v5069
    %v5408 = vunpack.c.h.b16 %v5069
    %v5409 = vunpack.c.l.b16 %v5070
    %v5410 = vunpack.c.h.b16 %v5070
    %v5411 = vunpack.c.l.b16 %v5071
    %v5412 = vunpack.c.h.b16 %v5071
    %v5413 = vunpack.c.l.b16 %v5072
    %v5414 = vunpack.c.h.b16 %v5072
    %v5415 = vlaneseq
    %v5416 = vshrl.u32 %v5415, 7
    %v5417 = vsub.s32 %v1642, %v5416
    %v5418 = vrot.slane %v5287, %v5417
    %v5419 = vlaneseq
    %v5420 = vshrl.u32 %v5419, 7
    %v5421 = vsub.s32 %v1647, %v5420
    %v5422 = vrot.slane %v5288, %v5421
    %v5423 = vsel %vm1652, %v5422, %v5418
    %v5424 = vlaneseq
    %v5425 = vshrl.u32 %v5424, 7
    %v5426 = vsub.s32 %v1654, %v5425
    %v5427 = vrot.slane %v5289, %v5426
    %v5428 = vsel %vm1659, %v5427, %v5423
    %v5429 = vlaneseq
    %v5430 = vshrl.u32 %v5429, 7
    %v5431 = vsub.s32 %v1661, %v5430
    %v5432 = vrot.slane %v5290, %v5431
    %v5433 = vsel %vm1666, %v5432, %v5428
    %v5434 = vlaneseq
    %v5435 = vshrl.u32 %v5434, 7
    %v5436 = vsub.s32 %v1668, %v5435
    %v5437 = vrot.slane %v5291, %v5436
    %v5438 = vsel %vm1673, %v5437, %v5433
    %v5439 = vlaneseq
    %v5440 = vshrl.u32 %v5439, 7
    %v5441 = vsub.s32 %v1675, %v5440
    %v5442 = vrot.slane %v5292, %v5441
    %v5443 = vsel %vm1680, %v5442, %v5438
    %v5444 = vlaneseq
    %v5445 = vshrl.u32 %v5444, 7
    %v5446 = vsub.s32 %v1682, %v5445
    %v5447 = vrot.slane %v5293, %v5446
    %v5448 = vsel %vm1687, %v5447, %v5443
    %v5449 = vlaneseq
    %v5450 = vshrl.u32 %v5449, 7
    %v5451 = vsub.s32 %v1689, %v5450
    %v5452 = vrot.slane %v5294, %v5451
    %v5453 = vsel %vm1694, %v5452, %v5448
    %v5454 = vlaneseq
    %v5455 = vshrl.u32 %v5454, 7
    %v5456 = vsub.s32 %v1696, %v5455
    %v5457 = vrot.slane %v5295, %v5456
    %v5458 = vsel %vm1701, %v5457, %v5453
    %v5459 = vlaneseq
    %v5460 = vshrl.u32 %v5459, 7
    %v5461 = vsub.s32 %v1703, %v5460
    %v5462 = vrot.slane %v5296, %v5461
    %v5463 = vsel %vm1708, %v5462, %v5458
    %v5464 = vlaneseq
    %v5465 = vshrl.u32 %v5464, 7
    %v5466 = vsub.s32 %v1710, %v5465
    %v5467 = vrot.slane %v5297, %v5466
    %v5468 = vsel %vm1715, %v5467, %v5463
    %v5469 = vlaneseq
    %v5470 = vshrl.u32 %v5469, 7
    %v5471 = vsub.s32 %v1717, %v5470
    %v5472 = vrot.slane %v5298, %v5471
    %v5473 = vsel %vm1722, %v5472, %v5468
    %v5474 = vlaneseq
    %v5475 = vshrl.u32 %v5474, 7
    %v5476 = vsub.s32 %v1724, %v5475
    %v5477 = vrot.slane %v5299, %v5476
    %v5478 = vsel %vm1729, %v5477, %v5473
    %v5479 = vlaneseq
    %v5480 = vshrl.u32 %v5479, 7
    %v5481 = vsub.s32 %v1731, %v5480
    %v5482 = vrot.slane %v5300, %v5481
    %v5483 = vsel %vm1736, %v5482, %v5478
    %v5484 = vlaneseq
    %v5485 = vshrl.u32 %v5484, 7
    %v5486 = vsub.s32 %v1738, %v5485
    %v5487 = vrot.slane %v5301, %v5486
    %v5488 = vsel %vm1743, %v5487, %v5483
    %v5489 = vlaneseq
    %v5490 = vshrl.u32 %v5489, 7
    %v5491 = vsub.s32 %v1745, %v5490
    %v5492 = vrot.slane %v5302, %v5491
    %v5493 = vsel %vm1750, %v5492, %v5488
    %v5494 = vlaneseq
    %v5495 = vshrl.u32 %v5494, 7
    %v5496 = vsub.s32 %v1642, %v5495
    %v5497 = vrot.slane %v5303, %v5496
    %v5498 = vlaneseq
    %v5499 = vshrl.u32 %v5498, 7
    %v5500 = vsub.s32 %v1647, %v5499
    %v5501 = vrot.slane %v5304, %v5500
    %v5502 = vsel %vm1652, %v5501, %v5497
    %v5503 = vlaneseq
    %v5504 = vshrl.u32 %v5503, 7
    %v5505 = vsub.s32 %v1654, %v5504
    %v5506 = vrot.slane %v5305, %v5505
    %v5507 = vsel %vm1659, %v5506, %v5502
    %v5508 = vlaneseq
    %v5509 = vshrl.u32 %v5508, 7
    %v5510 = vsub.s32 %v1661, %v5509
    %v5511 = vrot.slane %v5306, %v5510
    %v5512 = vsel %vm1666, %v5511, %v5507
    %v5513 = vlaneseq
    %v5514 = vshrl.u32 %v5513, 7
    %v5515 = vsub.s32 %v1668, %v5514
    %v5516 = vrot.slane %v5307, %v5515
    %v5517 = vsel %vm1673, %v5516, %v5512
    %v5518 = vlaneseq
    %v5519 = vshrl.u32 %v5518, 7
    %v5520 = vsub.s32 %v1675, %v5519
    %v5521 = vrot.slane %v5308, %v5520
    %v5522 = vsel %vm1680, %v5521, %v5517
    %v5523 = vlaneseq
    %v5524 = vshrl.u32 %v5523, 7
    %v5525 = vsub.s32 %v1682, %v5524
    %v5526 = vrot.slane %v5309, %v5525
    %v5527 = vsel %vm1687, %v5526, %v5522
    %v5528 = vlaneseq
    %v5529 = vshrl.u32 %v5528, 7
    %v5530 = vsub.s32 %v1689, %v5529
    %v5531 = vrot.slane %v5310, %v5530
    %v5532 = vsel %vm1694, %v5531, %v5527
    %v5533 = vlaneseq
    %v5534 = vshrl.u32 %v5533, 7
    %v5535 = vsub.s32 %v1696, %v5534
    %v5536 = vrot.slane %v5311, %v5535
    %v5537 = vsel %vm1701, %v5536, %v5532
    %v5538 = vlaneseq
    %v5539 = vshrl.u32 %v5538, 7
    %v5540 = vsub.s32 %v1703, %v5539
    %v5541 = vrot.slane %v5312, %v5540
    %v5542 = vsel %vm1708, %v5541, %v5537
    %v5543 = vlaneseq
    %v5544 = vshrl.u32 %v5543, 7
    %v5545 = vsub.s32 %v1710, %v5544
    %v5546 = vrot.slane %v5313, %v5545
    %v5547 = vsel %vm1715, %v5546, %v5542
    %v5548 = vlaneseq
    %v5549 = vshrl.u32 %v5548, 7
    %v5550 = vsub.s32 %v1717, %v5549
    %v5551 = vrot.slane %v5314, %v5550
    %v5552 = vsel %vm1722, %v5551, %v5547
    %v5553 = vlaneseq
    %v5554 = vshrl.u32 %v5553, 7
    %v5555 = vsub.s32 %v1724, %v5554
    %v5556 = vrot.slane %v5315, %v5555
    %v5557 = vsel %vm1729, %v5556, %v5552
    %v5558 = vlaneseq
    %v5559 = vshrl.u32 %v5558, 7
    %v5560 = vsub.s32 %v1731, %v5559
    %v5561 = vrot.slane %v5316, %v5560
    %v5562 = vsel %vm1736, %v5561, %v5557
    %v5563 = vlaneseq
    %v5564 = vshrl.u32 %v5563, 7
    %v5565 = vsub.s32 %v1738, %v5564
    %v5566 = vrot.slane %v5317, %v5565
    %v5567 = vsel %vm1743, %v5566, %v5562
    %v5568 = vlaneseq
    %v5569 = vshrl.u32 %v5568, 7
    %v5570 = vsub.s32 %v1745, %v5569
    %v5571 = vrot.slane %v5318, %v5570
    %v5572 = vsel %vm1750, %v5571, %v5567
    %v5573 = vlaneseq
    %v5574 = vshrl.u32 %v5573, 7
    %v5575 = vsub.s32 %v1642, %v5574
    %v5576 = vrot.slane %v5319, %v5575
    %v5577 = vlaneseq
    %v5578 = vshrl.u32 %v5577, 7
    %v5579 = vsub.s32 %v1647, %v5578
    %v5580 = vrot.slane %v5320, %v5579
    %v5581 = vsel %vm1652, %v5580, %v5576
    %v5582 = vlaneseq
    %v5583 = vshrl.u32 %v5582, 7
    %v5584 = vsub.s32 %v1654, %v5583
    %v5585 = vrot.slane %v5321, %v5584
    %v5586 = vsel %vm1659, %v5585, %v5581
    %v5587 = vlaneseq
    %v5588 = vshrl.u32 %v5587, 7
    %v5589 = vsub.s32 %v1661, %v5588
    %v5590 = vrot.slane %v5322, %v5589
    %v5591 = vsel %vm1666, %v5590, %v5586
    %v5592 = vlaneseq
    %v5593 = vshrl.u32 %v5592, 7
    %v5594 = vsub.s32 %v1668, %v5593
    %v5595 = vrot.slane %v5323, %v5594
    %v5596 = vsel %vm1673, %v5595, %v5591
    %v5597 = vlaneseq
    %v5598 = vshrl.u32 %v5597, 7
    %v5599 = vsub.s32 %v1675, %v5598
    %v5600 = vrot.slane %v5324, %v5599
    %v5601 = vsel %vm1680, %v5600, %v5596
    %v5602 = vlaneseq
    %v5603 = vshrl.u32 %v5602, 7
    %v5604 = vsub.s32 %v1682, %v5603
    %v5605 = vrot.slane %v5325, %v5604
    %v5606 = vsel %vm1687, %v5605, %v5601
    %v5607 = vlaneseq
    %v5608 = vshrl.u32 %v5607, 7
    %v5609 = vsub.s32 %v1689, %v5608
    %v5610 = vrot.slane %v5326, %v5609
    %v5611 = vsel %vm1694, %v5610, %v5606
    %v5612 = vlaneseq
    %v5613 = vshrl.u32 %v5612, 7
    %v5614 = vsub.s32 %v1696, %v5613
    %v5615 = vrot.slane %v5327, %v5614
    %v5616 = vsel %vm1701, %v5615, %v5611
    %v5617 = vlaneseq
    %v5618 = vshrl.u32 %v5617, 7
    %v5619 = vsub.s32 %v1703, %v5618
    %v5620 = vrot.slane %v5328, %v5619
    %v5621 = vsel %vm1708, %v5620, %v5616
    %v5622 = vlaneseq
    %v5623 = vshrl.u32 %v5622, 7
    %v5624 = vsub.s32 %v1710, %v5623
    %v5625 = vrot.slane %v5329, %v5624
    %v5626 = vsel %vm1715, %v5625, %v5621
    %v5627 = vlaneseq
    %v5628 = vshrl.u32 %v5627, 7
    %v5629 = vsub.s32 %v1717, %v5628
    %v5630 = vrot.slane %v5330, %v5629
    %v5631 = vsel %vm1722, %v5630, %v5626
    %v5632 = vlaneseq
    %v5633 = vshrl.u32 %v5632, 7
    %v5634 = vsub.s32 %v1724, %v5633
    %v5635 = vrot.slane %v5331, %v5634
    %v5636 = vsel %vm1729, %v5635, %v5631
    %v5637 = vlaneseq
    %v5638 = vshrl.u32 %v5637, 7
    %v5639 = vsub.s32 %v1731, %v5638
    %v5640 = vrot.slane %v5332, %v5639
    %v5641 = vsel %vm1736, %v5640, %v5636
    %v5642 = vlaneseq
    %v5643 = vshrl.u32 %v5642, 7
    %v5644 = vsub.s32 %v1738, %v5643
    %v5645 = vrot.slane %v5333, %v5644
    %v5646 = vsel %vm1743, %v5645, %v5641
    %v5647 = vlaneseq
    %v5648 = vshrl.u32 %v5647, 7
    %v5649 = vsub.s32 %v1745, %v5648
    %v5650 = vrot.slane %v5334, %v5649
    %v5651 = vsel %vm1750, %v5650, %v5646
    %v5652 = vlaneseq
    %v5653 = vshrl.u32 %v5652, 7
    %v5654 = vsub.s32 %v1642, %v5653
    %v5655 = vrot.slane %v5335, %v5654
    %v5656 = vlaneseq
    %v5657 = vshrl.u32 %v5656, 7
    %v5658 = vsub.s32 %v1647, %v5657
    %v5659 = vrot.slane %v5336, %v5658
    %v5660 = vsel %vm1652, %v5659, %v5655
    %v5661 = vlaneseq
    %v5662 = vshrl.u32 %v5661, 7
    %v5663 = vsub.s32 %v1654, %v5662
    %v5664 = vrot.slane %v5337, %v5663
    %v5665 = vsel %vm1659, %v5664, %v5660
    %v5666 = vlaneseq
    %v5667 = vshrl.u32 %v5666, 7
    %v5668 = vsub.s32 %v1661, %v5667
    %v5669 = vrot.slane %v5338, %v5668
    %v5670 = vsel %vm1666, %v5669, %v5665
    %v5671 = vlaneseq
    %v5672 = vshrl.u32 %v5671, 7
    %v5673 = vsub.s32 %v1668, %v5672
    %v5674 = vrot.slane %v5339, %v5673
    %v5675 = vsel %vm1673, %v5674, %v5670
    %v5676 = vlaneseq
    %v5677 = vshrl.u32 %v5676, 7
    %v5678 = vsub.s32 %v1675, %v5677
    %v5679 = vrot.slane %v5340, %v5678
    %v5680 = vsel %vm1680, %v5679, %v5675
    %v5681 = vlaneseq
    %v5682 = vshrl.u32 %v5681, 7
    %v5683 = vsub.s32 %v1682, %v5682
    %v5684 = vrot.slane %v5341, %v5683
    %v5685 = vsel %vm1687, %v5684, %v5680
    %v5686 = vlaneseq
    %v5687 = vshrl.u32 %v5686, 7
    %v5688 = vsub.s32 %v1689, %v5687
    %v5689 = vrot.slane %v5342, %v5688
    %v5690 = vsel %vm1694, %v5689, %v5685
    %v5691 = vlaneseq
    %v5692 = vshrl.u32 %v5691, 7
    %v5693 = vsub.s32 %v1696, %v5692
    %v5694 = vrot.slane %v5343, %v5693
    %v5695 = vsel %vm1701, %v5694, %v5690
    %v5696 = vlaneseq
    %v5697 = vshrl.u32 %v5696, 7
    %v5698 = vsub.s32 %v1703, %v5697
    %v5699 = vrot.slane %v5344, %v5698
    %v5700 = vsel %vm1708, %v5699, %v5695
    %v5701 = vlaneseq
    %v5702 = vshrl.u32 %v5701, 7
    %v5703 = vsub.s32 %v1710, %v5702
    %v5704 = vrot.slane %v5345, %v5703
    %v5705 = vsel %vm1715, %v5704, %v5700
    %v5706 = vlaneseq
    %v5707 = vshrl.u32 %v5706, 7
    %v5708 = vsub.s32 %v1717, %v5707
    %v5709 = vrot.slane %v5346, %v5708
    %v5710 = vsel %vm1722, %v5709, %v5705
    %v5711 = vlaneseq
    %v5712 = vshrl.u32 %v5711, 7
    %v5713 = vsub.s32 %v1724, %v5712
    %v5714 = vrot.slane %v5347, %v5713
    %v5715 = vsel %vm1729, %v5714, %v5710
    %v5716 = vlaneseq
    %v5717 = vshrl.u32 %v5716, 7
    %v5718 = vsub.s32 %v1731, %v5717
    %v5719 = vrot.slane %v5348, %v5718
    %v5720 = vsel %vm1736, %v5719, %v5715
    %v5721 = vlaneseq
    %v5722 = vshrl.u32 %v5721, 7
    %v5723 = vsub.s32 %v1738, %v5722
    %v5724 = vrot.slane %v5349, %v5723
    %v5725 = vsel %vm1743, %v5724, %v5720
    %v5726 = vlaneseq
    %v5727 = vshrl.u32 %v5726, 7
    %v5728 = vsub.s32 %v1745, %v5727
    %v5729 = vrot.slane %v5350, %v5728
    %v5730 = vsel %vm1750, %v5729, %v5725
    %v5731 = vlaneseq
    %v5732 = vshrl.u32 %v5731, 7
    %v5733 = vsub.s32 %v1642, %v5732
    %v5734 = vrot.slane %v5351, %v5733
    %v5735 = vlaneseq
    %v5736 = vshrl.u32 %v5735, 7
    %v5737 = vsub.s32 %v1647, %v5736
    %v5738 = vrot.slane %v5352, %v5737
    %v5739 = vsel %vm1652, %v5738, %v5734
    %v5740 = vlaneseq
    %v5741 = vshrl.u32 %v5740, 7
    %v5742 = vsub.s32 %v1654, %v5741
    %v5743 = vrot.slane %v5353, %v5742
    %v5744 = vsel %vm1659, %v5743, %v5739
    %v5745 = vlaneseq
    %v5746 = vshrl.u32 %v5745, 7
    %v5747 = vsub.s32 %v1661, %v5746
    %v5748 = vrot.slane %v5354, %v5747
    %v5749 = vsel %vm1666, %v5748, %v5744
    %v5750 = vlaneseq
    %v5751 = vshrl.u32 %v5750, 7
    %v5752 = vsub.s32 %v1668, %v5751
    %v5753 = vrot.slane %v5355, %v5752
    %v5754 = vsel %vm1673, %v5753, %v5749
    %v5755 = vlaneseq
    %v5756 = vshrl.u32 %v5755, 7
    %v5757 = vsub.s32 %v1675, %v5756
    %v5758 = vrot.slane %v5356, %v5757
    %v5759 = vsel %vm1680, %v5758, %v5754
    %v5760 = vlaneseq
    %v5761 = vshrl.u32 %v5760, 7
    %v5762 = vsub.s32 %v1682, %v5761
    %v5763 = vrot.slane %v5357, %v5762
    %v5764 = vsel %vm1687, %v5763, %v5759
    %v5765 = vlaneseq
    %v5766 = vshrl.u32 %v5765, 7
    %v5767 = vsub.s32 %v1689, %v5766
    %v5768 = vrot.slane %v5358, %v5767
    %v5769 = vsel %vm1694, %v5768, %v5764
    %v5770 = vlaneseq
    %v5771 = vshrl.u32 %v5770, 7
    %v5772 = vsub.s32 %v1696, %v5771
    %v5773 = vrot.slane %v5359, %v5772
    %v5774 = vsel %vm1701, %v5773, %v5769
    %v5775 = vlaneseq
    %v5776 = vshrl.u32 %v5775, 7
    %v5777 = vsub.s32 %v1703, %v5776
    %v5778 = vrot.slane %v5360, %v5777
    %v5779 = vsel %vm1708, %v5778, %v5774
    %v5780 = vlaneseq
    %v5781 = vshrl.u32 %v5780, 7
    %v5782 = vsub.s32 %v1710, %v5781
    %v5783 = vrot.slane %v5361, %v5782
    %v5784 = vsel %vm1715, %v5783, %v5779
    %v5785 = vlaneseq
    %v5786 = vshrl.u32 %v5785, 7
    %v5787 = vsub.s32 %v1717, %v5786
    %v5788 = vrot.slane %v5362, %v5787
    %v5789 = vsel %vm1722, %v5788, %v5784
    %v5790 = vlaneseq
    %v5791 = vshrl.u32 %v5790, 7
    %v5792 = vsub.s32 %v1724, %v5791
    %v5793 = vrot.slane %v5363, %v5792
    %v5794 = vsel %vm1729, %v5793, %v5789
    %v5795 = vlaneseq
    %v5796 = vshrl.u32 %v5795, 7
    %v5797 = vsub.s32 %v1731, %v5796
    %v5798 = vrot.slane %v5364, %v5797
    %v5799 = vsel %vm1736, %v5798, %v5794
    %v5800 = vlaneseq
    %v5801 = vshrl.u32 %v5800, 7
    %v5802 = vsub.s32 %v1738, %v5801
    %v5803 = vrot.slane %v5365, %v5802
    %v5804 = vsel %vm1743, %v5803, %v5799
    %v5805 = vlaneseq
    %v5806 = vshrl.u32 %v5805, 7
    %v5807 = vsub.s32 %v1745, %v5806
    %v5808 = vrot.slane %v5366, %v5807
    %v5809 = vsel %vm1750, %v5808, %v5804
    %v5810 = vlaneseq
    %v5811 = vshrl.u32 %v5810, 7
    %v5812 = vsub.s32 %v1642, %v5811
    %v5813 = vrot.slane %v5367, %v5812
    %v5814 = vlaneseq
    %v5815 = vshrl.u32 %v5814, 7
    %v5816 = vsub.s32 %v1647, %v5815
    %v5817 = vrot.slane %v5368, %v5816
    %v5818 = vsel %vm1652, %v5817, %v5813
    %v5819 = vlaneseq
    %v5820 = vshrl.u32 %v5819, 7
    %v5821 = vsub.s32 %v1654, %v5820
    %v5822 = vrot.slane %v5369, %v5821
    %v5823 = vsel %vm1659, %v5822, %v5818
    %v5824 = vlaneseq
    %v5825 = vshrl.u32 %v5824, 7
    %v5826 = vsub.s32 %v1661, %v5825
    %v5827 = vrot.slane %v5370, %v5826
    %v5828 = vsel %vm1666, %v5827, %v5823
    %v5829 = vlaneseq
    %v5830 = vshrl.u32 %v5829, 7
    %v5831 = vsub.s32 %v1668, %v5830
    %v5832 = vrot.slane %v5371, %v5831
    %v5833 = vsel %vm1673, %v5832, %v5828
    %v5834 = vlaneseq
    %v5835 = vshrl.u32 %v5834, 7
    %v5836 = vsub.s32 %v1675, %v5835
    %v5837 = vrot.slane %v5372, %v5836
    %v5838 = vsel %vm1680, %v5837, %v5833
    %v5839 = vlaneseq
    %v5840 = vshrl.u32 %v5839, 7
    %v5841 = vsub.s32 %v1682, %v5840
    %v5842 = vrot.slane %v5373, %v5841
    %v5843 = vsel %vm1687, %v5842, %v5838
    %v5844 = vlaneseq
    %v5845 = vshrl.u32 %v5844, 7
    %v5846 = vsub.s32 %v1689, %v5845
    %v5847 = vrot.slane %v5374, %v5846
    %v5848 = vsel %vm1694, %v5847, %v5843
    %v5849 = vlaneseq
    %v5850 = vshrl.u32 %v5849, 7
    %v5851 = vsub.s32 %v1696, %v5850
    %v5852 = vrot.slane %v5375, %v5851
    %v5853 = vsel %vm1701, %v5852, %v5848
    %v5854 = vlaneseq
    %v5855 = vshrl.u32 %v5854, 7
    %v5856 = vsub.s32 %v1703, %v5855
    %v5857 = vrot.slane %v5376, %v5856
    %v5858 = vsel %vm1708, %v5857, %v5853
    %v5859 = vlaneseq
    %v5860 = vshrl.u32 %v5859, 7
    %v5861 = vsub.s32 %v1710, %v5860
    %v5862 = vrot.slane %v5377, %v5861
    %v5863 = vsel %vm1715, %v5862, %v5858
    %v5864 = vlaneseq
    %v5865 = vshrl.u32 %v5864, 7
    %v5866 = vsub.s32 %v1717, %v5865
    %v5867 = vrot.slane %v5378, %v5866
    %v5868 = vsel %vm1722, %v5867, %v5863
    %v5869 = vlaneseq
    %v5870 = vshrl.u32 %v5869, 7
    %v5871 = vsub.s32 %v1724, %v5870
    %v5872 = vrot.slane %v5379, %v5871
    %v5873 = vsel %vm1729, %v5872, %v5868
    %v5874 = vlaneseq
    %v5875 = vshrl.u32 %v5874, 7
    %v5876 = vsub.s32 %v1731, %v5875
    %v5877 = vrot.slane %v5380, %v5876
    %v5878 = vsel %vm1736, %v5877, %v5873
    %v5879 = vlaneseq
    %v5880 = vshrl.u32 %v5879, 7
    %v5881 = vsub.s32 %v1738, %v5880
    %v5882 = vrot.slane %v5381, %v5881
    %v5883 = vsel %vm1743, %v5882, %v5878
    %v5884 = vlaneseq
    %v5885 = vshrl.u32 %v5884, 7
    %v5886 = vsub.s32 %v1745, %v5885
    %v5887 = vrot.slane %v5382, %v5886
    %v5888 = vsel %vm1750, %v5887, %v5883
    %v5889 = vlaneseq
    %v5890 = vshrl.u32 %v5889, 7
    %v5891 = vsub.s32 %v1642, %v5890
    %v5892 = vrot.slane %v5383, %v5891
    %v5893 = vlaneseq
    %v5894 = vshrl.u32 %v5893, 7
    %v5895 = vsub.s32 %v1647, %v5894
    %v5896 = vrot.slane %v5384, %v5895
    %v5897 = vsel %vm1652, %v5896, %v5892
    %v5898 = vlaneseq
    %v5899 = vshrl.u32 %v5898, 7
    %v5900 = vsub.s32 %v1654, %v5899
    %v5901 = vrot.slane %v5385, %v5900
    %v5902 = vsel %vm1659, %v5901, %v5897
    %v5903 = vlaneseq
    %v5904 = vshrl.u32 %v5903, 7
    %v5905 = vsub.s32 %v1661, %v5904
    %v5906 = vrot.slane %v5386, %v5905
    %v5907 = vsel %vm1666, %v5906, %v5902
    %v5908 = vlaneseq
    %v5909 = vshrl.u32 %v5908, 7
    %v5910 = vsub.s32 %v1668, %v5909
    %v5911 = vrot.slane %v5387, %v5910
    %v5912 = vsel %vm1673, %v5911, %v5907
    %v5913 = vlaneseq
    %v5914 = vshrl.u32 %v5913, 7
    %v5915 = vsub.s32 %v1675, %v5914
    %v5916 = vrot.slane %v5388, %v5915
    %v5917 = vsel %vm1680, %v5916, %v5912
    %v5918 = vlaneseq
    %v5919 = vshrl.u32 %v5918, 7
    %v5920 = vsub.s32 %v1682, %v5919
    %v5921 = vrot.slane %v5389, %v5920
    %v5922 = vsel %vm1687, %v5921, %v5917
    %v5923 = vlaneseq
    %v5924 = vshrl.u32 %v5923, 7
    %v5925 = vsub.s32 %v1689, %v5924
    %v5926 = vrot.slane %v5390, %v5925
    %v5927 = vsel %vm1694, %v5926, %v5922
    %v5928 = vlaneseq
    %v5929 = vshrl.u32 %v5928, 7
    %v5930 = vsub.s32 %v1696, %v5929
    %v5931 = vrot.slane %v5391, %v5930
    %v5932 = vsel %vm1701, %v5931, %v5927
    %v5933 = vlaneseq
    %v5934 = vshrl.u32 %v5933, 7
    %v5935 = vsub.s32 %v1703, %v5934
    %v5936 = vrot.slane %v5392, %v5935
    %v5937 = vsel %vm1708, %v5936, %v5932
    %v5938 = vlaneseq
    %v5939 = vshrl.u32 %v5938, 7
    %v5940 = vsub.s32 %v1710, %v5939
    %v5941 = vrot.slane %v5393, %v5940
    %v5942 = vsel %vm1715, %v5941, %v5937
    %v5943 = vlaneseq
    %v5944 = vshrl.u32 %v5943, 7
    %v5945 = vsub.s32 %v1717, %v5944
    %v5946 = vrot.slane %v5394, %v5945
    %v5947 = vsel %vm1722, %v5946, %v5942
    %v5948 = vlaneseq
    %v5949 = vshrl.u32 %v5948, 7
    %v5950 = vsub.s32 %v1724, %v5949
    %v5951 = vrot.slane %v5395, %v5950
    %v5952 = vsel %vm1729, %v5951, %v5947
    %v5953 = vlaneseq
    %v5954 = vshrl.u32 %v5953, 7
    %v5955 = vsub.s32 %v1731, %v5954
    %v5956 = vrot.slane %v5396, %v5955
    %v5957 = vsel %vm1736, %v5956, %v5952
    %v5958 = vlaneseq
    %v5959 = vshrl.u32 %v5958, 7
    %v5960 = vsub.s32 %v1738, %v5959
    %v5961 = vrot.slane %v5397, %v5960
    %v5962 = vsel %vm1743, %v5961, %v5957
    %v5963 = vlaneseq
    %v5964 = vshrl.u32 %v5963, 7
    %v5965 = vsub.s32 %v1745, %v5964
    %v5966 = vrot.slane %v5398, %v5965
    %v5967 = vsel %vm1750, %v5966, %v5962
    %v5968 = vlaneseq
    %v5969 = vshrl.u32 %v5968, 7
    %v5970 = vsub.s32 %v1642, %v5969
    %v5971 = vrot.slane %v5399, %v5970
    %v5972 = vlaneseq
    %v5973 = vshrl.u32 %v5972, 7
    %v5974 = vsub.s32 %v1647, %v5973
    %v5975 = vrot.slane %v5400, %v5974
    %v5976 = vsel %vm1652, %v5975, %v5971
    %v5977 = vlaneseq
    %v5978 = vshrl.u32 %v5977, 7
    %v5979 = vsub.s32 %v1654, %v5978
    %v5980 = vrot.slane %v5401, %v5979
    %v5981 = vsel %vm1659, %v5980, %v5976
    %v5982 = vlaneseq
    %v5983 = vshrl.u32 %v5982, 7
    %v5984 = vsub.s32 %v1661, %v5983
    %v5985 = vrot.slane %v5402, %v5984
    %v5986 = vsel %vm1666, %v5985, %v5981
    %v5987 = vlaneseq
    %v5988 = vshrl.u32 %v5987, 7
    %v5989 = vsub.s32 %v1668, %v5988
    %v5990 = vrot.slane %v5403, %v5989
    %v5991 = vsel %vm1673, %v5990, %v5986
    %v5992 = vlaneseq
    %v5993 = vshrl.u32 %v5992, 7
    %v5994 = vsub.s32 %v1675, %v5993
    %v5995 = vrot.slane %v5404, %v5994
    %v5996 = vsel %vm1680, %v5995, %v5991
    %v5997 = vlaneseq
    %v5998 = vshrl.u32 %v5997, 7
    %v5999 = vsub.s32 %v1682, %v5998
    %v6000 = vrot.slane %v5405, %v5999
    %v6001 = vsel %vm1687, %v6000, %v5996
    %v6002 = vlaneseq
    %v6003 = vshrl.u32 %v6002, 7
    %v6004 = vsub.s32 %v1689, %v6003
    %v6005 = vrot.slane %v5406, %v6004
    %v6006 = vsel %vm1694, %v6005, %v6001
    %v6007 = vlaneseq
    %v6008 = vshrl.u32 %v6007, 7
    %v6009 = vsub.s32 %v1696, %v6008
    %v6010 = vrot.slane %v5407, %v6009
    %v6011 = vsel %vm1701, %v6010, %v6006
    %v6012 = vlaneseq
    %v6013 = vshrl.u32 %v6012, 7
    %v6014 = vsub.s32 %v1703, %v6013
    %v6015 = vrot.slane %v5408, %v6014
    %v6016 = vsel %vm1708, %v6015, %v6011
    %v6017 = vlaneseq
    %v6018 = vshrl.u32 %v6017, 7
    %v6019 = vsub.s32 %v1710, %v6018
    %v6020 = vrot.slane %v5409, %v6019
    %v6021 = vsel %vm1715, %v6020, %v6016
    %v6022 = vlaneseq
    %v6023 = vshrl.u32 %v6022, 7
    %v6024 = vsub.s32 %v1717, %v6023
    %v6025 = vrot.slane %v5410, %v6024
    %v6026 = vsel %vm1722, %v6025, %v6021
    %v6027 = vlaneseq
    %v6028 = vshrl.u32 %v6027, 7
    %v6029 = vsub.s32 %v1724, %v6028
    %v6030 = vrot.slane %v5411, %v6029
    %v6031 = vsel %vm1729, %v6030, %v6026
    %v6032 = vlaneseq
    %v6033 = vshrl.u32 %v6032, 7
    %v6034 = vsub.s32 %v1731, %v6033
    %v6035 = vrot.slane %v5412, %v6034
    %v6036 = vsel %vm1736, %v6035, %v6031
    %v6037 = vlaneseq
    %v6038 = vshrl.u32 %v6037, 7
    %v6039 = vsub.s32 %v1738, %v6038
    %v6040 = vrot.slane %v5413, %v6039
    %v6041 = vsel %vm1743, %v6040, %v6036
    %v6042 = vlaneseq
    %v6043 = vshrl.u32 %v6042, 7
    %v6044 = vsub.s32 %v1745, %v6043
    %v6045 = vrot.slane %v5414, %v6044
    %v6046 = vsel %vm1750, %v6045, %v6041
    %v6047 = vsel %vm2305, %v5809, %v5493
    %v6048 = vsel %vm2305, %v5888, %v5572
    %v6049 = vsel %vm2305, %v5967, %v5651
    %v6050 = vsel %vm2305, %v6046, %v5730
    %v6051 = vpack.c.b16 %v6047, %v6047
    %v6052 = vpack.c.b16 %v6048, %v6048
    %v6053 = vpack.c.b16 %v6049, %v6049
    %v6054 = vpack.c.b16 %v6050, %v6050
    %v6187 = vunpack.c.l.b16 %v5073
    %v6188 = vunpack.c.h.b16 %v5073
    %v6189 = vunpack.c.l.b16 %v5074
    %v6190 = vunpack.c.h.b16 %v5074
    %v6191 = vunpack.c.l.b16 %v5075
    %v6192 = vunpack.c.h.b16 %v5075
    %v6193 = vunpack.c.l.b16 %v5076
    %v6194 = vunpack.c.h.b16 %v5076
    %v6195 = vunpack.c.l.b16 %v5077
    %v6196 = vunpack.c.h.b16 %v5077
    %v6197 = vunpack.c.l.b16 %v5078
    %v6198 = vunpack.c.h.b16 %v5078
    %v6199 = vunpack.c.l.b16 %v5079
    %v6200 = vunpack.c.h.b16 %v5079
    %v6201 = vunpack.c.l.b16 %v5080
    %v6202 = vunpack.c.h.b16 %v5080
    %v6203 = vunpack.c.l.b16 %v5081
    %v6204 = vunpack.c.h.b16 %v5081
    %v6205 = vunpack.c.l.b16 %v5082
    %v6206 = vunpack.c.h.b16 %v5082
    %v6207 = vunpack.c.l.b16 %v5083
    %v6208 = vunpack.c.h.b16 %v5083
    %v6209 = vunpack.c.l.b16 %v5084
    %v6210 = vunpack.c.h.b16 %v5084
    %v6211 = vunpack.c.l.b16 %v5085
    %v6212 = vunpack.c.h.b16 %v5085
    %v6213 = vunpack.c.l.b16 %v5086
    %v6214 = vunpack.c.h.b16 %v5086
    %v6215 = vunpack.c.l.b16 %v5087
    %v6216 = vunpack.c.h.b16 %v5087
    %v6217 = vunpack.c.l.b16 %v5088
    %v6218 = vunpack.c.h.b16 %v5088
    %v6219 = vunpack.c.l.b16 %v5089
    %v6220 = vunpack.c.h.b16 %v5089
    %v6221 = vunpack.c.l.b16 %v5090
    %v6222 = vunpack.c.h.b16 %v5090
    %v6223 = vunpack.c.l.b16 %v5091
    %v6224 = vunpack.c.h.b16 %v5091
    %v6225 = vunpack.c.l.b16 %v5092
    %v6226 = vunpack.c.h.b16 %v5092
    %v6227 = vunpack.c.l.b16 %v5093
    %v6228 = vunpack.c.h.b16 %v5093
    %v6229 = vunpack.c.l.b16 %v5094
    %v6230 = vunpack.c.h.b16 %v5094
    %v6231 = vunpack.c.l.b16 %v5095
    %v6232 = vunpack.c.h.b16 %v5095
    %v6233 = vunpack.c.l.b16 %v5096
    %v6234 = vunpack.c.h.b16 %v5096
    %v6235 = vunpack.c.l.b16 %v5097
    %v6236 = vunpack.c.h.b16 %v5097
    %v6237 = vunpack.c.l.b16 %v5098
    %v6238 = vunpack.c.h.b16 %v5098
    %v6239 = vunpack.c.l.b16 %v5099
    %v6240 = vunpack.c.h.b16 %v5099
    %v6241 = vunpack.c.l.b16 %v5100
    %v6242 = vunpack.c.h.b16 %v5100
    %v6243 = vunpack.c.l.b16 %v5101
    %v6244 = vunpack.c.h.b16 %v5101
    %v6245 = vunpack.c.l.b16 %v5102
    %v6246 = vunpack.c.h.b16 %v5102
    %v6247 = vunpack.c.l.b16 %v5103
    %v6248 = vunpack.c.h.b16 %v5103
    %v6249 = vunpack.c.l.b16 %v5104
    %v6250 = vunpack.c.h.b16 %v5104
    %v6251 = vunpack.c.l.b16 %v5105
    %v6252 = vunpack.c.h.b16 %v5105
    %v6253 = vunpack.c.l.b16 %v5106
    %v6254 = vunpack.c.h.b16 %v5106
    %v6255 = vunpack.c.l.b16 %v5107
    %v6256 = vunpack.c.h.b16 %v5107
    %v6257 = vunpack.c.l.b16 %v5108
    %v6258 = vunpack.c.h.b16 %v5108
    %v6259 = vunpack.c.l.b16 %v5109
    %v6260 = vunpack.c.h.b16 %v5109
    %v6261 = vunpack.c.l.b16 %v5110
    %v6262 = vunpack.c.h.b16 %v5110
    %v6263 = vunpack.c.l.b16 %v5111
    %v6264 = vunpack.c.h.b16 %v5111
    %v6265 = vunpack.c.l.b16 %v5112
    %v6266 = vunpack.c.h.b16 %v5112
    %v6267 = vunpack.c.l.b16 %v5113
    %v6268 = vunpack.c.h.b16 %v5113
    %v6269 = vunpack.c.l.b16 %v5114
    %v6270 = vunpack.c.h.b16 %v5114
    %v6271 = vunpack.c.l.b16 %v5115
    %v6272 = vunpack.c.h.b16 %v5115
    %v6273 = vunpack.c.l.b16 %v5116
    %v6274 = vunpack.c.h.b16 %v5116
    %v6275 = vunpack.c.l.b16 %v5117
    %v6276 = vunpack.c.h.b16 %v5117
    %v6277 = vunpack.c.l.b16 %v5118
    %v6278 = vunpack.c.h.b16 %v5118
    %v6279 = vunpack.c.l.b16 %v5119
    %v6280 = vunpack.c.h.b16 %v5119
    %v6281 = vunpack.c.l.b16 %v5120
    %v6282 = vunpack.c.h.b16 %v5120
    %v6283 = vunpack.c.l.b16 %v5121
    %v6284 = vunpack.c.h.b16 %v5121
    %v6285 = vunpack.c.l.b16 %v5122
    %v6286 = vunpack.c.h.b16 %v5122
    %v6287 = vunpack.c.l.b16 %v5123
    %v6288 = vunpack.c.h.b16 %v5123
    %v6289 = vunpack.c.l.b16 %v5124
    %v6290 = vunpack.c.h.b16 %v5124
    %v6291 = vunpack.c.l.b16 %v5125
    %v6292 = vunpack.c.h.b16 %v5125
    %v6293 = vunpack.c.l.b16 %v5126
    %v6294 = vunpack.c.h.b16 %v5126
    %v6295 = vunpack.c.l.b16 %v5127
    %v6296 = vunpack.c.h.b16 %v5127
    %v6297 = vunpack.c.l.b16 %v5128
    %v6298 = vunpack.c.h.b16 %v5128
    %v6299 = vunpack.c.l.b16 %v5129
    %v6300 = vunpack.c.h.b16 %v5129
    %v6301 = vunpack.c.l.b16 %v5130
    %v6302 = vunpack.c.h.b16 %v5130
    %v6303 = vunpack.c.l.b16 %v5131
    %v6304 = vunpack.c.h.b16 %v5131
    %v6305 = vunpack.c.l.b16 %v5132
    %v6306 = vunpack.c.h.b16 %v5132
    %v6307 = vunpack.c.l.b16 %v5133
    %v6308 = vunpack.c.h.b16 %v5133
    %v6309 = vunpack.c.l.b16 %v5134
    %v6310 = vunpack.c.h.b16 %v5134
    %v6311 = vunpack.c.l.b16 %v5135
    %v6312 = vunpack.c.h.b16 %v5135
    %v6313 = vunpack.c.l.b16 %v5136
    %v6314 = vunpack.c.h.b16 %v5136
    %v6315 = vunpack.c.l.b16 %v5137
    %v6316 = vunpack.c.h.b16 %v5137
    %v6317 = vunpack.c.l.b16 %v5138
    %v6318 = vunpack.c.h.b16 %v5138
    %v6319 = vunpack.c.l.b16 %v5139
    %v6320 = vunpack.c.h.b16 %v5139
    %v6321 = vunpack.c.l.b16 %v5140
    %v6322 = vunpack.c.h.b16 %v5140
    %v6323 = vunpack.c.l.b16 %v5141
    %v6324 = vunpack.c.h.b16 %v5141
    %v6325 = vunpack.c.l.b16 %v5142
    %v6326 = vunpack.c.h.b16 %v5142
    %v6327 = vunpack.c.l.b16 %v5143
    %v6328 = vunpack.c.h.b16 %v5143
    %v6329 = vunpack.c.l.b16 %v5144
    %v6330 = vunpack.c.h.b16 %v5144
    %v6331 = vunpack.c.l.b16 %v5145
    %v6332 = vunpack.c.h.b16 %v5145
    %v6333 = vunpack.c.l.b16 %v5146
    %v6334 = vunpack.c.h.b16 %v5146
    %v6335 = vunpack.c.l.b16 %v5147
    %v6336 = vunpack.c.h.b16 %v5147
    %v6337 = vunpack.c.l.b16 %v5148
    %v6338 = vunpack.c.h.b16 %v5148
    %v6339 = vunpack.c.l.b16 %v5149
    %v6340 = vunpack.c.h.b16 %v5149
    %v6341 = vunpack.c.l.b16 %v5150
    %v6342 = vunpack.c.h.b16 %v5150
    %v6343 = vunpack.c.l.b16 %v5151
    %v6344 = vunpack.c.h.b16 %v5151
    %v6345 = vunpack.c.l.b16 %v5152
    %v6346 = vunpack.c.h.b16 %v5152
    %v6347 = vunpack.c.l.b16 %v5153
    %v6348 = vunpack.c.h.b16 %v5153
    %v6349 = vunpack.c.l.b16 %v5154
    %v6350 = vunpack.c.h.b16 %v5154
    %v6351 = vunpack.c.l.b16 %v5155
    %v6352 = vunpack.c.h.b16 %v5155
    %v6353 = vunpack.c.l.b16 %v5156
    %v6354 = vunpack.c.h.b16 %v5156
    %v6355 = vunpack.c.l.b16 %v5157
    %v6356 = vunpack.c.h.b16 %v5157
    %v6357 = vunpack.c.l.b16 %v5158
    %v6358 = vunpack.c.h.b16 %v5158
    %v6359 = vunpack.c.l.b16 %v5159
    %v6360 = vunpack.c.h.b16 %v5159
    %v6361 = vunpack.c.l.b16 %v5160
    %v6362 = vunpack.c.h.b16 %v5160
    %v6363 = vunpack.c.l.b16 %v5161
    %v6364 = vunpack.c.h.b16 %v5161
    %v6365 = vunpack.c.l.b16 %v5162
    %v6366 = vunpack.c.h.b16 %v5162
    %v6367 = vunpack.c.l.b16 %v5163
    %v6368 = vunpack.c.h.b16 %v5163
    %v6369 = vunpack.c.l.b16 %v5164
    %v6370 = vunpack.c.h.b16 %v5164
    %v6371 = vunpack.c.l.b16 %v5165
    %v6372 = vunpack.c.h.b16 %v5165
    %v6373 = vunpack.c.l.b16 %v5166
    %v6374 = vunpack.c.h.b16 %v5166
    %v6375 = vunpack.c.l.b16 %v5167
    %v6376 = vunpack.c.h.b16 %v5167
    %v6377 = vunpack.c.l.b16 %v5168
    %v6378 = vunpack.c.h.b16 %v5168
    %v6379 = vunpack.c.l.b16 %v5169
    %v6380 = vunpack.c.h.b16 %v5169
    %v6381 = vunpack.c.l.b16 %v5170
    %v6382 = vunpack.c.h.b16 %v5170
    %v6383 = vunpack.c.l.b16 %v5171
    %v6384 = vunpack.c.h.b16 %v5171
    %v6385 = vunpack.c.l.b16 %v5172
    %v6386 = vunpack.c.h.b16 %v5172
    %v6387 = vunpack.c.l.b16 %v5173
    %v6388 = vunpack.c.h.b16 %v5173
    %v6389 = vunpack.c.l.b16 %v5174
    %v6390 = vunpack.c.h.b16 %v5174
    %v6391 = vunpack.c.l.b16 %v5175
    %v6392 = vunpack.c.h.b16 %v5175
    %v6393 = vunpack.c.l.b16 %v5176
    %v6394 = vunpack.c.h.b16 %v5176
    %v6395 = vunpack.c.l.b16 %v5177
    %v6396 = vunpack.c.h.b16 %v5177
    %v6397 = vunpack.c.l.b16 %v5178
    %v6398 = vunpack.c.h.b16 %v5178
    %v6399 = vunpack.c.l.b16 %v5179
    %v6400 = vunpack.c.h.b16 %v5179
    %v6401 = vunpack.c.l.b16 %v5180
    %v6402 = vunpack.c.h.b16 %v5180
    %v6403 = vunpack.c.l.b16 %v5181
    %v6404 = vunpack.c.h.b16 %v5181
    %v6405 = vunpack.c.l.b16 %v5182
    %v6406 = vunpack.c.h.b16 %v5182
    %v6407 = vunpack.c.l.b16 %v5183
    %v6408 = vunpack.c.h.b16 %v5183
    %v6409 = vunpack.c.l.b16 %v5184
    %v6410 = vunpack.c.h.b16 %v5184
    %v6411 = vunpack.c.l.b16 %v5185
    %v6412 = vunpack.c.h.b16 %v5185
    %v6413 = vunpack.c.l.b16 %v5186
    %v6414 = vunpack.c.h.b16 %v5186
    %v6415 = vunpack.c.l.b16 %v5187
    %v6416 = vunpack.c.h.b16 %v5187
    %v6417 = vunpack.c.l.b16 %v5188
    %v6418 = vunpack.c.h.b16 %v5188
    %v6419 = vunpack.c.l.b16 %v5189
    %v6420 = vunpack.c.h.b16 %v5189
    %v6421 = vunpack.c.l.b16 %v5190
    %v6422 = vunpack.c.h.b16 %v5190
    %v6423 = vunpack.c.l.b16 %v5191
    %v6424 = vunpack.c.h.b16 %v5191
    %v6425 = vunpack.c.l.b16 %v5192
    %v6426 = vunpack.c.h.b16 %v5192
    %v6427 = vunpack.c.l.b16 %v5193
    %v6428 = vunpack.c.h.b16 %v5193
    %v6429 = vunpack.c.l.b16 %v5194
    %v6430 = vunpack.c.h.b16 %v5194
    %v6431 = vunpack.c.l.b16 %v5195
    %v6432 = vunpack.c.h.b16 %v5195
    %v6433 = vunpack.c.l.b16 %v5196
    %v6434 = vunpack.c.h.b16 %v5196
    %v6435 = vunpack.c.l.b16 %v5197
    %v6436 = vunpack.c.h.b16 %v5197
    %v6437 = vunpack.c.l.b16 %v5198
    %v6438 = vunpack.c.h.b16 %v5198
    %v6439 = vunpack.c.l.b16 %v5199
    %v6440 = vunpack.c.h.b16 %v5199
    %v6441 = vunpack.c.l.b16 %v5200
    %v6442 = vunpack.c.h.b16 %v5200
    %v6443 = vpack.c.b16 %v6191, %v6187
    %v6444 = vpack.c.b16 %v6192, %v6188
    %v6445 = vpack.c.b16 %v6193, %v6189
    %v6446 = vpack.c.b16 %v6194, %v6190
    %v6447 = vpack.c.b16 %v6199, %v6195
    %v6448 = vpack.c.b16 %v6200, %v6196
    %v6449 = vpack.c.b16 %v6201, %v6197
    %v6450 = vpack.c.b16 %v6202, %v6198
    %v6451 = vpack.c.b16 %v6207, %v6203
    %v6452 = vpack.c.b16 %v6208, %v6204
    %v6453 = vpack.c.b16 %v6209, %v6205
    %v6454 = vpack.c.b16 %v6210, %v6206
    %v6455 = vpack.c.b16 %v6215, %v6211
    %v6456 = vpack.c.b16 %v6216, %v6212
    %v6457 = vpack.c.b16 %v6217, %v6213
    %v6458 = vpack.c.b16 %v6218, %v6214
    %v6459 = vpack.c.b16 %v6223, %v6219
    %v6460 = vpack.c.b16 %v6224, %v6220
    %v6461 = vpack.c.b16 %v6225, %v6221
    %v6462 = vpack.c.b16 %v6226, %v6222
    %v6463 = vpack.c.b16 %v6231, %v6227
    %v6464 = vpack.c.b16 %v6232, %v6228
    %v6465 = vpack.c.b16 %v6233, %v6229
    %v6466 = vpack.c.b16 %v6234, %v6230
    %v6467 = vpack.c.b16 %v6239, %v6235
    %v6468 = vpack.c.b16 %v6240, %v6236
    %v6469 = vpack.c.b16 %v6241, %v6237
    %v6470 = vpack.c.b16 %v6242, %v6238
    %v6471 = vpack.c.b16 %v6247, %v6243
    %v6472 = vpack.c.b16 %v6248, %v6244
    %v6473 = vpack.c.b16 %v6249, %v6245
    %v6474 = vpack.c.b16 %v6250, %v6246
    %v6475 = vpack.c.b16 %v6255, %v6251
    %v6476 = vpack.c.b16 %v6256, %v6252
    %v6477 = vpack.c.b16 %v6257, %v6253
    %v6478 = vpack.c.b16 %v6258, %v6254
    %v6479 = vpack.c.b16 %v6263, %v6259
    %v6480 = vpack.c.b16 %v6264, %v6260
    %v6481 = vpack.c.b16 %v6265, %v6261
    %v6482 = vpack.c.b16 %v6266, %v6262
    %v6483 = vpack.c.b16 %v6271, %v6267
    %v6484 = vpack.c.b16 %v6272, %v6268
    %v6485 = vpack.c.b16 %v6273, %v6269
    %v6486 = vpack.c.b16 %v6274, %v6270
    %v6487 = vpack.c.b16 %v6279, %v6275
    %v6488 = vpack.c.b16 %v6280, %v6276
    %v6489 = vpack.c.b16 %v6281, %v6277
    %v6490 = vpack.c.b16 %v6282, %v6278
    %v6491 = vpack.c.b16 %v6287, %v6283
    %v6492 = vpack.c.b16 %v6288, %v6284
    %v6493 = vpack.c.b16 %v6289, %v6285
    %v6494 = vpack.c.b16 %v6290, %v6286
    %v6495 = vpack.c.b16 %v6295, %v6291
    %v6496 = vpack.c.b16 %v6296, %v6292
    %v6497 = vpack.c.b16 %v6297, %v6293
    %v6498 = vpack.c.b16 %v6298, %v6294
    %v6499 = vpack.c.b16 %v6303, %v6299
    %v6500 = vpack.c.b16 %v6304, %v6300
    %v6501 = vpack.c.b16 %v6305, %v6301
    %v6502 = vpack.c.b16 %v6306, %v6302
    %v6503 = vpack.c.b16 %v6311, %v6307
    %v6504 = vpack.c.b16 %v6312, %v6308
    %v6505 = vpack.c.b16 %v6313, %v6309
    %v6506 = vpack.c.b16 %v6314, %v6310
    %v6507 = vpack.c.b16 %v6319, %v6315
    %v6508 = vpack.c.b16 %v6320, %v6316
    %v6509 = vpack.c.b16 %v6321, %v6317
    %v6510 = vpack.c.b16 %v6322, %v6318
    %v6511 = vpack.c.b16 %v6327, %v6323
    %v6512 = vpack.c.b16 %v6328, %v6324
    %v6513 = vpack.c.b16 %v6329, %v6325
    %v6514 = vpack.c.b16 %v6330, %v6326
    %v6515 = vpack.c.b16 %v6335, %v6331
    %v6516 = vpack.c.b16 %v6336, %v6332
    %v6517 = vpack.c.b16 %v6337, %v6333
    %v6518 = vpack.c.b16 %v6338, %v6334
    %v6519 = vpack.c.b16 %v6343, %v6339
    %v6520 = vpack.c.b16 %v6344, %v6340
    %v6521 = vpack.c.b16 %v6345, %v6341
    %v6522 = vpack.c.b16 %v6346, %v6342
    %v6523 = vpack.c.b16 %v6351, %v6347
    %v6524 = vpack.c.b16 %v6352, %v6348
    %v6525 = vpack.c.b16 %v6353, %v6349
    %v6526 = vpack.c.b16 %v6354, %v6350
    %v6527 = vpack.c.b16 %v6359, %v6355
    %v6528 = vpack.c.b16 %v6360, %v6356
    %v6529 = vpack.c.b16 %v6361, %v6357
    %v6530 = vpack.c.b16 %v6362, %v6358
    %v6531 = vpack.c.b16 %v6367, %v6363
    %v6532 = vpack.c.b16 %v6368, %v6364
    %v6533 = vpack.c.b16 %v6369, %v6365
    %v6534 = vpack.c.b16 %v6370, %v6366
    %v6535 = vpack.c.b16 %v6375, %v6371
    %v6536 = vpack.c.b16 %v6376, %v6372
    %v6537 = vpack.c.b16 %v6377, %v6373
    %v6538 = vpack.c.b16 %v6378, %v6374
    %v6539 = vpack.c.b16 %v6383, %v6379
    %v6540 = vpack.c.b16 %v6384, %v6380
    %v6541 = vpack.c.b16 %v6385, %v6381
    %v6542 = vpack.c.b16 %v6386, %v6382
    %v6543 = vpack.c.b16 %v6391, %v6387
    %v6544 = vpack.c.b16 %v6392, %v6388
    %v6545 = vpack.c.b16 %v6393, %v6389
    %v6546 = vpack.c.b16 %v6394, %v6390
    %v6547 = vpack.c.b16 %v6399, %v6395
    %v6548 = vpack.c.b16 %v6400, %v6396
    %v6549 = vpack.c.b16 %v6401, %v6397
    %v6550 = vpack.c.b16 %v6402, %v6398
    %v6551 = vpack.c.b16 %v6407, %v6403
    %v6552 = vpack.c.b16 %v6408, %v6404
    %v6553 = vpack.c.b16 %v6409, %v6405
    %v6554 = vpack.c.b16 %v6410, %v6406
    %v6555 = vpack.c.b16 %v6415, %v6411
    %v6556 = vpack.c.b16 %v6416, %v6412
    %v6557 = vpack.c.b16 %v6417, %v6413
    %v6558 = vpack.c.b16 %v6418, %v6414
    %v6559 = vpack.c.b16 %v6423, %v6419
    %v6560 = vpack.c.b16 %v6424, %v6420
    %v6561 = vpack.c.b16 %v6425, %v6421
    %v6562 = vpack.c.b16 %v6426, %v6422
    %v6563 = vpack.c.b16 %v6431, %v6427
    %v6564 = vpack.c.b16 %v6432, %v6428
    %v6565 = vpack.c.b16 %v6433, %v6429
    %v6566 = vpack.c.b16 %v6434, %v6430
    %v6567 = vpack.c.b16 %v6439, %v6435
    %v6568 = vpack.c.b16 %v6440, %v6436
    %v6569 = vpack.c.b16 %v6441, %v6437
    %v6570 = vpack.c.b16 %v6442, %v6438
    %6699 = vmatprep.subr.bf16.mxu0 %v6472
    %6700 = vmatpush1.bf16.msra.mxu0 %v6471
    %6701 = vmatprep.subr.bf16.mxu0 %v6468
    %6702 = vmatpush1.bf16.msra.mxu0 %v6467
    %6703 = vmatprep.subr.bf16.mxu0 %v6464
    %6704 = vmatpush1.bf16.msra.mxu0 %v6463
    %6705 = vmatprep.subr.bf16.mxu0 %v6460
    %6706 = vmatpush1.bf16.msra.mxu0 %v6459
    %6707 = vmatprep.subr.bf16.mxu0 %v6456
    %6708 = vmatpush1.bf16.msra.mxu0 %v6455
    %6709 = vmatprep.subr.bf16.mxu0 %v6452
    %6710 = vmatpush1.bf16.msra.mxu0 %v6451
    %6711 = vmatprep.subr.bf16.mxu0 %v6448
    %6712 = vmatpush1.bf16.msra.mxu0 %v6447
    %6713 = vmatprep.subr.bf16.mxu0 %v6444
    %6714 = vmatpush1.bf16.msra.mxu0 %v6443
    %6715 = vmatprep.subr.bf16.mxu0 %v6504
    %6716 = vmatpush2.bf16.msra.mxu0 %v6503
    %6717 = vmatprep.subr.bf16.mxu0 %v6500
    %6718 = vmatpush2.bf16.msra.mxu0 %v6499
    %6719 = vmatprep.subr.bf16.mxu0 %v6496
    %6720 = vmatpush2.bf16.msra.mxu0 %v6495
    %6721 = vmatprep.subr.bf16.mxu0 %v6492
    %6722 = vmatpush2.bf16.msra.mxu0 %v6491
    %6723 = vmatprep.subr.bf16.mxu0 %v6488
    %6724 = vmatpush2.bf16.msra.mxu0 %v6487
    %6725 = vmatprep.subr.bf16.mxu0 %v6484
    %6726 = vmatpush2.bf16.msra.mxu0 %v6483
    %6727 = vmatprep.subr.bf16.mxu0 %v6480
    %6728 = vmatpush2.bf16.msra.mxu0 %v6479
    %6729 = vmatprep.subr.bf16.mxu0 %v6476
    %6730 = vmatpush2.bf16.msra.mxu0 %v6475
    %6731 = vmatprep.mubr.bf16.mxu0 %v6052
    %6732 = vmatmul.mubr.bf16.gmra.mxu0 %v6051
    %v6733 = vpop.f32.mrf.mxu0
    %v6734 = vadd.f32 %v5206, %v6733
    %v6735 = vpop.f32.mrf.mxu0
    %v6736 = vadd.f32 %v5210, %v6735
    %v6737 = vpop.f32.mrf.mxu0
    %v6738 = vpop.f32.mrf.mxu0
    %6739 = vdwg.mxu0
    %6740 = vmatprep.subr.bf16.mxu0 %v6536
    %6741 = vmatpush1.bf16.msra.mxu0 %v6535
    %6742 = vmatprep.subr.bf16.mxu0 %v6532
    %6743 = vmatpush1.bf16.msra.mxu0 %v6531
    %6744 = vmatprep.subr.bf16.mxu0 %v6528
    %6745 = vmatpush1.bf16.msra.mxu0 %v6527
    %6746 = vmatprep.subr.bf16.mxu0 %v6524
    %6747 = vmatpush1.bf16.msra.mxu0 %v6523
    %6748 = vmatprep.subr.bf16.mxu0 %v6520
    %6749 = vmatpush1.bf16.msra.mxu0 %v6519
    %6750 = vmatprep.subr.bf16.mxu0 %v6516
    %6751 = vmatpush1.bf16.msra.mxu0 %v6515
    %6752 = vmatprep.subr.bf16.mxu0 %v6512
    %6753 = vmatpush1.bf16.msra.mxu0 %v6511
    %6754 = vmatprep.subr.bf16.mxu0 %v6508
    %6755 = vmatpush1.bf16.msra.mxu0 %v6507
    %6756 = vmatprep.subr.bf16.mxu0 %v6568
    %6757 = vmatpush2.bf16.msra.mxu0 %v6567
    %6758 = vmatprep.subr.bf16.mxu0 %v6564
    %6759 = vmatpush2.bf16.msra.mxu0 %v6563
    %6760 = vmatprep.subr.bf16.mxu0 %v6560
    %6761 = vmatpush2.bf16.msra.mxu0 %v6559
    %6762 = vmatprep.subr.bf16.mxu0 %v6556
    %6763 = vmatpush2.bf16.msra.mxu0 %v6555
    %6764 = vmatprep.subr.bf16.mxu0 %v6552
    %6765 = vmatpush2.bf16.msra.mxu0 %v6551
    %6766 = vmatprep.subr.bf16.mxu0 %v6548
    %6767 = vmatpush2.bf16.msra.mxu0 %v6547
    %6768 = vmatprep.subr.bf16.mxu0 %v6544
    %6769 = vmatpush2.bf16.msra.mxu0 %v6543
    %6770 = vmatprep.subr.bf16.mxu0 %v6540
    %6771 = vmatpush2.bf16.msra.mxu0 %v6539
    %6772 = vmatprep.mubr.bf16.mxu0 %v6054
    %6773 = vmatmul.mubr.bf16.gmra.mxu0 %v6053
    %v6774 = vpop.f32.mrf.mxu0
    %v6775 = vadd.f32 %v6734, %v6774
    %v6776 = vpop.f32.mrf.mxu0
    %v6777 = vadd.f32 %v6736, %v6776
    %v6778 = vpop.f32.mrf.mxu0
    %v6779 = vpop.f32.mrf.mxu0
    %6780 = vdwg.mxu0
    %6781 = vmatprep.subr.bf16.mxu0 %v6474
    %6782 = vmatpush1.bf16.msra.mxu0 %v6473
    %6783 = vmatprep.subr.bf16.mxu0 %v6470
    %6784 = vmatpush1.bf16.msra.mxu0 %v6469
    %6785 = vmatprep.subr.bf16.mxu0 %v6466
    %6786 = vmatpush1.bf16.msra.mxu0 %v6465
    %6787 = vmatprep.subr.bf16.mxu0 %v6462
    %6788 = vmatpush1.bf16.msra.mxu0 %v6461
    %6789 = vmatprep.subr.bf16.mxu0 %v6458
    %6790 = vmatpush1.bf16.msra.mxu0 %v6457
    %6791 = vmatprep.subr.bf16.mxu0 %v6454
    %6792 = vmatpush1.bf16.msra.mxu0 %v6453
    %6793 = vmatprep.subr.bf16.mxu0 %v6450
    %6794 = vmatpush1.bf16.msra.mxu0 %v6449
    %6795 = vmatprep.subr.bf16.mxu0 %v6446
    %6796 = vmatpush1.bf16.msra.mxu0 %v6445
    %6797 = vmatprep.subr.bf16.mxu0 %v6506
    %6798 = vmatpush2.bf16.msra.mxu0 %v6505
    %6799 = vmatprep.subr.bf16.mxu0 %v6502
    %6800 = vmatpush2.bf16.msra.mxu0 %v6501
    %6801 = vmatprep.subr.bf16.mxu0 %v6498
    %6802 = vmatpush2.bf16.msra.mxu0 %v6497
    %6803 = vmatprep.subr.bf16.mxu0 %v6494
    %6804 = vmatpush2.bf16.msra.mxu0 %v6493
    %6805 = vmatprep.subr.bf16.mxu0 %v6490
    %6806 = vmatpush2.bf16.msra.mxu0 %v6489
    %6807 = vmatprep.subr.bf16.mxu0 %v6486
    %6808 = vmatpush2.bf16.msra.mxu0 %v6485
    %6809 = vmatprep.subr.bf16.mxu0 %v6482
    %6810 = vmatpush2.bf16.msra.mxu0 %v6481
    %6811 = vmatprep.subr.bf16.mxu0 %v6478
    %6812 = vmatpush2.bf16.msra.mxu0 %v6477
    %6813 = vmatprep.mubr.bf16.mxu0 %v6052
    %6814 = vmatmul.mubr.bf16.gmra.mxu0 %v6051
    %v6815 = vpop.f32.mrf.mxu0
    %v6816 = vadd.f32 %v5214, %v6815
    %v6817 = vpop.f32.mrf.mxu0
    %v6818 = vadd.f32 %v5218, %v6817
    %v6819 = vpop.f32.mrf.mxu0
    %v6820 = vpop.f32.mrf.mxu0
    %6821 = vdwg.mxu0
    %6822 = vmatprep.subr.bf16.mxu0 %v6538
    %6823 = vmatpush1.bf16.msra.mxu0 %v6537
    %6824 = vmatprep.subr.bf16.mxu0 %v6534
    %6825 = vmatpush1.bf16.msra.mxu0 %v6533
    %6826 = vmatprep.subr.bf16.mxu0 %v6530
    %6827 = vmatpush1.bf16.msra.mxu0 %v6529
    %6828 = vmatprep.subr.bf16.mxu0 %v6526
    %6829 = vmatpush1.bf16.msra.mxu0 %v6525
    %6830 = vmatprep.subr.bf16.mxu0 %v6522
    %6831 = vmatpush1.bf16.msra.mxu0 %v6521
    %6832 = vmatprep.subr.bf16.mxu0 %v6518
    %6833 = vmatpush1.bf16.msra.mxu0 %v6517
    %6834 = vmatprep.subr.bf16.mxu0 %v6514
    %6835 = vmatpush1.bf16.msra.mxu0 %v6513
    %6836 = vmatprep.subr.bf16.mxu0 %v6510
    %6837 = vmatpush1.bf16.msra.mxu0 %v6509
    %6838 = vmatprep.subr.bf16.mxu0 %v6570
    %6839 = vmatpush2.bf16.msra.mxu0 %v6569
    %6840 = vmatprep.subr.bf16.mxu0 %v6566
    %6841 = vmatpush2.bf16.msra.mxu0 %v6565
    %6842 = vmatprep.subr.bf16.mxu0 %v6562
    %6843 = vmatpush2.bf16.msra.mxu0 %v6561
    %6844 = vmatprep.subr.bf16.mxu0 %v6558
    %6845 = vmatpush2.bf16.msra.mxu0 %v6557
    %6846 = vmatprep.subr.bf16.mxu0 %v6554
    %6847 = vmatpush2.bf16.msra.mxu0 %v6553
    %6848 = vmatprep.subr.bf16.mxu0 %v6550
    %6849 = vmatpush2.bf16.msra.mxu0 %v6549
    %6850 = vmatprep.subr.bf16.mxu0 %v6546
    %6851 = vmatpush2.bf16.msra.mxu0 %v6545
    %6852 = vmatprep.subr.bf16.mxu0 %v6542
    %6853 = vmatpush2.bf16.msra.mxu0 %v6541
    %6854 = vmatprep.mubr.bf16.mxu0 %v6054
    %6855 = vmatmul.mubr.bf16.gmra.mxu0 %v6053
    %v6856 = vpop.f32.mrf.mxu0
    %v6857 = vadd.f32 %v6816, %v6856
    %v6858 = vpop.f32.mrf.mxu0
    %v6859 = vadd.f32 %v6818, %v6858
    %v6860 = vpop.f32.mrf.mxu0
    %v6861 = vpop.f32.mrf.mxu0
    %6862 = vdwg.mxu0
    %v6863 = vmax.f32 %v6775, 0.0
    %v6864 = vmax.f32 %v6777, 0.0
    %v6865 = vmax.f32 %v6857, 0.0
    %v6866 = vmax.f32 %v6859, 0.0
    %v6867 = vpack.c.bf16 %v6863, %v6863
    %v6868 = vpack.c.bf16 %v6864, %v6864
    %v6869 = vpack.c.bf16 %v6865, %v6865
    %v6870 = vpack.c.bf16 %v6866, %v6866
    %v6871 = vld [vmem:[#allocation5] sm:$0xff]
    %v6872 = vld [vmem:[#allocation5 + $0x8] sm:$0xff]
    %v6873 = vld [vmem:[#allocation5 + $0x10] sm:$0xff]
    %v6874 = vld [vmem:[#allocation5 + $0x18] sm:$0xff]
    %v6875 = vld [vmem:[#allocation5 + $0x20] sm:$0xff]
    %v6876 = vld [vmem:[#allocation5 + $0x28] sm:$0xff]
    %v6877 = vld [vmem:[#allocation5 + $0x30] sm:$0xff]
    %v6878 = vld [vmem:[#allocation5 + $0x38] sm:$0xff]
    %v6879 = vld [vmem:[#allocation5 + $0x40] sm:$0xff]
    %v6880 = vld [vmem:[#allocation5 + $0x48] sm:$0xff]
    %v6881 = vld [vmem:[#allocation5 + $0x50] sm:$0xff]
    %v6882 = vld [vmem:[#allocation5 + $0x58] sm:$0xff]
    %v6883 = vld [vmem:[#allocation5 + $0x60] sm:$0xff]
    %v6884 = vld [vmem:[#allocation5 + $0x68] sm:$0xff]
    %v6885 = vld [vmem:[#allocation5 + $0x70] sm:$0xff]
    %v6886 = vld [vmem:[#allocation5 + $0x78] sm:$0xff]
    %v6887 = vld [vmem:[#allocation5 + $0x80] sm:$0xff]
    %v6888 = vld [vmem:[#allocation5 + $0x88] sm:$0xff]
    %v6889 = vld [vmem:[#allocation5 + $0x90] sm:$0xff]
    %v6890 = vld [vmem:[#allocation5 + $0x98] sm:$0xff]
    %v6891 = vld [vmem:[#allocation5 + $0xa0] sm:$0xff]
    %v6892 = vld [vmem:[#allocation5 + $0xa8] sm:$0xff]
    %v6893 = vld [vmem:[#allocation5 + $0xb0] sm:$0xff]
    %v6894 = vld [vmem:[#allocation5 + $0xb8] sm:$0xff]
    %v6895 = vld [vmem:[#allocation5 + $0xc0] sm:$0xff]
    %v6896 = vld [vmem:[#allocation5 + $0xc8] sm:$0xff]
    %v6897 = vld [vmem:[#allocation5 + $0xd0] sm:$0xff]
    %v6898 = vld [vmem:[#allocation5 + $0xd8] sm:$0xff]
    %v6899 = vld [vmem:[#allocation5 + $0xe0] sm:$0xff]
    %v6900 = vld [vmem:[#allocation5 + $0xe8] sm:$0xff]
    %v6901 = vld [vmem:[#allocation5 + $0xf0] sm:$0xff]
    %v6902 = vld [vmem:[#allocation5 + $0xf8] sm:$0xff]
    %v6903 = vld [vmem:[#allocation5 + $0x100] sm:$0xff]
    %v6904 = vld [vmem:[#allocation5 + $0x108] sm:$0xff]
    %v6905 = vld [vmem:[#allocation5 + $0x110] sm:$0xff]
    %v6906 = vld [vmem:[#allocation5 + $0x118] sm:$0xff]
    %v6907 = vld [vmem:[#allocation5 + $0x120] sm:$0xff]
    %v6908 = vld [vmem:[#allocation5 + $0x128] sm:$0xff]
    %v6909 = vld [vmem:[#allocation5 + $0x130] sm:$0xff]
    %v6910 = vld [vmem:[#allocation5 + $0x138] sm:$0xff]
    %v6911 = vld [vmem:[#allocation5 + $0x140] sm:$0xff]
    %v6912 = vld [vmem:[#allocation5 + $0x148] sm:$0xff]
    %v6913 = vld [vmem:[#allocation5 + $0x150] sm:$0xff]
    %v6914 = vld [vmem:[#allocation5 + $0x158] sm:$0xff]
    %v6915 = vld [vmem:[#allocation5 + $0x160] sm:$0xff]
    %v6916 = vld [vmem:[#allocation5 + $0x168] sm:$0xff]
    %v6917 = vld [vmem:[#allocation5 + $0x170] sm:$0xff]
    %v6918 = vld [vmem:[#allocation5 + $0x178] sm:$0xff]
    %v6919 = vld [vmem:[#allocation5 + $0x180] sm:$0xff]
    %v6920 = vld [vmem:[#allocation5 + $0x188] sm:$0xff]
    %v6921 = vld [vmem:[#allocation5 + $0x190] sm:$0xff]
    %v6922 = vld [vmem:[#allocation5 + $0x198] sm:$0xff]
    %v6923 = vld [vmem:[#allocation5 + $0x1a0] sm:$0xff]
    %v6924 = vld [vmem:[#allocation5 + $0x1a8] sm:$0xff]
    %v6925 = vld [vmem:[#allocation5 + $0x1b0] sm:$0xff]
    %v6926 = vld [vmem:[#allocation5 + $0x1b8] sm:$0xff]
    %v6927 = vld [vmem:[#allocation5 + $0x1c0] sm:$0xff]
    %v6928 = vld [vmem:[#allocation5 + $0x1c8] sm:$0xff]
    %v6929 = vld [vmem:[#allocation5 + $0x1d0] sm:$0xff]
    %v6930 = vld [vmem:[#allocation5 + $0x1d8] sm:$0xff]
    %v6931 = vld [vmem:[#allocation5 + $0x1e0] sm:$0xff]
    %v6932 = vld [vmem:[#allocation5 + $0x1e8] sm:$0xff]
    %v6933 = vld [vmem:[#allocation5 + $0x1f0] sm:$0xff]
    %v6934 = vld [vmem:[#allocation5 + $0x1f8] sm:$0xff]
    %v6935 = vld [vmem:[#allocation5 + $0x200] sm:$0xff]
    %v6936 = vld [vmem:[#allocation5 + $0x208] sm:$0xff]
    %v6937 = vld [vmem:[#allocation5 + $0x210] sm:$0xff]
    %v6938 = vld [vmem:[#allocation5 + $0x218] sm:$0xff]
    %v6939 = vld [vmem:[#allocation5 + $0x220] sm:$0xff]
    %v6940 = vld [vmem:[#allocation5 + $0x228] sm:$0xff]
    %v6941 = vld [vmem:[#allocation5 + $0x230] sm:$0xff]
    %v6942 = vld [vmem:[#allocation5 + $0x238] sm:$0xff]
    %v6943 = vld [vmem:[#allocation5 + $0x240] sm:$0xff]
    %v6944 = vld [vmem:[#allocation5 + $0x248] sm:$0xff]
    %v6945 = vld [vmem:[#allocation5 + $0x250] sm:$0xff]
    %v6946 = vld [vmem:[#allocation5 + $0x258] sm:$0xff]
    %v6947 = vld [vmem:[#allocation5 + $0x260] sm:$0xff]
    %v6948 = vld [vmem:[#allocation5 + $0x268] sm:$0xff]
    %v6949 = vld [vmem:[#allocation5 + $0x270] sm:$0xff]
    %v6950 = vld [vmem:[#allocation5 + $0x278] sm:$0xff]
    %v6951 = vld [vmem:[#allocation5 + $0x280] sm:$0xff]
    %v6952 = vld [vmem:[#allocation5 + $0x288] sm:$0xff]
    %v6953 = vld [vmem:[#allocation5 + $0x290] sm:$0xff]
    %v6954 = vld [vmem:[#allocation5 + $0x298] sm:$0xff]
    %v6955 = vld [vmem:[#allocation5 + $0x2a0] sm:$0xff]
    %v6956 = vld [vmem:[#allocation5 + $0x2a8] sm:$0xff]
    %v6957 = vld [vmem:[#allocation5 + $0x2b0] sm:$0xff]
    %v6958 = vld [vmem:[#allocation5 + $0x2b8] sm:$0xff]
    %v6959 = vld [vmem:[#allocation5 + $0x2c0] sm:$0xff]
    %v6960 = vld [vmem:[#allocation5 + $0x2c8] sm:$0xff]
    %v6961 = vld [vmem:[#allocation5 + $0x2d0] sm:$0xff]
    %v6962 = vld [vmem:[#allocation5 + $0x2d8] sm:$0xff]
    %v6963 = vld [vmem:[#allocation5 + $0x2e0] sm:$0xff]
    %v6964 = vld [vmem:[#allocation5 + $0x2e8] sm:$0xff]
    %v6965 = vld [vmem:[#allocation5 + $0x2f0] sm:$0xff]
    %v6966 = vld [vmem:[#allocation5 + $0x2f8] sm:$0xff]
    %v6967 = vld [vmem:[#allocation5 + $0x300] sm:$0xff]
    %v6968 = vld [vmem:[#allocation5 + $0x308] sm:$0xff]
    %v6969 = vld [vmem:[#allocation5 + $0x310] sm:$0xff]
    %v6970 = vld [vmem:[#allocation5 + $0x318] sm:$0xff]
    %v6971 = vld [vmem:[#allocation5 + $0x320] sm:$0xff]
    %v6972 = vld [vmem:[#allocation5 + $0x328] sm:$0xff]
    %v6973 = vld [vmem:[#allocation5 + $0x330] sm:$0xff]
    %v6974 = vld [vmem:[#allocation5 + $0x338] sm:$0xff]
    %v6975 = vld [vmem:[#allocation5 + $0x340] sm:$0xff]
    %v6976 = vld [vmem:[#allocation5 + $0x348] sm:$0xff]
    %v6977 = vld [vmem:[#allocation5 + $0x350] sm:$0xff]
    %v6978 = vld [vmem:[#allocation5 + $0x358] sm:$0xff]
    %v6979 = vld [vmem:[#allocation5 + $0x360] sm:$0xff]
    %v6980 = vld [vmem:[#allocation5 + $0x368] sm:$0xff]
    %v6981 = vld [vmem:[#allocation5 + $0x370] sm:$0xff]
    %v6982 = vld [vmem:[#allocation5 + $0x378] sm:$0xff]
    %v6983 = vld [vmem:[#allocation5 + $0x380] sm:$0xff]
    %v6984 = vld [vmem:[#allocation5 + $0x388] sm:$0xff]
    %v6985 = vld [vmem:[#allocation5 + $0x390] sm:$0xff]
    %v6986 = vld [vmem:[#allocation5 + $0x398] sm:$0xff]
    %v6987 = vld [vmem:[#allocation5 + $0x3a0] sm:$0xff]
    %v6988 = vld [vmem:[#allocation5 + $0x3a8] sm:$0xff]
    %v6989 = vld [vmem:[#allocation5 + $0x3b0] sm:$0xff]
    %v6990 = vld [vmem:[#allocation5 + $0x3b8] sm:$0xff]
    %v6991 = vld [vmem:[#allocation5 + $0x3c0] sm:$0xff]
    %v6992 = vld [vmem:[#allocation5 + $0x3c8] sm:$0xff]
    %v6993 = vld [vmem:[#allocation5 + $0x3d0] sm:$0xff]
    %v6994 = vld [vmem:[#allocation5 + $0x3d8] sm:$0xff]
    %v6995 = vld [vmem:[#allocation5 + $0x3e0] sm:$0xff]
    %v6996 = vld [vmem:[#allocation5 + $0x3e8] sm:$0xff]
    %v6997 = vld [vmem:[#allocation5 + $0x3f0] sm:$0xff]
    %v6998 = vld [vmem:[#allocation5 + $0x3f8] sm:$0xff]
    %v6999 = vld [vmem:[%s9] sm:$0xf]
    %v7001 = vlaneseq
    %v7002 = vshrl.u32 %v7001, 7
    %v7003 = vsub.s32 0, %v7002
    %v7004 = vrot.slane %v6999, %v7003
    %v7005 = vlaneseq
    %v7006 = vshrl.u32 %v7005, 7
    %v7007 = vsub.s32 1, %v7006
    %v7008 = vrot.slane %v6999, %v7007
    %v7009 = vlaneseq
    %v7010 = vshrl.u32 %v7009, 7
    %v7011 = vsub.s32 2, %v7010
    %v7012 = vrot.slane %v6999, %v7011
    %v7013 = vlaneseq
    %v7014 = vshrl.u32 %v7013, 7
    %v7015 = vsub.s32 3, %v7014
    %v7016 = vrot.slane %v6999, %v7015
    %v7149 = vunpack.c.l.b16 %v6871
    %v7150 = vunpack.c.h.b16 %v6871
    %v7151 = vunpack.c.l.b16 %v6872
    %v7152 = vunpack.c.h.b16 %v6872
    %v7153 = vunpack.c.l.b16 %v6873
    %v7154 = vunpack.c.h.b16 %v6873
    %v7155 = vunpack.c.l.b16 %v6874
    %v7156 = vunpack.c.h.b16 %v6874
    %v7157 = vunpack.c.l.b16 %v6875
    %v7158 = vunpack.c.h.b16 %v6875
    %v7159 = vunpack.c.l.b16 %v6876
    %v7160 = vunpack.c.h.b16 %v6876
    %v7161 = vunpack.c.l.b16 %v6877
    %v7162 = vunpack.c.h.b16 %v6877
    %v7163 = vunpack.c.l.b16 %v6878
    %v7164 = vunpack.c.h.b16 %v6878
    %v7165 = vunpack.c.l.b16 %v6879
    %v7166 = vunpack.c.h.b16 %v6879
    %v7167 = vunpack.c.l.b16 %v6880
    %v7168 = vunpack.c.h.b16 %v6880
    %v7169 = vunpack.c.l.b16 %v6881
    %v7170 = vunpack.c.h.b16 %v6881
    %v7171 = vunpack.c.l.b16 %v6882
    %v7172 = vunpack.c.h.b16 %v6882
    %v7173 = vunpack.c.l.b16 %v6883
    %v7174 = vunpack.c.h.b16 %v6883
    %v7175 = vunpack.c.l.b16 %v6884
    %v7176 = vunpack.c.h.b16 %v6884
    %v7177 = vunpack.c.l.b16 %v6885
    %v7178 = vunpack.c.h.b16 %v6885
    %v7179 = vunpack.c.l.b16 %v6886
    %v7180 = vunpack.c.h.b16 %v6886
    %v7181 = vunpack.c.l.b16 %v6887
    %v7182 = vunpack.c.h.b16 %v6887
    %v7183 = vunpack.c.l.b16 %v6888
    %v7184 = vunpack.c.h.b16 %v6888
    %v7185 = vunpack.c.l.b16 %v6889
    %v7186 = vunpack.c.h.b16 %v6889
    %v7187 = vunpack.c.l.b16 %v6890
    %v7188 = vunpack.c.h.b16 %v6890
    %v7189 = vunpack.c.l.b16 %v6891
    %v7190 = vunpack.c.h.b16 %v6891
    %v7191 = vunpack.c.l.b16 %v6892
    %v7192 = vunpack.c.h.b16 %v6892
    %v7193 = vunpack.c.l.b16 %v6893
    %v7194 = vunpack.c.h.b16 %v6893
    %v7195 = vunpack.c.l.b16 %v6894
    %v7196 = vunpack.c.h.b16 %v6894
    %v7197 = vunpack.c.l.b16 %v6895
    %v7198 = vunpack.c.h.b16 %v6895
    %v7199 = vunpack.c.l.b16 %v6896
    %v7200 = vunpack.c.h.b16 %v6896
    %v7201 = vunpack.c.l.b16 %v6897
    %v7202 = vunpack.c.h.b16 %v6897
    %v7203 = vunpack.c.l.b16 %v6898
    %v7204 = vunpack.c.h.b16 %v6898
    %v7205 = vunpack.c.l.b16 %v6899
    %v7206 = vunpack.c.h.b16 %v6899
    %v7207 = vunpack.c.l.b16 %v6900
    %v7208 = vunpack.c.h.b16 %v6900
    %v7209 = vunpack.c.l.b16 %v6901
    %v7210 = vunpack.c.h.b16 %v6901
    %v7211 = vunpack.c.l.b16 %v6902
    %v7212 = vunpack.c.h.b16 %v6902
    %v7213 = vunpack.c.l.b16 %v6903
    %v7214 = vunpack.c.h.b16 %v6903
    %v7215 = vunpack.c.l.b16 %v6904
    %v7216 = vunpack.c.h.b16 %v6904
    %v7217 = vunpack.c.l.b16 %v6905
    %v7218 = vunpack.c.h.b16 %v6905
    %v7219 = vunpack.c.l.b16 %v6906
    %v7220 = vunpack.c.h.b16 %v6906
    %v7221 = vunpack.c.l.b16 %v6907
    %v7222 = vunpack.c.h.b16 %v6907
    %v7223 = vunpack.c.l.b16 %v6908
    %v7224 = vunpack.c.h.b16 %v6908
    %v7225 = vunpack.c.l.b16 %v6909
    %v7226 = vunpack.c.h.b16 %v6909
    %v7227 = vunpack.c.l.b16 %v6910
    %v7228 = vunpack.c.h.b16 %v6910
    %v7229 = vunpack.c.l.b16 %v6911
    %v7230 = vunpack.c.h.b16 %v6911
    %v7231 = vunpack.c.l.b16 %v6912
    %v7232 = vunpack.c.h.b16 %v6912
    %v7233 = vunpack.c.l.b16 %v6913
    %v7234 = vunpack.c.h.b16 %v6913
    %v7235 = vunpack.c.l.b16 %v6914
    %v7236 = vunpack.c.h.b16 %v6914
    %v7237 = vunpack.c.l.b16 %v6915
    %v7238 = vunpack.c.h.b16 %v6915
    %v7239 = vunpack.c.l.b16 %v6916
    %v7240 = vunpack.c.h.b16 %v6916
    %v7241 = vunpack.c.l.b16 %v6917
    %v7242 = vunpack.c.h.b16 %v6917
    %v7243 = vunpack.c.l.b16 %v6918
    %v7244 = vunpack.c.h.b16 %v6918
    %v7245 = vunpack.c.l.b16 %v6919
    %v7246 = vunpack.c.h.b16 %v6919
    %v7247 = vunpack.c.l.b16 %v6920
    %v7248 = vunpack.c.h.b16 %v6920
    %v7249 = vunpack.c.l.b16 %v6921
    %v7250 = vunpack.c.h.b16 %v6921
    %v7251 = vunpack.c.l.b16 %v6922
    %v7252 = vunpack.c.h.b16 %v6922
    %v7253 = vunpack.c.l.b16 %v6923
    %v7254 = vunpack.c.h.b16 %v6923
    %v7255 = vunpack.c.l.b16 %v6924
    %v7256 = vunpack.c.h.b16 %v6924
    %v7257 = vunpack.c.l.b16 %v6925
    %v7258 = vunpack.c.h.b16 %v6925
    %v7259 = vunpack.c.l.b16 %v6926
    %v7260 = vunpack.c.h.b16 %v6926
    %v7261 = vunpack.c.l.b16 %v6927
    %v7262 = vunpack.c.h.b16 %v6927
    %v7263 = vunpack.c.l.b16 %v6928
    %v7264 = vunpack.c.h.b16 %v6928
    %v7265 = vunpack.c.l.b16 %v6929
    %v7266 = vunpack.c.h.b16 %v6929
    %v7267 = vunpack.c.l.b16 %v6930
    %v7268 = vunpack.c.h.b16 %v6930
    %v7269 = vunpack.c.l.b16 %v6931
    %v7270 = vunpack.c.h.b16 %v6931
    %v7271 = vunpack.c.l.b16 %v6932
    %v7272 = vunpack.c.h.b16 %v6932
    %v7273 = vunpack.c.l.b16 %v6933
    %v7274 = vunpack.c.h.b16 %v6933
    %v7275 = vunpack.c.l.b16 %v6934
    %v7276 = vunpack.c.h.b16 %v6934
    %v7277 = vunpack.c.l.b16 %v6935
    %v7278 = vunpack.c.h.b16 %v6935
    %v7279 = vunpack.c.l.b16 %v6936
    %v7280 = vunpack.c.h.b16 %v6936
    %v7281 = vunpack.c.l.b16 %v6937
    %v7282 = vunpack.c.h.b16 %v6937
    %v7283 = vunpack.c.l.b16 %v6938
    %v7284 = vunpack.c.h.b16 %v6938
    %v7285 = vunpack.c.l.b16 %v6939
    %v7286 = vunpack.c.h.b16 %v6939
    %v7287 = vunpack.c.l.b16 %v6940
    %v7288 = vunpack.c.h.b16 %v6940
    %v7289 = vunpack.c.l.b16 %v6941
    %v7290 = vunpack.c.h.b16 %v6941
    %v7291 = vunpack.c.l.b16 %v6942
    %v7292 = vunpack.c.h.b16 %v6942
    %v7293 = vunpack.c.l.b16 %v6943
    %v7294 = vunpack.c.h.b16 %v6943
    %v7295 = vunpack.c.l.b16 %v6944
    %v7296 = vunpack.c.h.b16 %v6944
    %v7297 = vunpack.c.l.b16 %v6945
    %v7298 = vunpack.c.h.b16 %v6945
    %v7299 = vunpack.c.l.b16 %v6946
    %v7300 = vunpack.c.h.b16 %v6946
    %v7301 = vunpack.c.l.b16 %v6947
    %v7302 = vunpack.c.h.b16 %v6947
    %v7303 = vunpack.c.l.b16 %v6948
    %v7304 = vunpack.c.h.b16 %v6948
    %v7305 = vunpack.c.l.b16 %v6949
    %v7306 = vunpack.c.h.b16 %v6949
    %v7307 = vunpack.c.l.b16 %v6950
    %v7308 = vunpack.c.h.b16 %v6950
    %v7309 = vunpack.c.l.b16 %v6951
    %v7310 = vunpack.c.h.b16 %v6951
    %v7311 = vunpack.c.l.b16 %v6952
    %v7312 = vunpack.c.h.b16 %v6952
    %v7313 = vunpack.c.l.b16 %v6953
    %v7314 = vunpack.c.h.b16 %v6953
    %v7315 = vunpack.c.l.b16 %v6954
    %v7316 = vunpack.c.h.b16 %v6954
    %v7317 = vunpack.c.l.b16 %v6955
    %v7318 = vunpack.c.h.b16 %v6955
    %v7319 = vunpack.c.l.b16 %v6956
    %v7320 = vunpack.c.h.b16 %v6956
    %v7321 = vunpack.c.l.b16 %v6957
    %v7322 = vunpack.c.h.b16 %v6957
    %v7323 = vunpack.c.l.b16 %v6958
    %v7324 = vunpack.c.h.b16 %v6958
    %v7325 = vunpack.c.l.b16 %v6959
    %v7326 = vunpack.c.h.b16 %v6959
    %v7327 = vunpack.c.l.b16 %v6960
    %v7328 = vunpack.c.h.b16 %v6960
    %v7329 = vunpack.c.l.b16 %v6961
    %v7330 = vunpack.c.h.b16 %v6961
    %v7331 = vunpack.c.l.b16 %v6962
    %v7332 = vunpack.c.h.b16 %v6962
    %v7333 = vunpack.c.l.b16 %v6963
    %v7334 = vunpack.c.h.b16 %v6963
    %v7335 = vunpack.c.l.b16 %v6964
    %v7336 = vunpack.c.h.b16 %v6964
    %v7337 = vunpack.c.l.b16 %v6965
    %v7338 = vunpack.c.h.b16 %v6965
    %v7339 = vunpack.c.l.b16 %v6966
    %v7340 = vunpack.c.h.b16 %v6966
    %v7341 = vunpack.c.l.b16 %v6967
    %v7342 = vunpack.c.h.b16 %v6967
    %v7343 = vunpack.c.l.b16 %v6968
    %v7344 = vunpack.c.h.b16 %v6968
    %v7345 = vunpack.c.l.b16 %v6969
    %v7346 = vunpack.c.h.b16 %v6969
    %v7347 = vunpack.c.l.b16 %v6970
    %v7348 = vunpack.c.h.b16 %v6970
    %v7349 = vunpack.c.l.b16 %v6971
    %v7350 = vunpack.c.h.b16 %v6971
    %v7351 = vunpack.c.l.b16 %v6972
    %v7352 = vunpack.c.h.b16 %v6972
    %v7353 = vunpack.c.l.b16 %v6973
    %v7354 = vunpack.c.h.b16 %v6973
    %v7355 = vunpack.c.l.b16 %v6974
    %v7356 = vunpack.c.h.b16 %v6974
    %v7357 = vunpack.c.l.b16 %v6975
    %v7358 = vunpack.c.h.b16 %v6975
    %v7359 = vunpack.c.l.b16 %v6976
    %v7360 = vunpack.c.h.b16 %v6976
    %v7361 = vunpack.c.l.b16 %v6977
    %v7362 = vunpack.c.h.b16 %v6977
    %v7363 = vunpack.c.l.b16 %v6978
    %v7364 = vunpack.c.h.b16 %v6978
    %v7365 = vunpack.c.l.b16 %v6979
    %v7366 = vunpack.c.h.b16 %v6979
    %v7367 = vunpack.c.l.b16 %v6980
    %v7368 = vunpack.c.h.b16 %v6980
    %v7369 = vunpack.c.l.b16 %v6981
    %v7370 = vunpack.c.h.b16 %v6981
    %v7371 = vunpack.c.l.b16 %v6982
    %v7372 = vunpack.c.h.b16 %v6982
    %v7373 = vunpack.c.l.b16 %v6983
    %v7374 = vunpack.c.h.b16 %v6983
    %v7375 = vunpack.c.l.b16 %v6984
    %v7376 = vunpack.c.h.b16 %v6984
    %v7377 = vunpack.c.l.b16 %v6985
    %v7378 = vunpack.c.h.b16 %v6985
    %v7379 = vunpack.c.l.b16 %v6986
    %v7380 = vunpack.c.h.b16 %v6986
    %v7381 = vunpack.c.l.b16 %v6987
    %v7382 = vunpack.c.h.b16 %v6987
    %v7383 = vunpack.c.l.b16 %v6988
    %v7384 = vunpack.c.h.b16 %v6988
    %v7385 = vunpack.c.l.b16 %v6989
    %v7386 = vunpack.c.h.b16 %v6989
    %v7387 = vunpack.c.l.b16 %v6990
    %v7388 = vunpack.c.h.b16 %v6990
    %v7389 = vunpack.c.l.b16 %v6991
    %v7390 = vunpack.c.h.b16 %v6991
    %v7391 = vunpack.c.l.b16 %v6992
    %v7392 = vunpack.c.h.b16 %v6992
    %v7393 = vunpack.c.l.b16 %v6993
    %v7394 = vunpack.c.h.b16 %v6993
    %v7395 = vunpack.c.l.b16 %v6994
    %v7396 = vunpack.c.h.b16 %v6994
    %v7397 = vunpack.c.l.b16 %v6995
    %v7398 = vunpack.c.h.b16 %v6995
    %v7399 = vunpack.c.l.b16 %v6996
    %v7400 = vunpack.c.h.b16 %v6996
    %v7401 = vunpack.c.l.b16 %v6997
    %v7402 = vunpack.c.h.b16 %v6997
    %v7403 = vunpack.c.l.b16 %v6998
    %v7404 = vunpack.c.h.b16 %v6998
    %v7405 = vpack.c.b16 %v7153, %v7149
    %v7406 = vpack.c.b16 %v7154, %v7150
    %v7407 = vpack.c.b16 %v7155, %v7151
    %v7408 = vpack.c.b16 %v7156, %v7152
    %v7409 = vpack.c.b16 %v7161, %v7157
    %v7410 = vpack.c.b16 %v7162, %v7158
    %v7411 = vpack.c.b16 %v7163, %v7159
    %v7412 = vpack.c.b16 %v7164, %v7160
    %v7413 = vpack.c.b16 %v7169, %v7165
    %v7414 = vpack.c.b16 %v7170, %v7166
    %v7415 = vpack.c.b16 %v7171, %v7167
    %v7416 = vpack.c.b16 %v7172, %v7168
    %v7417 = vpack.c.b16 %v7177, %v7173
    %v7418 = vpack.c.b16 %v7178, %v7174
    %v7419 = vpack.c.b16 %v7179, %v7175
    %v7420 = vpack.c.b16 %v7180, %v7176
    %v7421 = vpack.c.b16 %v7185, %v7181
    %v7422 = vpack.c.b16 %v7186, %v7182
    %v7423 = vpack.c.b16 %v7187, %v7183
    %v7424 = vpack.c.b16 %v7188, %v7184
    %v7425 = vpack.c.b16 %v7193, %v7189
    %v7426 = vpack.c.b16 %v7194, %v7190
    %v7427 = vpack.c.b16 %v7195, %v7191
    %v7428 = vpack.c.b16 %v7196, %v7192
    %v7429 = vpack.c.b16 %v7201, %v7197
    %v7430 = vpack.c.b16 %v7202, %v7198
    %v7431 = vpack.c.b16 %v7203, %v7199
    %v7432 = vpack.c.b16 %v7204, %v7200
    %v7433 = vpack.c.b16 %v7209, %v7205
    %v7434 = vpack.c.b16 %v7210, %v7206
    %v7435 = vpack.c.b16 %v7211, %v7207
    %v7436 = vpack.c.b16 %v7212, %v7208
    %v7437 = vpack.c.b16 %v7217, %v7213
    %v7438 = vpack.c.b16 %v7218, %v7214
    %v7439 = vpack.c.b16 %v7219, %v7215
    %v7440 = vpack.c.b16 %v7220, %v7216
    %v7441 = vpack.c.b16 %v7225, %v7221
    %v7442 = vpack.c.b16 %v7226, %v7222
    %v7443 = vpack.c.b16 %v7227, %v7223
    %v7444 = vpack.c.b16 %v7228, %v7224
    %v7445 = vpack.c.b16 %v7233, %v7229
    %v7446 = vpack.c.b16 %v7234, %v7230
    %v7447 = vpack.c.b16 %v7235, %v7231
    %v7448 = vpack.c.b16 %v7236, %v7232
    %v7449 = vpack.c.b16 %v7241, %v7237
    %v7450 = vpack.c.b16 %v7242, %v7238
    %v7451 = vpack.c.b16 %v7243, %v7239
    %v7452 = vpack.c.b16 %v7244, %v7240
    %v7453 = vpack.c.b16 %v7249, %v7245
    %v7454 = vpack.c.b16 %v7250, %v7246
    %v7455 = vpack.c.b16 %v7251, %v7247
    %v7456 = vpack.c.b16 %v7252, %v7248
    %v7457 = vpack.c.b16 %v7257, %v7253
    %v7458 = vpack.c.b16 %v7258, %v7254
    %v7459 = vpack.c.b16 %v7259, %v7255
    %v7460 = vpack.c.b16 %v7260, %v7256
    %v7461 = vpack.c.b16 %v7265, %v7261
    %v7462 = vpack.c.b16 %v7266, %v7262
    %v7463 = vpack.c.b16 %v7267, %v7263
    %v7464 = vpack.c.b16 %v7268, %v7264
    %v7465 = vpack.c.b16 %v7273, %v7269
    %v7466 = vpack.c.b16 %v7274, %v7270
    %v7467 = vpack.c.b16 %v7275, %v7271
    %v7468 = vpack.c.b16 %v7276, %v7272
    %v7469 = vpack.c.b16 %v7281, %v7277
    %v7470 = vpack.c.b16 %v7282, %v7278
    %v7471 = vpack.c.b16 %v7283, %v7279
    %v7472 = vpack.c.b16 %v7284, %v7280
    %v7473 = vpack.c.b16 %v7289, %v7285
    %v7474 = vpack.c.b16 %v7290, %v7286
    %v7475 = vpack.c.b16 %v7291, %v7287
    %v7476 = vpack.c.b16 %v7292, %v7288
    %v7477 = vpack.c.b16 %v7297, %v7293
    %v7478 = vpack.c.b16 %v7298, %v7294
    %v7479 = vpack.c.b16 %v7299, %v7295
    %v7480 = vpack.c.b16 %v7300, %v7296
    %v7481 = vpack.c.b16 %v7305, %v7301
    %v7482 = vpack.c.b16 %v7306, %v7302
    %v7483 = vpack.c.b16 %v7307, %v7303
    %v7484 = vpack.c.b16 %v7308, %v7304
    %v7485 = vpack.c.b16 %v7313, %v7309
    %v7486 = vpack.c.b16 %v7314, %v7310
    %v7487 = vpack.c.b16 %v7315, %v7311
    %v7488 = vpack.c.b16 %v7316, %v7312
    %v7489 = vpack.c.b16 %v7321, %v7317
    %v7490 = vpack.c.b16 %v7322, %v7318
    %v7491 = vpack.c.b16 %v7323, %v7319
    %v7492 = vpack.c.b16 %v7324, %v7320
    %v7493 = vpack.c.b16 %v7329, %v7325
    %v7494 = vpack.c.b16 %v7330, %v7326
    %v7495 = vpack.c.b16 %v7331, %v7327
    %v7496 = vpack.c.b16 %v7332, %v7328
    %v7497 = vpack.c.b16 %v7337, %v7333
    %v7498 = vpack.c.b16 %v7338, %v7334
    %v7499 = vpack.c.b16 %v7339, %v7335
    %v7500 = vpack.c.b16 %v7340, %v7336
    %v7501 = vpack.c.b16 %v7345, %v7341
    %v7502 = vpack.c.b16 %v7346, %v7342
    %v7503 = vpack.c.b16 %v7347, %v7343
    %v7504 = vpack.c.b16 %v7348, %v7344
    %v7505 = vpack.c.b16 %v7353, %v7349
    %v7506 = vpack.c.b16 %v7354, %v7350
    %v7507 = vpack.c.b16 %v7355, %v7351
    %v7508 = vpack.c.b16 %v7356, %v7352
    %v7509 = vpack.c.b16 %v7361, %v7357
    %v7510 = vpack.c.b16 %v7362, %v7358
    %v7511 = vpack.c.b16 %v7363, %v7359
    %v7512 = vpack.c.b16 %v7364, %v7360
    %v7513 = vpack.c.b16 %v7369, %v7365
    %v7514 = vpack.c.b16 %v7370, %v7366
    %v7515 = vpack.c.b16 %v7371, %v7367
    %v7516 = vpack.c.b16 %v7372, %v7368
    %v7517 = vpack.c.b16 %v7377, %v7373
    %v7518 = vpack.c.b16 %v7378, %v7374
    %v7519 = vpack.c.b16 %v7379, %v7375
    %v7520 = vpack.c.b16 %v7380, %v7376
    %v7521 = vpack.c.b16 %v7385, %v7381
    %v7522 = vpack.c.b16 %v7386, %v7382
    %v7523 = vpack.c.b16 %v7387, %v7383
    %v7524 = vpack.c.b16 %v7388, %v7384
    %v7525 = vpack.c.b16 %v7393, %v7389
    %v7526 = vpack.c.b16 %v7394, %v7390
    %v7527 = vpack.c.b16 %v7395, %v7391
    %v7528 = vpack.c.b16 %v7396, %v7392
    %v7529 = vpack.c.b16 %v7401, %v7397
    %v7530 = vpack.c.b16 %v7402, %v7398
    %v7531 = vpack.c.b16 %v7403, %v7399
    %v7532 = vpack.c.b16 %v7404, %v7400
    %7661 = vmatprep.subr.bf16.mxu0 %v7434
    %7662 = vmatpush1.bf16.msra.mxu0 %v7433
    %7663 = vmatprep.subr.bf16.mxu0 %v7430
    %7664 = vmatpush1.bf16.msra.mxu0 %v7429
    %7665 = vmatprep.subr.bf16.mxu0 %v7426
    %7666 = vmatpush1.bf16.msra.mxu0 %v7425
    %7667 = vmatprep.subr.bf16.mxu0 %v7422
    %7668 = vmatpush1.bf16.msra.mxu0 %v7421
    %7669 = vmatprep.subr.bf16.mxu0 %v7418
    %7670 = vmatpush1.bf16.msra.mxu0 %v7417
    %7671 = vmatprep.subr.bf16.mxu0 %v7414
    %7672 = vmatpush1.bf16.msra.mxu0 %v7413
    %7673 = vmatprep.subr.bf16.mxu0 %v7410
    %7674 = vmatpush1.bf16.msra.mxu0 %v7409
    %7675 = vmatprep.subr.bf16.mxu0 %v7406
    %7676 = vmatpush1.bf16.msra.mxu0 %v7405
    %7677 = vmatprep.subr.bf16.mxu0 %v7466
    %7678 = vmatpush2.bf16.msra.mxu0 %v7465
    %7679 = vmatprep.subr.bf16.mxu0 %v7462
    %7680 = vmatpush2.bf16.msra.mxu0 %v7461
    %7681 = vmatprep.subr.bf16.mxu0 %v7458
    %7682 = vmatpush2.bf16.msra.mxu0 %v7457
    %7683 = vmatprep.subr.bf16.mxu0 %v7454
    %7684 = vmatpush2.bf16.msra.mxu0 %v7453
    %7685 = vmatprep.subr.bf16.mxu0 %v7450
    %7686 = vmatpush2.bf16.msra.mxu0 %v7449
    %7687 = vmatprep.subr.bf16.mxu0 %v7446
    %7688 = vmatpush2.bf16.msra.mxu0 %v7445
    %7689 = vmatprep.subr.bf16.mxu0 %v7442
    %7690 = vmatpush2.bf16.msra.mxu0 %v7441
    %7691 = vmatprep.subr.bf16.mxu0 %v7438
    %7692 = vmatpush2.bf16.msra.mxu0 %v7437
    %7693 = vmatprep.mubr.bf16.mxu0 %v6868
    %7694 = vmatmul.mubr.bf16.gmra.mxu0 %v6867
    %v7695 = vpop.f32.mrf.mxu0
    %v7696 = vadd.f32 %v7004, %v7695
    %v7697 = vpop.f32.mrf.mxu0
    %v7698 = vadd.f32 %v7008, %v7697
    %v7699 = vpop.f32.mrf.mxu0
    %v7700 = vpop.f32.mrf.mxu0
    %7701 = vdwg.mxu0
    %7702 = vmatprep.subr.bf16.mxu0 %v7498
    %7703 = vmatpush1.bf16.msra.mxu0 %v7497
    %7704 = vmatprep.subr.bf16.mxu0 %v7494
    %7705 = vmatpush1.bf16.msra.mxu0 %v7493
    %7706 = vmatprep.subr.bf16.mxu0 %v7490
    %7707 = vmatpush1.bf16.msra.mxu0 %v7489
    %7708 = vmatprep.subr.bf16.mxu0 %v7486
    %7709 = vmatpush1.bf16.msra.mxu0 %v7485
    %7710 = vmatprep.subr.bf16.mxu0 %v7482
    %7711 = vmatpush1.bf16.msra.mxu0 %v7481
    %7712 = vmatprep.subr.bf16.mxu0 %v7478
    %7713 = vmatpush1.bf16.msra.mxu0 %v7477
    %7714 = vmatprep.subr.bf16.mxu0 %v7474
    %7715 = vmatpush1.bf16.msra.mxu0 %v7473
    %7716 = vmatprep.subr.bf16.mxu0 %v7470
    %7717 = vmatpush1.bf16.msra.mxu0 %v7469
    %7718 = vmatprep.subr.bf16.mxu0 %v7530
    %7719 = vmatpush2.bf16.msra.mxu0 %v7529
    %7720 = vmatprep.subr.bf16.mxu0 %v7526
    %7721 = vmatpush2.bf16.msra.mxu0 %v7525
    %7722 = vmatprep.subr.bf16.mxu0 %v7522
    %7723 = vmatpush2.bf16.msra.mxu0 %v7521
    %7724 = vmatprep.subr.bf16.mxu0 %v7518
    %7725 = vmatpush2.bf16.msra.mxu0 %v7517
    %7726 = vmatprep.subr.bf16.mxu0 %v7514
    %7727 = vmatpush2.bf16.msra.mxu0 %v7513
    %7728 = vmatprep.subr.bf16.mxu0 %v7510
    %7729 = vmatpush2.bf16.msra.mxu0 %v7509
    %7730 = vmatprep.subr.bf16.mxu0 %v7506
    %7731 = vmatpush2.bf16.msra.mxu0 %v7505
    %7732 = vmatprep.subr.bf16.mxu0 %v7502
    %7733 = vmatpush2.bf16.msra.mxu0 %v7501
    %7734 = vmatprep.mubr.bf16.mxu0 %v6870
    %7735 = vmatmul.mubr.bf16.gmra.mxu0 %v6869
    %v7736 = vpop.f32.mrf.mxu0
    %v7737 = vadd.f32 %v7696, %v7736
    %v7738 = vpop.f32.mrf.mxu0
    %v7739 = vadd.f32 %v7698, %v7738
    %v7740 = vpop.f32.mrf.mxu0
    %v7741 = vpop.f32.mrf.mxu0
    %7742 = vdwg.mxu0
    %7743 = vmatprep.subr.bf16.mxu0 %v7436
    %7744 = vmatpush1.bf16.msra.mxu0 %v7435
    %7745 = vmatprep.subr.bf16.mxu0 %v7432
    %7746 = vmatpush1.bf16.msra.mxu0 %v7431
    %7747 = vmatprep.subr.bf16.mxu0 %v7428
    %7748 = vmatpush1.bf16.msra.mxu0 %v7427
    %7749 = vmatprep.subr.bf16.mxu0 %v7424
    %7750 = vmatpush1.bf16.msra.mxu0 %v7423
    %7751 = vmatprep.subr.bf16.mxu0 %v7420
    %7752 = vmatpush1.bf16.msra.mxu0 %v7419
    %7753 = vmatprep.subr.bf16.mxu0 %v7416
    %7754 = vmatpush1.bf16.msra.mxu0 %v7415
    %7755 = vmatprep.subr.bf16.mxu0 %v7412
    %7756 = vmatpush1.bf16.msra.mxu0 %v7411
    %7757 = vmatprep.subr.bf16.mxu0 %v7408
    %7758 = vmatpush1.bf16.msra.mxu0 %v7407
    %7759 = vmatprep.subr.bf16.mxu0 %v7468
    %7760 = vmatpush2.bf16.msra.mxu0 %v7467
    %7761 = vmatprep.subr.bf16.mxu0 %v7464
    %7762 = vmatpush2.bf16.msra.mxu0 %v7463
    %7763 = vmatprep.subr.bf16.mxu0 %v7460
    %7764 = vmatpush2.bf16.msra.mxu0 %v7459
    %7765 = vmatprep.subr.bf16.mxu0 %v7456
    %7766 = vmatpush2.bf16.msra.mxu0 %v7455
    %7767 = vmatprep.subr.bf16.mxu0 %v7452
    %7768 = vmatpush2.bf16.msra.mxu0 %v7451
    %7769 = vmatprep.subr.bf16.mxu0 %v7448
    %7770 = vmatpush2.bf16.msra.mxu0 %v7447
    %7771 = vmatprep.subr.bf16.mxu0 %v7444
    %7772 = vmatpush2.bf16.msra.mxu0 %v7443
    %7773 = vmatprep.subr.bf16.mxu0 %v7440
    %7774 = vmatpush2.bf16.msra.mxu0 %v7439
    %7775 = vmatprep.mubr.bf16.mxu0 %v6868
    %7776 = vmatmul.mubr.bf16.gmra.mxu0 %v6867
    %v7777 = vpop.f32.mrf.mxu0
    %v7778 = vadd.f32 %v7012, %v7777
    %v7779 = vpop.f32.mrf.mxu0
    %v7780 = vadd.f32 %v7016, %v7779
    %v7781 = vpop.f32.mrf.mxu0
    %v7782 = vpop.f32.mrf.mxu0
    %7783 = vdwg.mxu0
    %7784 = vmatprep.subr.bf16.mxu0 %v7500
    %7785 = vmatpush1.bf16.msra.mxu0 %v7499
    %7786 = vmatprep.subr.bf16.mxu0 %v7496
    %7787 = vmatpush1.bf16.msra.mxu0 %v7495
    %7788 = vmatprep.subr.bf16.mxu0 %v7492
    %7789 = vmatpush1.bf16.msra.mxu0 %v7491
    %7790 = vmatprep.subr.bf16.mxu0 %v7488
    %7791 = vmatpush1.bf16.msra.mxu0 %v7487
    %7792 = vmatprep.subr.bf16.mxu0 %v7484
    %7793 = vmatpush1.bf16.msra.mxu0 %v7483
    %7794 = vmatprep.subr.bf16.mxu0 %v7480
    %7795 = vmatpush1.bf16.msra.mxu0 %v7479
    %7796 = vmatprep.subr.bf16.mxu0 %v7476
    %7797 = vmatpush1.bf16.msra.mxu0 %v7475
    %7798 = vmatprep.subr.bf16.mxu0 %v7472
    %7799 = vmatpush1.bf16.msra.mxu0 %v7471
    %7800 = vmatprep.subr.bf16.mxu0 %v7532
    %7801 = vmatpush2.bf16.msra.mxu0 %v7531
    %7802 = vmatprep.subr.bf16.mxu0 %v7528
    %7803 = vmatpush2.bf16.msra.mxu0 %v7527
    %7804 = vmatprep.subr.bf16.mxu0 %v7524
    %7805 = vmatpush2.bf16.msra.mxu0 %v7523
    %7806 = vmatprep.subr.bf16.mxu0 %v7520
    %7807 = vmatpush2.bf16.msra.mxu0 %v7519
    %7808 = vmatprep.subr.bf16.mxu0 %v7516
    %7809 = vmatpush2.bf16.msra.mxu0 %v7515
    %7810 = vmatprep.subr.bf16.mxu0 %v7512
    %7811 = vmatpush2.bf16.msra.mxu0 %v7511
    %7812 = vmatprep.subr.bf16.mxu0 %v7508
    %7813 = vmatpush2.bf16.msra.mxu0 %v7507
    %7814 = vmatprep.subr.bf16.mxu0 %v7504
    %7815 = vmatpush2.bf16.msra.mxu0 %v7503
    %7816 = vmatprep.mubr.bf16.mxu0 %v6870
    %7817 = vmatmul.mubr.bf16.gmra.mxu0 %v6869
    %v7818 = vpop.f32.mrf.mxu0
    %v7819 = vadd.f32 %v7778, %v7818
    %v7820 = vpop.f32.mrf.mxu0
    %v7821 = vadd.f32 %v7780, %v7820
    %v7822 = vpop.f32.mrf.mxu0
    %v7823 = vpop.f32.mrf.mxu0
    %7824 = vdwg.mxu0
    %v7825 = vmax.f32 %v7737, 0.0
    %v7826 = vmax.f32 %v7739, 0.0
    %v7827 = vmax.f32 %v7819, 0.0
    %v7828 = vmax.f32 %v7821, 0.0
    %v7957 = vlaneseq
    %v7958 = vshrl.u32 %v7957, 7
    %v7959 = vsub.s32 %v1642, %v7958
    %v7960 = vrot.slane %v853, %v7959
    %v7961 = vlaneseq
    %v7962 = vshrl.u32 %v7961, 7
    %v7963 = vsub.s32 %v1647, %v7962
    %v7964 = vrot.slane %v856, %v7963
    %v7965 = vsel %vm1652, %v7964, %v7960
    %v7966 = vlaneseq
    %v7967 = vshrl.u32 %v7966, 7
    %v7968 = vsub.s32 %v1654, %v7967
    %v7969 = vrot.slane %v859, %v7968
    %v7970 = vsel %vm1659, %v7969, %v7965
    %v7971 = vlaneseq
    %v7972 = vshrl.u32 %v7971, 7
    %v7973 = vsub.s32 %v1661, %v7972
    %v7974 = vrot.slane %v862, %v7973
    %v7975 = vsel %vm1666, %v7974, %v7970
    %v7976 = vlaneseq
    %v7977 = vshrl.u32 %v7976, 7
    %v7978 = vsub.s32 %v1668, %v7977
    %v7979 = vrot.slane %v865, %v7978
    %v7980 = vsel %vm1673, %v7979, %v7975
    %v7981 = vlaneseq
    %v7982 = vshrl.u32 %v7981, 7
    %v7983 = vsub.s32 %v1675, %v7982
    %v7984 = vrot.slane %v868, %v7983
    %v7985 = vsel %vm1680, %v7984, %v7980
    %v7986 = vlaneseq
    %v7987 = vshrl.u32 %v7986, 7
    %v7988 = vsub.s32 %v1682, %v7987
    %v7989 = vrot.slane %v871, %v7988
    %v7990 = vsel %vm1687, %v7989, %v7985
    %v7991 = vlaneseq
    %v7992 = vshrl.u32 %v7991, 7
    %v7993 = vsub.s32 %v1689, %v7992
    %v7994 = vrot.slane %v874, %v7993
    %v7995 = vsel %vm1694, %v7994, %v7990
    %v7996 = vlaneseq
    %v7997 = vshrl.u32 %v7996, 7
    %v7998 = vsub.s32 %v1696, %v7997
    %v7999 = vrot.slane %v877, %v7998
    %v8000 = vsel %vm1701, %v7999, %v7995
    %v8001 = vlaneseq
    %v8002 = vshrl.u32 %v8001, 7
    %v8003 = vsub.s32 %v1703, %v8002
    %v8004 = vrot.slane %v880, %v8003
    %v8005 = vsel %vm1708, %v8004, %v8000
    %v8006 = vlaneseq
    %v8007 = vshrl.u32 %v8006, 7
    %v8008 = vsub.s32 %v1710, %v8007
    %v8009 = vrot.slane %v883, %v8008
    %v8010 = vsel %vm1715, %v8009, %v8005
    %v8011 = vlaneseq
    %v8012 = vshrl.u32 %v8011, 7
    %v8013 = vsub.s32 %v1717, %v8012
    %v8014 = vrot.slane %v886, %v8013
    %v8015 = vsel %vm1722, %v8014, %v8010
    %v8016 = vlaneseq
    %v8017 = vshrl.u32 %v8016, 7
    %v8018 = vsub.s32 %v1724, %v8017
    %v8019 = vrot.slane %v889, %v8018
    %v8020 = vsel %vm1729, %v8019, %v8015
    %v8021 = vlaneseq
    %v8022 = vshrl.u32 %v8021, 7
    %v8023 = vsub.s32 %v1731, %v8022
    %v8024 = vrot.slane %v892, %v8023
    %v8025 = vsel %vm1736, %v8024, %v8020
    %v8026 = vlaneseq
    %v8027 = vshrl.u32 %v8026, 7
    %v8028 = vsub.s32 %v1738, %v8027
    %v8029 = vrot.slane %v895, %v8028
    %v8030 = vsel %vm1743, %v8029, %v8025
    %v8031 = vlaneseq
    %v8032 = vshrl.u32 %v8031, 7
    %v8033 = vsub.s32 %v1745, %v8032
    %v8034 = vrot.slane %v898, %v8033
    %v8035 = vsel %vm1750, %v8034, %v8030
    %v8036 = vlaneseq
    %v8037 = vshrl.u32 %v8036, 7
    %v8038 = vsub.s32 %v1642, %v8037
    %v8039 = vrot.slane %v901, %v8038
    %v8040 = vlaneseq
    %v8041 = vshrl.u32 %v8040, 7
    %v8042 = vsub.s32 %v1647, %v8041
    %v8043 = vrot.slane %v904, %v8042
    %v8044 = vsel %vm1652, %v8043, %v8039
    %v8045 = vlaneseq
    %v8046 = vshrl.u32 %v8045, 7
    %v8047 = vsub.s32 %v1654, %v8046
    %v8048 = vrot.slane %v907, %v8047
    %v8049 = vsel %vm1659, %v8048, %v8044
    %v8050 = vlaneseq
    %v8051 = vshrl.u32 %v8050, 7
    %v8052 = vsub.s32 %v1661, %v8051
    %v8053 = vrot.slane %v910, %v8052
    %v8054 = vsel %vm1666, %v8053, %v8049
    %v8055 = vlaneseq
    %v8056 = vshrl.u32 %v8055, 7
    %v8057 = vsub.s32 %v1668, %v8056
    %v8058 = vrot.slane %v913, %v8057
    %v8059 = vsel %vm1673, %v8058, %v8054
    %v8060 = vlaneseq
    %v8061 = vshrl.u32 %v8060, 7
    %v8062 = vsub.s32 %v1675, %v8061
    %v8063 = vrot.slane %v916, %v8062
    %v8064 = vsel %vm1680, %v8063, %v8059
    %v8065 = vlaneseq
    %v8066 = vshrl.u32 %v8065, 7
    %v8067 = vsub.s32 %v1682, %v8066
    %v8068 = vrot.slane %v919, %v8067
    %v8069 = vsel %vm1687, %v8068, %v8064
    %v8070 = vlaneseq
    %v8071 = vshrl.u32 %v8070, 7
    %v8072 = vsub.s32 %v1689, %v8071
    %v8073 = vrot.slane %v922, %v8072
    %v8074 = vsel %vm1694, %v8073, %v8069
    %v8075 = vlaneseq
    %v8076 = vshrl.u32 %v8075, 7
    %v8077 = vsub.s32 %v1696, %v8076
    %v8078 = vrot.slane %v925, %v8077
    %v8079 = vsel %vm1701, %v8078, %v8074
    %v8080 = vlaneseq
    %v8081 = vshrl.u32 %v8080, 7
    %v8082 = vsub.s32 %v1703, %v8081
    %v8083 = vrot.slane %v928, %v8082
    %v8084 = vsel %vm1708, %v8083, %v8079
    %v8085 = vlaneseq
    %v8086 = vshrl.u32 %v8085, 7
    %v8087 = vsub.s32 %v1710, %v8086
    %v8088 = vrot.slane %v931, %v8087
    %v8089 = vsel %vm1715, %v8088, %v8084
    %v8090 = vlaneseq
    %v8091 = vshrl.u32 %v8090, 7
    %v8092 = vsub.s32 %v1717, %v8091
    %v8093 = vrot.slane %v934, %v8092
    %v8094 = vsel %vm1722, %v8093, %v8089
    %v8095 = vlaneseq
    %v8096 = vshrl.u32 %v8095, 7
    %v8097 = vsub.s32 %v1724, %v8096
    %v8098 = vrot.slane %v937, %v8097
    %v8099 = vsel %vm1729, %v8098, %v8094
    %v8100 = vlaneseq
    %v8101 = vshrl.u32 %v8100, 7
    %v8102 = vsub.s32 %v1731, %v8101
    %v8103 = vrot.slane %v940, %v8102
    %v8104 = vsel %vm1736, %v8103, %v8099
    %v8105 = vlaneseq
    %v8106 = vshrl.u32 %v8105, 7
    %v8107 = vsub.s32 %v1738, %v8106
    %v8108 = vrot.slane %v943, %v8107
    %v8109 = vsel %vm1743, %v8108, %v8104
    %v8110 = vlaneseq
    %v8111 = vshrl.u32 %v8110, 7
    %v8112 = vsub.s32 %v1745, %v8111
    %v8113 = vrot.slane %v946, %v8112
    %v8114 = vsel %vm1750, %v8113, %v8109
    %v8115 = vlaneseq
    %v8116 = vshrl.u32 %v8115, 7
    %v8117 = vsub.s32 %v1642, %v8116
    %v8118 = vrot.slane %v949, %v8117
    %v8119 = vlaneseq
    %v8120 = vshrl.u32 %v8119, 7
    %v8121 = vsub.s32 %v1647, %v8120
    %v8122 = vrot.slane %v952, %v8121
    %v8123 = vsel %vm1652, %v8122, %v8118
    %v8124 = vlaneseq
    %v8125 = vshrl.u32 %v8124, 7
    %v8126 = vsub.s32 %v1654, %v8125
    %v8127 = vrot.slane %v955, %v8126
    %v8128 = vsel %vm1659, %v8127, %v8123
    %v8129 = vlaneseq
    %v8130 = vshrl.u32 %v8129, 7
    %v8131 = vsub.s32 %v1661, %v8130
    %v8132 = vrot.slane %v958, %v8131
    %v8133 = vsel %vm1666, %v8132, %v8128
    %v8134 = vlaneseq
    %v8135 = vshrl.u32 %v8134, 7
    %v8136 = vsub.s32 %v1668, %v8135
    %v8137 = vrot.slane %v961, %v8136
    %v8138 = vsel %vm1673, %v8137, %v8133
    %v8139 = vlaneseq
    %v8140 = vshrl.u32 %v8139, 7
    %v8141 = vsub.s32 %v1675, %v8140
    %v8142 = vrot.slane %v964, %v8141
    %v8143 = vsel %vm1680, %v8142, %v8138
    %v8144 = vlaneseq
    %v8145 = vshrl.u32 %v8144, 7
    %v8146 = vsub.s32 %v1682, %v8145
    %v8147 = vrot.slane %v967, %v8146
    %v8148 = vsel %vm1687, %v8147, %v8143
    %v8149 = vlaneseq
    %v8150 = vshrl.u32 %v8149, 7
    %v8151 = vsub.s32 %v1689, %v8150
    %v8152 = vrot.slane %v970, %v8151
    %v8153 = vsel %vm1694, %v8152, %v8148
    %v8154 = vlaneseq
    %v8155 = vshrl.u32 %v8154, 7
    %v8156 = vsub.s32 %v1696, %v8155
    %v8157 = vrot.slane %v973, %v8156
    %v8158 = vsel %vm1701, %v8157, %v8153
    %v8159 = vlaneseq
    %v8160 = vshrl.u32 %v8159, 7
    %v8161 = vsub.s32 %v1703, %v8160
    %v8162 = vrot.slane %v976, %v8161
    %v8163 = vsel %vm1708, %v8162, %v8158
    %v8164 = vlaneseq
    %v8165 = vshrl.u32 %v8164, 7
    %v8166 = vsub.s32 %v1710, %v8165
    %v8167 = vrot.slane %v979, %v8166
    %v8168 = vsel %vm1715, %v8167, %v8163
    %v8169 = vlaneseq
    %v8170 = vshrl.u32 %v8169, 7
    %v8171 = vsub.s32 %v1717, %v8170
    %v8172 = vrot.slane %v982, %v8171
    %v8173 = vsel %vm1722, %v8172, %v8168
    %v8174 = vlaneseq
    %v8175 = vshrl.u32 %v8174, 7
    %v8176 = vsub.s32 %v1724, %v8175
    %v8177 = vrot.slane %v985, %v8176
    %v8178 = vsel %vm1729, %v8177, %v8173
    %v8179 = vlaneseq
    %v8180 = vshrl.u32 %v8179, 7
    %v8181 = vsub.s32 %v1731, %v8180
    %v8182 = vrot.slane %v988, %v8181
    %v8183 = vsel %vm1736, %v8182, %v8178
    %v8184 = vlaneseq
    %v8185 = vshrl.u32 %v8184, 7
    %v8186 = vsub.s32 %v1738, %v8185
    %v8187 = vrot.slane %v991, %v8186
    %v8188 = vsel %vm1743, %v8187, %v8183
    %v8189 = vlaneseq
    %v8190 = vshrl.u32 %v8189, 7
    %v8191 = vsub.s32 %v1745, %v8190
    %v8192 = vrot.slane %v994, %v8191
    %v8193 = vsel %vm1750, %v8192, %v8188
    %v8194 = vlaneseq
    %v8195 = vshrl.u32 %v8194, 7
    %v8196 = vsub.s32 %v1642, %v8195
    %v8197 = vrot.slane %v997, %v8196
    %v8198 = vlaneseq
    %v8199 = vshrl.u32 %v8198, 7
    %v8200 = vsub.s32 %v1647, %v8199
    %v8201 = vrot.slane %v1000, %v8200
    %v8202 = vsel %vm1652, %v8201, %v8197
    %v8203 = vlaneseq
    %v8204 = vshrl.u32 %v8203, 7
    %v8205 = vsub.s32 %v1654, %v8204
    %v8206 = vrot.slane %v1003, %v8205
    %v8207 = vsel %vm1659, %v8206, %v8202
    %v8208 = vlaneseq
    %v8209 = vshrl.u32 %v8208, 7
    %v8210 = vsub.s32 %v1661, %v8209
    %v8211 = vrot.slane %v1006, %v8210
    %v8212 = vsel %vm1666, %v8211, %v8207
    %v8213 = vlaneseq
    %v8214 = vshrl.u32 %v8213, 7
    %v8215 = vsub.s32 %v1668, %v8214
    %v8216 = vrot.slane %v1009, %v8215
    %v8217 = vsel %vm1673, %v8216, %v8212
    %v8218 = vlaneseq
    %v8219 = vshrl.u32 %v8218, 7
    %v8220 = vsub.s32 %v1675, %v8219
    %v8221 = vrot.slane %v1012, %v8220
    %v8222 = vsel %vm1680, %v8221, %v8217
    %v8223 = vlaneseq
    %v8224 = vshrl.u32 %v8223, 7
    %v8225 = vsub.s32 %v1682, %v8224
    %v8226 = vrot.slane %v1015, %v8225
    %v8227 = vsel %vm1687, %v8226, %v8222
    %v8228 = vlaneseq
    %v8229 = vshrl.u32 %v8228, 7
    %v8230 = vsub.s32 %v1689, %v8229
    %v8231 = vrot.slane %v1018, %v8230
    %v8232 = vsel %vm1694, %v8231, %v8227
    %v8233 = vlaneseq
    %v8234 = vshrl.u32 %v8233, 7
    %v8235 = vsub.s32 %v1696, %v8234
    %v8236 = vrot.slane %v1021, %v8235
    %v8237 = vsel %vm1701, %v8236, %v8232
    %v8238 = vlaneseq
    %v8239 = vshrl.u32 %v8238, 7
    %v8240 = vsub.s32 %v1703, %v8239
    %v8241 = vrot.slane %v1024, %v8240
    %v8242 = vsel %vm1708, %v8241, %v8237
    %v8243 = vlaneseq
    %v8244 = vshrl.u32 %v8243, 7
    %v8245 = vsub.s32 %v1710, %v8244
    %v8246 = vrot.slane %v1027, %v8245
    %v8247 = vsel %vm1715, %v8246, %v8242
    %v8248 = vlaneseq
    %v8249 = vshrl.u32 %v8248, 7
    %v8250 = vsub.s32 %v1717, %v8249
    %v8251 = vrot.slane %v1030, %v8250
    %v8252 = vsel %vm1722, %v8251, %v8247
    %v8253 = vlaneseq
    %v8254 = vshrl.u32 %v8253, 7
    %v8255 = vsub.s32 %v1724, %v8254
    %v8256 = vrot.slane %v1033, %v8255
    %v8257 = vsel %vm1729, %v8256, %v8252
    %v8258 = vlaneseq
    %v8259 = vshrl.u32 %v8258, 7
    %v8260 = vsub.s32 %v1731, %v8259
    %v8261 = vrot.slane %v1036, %v8260
    %v8262 = vsel %vm1736, %v8261, %v8257
    %v8263 = vlaneseq
    %v8264 = vshrl.u32 %v8263, 7
    %v8265 = vsub.s32 %v1738, %v8264
    %v8266 = vrot.slane %v1039, %v8265
    %v8267 = vsel %vm1743, %v8266, %v8262
    %v8268 = vlaneseq
    %v8269 = vshrl.u32 %v8268, 7
    %v8270 = vsub.s32 %v1745, %v8269
    %v8271 = vrot.slane %v1042, %v8270
    %v8272 = vsel %vm1750, %v8271, %v8267
    %v8273 = vlaneseq
    %v8274 = vshrl.u32 %v8273, 7
    %v8275 = vsub.s32 %v1642, %v8274
    %v8276 = vrot.slane %v1045, %v8275
    %v8277 = vlaneseq
    %v8278 = vshrl.u32 %v8277, 7
    %v8279 = vsub.s32 %v1647, %v8278
    %v8280 = vrot.slane %v1048, %v8279
    %v8281 = vsel %vm1652, %v8280, %v8276
    %v8282 = vlaneseq
    %v8283 = vshrl.u32 %v8282, 7
    %v8284 = vsub.s32 %v1654, %v8283
    %v8285 = vrot.slane %v1051, %v8284
    %v8286 = vsel %vm1659, %v8285, %v8281
    %v8287 = vlaneseq
    %v8288 = vshrl.u32 %v8287, 7
    %v8289 = vsub.s32 %v1661, %v8288
    %v8290 = vrot.slane %v1054, %v8289
    %v8291 = vsel %vm1666, %v8290, %v8286
    %v8292 = vlaneseq
    %v8293 = vshrl.u32 %v8292, 7
    %v8294 = vsub.s32 %v1668, %v8293
    %v8295 = vrot.slane %v1057, %v8294
    %v8296 = vsel %vm1673, %v8295, %v8291
    %v8297 = vlaneseq
    %v8298 = vshrl.u32 %v8297, 7
    %v8299 = vsub.s32 %v1675, %v8298
    %v8300 = vrot.slane %v1060, %v8299
    %v8301 = vsel %vm1680, %v8300, %v8296
    %v8302 = vlaneseq
    %v8303 = vshrl.u32 %v8302, 7
    %v8304 = vsub.s32 %v1682, %v8303
    %v8305 = vrot.slane %v1063, %v8304
    %v8306 = vsel %vm1687, %v8305, %v8301
    %v8307 = vlaneseq
    %v8308 = vshrl.u32 %v8307, 7
    %v8309 = vsub.s32 %v1689, %v8308
    %v8310 = vrot.slane %v1066, %v8309
    %v8311 = vsel %vm1694, %v8310, %v8306
    %v8312 = vlaneseq
    %v8313 = vshrl.u32 %v8312, 7
    %v8314 = vsub.s32 %v1696, %v8313
    %v8315 = vrot.slane %v1069, %v8314
    %v8316 = vsel %vm1701, %v8315, %v8311
    %v8317 = vlaneseq
    %v8318 = vshrl.u32 %v8317, 7
    %v8319 = vsub.s32 %v1703, %v8318
    %v8320 = vrot.slane %v1072, %v8319
    %v8321 = vsel %vm1708, %v8320, %v8316
    %v8322 = vlaneseq
    %v8323 = vshrl.u32 %v8322, 7
    %v8324 = vsub.s32 %v1710, %v8323
    %v8325 = vrot.slane %v1075, %v8324
    %v8326 = vsel %vm1715, %v8325, %v8321
    %v8327 = vlaneseq
    %v8328 = vshrl.u32 %v8327, 7
    %v8329 = vsub.s32 %v1717, %v8328
    %v8330 = vrot.slane %v1078, %v8329
    %v8331 = vsel %vm1722, %v8330, %v8326
    %v8332 = vlaneseq
    %v8333 = vshrl.u32 %v8332, 7
    %v8334 = vsub.s32 %v1724, %v8333
    %v8335 = vrot.slane %v1081, %v8334
    %v8336 = vsel %vm1729, %v8335, %v8331
    %v8337 = vlaneseq
    %v8338 = vshrl.u32 %v8337, 7
    %v8339 = vsub.s32 %v1731, %v8338
    %v8340 = vrot.slane %v1084, %v8339
    %v8341 = vsel %vm1736, %v8340, %v8336
    %v8342 = vlaneseq
    %v8343 = vshrl.u32 %v8342, 7
    %v8344 = vsub.s32 %v1738, %v8343
    %v8345 = vrot.slane %v1087, %v8344
    %v8346 = vsel %vm1743, %v8345, %v8341
    %v8347 = vlaneseq
    %v8348 = vshrl.u32 %v8347, 7
    %v8349 = vsub.s32 %v1745, %v8348
    %v8350 = vrot.slane %v1090, %v8349
    %v8351 = vsel %vm1750, %v8350, %v8346
    %v8352 = vlaneseq
    %v8353 = vshrl.u32 %v8352, 7
    %v8354 = vsub.s32 %v1642, %v8353
    %v8355 = vrot.slane %v1093, %v8354
    %v8356 = vlaneseq
    %v8357 = vshrl.u32 %v8356, 7
    %v8358 = vsub.s32 %v1647, %v8357
    %v8359 = vrot.slane %v1096, %v8358
    %v8360 = vsel %vm1652, %v8359, %v8355
    %v8361 = vlaneseq
    %v8362 = vshrl.u32 %v8361, 7
    %v8363 = vsub.s32 %v1654, %v8362
    %v8364 = vrot.slane %v1099, %v8363
    %v8365 = vsel %vm1659, %v8364, %v8360
    %v8366 = vlaneseq
    %v8367 = vshrl.u32 %v8366, 7
    %v8368 = vsub.s32 %v1661, %v8367
    %v8369 = vrot.slane %v1102, %v8368
    %v8370 = vsel %vm1666, %v8369, %v8365
    %v8371 = vlaneseq
    %v8372 = vshrl.u32 %v8371, 7
    %v8373 = vsub.s32 %v1668, %v8372
    %v8374 = vrot.slane %v1105, %v8373
    %v8375 = vsel %vm1673, %v8374, %v8370
    %v8376 = vlaneseq
    %v8377 = vshrl.u32 %v8376, 7
    %v8378 = vsub.s32 %v1675, %v8377
    %v8379 = vrot.slane %v1108, %v8378
    %v8380 = vsel %vm1680, %v8379, %v8375
    %v8381 = vlaneseq
    %v8382 = vshrl.u32 %v8381, 7
    %v8383 = vsub.s32 %v1682, %v8382
    %v8384 = vrot.slane %v1111, %v8383
    %v8385 = vsel %vm1687, %v8384, %v8380
    %v8386 = vlaneseq
    %v8387 = vshrl.u32 %v8386, 7
    %v8388 = vsub.s32 %v1689, %v8387
    %v8389 = vrot.slane %v1114, %v8388
    %v8390 = vsel %vm1694, %v8389, %v8385
    %v8391 = vlaneseq
    %v8392 = vshrl.u32 %v8391, 7
    %v8393 = vsub.s32 %v1696, %v8392
    %v8394 = vrot.slane %v1117, %v8393
    %v8395 = vsel %vm1701, %v8394, %v8390
    %v8396 = vlaneseq
    %v8397 = vshrl.u32 %v8396, 7
    %v8398 = vsub.s32 %v1703, %v8397
    %v8399 = vrot.slane %v1120, %v8398
    %v8400 = vsel %vm1708, %v8399, %v8395
    %v8401 = vlaneseq
    %v8402 = vshrl.u32 %v8401, 7
    %v8403 = vsub.s32 %v1710, %v8402
    %v8404 = vrot.slane %v1123, %v8403
    %v8405 = vsel %vm1715, %v8404, %v8400
    %v8406 = vlaneseq
    %v8407 = vshrl.u32 %v8406, 7
    %v8408 = vsub.s32 %v1717, %v8407
    %v8409 = vrot.slane %v1126, %v8408
    %v8410 = vsel %vm1722, %v8409, %v8405
    %v8411 = vlaneseq
    %v8412 = vshrl.u32 %v8411, 7
    %v8413 = vsub.s32 %v1724, %v8412
    %v8414 = vrot.slane %v1129, %v8413
    %v8415 = vsel %vm1729, %v8414, %v8410
    %v8416 = vlaneseq
    %v8417 = vshrl.u32 %v8416, 7
    %v8418 = vsub.s32 %v1731, %v8417
    %v8419 = vrot.slane %v1132, %v8418
    %v8420 = vsel %vm1736, %v8419, %v8415
    %v8421 = vlaneseq
    %v8422 = vshrl.u32 %v8421, 7
    %v8423 = vsub.s32 %v1738, %v8422
    %v8424 = vrot.slane %v1135, %v8423
    %v8425 = vsel %vm1743, %v8424, %v8420
    %v8426 = vlaneseq
    %v8427 = vshrl.u32 %v8426, 7
    %v8428 = vsub.s32 %v1745, %v8427
    %v8429 = vrot.slane %v1138, %v8428
    %v8430 = vsel %vm1750, %v8429, %v8425
    %v8431 = vlaneseq
    %v8432 = vshrl.u32 %v8431, 7
    %v8433 = vsub.s32 %v1642, %v8432
    %v8434 = vrot.slane %v1141, %v8433
    %v8435 = vlaneseq
    %v8436 = vshrl.u32 %v8435, 7
    %v8437 = vsub.s32 %v1647, %v8436
    %v8438 = vrot.slane %v1144, %v8437
    %v8439 = vsel %vm1652, %v8438, %v8434
    %v8440 = vlaneseq
    %v8441 = vshrl.u32 %v8440, 7
    %v8442 = vsub.s32 %v1654, %v8441
    %v8443 = vrot.slane %v1147, %v8442
    %v8444 = vsel %vm1659, %v8443, %v8439
    %v8445 = vlaneseq
    %v8446 = vshrl.u32 %v8445, 7
    %v8447 = vsub.s32 %v1661, %v8446
    %v8448 = vrot.slane %v1150, %v8447
    %v8449 = vsel %vm1666, %v8448, %v8444
    %v8450 = vlaneseq
    %v8451 = vshrl.u32 %v8450, 7
    %v8452 = vsub.s32 %v1668, %v8451
    %v8453 = vrot.slane %v1153, %v8452
    %v8454 = vsel %vm1673, %v8453, %v8449
    %v8455 = vlaneseq
    %v8456 = vshrl.u32 %v8455, 7
    %v8457 = vsub.s32 %v1675, %v8456
    %v8458 = vrot.slane %v1156, %v8457
    %v8459 = vsel %vm1680, %v8458, %v8454
    %v8460 = vlaneseq
    %v8461 = vshrl.u32 %v8460, 7
    %v8462 = vsub.s32 %v1682, %v8461
    %v8463 = vrot.slane %v1159, %v8462
    %v8464 = vsel %vm1687, %v8463, %v8459
    %v8465 = vlaneseq
    %v8466 = vshrl.u32 %v8465, 7
    %v8467 = vsub.s32 %v1689, %v8466
    %v8468 = vrot.slane %v1162, %v8467
    %v8469 = vsel %vm1694, %v8468, %v8464
    %v8470 = vlaneseq
    %v8471 = vshrl.u32 %v8470, 7
    %v8472 = vsub.s32 %v1696, %v8471
    %v8473 = vrot.slane %v1165, %v8472
    %v8474 = vsel %vm1701, %v8473, %v8469
    %v8475 = vlaneseq
    %v8476 = vshrl.u32 %v8475, 7
    %v8477 = vsub.s32 %v1703, %v8476
    %v8478 = vrot.slane %v1168, %v8477
    %v8479 = vsel %vm1708, %v8478, %v8474
    %v8480 = vlaneseq
    %v8481 = vshrl.u32 %v8480, 7
    %v8482 = vsub.s32 %v1710, %v8481
    %v8483 = vrot.slane %v1171, %v8482
    %v8484 = vsel %vm1715, %v8483, %v8479
    %v8485 = vlaneseq
    %v8486 = vshrl.u32 %v8485, 7
    %v8487 = vsub.s32 %v1717, %v8486
    %v8488 = vrot.slane %v1174, %v8487
    %v8489 = vsel %vm1722, %v8488, %v8484
    %v8490 = vlaneseq
    %v8491 = vshrl.u32 %v8490, 7
    %v8492 = vsub.s32 %v1724, %v8491
    %v8493 = vrot.slane %v1177, %v8492
    %v8494 = vsel %vm1729, %v8493, %v8489
    %v8495 = vlaneseq
    %v8496 = vshrl.u32 %v8495, 7
    %v8497 = vsub.s32 %v1731, %v8496
    %v8498 = vrot.slane %v1180, %v8497
    %v8499 = vsel %vm1736, %v8498, %v8494
    %v8500 = vlaneseq
    %v8501 = vshrl.u32 %v8500, 7
    %v8502 = vsub.s32 %v1738, %v8501
    %v8503 = vrot.slane %v1183, %v8502
    %v8504 = vsel %vm1743, %v8503, %v8499
    %v8505 = vlaneseq
    %v8506 = vshrl.u32 %v8505, 7
    %v8507 = vsub.s32 %v1745, %v8506
    %v8508 = vrot.slane %v1186, %v8507
    %v8509 = vsel %vm1750, %v8508, %v8504
    %v8510 = vlaneseq
    %v8511 = vshrl.u32 %v8510, 7
    %v8512 = vsub.s32 %v1642, %v8511
    %v8513 = vrot.slane %v1189, %v8512
    %v8514 = vlaneseq
    %v8515 = vshrl.u32 %v8514, 7
    %v8516 = vsub.s32 %v1647, %v8515
    %v8517 = vrot.slane %v1192, %v8516
    %v8518 = vsel %vm1652, %v8517, %v8513
    %v8519 = vlaneseq
    %v8520 = vshrl.u32 %v8519, 7
    %v8521 = vsub.s32 %v1654, %v8520
    %v8522 = vrot.slane %v1195, %v8521
    %v8523 = vsel %vm1659, %v8522, %v8518
    %v8524 = vlaneseq
    %v8525 = vshrl.u32 %v8524, 7
    %v8526 = vsub.s32 %v1661, %v8525
    %v8527 = vrot.slane %v1198, %v8526
    %v8528 = vsel %vm1666, %v8527, %v8523
    %v8529 = vlaneseq
    %v8530 = vshrl.u32 %v8529, 7
    %v8531 = vsub.s32 %v1668, %v8530
    %v8532 = vrot.slane %v1201, %v8531
    %v8533 = vsel %vm1673, %v8532, %v8528
    %v8534 = vlaneseq
    %v8535 = vshrl.u32 %v8534, 7
    %v8536 = vsub.s32 %v1675, %v8535
    %v8537 = vrot.slane %v1204, %v8536
    %v8538 = vsel %vm1680, %v8537, %v8533
    %v8539 = vlaneseq
    %v8540 = vshrl.u32 %v8539, 7
    %v8541 = vsub.s32 %v1682, %v8540
    %v8542 = vrot.slane %v1207, %v8541
    %v8543 = vsel %vm1687, %v8542, %v8538
    %v8544 = vlaneseq
    %v8545 = vshrl.u32 %v8544, 7
    %v8546 = vsub.s32 %v1689, %v8545
    %v8547 = vrot.slane %v1210, %v8546
    %v8548 = vsel %vm1694, %v8547, %v8543
    %v8549 = vlaneseq
    %v8550 = vshrl.u32 %v8549, 7
    %v8551 = vsub.s32 %v1696, %v8550
    %v8552 = vrot.slane %v1213, %v8551
    %v8553 = vsel %vm1701, %v8552, %v8548
    %v8554 = vlaneseq
    %v8555 = vshrl.u32 %v8554, 7
    %v8556 = vsub.s32 %v1703, %v8555
    %v8557 = vrot.slane %v1216, %v8556
    %v8558 = vsel %vm1708, %v8557, %v8553
    %v8559 = vlaneseq
    %v8560 = vshrl.u32 %v8559, 7
    %v8561 = vsub.s32 %v1710, %v8560
    %v8562 = vrot.slane %v1219, %v8561
    %v8563 = vsel %vm1715, %v8562, %v8558
    %v8564 = vlaneseq
    %v8565 = vshrl.u32 %v8564, 7
    %v8566 = vsub.s32 %v1717, %v8565
    %v8567 = vrot.slane %v1222, %v8566
    %v8568 = vsel %vm1722, %v8567, %v8563
    %v8569 = vlaneseq
    %v8570 = vshrl.u32 %v8569, 7
    %v8571 = vsub.s32 %v1724, %v8570
    %v8572 = vrot.slane %v1225, %v8571
    %v8573 = vsel %vm1729, %v8572, %v8568
    %v8574 = vlaneseq
    %v8575 = vshrl.u32 %v8574, 7
    %v8576 = vsub.s32 %v1731, %v8575
    %v8577 = vrot.slane %v1228, %v8576
    %v8578 = vsel %vm1736, %v8577, %v8573
    %v8579 = vlaneseq
    %v8580 = vshrl.u32 %v8579, 7
    %v8581 = vsub.s32 %v1738, %v8580
    %v8582 = vrot.slane %v1231, %v8581
    %v8583 = vsel %vm1743, %v8582, %v8578
    %v8584 = vlaneseq
    %v8585 = vshrl.u32 %v8584, 7
    %v8586 = vsub.s32 %v1745, %v8585
    %v8587 = vrot.slane %v1234, %v8586
    %v8588 = vsel %vm1750, %v8587, %v8583
    %v8589 = vsel %vm2305, %v8351, %v8035
    %v8590 = vsel %vm2305, %v8430, %v8114
    %v8591 = vsel %vm2305, %v8509, %v8193
    %v8592 = vsel %vm2305, %v8588, %v8272
    %v8597 = vsub.f32 %v7825, %v8589
    %v8598 = vsub.f32 %v7826, %v8590
    %v8599 = vsub.f32 %v7827, %v8591
    %v8600 = vsub.f32 %v7828, %v8592
    %v8601 = vmul.f32 %v8597, %v8597
    %v8602 = vmul.f32 %v8598, %v8598
    %v8603 = vmul.f32 %v8599, %v8599
    %v8604 = vmul.f32 %v8600, %v8600
    %v8605 = vsel %vm4092, %v8601, 0.0
    %v8606 = vsel %vm4092, %v8602, 0.0
    %v8607 = vadd.f32 %v8605, %v8606
    %v8608 = vsel %vm4092, %v8603, 0.0
    %v8609 = vadd.f32 %v8607, %v8608
    %v8610 = vsel %vm4092, %v8604, 0.0
    %v8611 = vadd.f32 %v8609, %v8610
    %8612 = vadd.xlane.f32.xlu0 %v8611
    %v8613 = vpop.xlane.xlu0 %8612
    %v8614 = vrsqrt.pop %v8613
    %v8615 = vmul.f32 %v8613, %v8614
    %vm8616 = vcmp.eq.f32.partialorder %v8613, inf
    %v8617 = vsel %vm8616, %v8613, %v8615
    %vm8618 = vcmp.eq.f32.partialorder %v8613, 0.0
    %v8619 = vand.u32 %v8613, 2147483648
    %v8620 = vsel %vm8618, %v8619, %v8617
    %vm8621 = vcmask 1024
    %8622 = vst.msk [vmem:[%s10] sm:$0x3] %vm8621, %v8620
    %v8627 = vcombine.low %v7825, %v7826
    %v8628 = vcombine.low %v7827, %v7828
    %v8630 = vunpack.c.l.s4 1983009808
    %v8631 = vunpack.c.0.s8 %v8630
    %v8632 = vlaneseq
    %v8633 = vshrl.u32 %v8632, 7
    %v8634 = vsub.s32 %v8631, %v8633
    %v8635 = vrot.slane %v8627, %v8634
    %v8637 = vunpack.c.l.s4 1983009808
    %v8638 = vunpack.c.0.s8 %v8637
    %v8639 = vlaneseq
    %v8640 = vshrl.u32 %v8639, 7
    %v8641 = vsub.s32 %v8638, %v8640
    %v8642 = vrot.slane %v8628, %v8641
    %v8643 = vcombine.low %v8635, %v8642
    %8645 = vst [vmem:[#allocation8] sm:$0xff] %v8643
    // Predicated region
    $region50: #{attention_net_forward.1} parent=1 // pred_check
      _
    $region51: #{attention_net_forward.1} parent=1 // pred_check_branch
      %8647 = sbr.rel (0) target = $region53
    $region52: #{attention_net_forward.1} parent=1 // pred_region
      _
    $region53: #{attention_net_forward.1} parent=1 // pred_fallthru
      _
    // Predicated region
    $region54: #{attention_net_forward.1} parent=1 // pred_check
      _
    $region55: #{attention_net_forward.1} parent=1 // pred_check_branch
      %8649 = sbr.rel (0) target = $region57
    $region56: #{attention_net_forward.1} parent=1 // pred_region
      %s8651 = ssub.s32 32, 32
      %8652 = vsyncadd [#allocation4], %s8651
      %s8653 = sshll.u32 [#allocation7], 4
      %s8654 = int_to_ptr.vmem [resolvable:$true] %s8653
      %8659 = dma.vmem_to_hbm [thread:$0]  %s8654, 32, %s11, [#allocation4], 16, 16, 1
    $region57: #{attention_net_forward.1} parent=1 // pred_fallthru
      _
    // Predicated region
    $region58: #{attention_net_forward.1} parent=1 // pred_check
      _
    $region59: #{attention_net_forward.1} parent=1 // pred_check_branch
      %8661 = sbr.rel (0) target = $region61
    $region60: #{attention_net_forward.1} parent=1 // pred_region
      %s8663 = ssub.s32 128, 128
      %8664 = vsyncadd [#allocation9], %s8663
      %s8666 = sshll.u32 [#allocation8], 4
      %s8667 = int_to_ptr.vmem [resolvable:$true] %s8666
      %8669 = dma.vmem_to_hbm [thread:$0]  %s8667, 128, %s12, [#allocation9]
    $region61: #{attention_net_forward.1} parent=1 // pred_fallthru
      _
    // Predicated region
    $region62: #{attention_net_forward.1} parent=1 // pred_check
      _
    $region63: #{attention_net_forward.1} parent=1 // pred_check_branch
      %8671 = sbr.rel (0) target = $region65
    $region64: #{attention_net_forward.1} parent=1 // pred_region
      _
    $region65: #{attention_net_forward.1} parent=1 // pred_fallthru
      _
    // Predicated region
    $region66: #{attention_net_forward.1} parent=1 // pred_check
      _
    $region67: #{attention_net_forward.1} parent=1 // pred_check_branch
      %8673 = sbr.rel (0) target = $region69
    $region68: #{attention_net_forward.1} parent=1 // pred_region
      %8674 = dma.done [#allocation4], 32
    $region69: #{attention_net_forward.1} parent=1 // pred_fallthru
      _
    // Predicated region
    $region70: #{attention_net_forward.1} parent=1 // pred_check
      _
    $region71: #{attention_net_forward.1} parent=1 // pred_check_branch
      %8676 = sbr.rel (0) target = $region73
    $region72: #{attention_net_forward.1} parent=1 // pred_region
      %8677 = dma.done [#allocation9], 128
    $region73: #{attention_net_forward.1} parent=1 // pred_fallthru
      _
    %8678 = vsyncpa [#allocation3], 1
    %8679 = vsyncpa [#allocation6], 1
    %8680 = vsyncpa [#allocation4], 1
    %8681 = vsyncpa [#allocation9], 1

</llo_original>
